<compile_context>
chip_gen: v5e
topology: v5e:2x2
jax: 0.10.0
libtpu: 0.0.40
codegen_flags: <defaults>
</compile_context>

<pallas_src>
import math
import functools

import jax
import jax.numpy as jnp
from jax import lax
from jax.experimental import pallas as pl
from jax.experimental.pallas import tpu as pltpu

NEG_INF = -1e30  # finite "minus infinity": fully-masked entries can never produce NaN


# --------------------------------------------------------------------------
# In-kernel helpers
# --------------------------------------------------------------------------

def _layer_norm(z, g, b, eps=1e-5):
    mu = jnp.mean(z, axis=-1, keepdims=True)
    var = jnp.mean(jnp.square(z - mu), axis=-1, keepdims=True)
    return (z - mu) * lax.rsqrt(var + eps) * g + b


def _mm(x, w, b=None):
    # bf16 MXU operands, f32 accumulation.
    y = jnp.dot(x.astype(w.dtype), w, preferred_element_type=jnp.float32)
    if b is not None:
        y = y + b
    return y


def _mha(q_all, k_all, v_all, mask4, n_batch, lq, lk, nhead, scale):
    """q_all: (N*lq, E), k_all/v_all: (N*lk, E), mask4 broadcastable to (N, H, lq, lk).
    Returns (N*lq, E).  Heads+batch folded into one batch dim -> two 3-D batched dots."""
    E = q_all.shape[-1]
    dh = E // nhead

    def heads(x, l):
        # (N*l, E) -> (N*H, l, dh) ; leading-dim row slices + static lane slices, stacked.
        return jnp.stack([x[n * l:(n + 1) * l, h * dh:(h + 1) * dh]
                          for n in range(n_batch) for h in range(nhead)], axis=0)

    qh = heads(q_all, lq).astype(jnp.bfloat16)
    kh = heads(k_all, lk).astype(jnp.bfloat16)
    vh = heads(v_all, lk).astype(jnp.bfloat16)

    # scores: (N*H, lq, lk), contracting the last dims (no transpose), f32 accumulation
    s = lax.dot_general(qh, kh, (((2,), (2,)), ((0,), (0,))),
                        preferred_element_type=jnp.float32)
    s = s * scale
    s = s.reshape(n_batch, nhead, lq, lk) + mask4        # masks stay tiny, broadcast here
    s = s - jnp.max(s, axis=-1, keepdims=True)
    p = jnp.exp(s)
    p = p * pl.reciprocal(jnp.sum(p, axis=-1, keepdims=True), approx=True)
    p = p.reshape(n_batch * nhead, lq, lk).astype(jnp.bfloat16)

    # p @ v : (N*H, lq, dh)
    o = lax.dot_general(p, vh, (((2,), (1,)), ((0,), (0,))),
                        preferred_element_type=jnp.float32)

    # merge heads in registers: lane-concat per batch, row-concat across batches -> (N*lq, E)
    rows = [jnp.concatenate([o[n * nhead + h] for h in range(nhead)], axis=-1)
            for n in range(n_batch)]
    return jnp.concatenate(rows, axis=0)


# --------------------------------------------------------------------------
# Pallas kernels (one fused kernel per transformer layer)
# --------------------------------------------------------------------------

def _encoder_layer_kernel(x_ref, am_ref, kpm_ref, pos_ref,
                          wqkv_ref, bqkv_ref, wo_ref, bo_ref,
                          n1g_ref, n1b_ref,
                          w1_ref, b1_ref, w2_ref, b2_ref,
                          n2g_ref, n2b_ref,
                          fng_ref, fnb_ref,
                          o_ref, *, nhead, emb_scale, fuse_embed, final_norm):
    N, S, E = x_ref.shape
    scale = 1.0 / math.sqrt(E // nhead)

    x3 = x_ref[...]
    if fuse_embed:                                        # token_emb*sqrt(E) + pos (fused)
        x3 = x3 * emb_scale + pos_ref[...]
    x = x3.reshape(N * S, E)                              # flatten batch into matmul M dim

    qkv = _mm(x, wqkv_ref[...], bqkv_ref[...])            # (N*S, 3E), one fused projection
    mask4 = jnp.maximum(am_ref[...][None, None, :, :]
                        + kpm_ref[...][:, None, None, :], NEG_INF)
    attn = _mha(qkv[:, :E], qkv[:, E:2 * E], qkv[:, 2 * E:],
                mask4, N, S, S, nhead, scale)
    sa = _mm(attn, wo_ref[...], bo_ref[...])
    h1 = _layer_norm(x + sa, n1g_ref[...], n1b_ref[...])

    ff = jnp.maximum(_mm(h1, w1_ref[...], b1_ref[...]), 0.0)
    ff = _mm(ff, w2_ref[...], b2_ref[...])
    h2 = _layer_norm(h1 + ff, n2g_ref[...], n2b_ref[...])
    if final_norm:                                        # encoder-final LayerNorm (fused)
        h2 = _layer_norm(h2, fng_ref[...], fnb_ref[...])
    o_ref[...] = h2.reshape(N, S, E)


def _decoder_layer_kernel(x_ref, mem_ref, am_ref, tkpm_ref, mkpm_ref, pos_ref,
                          s_wqkv_ref, s_bqkv_ref, s_wo_ref, s_bo_ref,
                          n1g_ref, n1b_ref,
                          c_wq_ref, c_bq_ref, c_wkv_ref, c_bkv_ref, c_wo_ref, c_bo_ref,
                          n2g_ref, n2b_ref,
                          w1_ref, b1_ref, w2_ref, b2_ref,
                          n3g_ref, n3b_ref,
                          o_ref, *, nhead, emb_scale, fuse_embed):
    N, T, E = x_ref.shape
    S = mem_ref.shape[1]
    scale = 1.0 / math.sqrt(E // nhead)

    x3 = x_ref[...]
    if fuse_embed:
        x3 = x3 * emb_scale + pos_ref[...]
    x = x3.reshape(N * T, E)
    mem = mem_ref[...].reshape(N * S, E)

    # --- masked self-attention ---
    qkv = _mm(x, s_wqkv_ref[...], s_bqkv_ref[...])        # (N*T, 3E)
    mask4 = jnp.maximum(am_ref[...][None, None, :, :]
                        + tkpm_ref[...][:, None, None, :], NEG_INF)
    sa = _mha(qkv[:, :E], qkv[:, E:2 * E], qkv[:, 2 * E:],
              mask4, N, T, T, nhead, scale)
    sa = _mm(sa, s_wo_ref[...], s_bo_ref[...])
    h1 = _layer_norm(x + sa, n1g_ref[...], n1b_ref[...])

    # --- cross-attention (memory_mask is None; key-padding mask only) ---
    qc = _mm(h1, c_wq_ref[...], c_bq_ref[...])            # (N*T, E)
    kv = _mm(mem, c_wkv_ref[...], c_bkv_ref[...])         # (N*S, 2E)
    cmask4 = mkpm_ref[...][:, None, None, :]              # (N, 1, 1, S)
    ca = _mha(qc, kv[:, :E], kv[:, E:], cmask4, N, T, S, nhead, scale)
    ca = _mm(ca, c_wo_ref[...], c_bo_ref[...])
    h2 = _layer_norm(h1 + ca, n2g_ref[...], n2b_ref[...])

    # --- FFN ---
    ff = jnp.maximum(_mm(h2, w1_ref[...], b1_ref[...]), 0.0)
    ff = _mm(ff, w2_ref[...], b2_ref[...])
    o_ref[...] = _layer_norm(h2 + ff, n3g_ref[...], n3b_ref[...]).reshape(N, T, E)


def _final_kernel(x_ref, g_ref, b_ref, wg_ref, bg_ref, o_ref):
    # decoder final LayerNorm fused with a (vocab-tiled) generator matmul
    y = _layer_norm(x_ref[...], g_ref[...], b_ref[...])
    o_ref[...] = _mm(y, wg_ref[...], bg_ref[...])


# --------------------------------------------------------------------------
# Pallas wrappers
# --------------------------------------------------------------------------

_VMEM_LIMIT = 32 * 1024 * 1024  # explicit scoped-VMEM budget (safe on v5e/v6e/v7x)


def _full_specs(operands):
    specs = []
    for a in operands:
        nd = a.ndim
        specs.append(pl.BlockSpec(a.shape, lambda i, _nd=nd: (0,) * _nd))
    return specs


def _run_fused(kernel, out_shape, operands):
    nd_out = len(out_shape.shape)
    return pl.pallas_call(
        kernel,
        out_shape=out_shape,
        grid=(1,),
        in_specs=_full_specs(operands),
        out_specs=pl.BlockSpec(out_shape.shape, lambda i, _nd=nd_out: (0,) * _nd),
        compiler_params=pltpu.CompilerParams(
            dimension_semantics=("arbitrary",),
            vmem_limit_bytes=_VMEM_LIMIT),
    )(*operands)


def encoder_layer_call(x, attn_mask, kpm, pos, fng, fnb, p, *, nhead, emb_scale,
                       fuse_embed, final_norm):
    N, S, E = x.shape
    sa = p["self_attn"]
    kern = functools.partial(_encoder_layer_kernel, nhead=nhead, emb_scale=emb_scale,
                             fuse_embed=fuse_embed, final_norm=final_norm)
    operands = (x, attn_mask, kpm, pos,
                sa["wqkv"], sa["bqkv"], sa["wo"], sa["bo"],
                p["n1g"], p["n1b"],
                p["lin1_w"], p["lin1_b"], p["lin2_w"], p["lin2_b"],
                p["n2g"], p["n2b"],
                fng, fnb)
    return _run_fused(kern, jax.ShapeDtypeStruct((N, S, E), jnp.float32), operands)


def decoder_layer_call(y, memory, tgt_am, tgt_kpm, mem_kpm, pos, p, *, nhead, emb_scale,
                       fuse_embed):
    N, T, E = y.shape
    sa, ca = p["self_attn"], p["cross_attn"]
    kern = functools.partial(_decoder_layer_kernel, nhead=nhead, emb_scale=emb_scale,
                             fuse_embed=fuse_embed)
    operands = (y, memory, tgt_am, tgt_kpm, mem_kpm, pos,
                sa["wqkv"], sa["bqkv"], sa["wo"], sa["bo"],
                p["n1g"], p["n1b"],
                ca["wq"], ca["bq"], ca["wkv"], ca["bkv"], ca["wo"], ca["bo"],
                p["n2g"], p["n2b"],
                p["lin1_w"], p["lin1_b"], p["lin2_w"], p["lin2_b"],
                p["n3g"], p["n3b"])
    return _run_fused(kern, jax.ShapeDtypeStruct((N, T, E), jnp.float32), operands)


def pallas_final(y, g, b, wg, bg, tile_v=256):
    """Fused decoder-final LayerNorm + generator, grid over 128-padded vocab tiles."""
    M, E = y.shape
    Vp = wg.shape[1]
    tv = min(tile_v, Vp)
    while Vp % tv:
        tv //= 2
    return pl.pallas_call(
        _final_kernel,
        out_shape=jax.ShapeDtypeStruct((M, Vp), jnp.float32),
        grid=(Vp // tv,),
        in_specs=[pl.BlockSpec((M, E), lambda j: (0, 0)),
                  pl.BlockSpec((1, E), lambda j: (0, 0)),
                  pl.BlockSpec((1, E), lambda j: (0, 0)),
                  pl.BlockSpec((E, tv), lambda j: (0, j)),
                  pl.BlockSpec((1, tv), lambda j: (0, j))],
        out_specs=pl.BlockSpec((M, tv), lambda j: (0, j)),
        compiler_params=pltpu.CompilerParams(
            dimension_semantics=("parallel",),
            vmem_limit_bytes=_VMEM_LIMIT),
    )(y, g, b, wg, bg)


# --------------------------------------------------------------------------
# Forward pass (gathers / layout transposes / mask prep stay in plain JAX)
# --------------------------------------------------------------------------

def make_pos_embedding(emb_size, maxlen=512):
    den = jnp.exp(-jnp.arange(0, emb_size, 2, dtype=jnp.float32)
                  * (math.log(10000.0) / emb_size))
    pos = jnp.arange(0, maxlen, dtype=jnp.float32).reshape(maxlen, 1)
    pe = jnp.zeros((maxlen, emb_size), jnp.float32)
    pe = pe.at[:, 0::2].set(jnp.sin(pos * den))
    pe = pe.at[:, 1::2].set(jnp.cos(pos * den))
    return pe


def _masks_to_additive(src_mask, tgt_mask, src_pm, tgt_pm, mem_pm):
    src_am = jnp.maximum(src_mask.astype(jnp.float32), NEG_INF)
    tgt_am = jnp.maximum(tgt_mask.astype(jnp.float32), NEG_INF)
    to_add = lambda m: jnp.where(m, NEG_INF, 0.0).astype(jnp.float32)
    return src_am, tgt_am, to_add(src_pm), to_add(tgt_pm), to_add(mem_pm)


def seq2seq_forward(params, src, trg, src_mask, tgt_mask,
                    src_padding_mask, tgt_padding_mask, memory_key_padding_mask,
                    *, nhead, tgt_vocab):
    E = params["src_emb"].shape[1]
    S, N = src.shape
    T = trg.shape[0]
    emb_scale = math.sqrt(E)

    # token-embedding gather (nn.Embedding lookup) + batch-major layout — plain-JAX glue
    src_tok = jnp.take(params["src_emb"], src, axis=0).transpose(1, 0, 2)   # (N, S, E)
    tgt_tok = jnp.take(params["tgt_emb"], trg, axis=0).transpose(1, 0, 2)   # (N, T, E)

    src_am, tgt_am, src_kpm, tgt_kpm, mem_kpm = _masks_to_additive(
        src_mask, tgt_mask, src_padding_mask, tgt_padding_mask, memory_key_padding_mask)

    pos_s = params["pos"][:S]
    pos_t = params["pos"][:T]

    # --- encoder stack (embed fused into layer 0, final norm fused into last layer) ---
    x = src_tok
    n_enc = len(params["enc_layers"])
    for li, lp in enumerate(params["enc_layers"]):
        x = encoder_layer_call(x, src_am, src_kpm, pos_s,
                               params["enc_norm_g"], params["enc_norm_b"], lp,
                               nhead=nhead, emb_scale=emb_scale,
                               fuse_embed=(li == 0), final_norm=(li == n_enc - 1))
    memory = x

    # --- decoder stack ---
    y = tgt_tok
    for li, lp in enumerate(params["dec_layers"]):
        y = decoder_layer_call(y, memory, tgt_am, tgt_kpm, mem_kpm, pos_t, lp,
                               nhead=nhead, emb_scale=emb_scale, fuse_embed=(li == 0))

    # --- final decoder norm + generator (fused, 128-lane-padded vocab) ---
    logits = pallas_final(y.reshape(N * T, E),
                          params["dec_norm_g"], params["dec_norm_b"],
                          params["gen_w"], params["gen_b"])
    logits = logits[:, :tgt_vocab].reshape(N, T, tgt_vocab).transpose(1, 0, 2)  # (T, N, V)
    return logits


# --------------------------------------------------------------------------
# Pure-JAX f32 reference (same parameterization) for a tolerance check
# --------------------------------------------------------------------------

def _ref_ln(z, g, b, eps=1e-5):
    mu = z.mean(-1, keepdims=True)
    var = ((z - mu) ** 2).mean(-1, keepdims=True)
    return (z - mu) / jnp.sqrt(var + eps) * g + b


def _ref_forward(params, src, trg, src_mask, tgt_mask, src_pm, tgt_pm, mem_pm,
                 *, nhead, tgt_vocab):
    E = params["src_emb"].shape[1]
    S, N = src.shape
    T = trg.shape[0]
    f = lambda a: jnp.asarray(a, jnp.float32)

    src_am, tgt_am, src_kpm, tgt_kpm, mem_kpm = _masks_to_additive(
        src_mask, tgt_mask, src_pm, tgt_pm, mem_pm)

    x = jnp.take(params["src_emb"], src, axis=0).transpose(1, 0, 2) * math.sqrt(E) \
        + params["pos"][:S]
    y = jnp.take(params["tgt_emb"], trg, axis=0).transpose(1, 0, 2) * math.sqrt(E) \
        + params["pos"][:T]
    x = x.reshape(N * S, E)
    y = y.reshape(N * T, E)

    def mha(q_all, k_all, v_all, am, kpm, lq, lk):
        dh = E // nhead
        mask = kpm[:, None, None, :]
        if am is not None:
            mask = mask + am[None, None]
        mask = jnp.maximum(mask, NEG_INF)
        sp = lambda z, l: z.reshape(N, l, nhead, dh).transpose(0, 2, 1, 3)
        qh, kh, vh = sp(q_all, lq), sp(k_all, lk), sp(v_all, lk)
        s = jnp.einsum('nhqd,nhkd->nhqk', qh, kh) / math.sqrt(dh) + mask
        p = jax.nn.softmax(s, axis=-1)
        o = jnp.einsum('nhqk,nhkd->nhqd', p, vh)
        return o.transpose(0, 2, 1, 3).reshape(N * lq, E)

    for lp in params["enc_layers"]:
        sp_ = lp["self_attn"]
        qkv = x @ f(sp_["wqkv"]) + sp_["bqkv"]
        sa = mha(qkv[:, :E], qkv[:, E:2 * E], qkv[:, 2 * E:], src_am, src_kpm, S, S)
        sa = sa @ f(sp_["wo"]) + sp_["bo"]
        h1 = _ref_ln(x + sa, lp["n1g"], lp["n1b"])
        ff = jnp.maximum(h1 @ f(lp["lin1_w"]) + lp["lin1_b"], 0.0) @ f(lp["lin2_w"]) + lp["lin2_b"]
        x = _ref_ln(h1 + ff, lp["n2g"], lp["n2b"])
    mem = _ref_ln(x, params["enc_norm_g"], params["enc_norm_b"])

    for lp in params["dec_layers"]:
        sp_, cp_ = lp["self_attn"], lp["cross_attn"]
        qkv = y @ f(sp_["wqkv"]) + sp_["bqkv"]
        sa = mha(qkv[:, :E], qkv[:, E:2 * E], qkv[:, 2 * E:], tgt_am, tgt_kpm, T, T)
        sa = sa @ f(sp_["wo"]) + sp_["bo"]
        h1 = _ref_ln(y + sa, lp["n1g"], lp["n1b"])
        qc = h1 @ f(cp_["wq"]) + cp_["bq"]
        kv = mem @ f(cp_["wkv"]) + cp_["bkv"]
        ca = mha(qc, kv[:, :E], kv[:, E:], None, mem_kpm, T, S)
        ca = ca @ f(cp_["wo"]) + cp_["bo"]
        h2 = _ref_ln(h1 + ca, lp["n2g"], lp["n2b"])
        ff = jnp.maximum(h2 @ f(lp["lin1_w"]) + lp["lin1_b"], 0.0) @ f(lp["lin2_w"]) + lp["lin2_b"]
        y = _ref_ln(h2 + ff, lp["n3g"], lp["n3b"])

    yf = _ref_ln(y, params["dec_norm_g"], params["dec_norm_b"])
    logits = yf @ f(params["gen_w"]) + params["gen_b"]
    return logits[:, :tgt_vocab].reshape(N, T, tgt_vocab).transpose(1, 0, 2)


# --------------------------------------------------------------------------
# Deterministic parameter init (pre-transposed, pre-fused, bf16 MXU weights)
# --------------------------------------------------------------------------

def init_params(key, num_enc, num_dec, emb_size, nhead, src_vocab, tgt_vocab, dim_ff):
    keys = iter(jax.random.split(key, 512))

    def w(shape, s=0.05):
        return jax.random.normal(next(keys), shape, jnp.float32) * s

    def row(v):
        return v.reshape(1, -1).astype(jnp.float32)

    def mxu(m):                      # matmul-weight storage dtype (MXU operand)
        return m.astype(jnp.bfloat16)

    def self_attn_p():
        in_w, in_b = w((3 * emb_size, emb_size)), w((3 * emb_size,))
        out_w, out_b = w((emb_size, emb_size)), w((emb_size,))
        return dict(wqkv=mxu(in_w.T), bqkv=row(in_b), wo=mxu(out_w.T), bo=row(out_b))

    def cross_attn_p():
        in_w, in_b = w((3 * emb_size, emb_size)), w((3 * emb_size,))
        out_w, out_b = w((emb_size, emb_size)), w((emb_size,))
        wq, wk, wv = jnp.split(in_w, 3, axis=0)
        bq, bk, bv = jnp.split(in_b, 3)
        return dict(wq=mxu(wq.T), bq=row(bq),
                    wkv=mxu(jnp.concatenate([wk, wv], axis=0).T),
                    bkv=row(jnp.concatenate([bk, bv])),
                    wo=mxu(out_w.T), bo=row(out_b))

    def common_layer(extra_norm):
        d = dict(lin1_w=mxu(w((dim_ff, emb_size)).T), lin1_b=row(w((dim_ff,))),
                 lin2_w=mxu(w((emb_size, dim_ff)).T), lin2_b=row(w((emb_size,))),
                 n1g=row(jnp.ones(emb_size)), n1b=row(jnp.zeros(emb_size)),
                 n2g=row(jnp.ones(emb_size)), n2b=row(jnp.zeros(emb_size)))
        if extra_norm:
            d.update(n3g=row(jnp.ones(emb_size)), n3b=row(jnp.zeros(emb_size)))
        return d

    def enc_layer_p():
        d = dict(self_attn=self_attn_p()); d.update(common_layer(False)); return d

    def dec_layer_p():
        d = dict(self_attn=self_attn_p(), cross_attn=cross_attn_p())
        d.update(common_layer(True)); return d

    vocab_pad = ((tgt_vocab + 127) // 128) * 128
    gw, gb = w((tgt_vocab, emb_size)), w((tgt_vocab,))
    gen_w = jnp.zeros((emb_size, vocab_pad), jnp.float32).at[:, :tgt_vocab].set(gw.T)
    gen_b = jnp.zeros((1, vocab_pad), jnp.float32).at[:, :tgt_vocab].set(gb)

    return dict(
        src_emb=w((src_vocab, emb_size), 0.1),
        tgt_emb=w((tgt_vocab, emb_size), 0.1),
        pos=make_pos_embedding(emb_size),
        enc_layers=[enc_layer_p() for _ in range(num_enc)],
        dec_layers=[dec_layer_p() for _ in range(num_dec)],
        enc_norm_g=row(jnp.ones(emb_size)), enc_norm_b=row(jnp.zeros(emb_size)),
        dec_norm_g=row(jnp.ones(emb_size)), dec_norm_b=row(jnp.zeros(emb_size)),
        gen_w=gen_w.astype(jnp.bfloat16), gen_b=gen_b,
    )


# --------------------------------------------------------------------------
# Main
# --------------------------------------------------------------------------

if __name__ == "__main__":
    NUM_ENC, NUM_DEC = 2, 2
    EMB, NHEAD, FF = 32, 4, 64
    SRC_VOCAB, TGT_VOCAB = 50, 60
    S, T, N = 8, 6, 2                 # src len, tgt len, batch

    root = jax.random.PRNGKey(0)
    k_param, k_src, k_tgt = jax.random.split(root, 3)

    params = init_params(k_param, NUM_ENC, NUM_DEC, EMB, NHEAD,
                         SRC_VOCAB, TGT_VOCAB, FF)

    src = jax.random.randint(k_src, (S, N), 0, SRC_VOCAB, dtype=jnp.int32)
    trg = jax.random.randint(k_tgt, (T, N), 0, TGT_VOCAB, dtype=jnp.int32)

    # masks, built like the standard PyTorch create_mask helper
    src_mask = jnp.zeros((S, S), jnp.float32)
    causal = jnp.triu(jnp.ones((T, T), jnp.bool_), k=1)
    tgt_mask = jnp.where(causal, -jnp.inf, 0.0).astype(jnp.float32)

    src_padding_mask = jnp.zeros((N, S), jnp.bool_).at[1, S - 1].set(True)
    tgt_padding_mask = jnp.zeros((N, T), jnp.bool_).at[0, T - 1].set(True)
    memory_key_padding_mask = src_padding_mask

    fwd = jax.jit(functools.partial(seq2seq_forward, nhead=NHEAD, tgt_vocab=TGT_VOCAB))
    out = jax.block_until_ready(fwd(params, src, trg, src_mask, tgt_mask,
                                    src_padding_mask, tgt_padding_mask,
                                    memory_key_padding_mask))

    ref_fwd = jax.jit(functools.partial(_ref_forward, nhead=NHEAD, tgt_vocab=TGT_VOCAB))
    ref = jax.block_until_ready(ref_fwd(params, src, trg, src_mask, tgt_mask,
                                        src_padding_mask, tgt_padding_mask,
                                        memory_key_padding_mask))

    assert out.shape == (T, N, TGT_VOCAB)
    assert bool(jnp.all(jnp.isfinite(out)))
    assert bool(jnp.allclose(out, ref, atol=1e-1, rtol=1e-1))
    print("KERNEL_OK")
</pallas_src>

<mosaic_0001>
module attributes {stable_mosaic.version = 11 : i64} {
  func.func @_encoder_layer_kernel(%arg0: i32, %arg1: memref<2x8x32xf32, #tpu.memory_space<vmem>>, %arg2: memref<8x8xf32, #tpu.memory_space<vmem>>, %arg3: memref<2x8xf32, #tpu.memory_space<vmem>>, %arg4: memref<8x32xf32, #tpu.memory_space<vmem>>, %arg5: memref<32x96xbf16, #tpu.memory_space<vmem>>, %arg6: memref<1x96xf32, #tpu.memory_space<vmem>>, %arg7: memref<32x32xbf16, #tpu.memory_space<vmem>>, %arg8: memref<1x32xf32, #tpu.memory_space<vmem>>, %arg9: memref<1x32xf32, #tpu.memory_space<vmem>>, %arg10: memref<1x32xf32, #tpu.memory_space<vmem>>, %arg11: memref<32x64xbf16, #tpu.memory_space<vmem>>, %arg12: memref<1x64xf32, #tpu.memory_space<vmem>>, %arg13: memref<64x32xbf16, #tpu.memory_space<vmem>>, %arg14: memref<1x32xf32, #tpu.memory_space<vmem>>, %arg15: memref<1x32xf32, #tpu.memory_space<vmem>>, %arg16: memref<1x32xf32, #tpu.memory_space<vmem>>, %arg17: memref<1x32xf32, #tpu.memory_space<vmem>>, %arg18: memref<1x32xf32, #tpu.memory_space<vmem>>, %arg19: memref<2x8x32xf32, #tpu.memory_space<vmem>>) attributes {dimension_semantics = [#tpu.dimension_semantics<arbitrary>], iteration_bounds = array<i64: 1>, scalar_prefetch = 0 : i64, scratch_operands = 0 : i64, tpu.core_type = #tpu.core_type<tc>, window_params = [{pipeline_mode = #tpu.pipeline_mode<synchronous>, transform_indices = @transform_0, window_bounds = array<i64: 2, 8, 32>}, {pipeline_mode = #tpu.pipeline_mode<synchronous>, transform_indices = @transform_1, window_bounds = array<i64: 8, 8>}, {pipeline_mode = #tpu.pipeline_mode<synchronous>, transform_indices = @transform_2, window_bounds = array<i64: 2, 8>}, {pipeline_mode = #tpu.pipeline_mode<synchronous>, transform_indices = @transform_3, window_bounds = array<i64: 8, 32>}, {pipeline_mode = #tpu.pipeline_mode<synchronous>, transform_indices = @transform_4, window_bounds = array<i64: 32, 96>}, {pipeline_mode = #tpu.pipeline_mode<synchronous>, transform_indices = @transform_5, window_bounds = array<i64: 1, 96>}, {pipeline_mode = #tpu.pipeline_mode<synchronous>, transform_indices = @transform_6, window_bounds = array<i64: 32, 32>}, {pipeline_mode = #tpu.pipeline_mode<synchronous>, transform_indices = @transform_7, window_bounds = array<i64: 1, 32>}, {pipeline_mode = #tpu.pipeline_mode<synchronous>, transform_indices = @transform_8, window_bounds = array<i64: 1, 32>}, {pipeline_mode = #tpu.pipeline_mode<synchronous>, transform_indices = @transform_9, window_bounds = array<i64: 1, 32>}, {pipeline_mode = #tpu.pipeline_mode<synchronous>, transform_indices = @transform_10, window_bounds = array<i64: 32, 64>}, {pipeline_mode = #tpu.pipeline_mode<synchronous>, transform_indices = @transform_11, window_bounds = array<i64: 1, 64>}, {pipeline_mode = #tpu.pipeline_mode<synchronous>, transform_indices = @transform_12, window_bounds = array<i64: 64, 32>}, {pipeline_mode = #tpu.pipeline_mode<synchronous>, transform_indices = @transform_13, window_bounds = array<i64: 1, 32>}, {pipeline_mode = #tpu.pipeline_mode<synchronous>, transform_indices = @transform_14, window_bounds = array<i64: 1, 32>}, {pipeline_mode = #tpu.pipeline_mode<synchronous>, transform_indices = @transform_15, window_bounds = array<i64: 1, 32>}, {pipeline_mode = #tpu.pipeline_mode<synchronous>, transform_indices = @transform_16, window_bounds = array<i64: 1, 32>}, {pipeline_mode = #tpu.pipeline_mode<synchronous>, transform_indices = @transform_17, window_bounds = array<i64: 1, 32>}, {pipeline_mode = #tpu.pipeline_mode<synchronous>, transform_indices = @transform_18, window_bounds = array<i64: 2, 8, 32>}]} {
    %c0 = arith.constant 0 : index
    %c0_0 = arith.constant 0 : index
    %c0_1 = arith.constant 0 : index
    %0 = vector.load %arg1[%c0, %c0_0, %c0_1] : memref<2x8x32xf32, #tpu.memory_space<vmem>>, vector<2x8x32xf32>
    %1 = vector.shape_cast %0 : vector<2x8x32xf32> to vector<16x32xf32>
    %c0_2 = arith.constant 0 : index
    %c0_3 = arith.constant 0 : index
    %2 = vector.load %arg5[%c0_2, %c0_3] : memref<32x96xbf16, #tpu.memory_space<vmem>>, vector<32x96xbf16>
    %c0_4 = arith.constant 0 : index
    %c0_5 = arith.constant 0 : index
    %3 = vector.load %arg6[%c0_4, %c0_5] : memref<1x96xf32, #tpu.memory_space<vmem>>, vector<1x96xf32>
    %4 = arith.truncf %1 : vector<16x32xf32> to vector<16x32xbf16>
    %cst = arith.constant dense<0.000000e+00> : vector<16x96xf32>
    %5 = tpu.matmul %4, %2, %cst {dimension_numbers = #tpu.dot_dimension_numbers<[1], [0], [0], [1], [0, 0, 1, 1], [], []>} : vector<16x32xbf16>, vector<32x96xbf16>, vector<16x96xf32> -> vector<16x96xf32>
    %6 = vector.broadcast %3 : vector<1x96xf32> to vector<16x96xf32>
    %7 = arith.addf %5, %6 : vector<16x96xf32>
    %c0_6 = arith.constant 0 : index
    %c0_7 = arith.constant 0 : index
    %8 = vector.load %arg2[%c0_6, %c0_7] : memref<8x8xf32, #tpu.memory_space<vmem>>, vector<8x8xf32>
    %9 = vector.shape_cast %8 : vector<8x8xf32> to vector<1x1x8x8xf32>
    %c0_8 = arith.constant 0 : index
    %c0_9 = arith.constant 0 : index
    %10 = vector.load %arg3[%c0_8, %c0_9] : memref<2x8xf32, #tpu.memory_space<vmem>>, vector<2x8xf32>
    %11 = vector.shape_cast %10 : vector<2x8xf32> to vector<2x1x1x8xf32>
    %12 = vector.broadcast %9 : vector<1x1x8x8xf32> to vector<2x1x8x8xf32>
    %13 = vector.broadcast %11 : vector<2x1x1x8xf32> to vector<2x1x8x8xf32>
    %14 = arith.addf %12, %13 : vector<2x1x8x8xf32>
    %cst_10 = arith.constant -1.000000e+30 : f32
    %15 = vector.broadcast %cst_10 : f32 to vector<2x1x8x8xf32>
    %16 = arith.maximumf %14, %15 : vector<2x1x8x8xf32>
    %17 = vector.extract_strided_slice %7 {offsets = [0, 0], sizes = [16, 32], strides = [1, 1]} : vector<16x96xf32> to vector<16x32xf32>
    %18 = vector.extract_strided_slice %7 {offsets = [0, 32], sizes = [16, 32], strides = [1, 1]} : vector<16x96xf32> to vector<16x32xf32>
    %19 = vector.extract_strided_slice %7 {offsets = [0, 64], sizes = [16, 32], strides = [1, 1]} : vector<16x96xf32> to vector<16x32xf32>
    %20 = vector.extract_strided_slice %17 {offsets = [0, 0], sizes = [8, 8], strides = [1, 1]} : vector<16x32xf32> to vector<8x8xf32>
    %21 = vector.extract_strided_slice %17 {offsets = [0, 8], sizes = [8, 8], strides = [1, 1]} : vector<16x32xf32> to vector<8x8xf32>
    %22 = vector.extract_strided_slice %17 {offsets = [0, 16], sizes = [8, 8], strides = [1, 1]} : vector<16x32xf32> to vector<8x8xf32>
    %23 = vector.extract_strided_slice %17 {offsets = [0, 24], sizes = [8, 8], strides = [1, 1]} : vector<16x32xf32> to vector<8x8xf32>
    %24 = vector.extract_strided_slice %17 {offsets = [8, 0], sizes = [8, 8], strides = [1, 1]} : vector<16x32xf32> to vector<8x8xf32>
    %25 = vector.extract_strided_slice %17 {offsets = [8, 8], sizes = [8, 8], strides = [1, 1]} : vector<16x32xf32> to vector<8x8xf32>
    %26 = vector.extract_strided_slice %17 {offsets = [8, 16], sizes = [8, 8], strides = [1, 1]} : vector<16x32xf32> to vector<8x8xf32>
    %27 = vector.extract_strided_slice %17 {offsets = [8, 24], sizes = [8, 8], strides = [1, 1]} : vector<16x32xf32> to vector<8x8xf32>
    %28 = vector.shape_cast %20 : vector<8x8xf32> to vector<1x8x8xf32>
    %29 = vector.shape_cast %21 : vector<8x8xf32> to vector<1x8x8xf32>
    %30 = vector.shape_cast %22 : vector<8x8xf32> to vector<1x8x8xf32>
    %31 = vector.shape_cast %23 : vector<8x8xf32> to vector<1x8x8xf32>
    %32 = vector.shape_cast %24 : vector<8x8xf32> to vector<1x8x8xf32>
    %33 = vector.shape_cast %25 : vector<8x8xf32> to vector<1x8x8xf32>
    %34 = vector.shape_cast %26 : vector<8x8xf32> to vector<1x8x8xf32>
    %35 = vector.shape_cast %27 : vector<8x8xf32> to vector<1x8x8xf32>
    %36 = tpu.concatenate %28, %29, %30, %31, %32, %33, %34, %35 in 0 : vector<1x8x8xf32>, vector<1x8x8xf32>, vector<1x8x8xf32>, vector<1x8x8xf32>, vector<1x8x8xf32>, vector<1x8x8xf32>, vector<1x8x8xf32>, vector<1x8x8xf32> -> vector<8x8x8xf32>
    %37 = arith.truncf %36 : vector<8x8x8xf32> to vector<8x8x8xbf16>
    %38 = vector.extract_strided_slice %18 {offsets = [0, 0], sizes = [8, 8], strides = [1, 1]} : vector<16x32xf32> to vector<8x8xf32>
    %39 = vector.extract_strided_slice %18 {offsets = [0, 8], sizes = [8, 8], strides = [1, 1]} : vector<16x32xf32> to vector<8x8xf32>
    %40 = vector.extract_strided_slice %18 {offsets = [0, 16], sizes = [8, 8], strides = [1, 1]} : vector<16x32xf32> to vector<8x8xf32>
    %41 = vector.extract_strided_slice %18 {offsets = [0, 24], sizes = [8, 8], strides = [1, 1]} : vector<16x32xf32> to vector<8x8xf32>
    %42 = vector.extract_strided_slice %18 {offsets = [8, 0], sizes = [8, 8], strides = [1, 1]} : vector<16x32xf32> to vector<8x8xf32>
    %43 = vector.extract_strided_slice %18 {offsets = [8, 8], sizes = [8, 8], strides = [1, 1]} : vector<16x32xf32> to vector<8x8xf32>
    %44 = vector.extract_strided_slice %18 {offsets = [8, 16], sizes = [8, 8], strides = [1, 1]} : vector<16x32xf32> to vector<8x8xf32>
    %45 = vector.extract_strided_slice %18 {offsets = [8, 24], sizes = [8, 8], strides = [1, 1]} : vector<16x32xf32> to vector<8x8xf32>
    %46 = vector.shape_cast %38 : vector<8x8xf32> to vector<1x8x8xf32>
    %47 = vector.shape_cast %39 : vector<8x8xf32> to vector<1x8x8xf32>
    %48 = vector.shape_cast %40 : vector<8x8xf32> to vector<1x8x8xf32>
    %49 = vector.shape_cast %41 : vector<8x8xf32> to vector<1x8x8xf32>
    %50 = vector.shape_cast %42 : vector<8x8xf32> to vector<1x8x8xf32>
    %51 = vector.shape_cast %43 : vector<8x8xf32> to vector<1x8x8xf32>
    %52 = vector.shape_cast %44 : vector<8x8xf32> to vector<1x8x8xf32>
    %53 = vector.shape_cast %45 : vector<8x8xf32> to vector<1x8x8xf32>
    %54 = tpu.concatenate %46, %47, %48, %49, %50, %51, %52, %53 in 0 : vector<1x8x8xf32>, vector<1x8x8xf32>, vector<1x8x8xf32>, vector<1x8x8xf32>, vector<1x8x8xf32>, vector<1x8x8xf32>, vector<1x8x8xf32>, vector<1x8x8xf32> -> vector<8x8x8xf32>
    %55 = arith.truncf %54 : vector<8x8x8xf32> to vector<8x8x8xbf16>
    %56 = vector.extract_strided_slice %19 {offsets = [0, 0], sizes = [8, 8], strides = [1, 1]} : vector<16x32xf32> to vector<8x8xf32>
    %57 = vector.extract_strided_slice %19 {offsets = [0, 8], sizes = [8, 8], strides = [1, 1]} : vector<16x32xf32> to vector<8x8xf32>
    %58 = vector.extract_strided_slice %19 {offsets = [0, 16], sizes = [8, 8], strides = [1, 1]} : vector<16x32xf32> to vector<8x8xf32>
    %59 = vector.extract_strided_slice %19 {offsets = [0, 24], sizes = [8, 8], strides = [1, 1]} : vector<16x32xf32> to vector<8x8xf32>
    %60 = vector.extract_strided_slice %19 {offsets = [8, 0], sizes = [8, 8], strides = [1, 1]} : vector<16x32xf32> to vector<8x8xf32>
    %61 = vector.extract_strided_slice %19 {offsets = [8, 8], sizes = [8, 8], strides = [1, 1]} : vector<16x32xf32> to vector<8x8xf32>
    %62 = vector.extract_strided_slice %19 {offsets = [8, 16], sizes = [8, 8], strides = [1, 1]} : vector<16x32xf32> to vector<8x8xf32>
    %63 = vector.extract_strided_slice %19 {offsets = [8, 24], sizes = [8, 8], strides = [1, 1]} : vector<16x32xf32> to vector<8x8xf32>
    %64 = vector.shape_cast %56 : vector<8x8xf32> to vector<1x8x8xf32>
    %65 = vector.shape_cast %57 : vector<8x8xf32> to vector<1x8x8xf32>
    %66 = vector.shape_cast %58 : vector<8x8xf32> to vector<1x8x8xf32>
    %67 = vector.shape_cast %59 : vector<8x8xf32> to vector<1x8x8xf32>
    %68 = vector.shape_cast %60 : vector<8x8xf32> to vector<1x8x8xf32>
    %69 = vector.shape_cast %61 : vector<8x8xf32> to vector<1x8x8xf32>
    %70 = vector.shape_cast %62 : vector<8x8xf32> to vector<1x8x8xf32>
    %71 = vector.shape_cast %63 : vector<8x8xf32> to vector<1x8x8xf32>
    %72 = tpu.concatenate %64, %65, %66, %67, %68, %69, %70, %71 in 0 : vector<1x8x8xf32>, vector<1x8x8xf32>, vector<1x8x8xf32>, vector<1x8x8xf32>, vector<1x8x8xf32>, vector<1x8x8xf32>, vector<1x8x8xf32>, vector<1x8x8xf32> -> vector<8x8x8xf32>
    %73 = arith.truncf %72 : vector<8x8x8xf32> to vector<8x8x8xbf16>
    %cst_11 = arith.constant dense<0.000000e+00> : vector<8x8x8xf32>
    %74 = tpu.matmul %37, %55, %cst_11 {dimension_numbers = #tpu.dot_dimension_numbers<[2], [2], [1], [1], [0, 0, 0, 1, 1, 1], [0], [0]>} : vector<8x8x8xbf16>, vector<8x8x8xbf16>, vector<8x8x8xf32> -> vector<8x8x8xf32>
    %cst_12 = arith.constant 0.353553385 : f32
    %75 = vector.broadcast %cst_12 : f32 to vector<8x8x8xf32>
    %76 = arith.mulf %74, %75 : vector<8x8x8xf32>
    %77 = vector.shape_cast %76 : vector<8x8x8xf32> to vector<2x4x8x8xf32>
    %78 = vector.broadcast %16 : vector<2x1x8x8xf32> to vector<2x4x8x8xf32>
    %79 = arith.addf %77, %78 : vector<2x4x8x8xf32>
    %cst_13 = arith.constant dense<0xFF800000> : vector<2x4x8xf32>
    %80 = vector.multi_reduction <maximumf>, %79, %cst_13 [3] : vector<2x4x8x8xf32> to vector<2x4x8xf32>
    %81 = vector.shape_cast %80 : vector<2x4x8xf32> to vector<2x4x8x1xf32>
    %82 = vector.broadcast %81 : vector<2x4x8x1xf32> to vector<2x4x8x8xf32>
    %83 = arith.subf %79, %82 : vector<2x4x8x8xf32>
    %84 = math.exp %83 : vector<2x4x8x8xf32>
    %cst_14 = arith.constant dense<0.000000e+00> : vector<2x4x8xf32>
    %85 = vector.multi_reduction <add>, %84, %cst_14 [3] : vector<2x4x8x8xf32> to vector<2x4x8xf32>
    %86 = vector.shape_cast %85 : vector<2x4x8xf32> to vector<2x4x8x1xf32>
    %87 = tpu.reciprocal %86 {approx = true} : vector<2x4x8x1xf32> -> vector<2x4x8x1xf32>
    %88 = vector.broadcast %87 : vector<2x4x8x1xf32> to vector<2x4x8x8xf32>
    %89 = arith.mulf %84, %88 : vector<2x4x8x8xf32>
    %90 = vector.shape_cast %89 : vector<2x4x8x8xf32> to vector<8x8x8xf32>
    %91 = arith.truncf %90 : vector<8x8x8xf32> to vector<8x8x8xbf16>
    %cst_15 = arith.constant dense<0.000000e+00> : vector<8x8x8xf32>
    %92 = tpu.matmul %91, %73, %cst_15 {dimension_numbers = #tpu.dot_dimension_numbers<[2], [1], [1], [2], [0, 0, 0, 1, 1, 2], [0], [0]>} : vector<8x8x8xbf16>, vector<8x8x8xbf16>, vector<8x8x8xf32> -> vector<8x8x8xf32>
    %93 = vector.extract_strided_slice %92 {offsets = [0, 0, 0], sizes = [1, 8, 8], strides = [1, 1, 1]} : vector<8x8x8xf32> to vector<1x8x8xf32>
    %94 = vector.shape_cast %93 : vector<1x8x8xf32> to vector<8x8xf32>
    %95 = vector.extract_strided_slice %92 {offsets = [1, 0, 0], sizes = [1, 8, 8], strides = [1, 1, 1]} : vector<8x8x8xf32> to vector<1x8x8xf32>
    %96 = vector.shape_cast %95 : vector<1x8x8xf32> to vector<8x8xf32>
    %97 = vector.extract_strided_slice %92 {offsets = [2, 0, 0], sizes = [1, 8, 8], strides = [1, 1, 1]} : vector<8x8x8xf32> to vector<1x8x8xf32>
    %98 = vector.shape_cast %97 : vector<1x8x8xf32> to vector<8x8xf32>
    %99 = vector.extract_strided_slice %92 {offsets = [3, 0, 0], sizes = [1, 8, 8], strides = [1, 1, 1]} : vector<8x8x8xf32> to vector<1x8x8xf32>
    %100 = vector.shape_cast %99 : vector<1x8x8xf32> to vector<8x8xf32>
    %101 = tpu.concatenate %94, %96, %98, %100 in 1 : vector<8x8xf32>, vector<8x8xf32>, vector<8x8xf32>, vector<8x8xf32> -> vector<8x32xf32>
    %102 = vector.extract_strided_slice %92 {offsets = [4, 0, 0], sizes = [1, 8, 8], strides = [1, 1, 1]} : vector<8x8x8xf32> to vector<1x8x8xf32>
    %103 = vector.shape_cast %102 : vector<1x8x8xf32> to vector<8x8xf32>
    %104 = vector.extract_strided_slice %92 {offsets = [5, 0, 0], sizes = [1, 8, 8], strides = [1, 1, 1]} : vector<8x8x8xf32> to vector<1x8x8xf32>
    %105 = vector.shape_cast %104 : vector<1x8x8xf32> to vector<8x8xf32>
    %106 = vector.extract_strided_slice %92 {offsets = [6, 0, 0], sizes = [1, 8, 8], strides = [1, 1, 1]} : vector<8x8x8xf32> to vector<1x8x8xf32>
    %107 = vector.shape_cast %106 : vector<1x8x8xf32> to vector<8x8xf32>
    %108 = vector.extract_strided_slice %92 {offsets = [7, 0, 0], sizes = [1, 8, 8], strides = [1, 1, 1]} : vector<8x8x8xf32> to vector<1x8x8xf32>
    %109 = vector.shape_cast %108 : vector<1x8x8xf32> to vector<8x8xf32>
    %110 = tpu.concatenate %103, %105, %107, %109 in 1 : vector<8x8xf32>, vector<8x8xf32>, vector<8x8xf32>, vector<8x8xf32> -> vector<8x32xf32>
    %111 = tpu.concatenate %101, %110 in 0 : vector<8x32xf32>, vector<8x32xf32> -> vector<16x32xf32>
    %c0_16 = arith.constant 0 : index
    %c0_17 = arith.constant 0 : index
    %112 = vector.load %arg7[%c0_16, %c0_17] : memref<32x32xbf16, #tpu.memory_space<vmem>>, vector<32x32xbf16>
    %c0_18 = arith.constant 0 : index
    %c0_19 = arith.constant 0 : index
    %113 = vector.load %arg8[%c0_18, %c0_19] : memref<1x32xf32, #tpu.memory_space<vmem>>, vector<1x32xf32>
    %114 = arith.truncf %111 : vector<16x32xf32> to vector<16x32xbf16>
    %cst_20 = arith.constant dense<0.000000e+00> : vector<16x32xf32>
    %115 = tpu.matmul %114, %112, %cst_20 {dimension_numbers = #tpu.dot_dimension_numbers<[1], [0], [0], [1], [0, 0, 1, 1], [], []>} : vector<16x32xbf16>, vector<32x32xbf16>, vector<16x32xf32> -> vector<16x32xf32>
    %116 = vector.broadcast %113 : vector<1x32xf32> to vector<16x32xf32>
    %117 = arith.addf %115, %116 : vector<16x32xf32>
    %118 = arith.addf %1, %117 : vector<16x32xf32>
    %c0_21 = arith.constant 0 : index
    %c0_22 = arith.constant 0 : index
    %119 = vector.load %arg9[%c0_21, %c0_22] : memref<1x32xf32, #tpu.memory_space<vmem>>, vector<1x32xf32>
    %c0_23 = arith.constant 0 : index
    %c0_24 = arith.constant 0 : index
    %120 = vector.load %arg10[%c0_23, %c0_24] : memref<1x32xf32, #tpu.memory_space<vmem>>, vector<1x32xf32>
    %cst_25 = arith.constant dense<0.000000e+00> : vector<16xf32>
    %121 = vector.multi_reduction <add>, %118, %cst_25 [1] : vector<16x32xf32> to vector<16xf32>
    %122 = vector.shape_cast %121 : vector<16xf32> to vector<16x1xf32>
    %cst_26 = arith.constant 3.200000e+01 : f32
    %123 = vector.broadcast %cst_26 : f32 to vector<16x1xf32>
    %124 = arith.divf %122, %123 : vector<16x1xf32>
    %125 = vector.broadcast %124 : vector<16x1xf32> to vector<16x32xf32>
    %126 = arith.subf %118, %125 : vector<16x32xf32>
    %127 = arith.mulf %126, %126 : vector<16x32xf32>
    %cst_27 = arith.constant dense<0.000000e+00> : vector<16xf32>
    %128 = vector.multi_reduction <add>, %127, %cst_27 [1] : vector<16x32xf32> to vector<16xf32>
    %129 = vector.shape_cast %128 : vector<16xf32> to vector<16x1xf32>
    %cst_28 = arith.constant 3.200000e+01 : f32
    %130 = vector.broadcast %cst_28 : f32 to vector<16x1xf32>
    %131 = arith.divf %129, %130 : vector<16x1xf32>
    %132 = vector.broadcast %124 : vector<16x1xf32> to vector<16x32xf32>
    %133 = arith.subf %118, %132 : vector<16x32xf32>
    %cst_29 = arith.constant 9.99999974E-6 : f32
    %134 = vector.broadcast %cst_29 : f32 to vector<16x1xf32>
    %135 = arith.addf %131, %134 : vector<16x1xf32>
    %136 = math.rsqrt %135 : vector<16x1xf32>
    %137 = vector.broadcast %136 : vector<16x1xf32> to vector<16x32xf32>
    %138 = arith.mulf %133, %137 : vector<16x32xf32>
    %139 = vector.broadcast %119 : vector<1x32xf32> to vector<16x32xf32>
    %140 = arith.mulf %138, %139 : vector<16x32xf32>
    %141 = vector.broadcast %120 : vector<1x32xf32> to vector<16x32xf32>
    %142 = arith.addf %140, %141 : vector<16x32xf32>
    %c0_30 = arith.constant 0 : index
    %c0_31 = arith.constant 0 : index
    %143 = vector.load %arg11[%c0_30, %c0_31] : memref<32x64xbf16, #tpu.memory_space<vmem>>, vector<32x64xbf16>
    %c0_32 = arith.constant 0 : index
    %c0_33 = arith.constant 0 : index
    %144 = vector.load %arg12[%c0_32, %c0_33] : memref<1x64xf32, #tpu.memory_space<vmem>>, vector<1x64xf32>
    %145 = arith.truncf %142 : vector<16x32xf32> to vector<16x32xbf16>
    %cst_34 = arith.constant dense<0.000000e+00> : vector<16x64xf32>
    %146 = tpu.matmul %145, %143, %cst_34 {dimension_numbers = #tpu.dot_dimension_numbers<[1], [0], [0], [1], [0, 0, 1, 1], [], []>} : vector<16x32xbf16>, vector<32x64xbf16>, vector<16x64xf32> -> vector<16x64xf32>
    %147 = vector.broadcast %144 : vector<1x64xf32> to vector<16x64xf32>
    %148 = arith.addf %146, %147 : vector<16x64xf32>
    %cst_35 = arith.constant 0.000000e+00 : f32
    %149 = vector.broadcast %cst_35 : f32 to vector<16x64xf32>
    %150 = arith.maximumf %148, %149 : vector<16x64xf32>
    %c0_36 = arith.constant 0 : index
    %c0_37 = arith.constant 0 : index
    %151 = vector.load %arg13[%c0_36, %c0_37] : memref<64x32xbf16, #tpu.memory_space<vmem>>, vector<64x32xbf16>
    %c0_38 = arith.constant 0 : index
    %c0_39 = arith.constant 0 : index
    %152 = vector.load %arg14[%c0_38, %c0_39] : memref<1x32xf32, #tpu.memory_space<vmem>>, vector<1x32xf32>
    %153 = arith.truncf %150 : vector<16x64xf32> to vector<16x64xbf16>
    %cst_40 = arith.constant dense<0.000000e+00> : vector<16x32xf32>
    %154 = tpu.matmul %153, %151, %cst_40 {dimension_numbers = #tpu.dot_dimension_numbers<[1], [0], [0], [1], [0, 0, 1, 1], [], []>} : vector<16x64xbf16>, vector<64x32xbf16>, vector<16x32xf32> -> vector<16x32xf32>
    %155 = vector.broadcast %152 : vector<1x32xf32> to vector<16x32xf32>
    %156 = arith.addf %154, %155 : vector<16x32xf32>
    %157 = arith.addf %142, %156 : vector<16x32xf32>
    %c0_41 = arith.constant 0 : index
    %c0_42 = arith.constant 0 : index
    %158 = vector.load %arg15[%c0_41, %c0_42] : memref<1x32xf32, #tpu.memory_space<vmem>>, vector<1x32xf32>
    %c0_43 = arith.constant 0 : index
    %c0_44 = arith.constant 0 : index
    %159 = vector.load %arg16[%c0_43, %c0_44] : memref<1x32xf32, #tpu.memory_space<vmem>>, vector<1x32xf32>
    %cst_45 = arith.constant dense<0.000000e+00> : vector<16xf32>
    %160 = vector.multi_reduction <add>, %157, %cst_45 [1] : vector<16x32xf32> to vector<16xf32>
    %161 = vector.shape_cast %160 : vector<16xf32> to vector<16x1xf32>
    %cst_46 = arith.constant 3.200000e+01 : f32
    %162 = vector.broadcast %cst_46 : f32 to vector<16x1xf32>
    %163 = arith.divf %161, %162 : vector<16x1xf32>
    %164 = vector.broadcast %163 : vector<16x1xf32> to vector<16x32xf32>
    %165 = arith.subf %157, %164 : vector<16x32xf32>
    %166 = arith.mulf %165, %165 : vector<16x32xf32>
    %cst_47 = arith.constant dense<0.000000e+00> : vector<16xf32>
    %167 = vector.multi_reduction <add>, %166, %cst_47 [1] : vector<16x32xf32> to vector<16xf32>
    %168 = vector.shape_cast %167 : vector<16xf32> to vector<16x1xf32>
    %cst_48 = arith.constant 3.200000e+01 : f32
    %169 = vector.broadcast %cst_48 : f32 to vector<16x1xf32>
    %170 = arith.divf %168, %169 : vector<16x1xf32>
    %171 = vector.broadcast %163 : vector<16x1xf32> to vector<16x32xf32>
    %172 = arith.subf %157, %171 : vector<16x32xf32>
    %cst_49 = arith.constant 9.99999974E-6 : f32
    %173 = vector.broadcast %cst_49 : f32 to vector<16x1xf32>
    %174 = arith.addf %170, %173 : vector<16x1xf32>
    %175 = math.rsqrt %174 : vector<16x1xf32>
    %176 = vector.broadcast %175 : vector<16x1xf32> to vector<16x32xf32>
    %177 = arith.mulf %172, %176 : vector<16x32xf32>
    %178 = vector.broadcast %158 : vector<1x32xf32> to vector<16x32xf32>
    %179 = arith.mulf %177, %178 : vector<16x32xf32>
    %180 = vector.broadcast %159 : vector<1x32xf32> to vector<16x32xf32>
    %181 = arith.addf %179, %180 : vector<16x32xf32>
    %c0_50 = arith.constant 0 : index
    %c0_51 = arith.constant 0 : index
    %182 = vector.load %arg17[%c0_50, %c0_51] : memref<1x32xf32, #tpu.memory_space<vmem>>, vector<1x32xf32>
    %c0_52 = arith.constant 0 : index
    %c0_53 = arith.constant 0 : index
    %183 = vector.load %arg18[%c0_52, %c0_53] : memref<1x32xf32, #tpu.memory_space<vmem>>, vector<1x32xf32>
    %cst_54 = arith.constant dense<0.000000e+00> : vector<16xf32>
    %184 = vector.multi_reduction <add>, %181, %cst_54 [1] : vector<16x32xf32> to vector<16xf32>
    %185 = vector.shape_cast %184 : vector<16xf32> to vector<16x1xf32>
    %cst_55 = arith.constant 3.200000e+01 : f32
    %186 = vector.broadcast %cst_55 : f32 to vector<16x1xf32>
    %187 = arith.divf %185, %186 : vector<16x1xf32>
    %188 = vector.broadcast %187 : vector<16x1xf32> to vector<16x32xf32>
    %189 = arith.subf %181, %188 : vector<16x32xf32>
    %190 = arith.mulf %189, %189 : vector<16x32xf32>
    %cst_56 = arith.constant dense<0.000000e+00> : vector<16xf32>
    %191 = vector.multi_reduction <add>, %190, %cst_56 [1] : vector<16x32xf32> to vector<16xf32>
    %192 = vector.shape_cast %191 : vector<16xf32> to vector<16x1xf32>
    %cst_57 = arith.constant 3.200000e+01 : f32
    %193 = vector.broadcast %cst_57 : f32 to vector<16x1xf32>
    %194 = arith.divf %192, %193 : vector<16x1xf32>
    %195 = vector.broadcast %187 : vector<16x1xf32> to vector<16x32xf32>
    %196 = arith.subf %181, %195 : vector<16x32xf32>
    %cst_58 = arith.constant 9.99999974E-6 : f32
    %197 = vector.broadcast %cst_58 : f32 to vector<16x1xf32>
    %198 = arith.addf %194, %197 : vector<16x1xf32>
    %199 = math.rsqrt %198 : vector<16x1xf32>
    %200 = vector.broadcast %199 : vector<16x1xf32> to vector<16x32xf32>
    %201 = arith.mulf %196, %200 : vector<16x32xf32>
    %202 = vector.broadcast %182 : vector<1x32xf32> to vector<16x32xf32>
    %203 = arith.mulf %201, %202 : vector<16x32xf32>
    %204 = vector.broadcast %183 : vector<1x32xf32> to vector<16x32xf32>
    %205 = arith.addf %203, %204 : vector<16x32xf32>
    %206 = vector.shape_cast %205 : vector<16x32xf32> to vector<2x8x32xf32>
    %c0_59 = arith.constant 0 : index
    %c0_60 = arith.constant 0 : index
    %c0_61 = arith.constant 0 : index
    %207 = vector.load %arg19[%c0_59, %c0_60, %c0_61] : memref<2x8x32xf32, #tpu.memory_space<vmem>>, vector<2x8x32xf32>
    tpu.vector_store %arg19[%c0_59, %c0_60, %c0_61], %206 {strides = array<i32>} : memref<2x8x32xf32, #tpu.memory_space<vmem>>, vector<2x8x32xf32>,
    return
  }
  func.func @transform_0(%arg0: i32) -> (i32, i32, i32) {
    %c0_i32 = arith.constant 0 : i32
    %c0_i32_0 = arith.constant 0 : i32
    %c0_i32_1 = arith.constant 0 : i32
    %c0_i32_2 = arith.constant 0 : i32
    return %c0_i32, %c0_i32_0, %c0_i32_1 : i32, i32, i32
  }
  func.func @transform_1(%arg0: i32) -> (i32, i32) {
    %c0_i32 = arith.constant 0 : i32
    %c0_i32_0 = arith.constant 0 : i32
    %c0_i32_1 = arith.constant 0 : i32
    return %c0_i32, %c0_i32_0 : i32, i32
  }
  func.func @transform_2(%arg0: i32) -> (i32, i32) {
    %c0_i32 = arith.constant 0 : i32
    %c0_i32_0 = arith.constant 0 : i32
    %c0_i32_1 = arith.constant 0 : i32
    return %c0_i32, %c0_i32_0 : i32, i32
  }
  func.func @transform_3(%arg0: i32) -> (i32, i32) {
    %c0_i32 = arith.constant 0 : i32
    %c0_i32_0 = arith.constant 0 : i32
    %c0_i32_1 = arith.constant 0 : i32
    return %c0_i32, %c0_i32_0 : i32, i32
  }
  func.func @transform_4(%arg0: i32) -> (i32, i32) {
    %c0_i32 = arith.constant 0 : i32
    %c0_i32_0 = arith.constant 0 : i32
    %c0_i32_1 = arith.constant 0 : i32
    return %c0_i32, %c0_i32_0 : i32, i32
  }
  func.func @transform_5(%arg0: i32) -> (i32, i32) {
    %c0_i32 = arith.constant 0 : i32
    %c0_i32_0 = arith.constant 0 : i32
    %c0_i32_1 = arith.constant 0 : i32
    return %c0_i32, %c0_i32_0 : i32, i32
  }
  func.func @transform_6(%arg0: i32) -> (i32, i32) {
    %c0_i32 = arith.constant 0 : i32
    %c0_i32_0 = arith.constant 0 : i32
    %c0_i32_1 = arith.constant 0 : i32
    return %c0_i32, %c0_i32_0 : i32, i32
  }
  func.func @transform_7(%arg0: i32) -> (i32, i32) {
    %c0_i32 = arith.constant 0 : i32
    %c0_i32_0 = arith.constant 0 : i32
    %c0_i32_1 = arith.constant 0 : i32
    return %c0_i32, %c0_i32_0 : i32, i32
  }
  func.func @transform_8(%arg0: i32) -> (i32, i32) {
    %c0_i32 = arith.constant 0 : i32
    %c0_i32_0 = arith.constant 0 : i32
    %c0_i32_1 = arith.constant 0 : i32
    return %c0_i32, %c0_i32_0 : i32, i32
  }
  func.func @transform_9(%arg0: i32) -> (i32, i32) {
    %c0_i32 = arith.constant 0 : i32
    %c0_i32_0 = arith.constant 0 : i32
    %c0_i32_1 = arith.constant 0 : i32
    return %c0_i32, %c0_i32_0 : i32, i32
  }
  func.func @transform_10(%arg0: i32) -> (i32, i32) {
    %c0_i32 = arith.constant 0 : i32
    %c0_i32_0 = arith.constant 0 : i32
    %c0_i32_1 = arith.constant 0 : i32
    return %c0_i32, %c0_i32_0 : i32, i32
  }
  func.func @transform_11(%arg0: i32) -> (i32, i32) {
    %c0_i32 = arith.constant 0 : i32
    %c0_i32_0 = arith.constant 0 : i32
    %c0_i32_1 = arith.constant 0 : i32
    return %c0_i32, %c0_i32_0 : i32, i32
  }
  func.func @transform_12(%arg0: i32) -> (i32, i32) {
    %c0_i32 = arith.constant 0 : i32
    %c0_i32_0 = arith.constant 0 : i32
    %c0_i32_1 = arith.constant 0 : i32
    return %c0_i32, %c0_i32_0 : i32, i32
  }
  func.func @transform_13(%arg0: i32) -> (i32, i32) {
    %c0_i32 = arith.constant 0 : i32
    %c0_i32_0 = arith.constant 0 : i32
    %c0_i32_1 = arith.constant 0 : i32
    return %c0_i32, %c0_i32_0 : i32, i32
  }
  func.func @transform_14(%arg0: i32) -> (i32, i32) {
    %c0_i32 = arith.constant 0 : i32
    %c0_i32_0 = arith.constant 0 : i32
    %c0_i32_1 = arith.constant 0 : i32
    return %c0_i32, %c0_i32_0 : i32, i32
  }
  func.func @transform_15(%arg0: i32) -> (i32, i32) {
    %c0_i32 = arith.constant 0 : i32
    %c0_i32_0 = arith.constant 0 : i32
    %c0_i32_1 = arith.constant 0 : i32
    return %c0_i32, %c0_i32_0 : i32, i32
  }
  func.func @transform_16(%arg0: i32) -> (i32, i32) {
    %c0_i32 = arith.constant 0 : i32
    %c0_i32_0 = arith.constant 0 : i32
    %c0_i32_1 = arith.constant 0 : i32
    return %c0_i32, %c0_i32_0 : i32, i32
  }
  func.func @transform_17(%arg0: i32) -> (i32, i32) {
    %c0_i32 = arith.constant 0 : i32
    %c0_i32_0 = arith.constant 0 : i32
    %c0_i32_1 = arith.constant 0 : i32
    return %c0_i32, %c0_i32_0 : i32, i32
  }
  func.func @transform_18(%arg0: i32) -> (i32, i32, i32) {
    %c0_i32 = arith.constant 0 : i32
    %c0_i32_0 = arith.constant 0 : i32
    %c0_i32_1 = arith.constant 0 : i32
    %c0_i32_2 = arith.constant 0 : i32
    return %c0_i32, %c0_i32_0, %c0_i32_1 : i32, i32, i32
  }
}

module attributes {stable_mosaic.version = 11 : i64} {
  func.func @_encoder_layer_kernel(%arg0: i32, %arg1: memref<2x8x32xf32, #tpu.memory_space<vmem>>, %arg2: memref<8x8xf32, #tpu.memory_space<vmem>>, %arg3: memref<2x8xf32, #tpu.memory_space<vmem>>, %arg4: memref<8x32xf32, #tpu.memory_space<vmem>>, %arg5: memref<32x96xbf16, #tpu.memory_space<vmem>>, %arg6: memref<1x96xf32, #tpu.memory_space<vmem>>, %arg7: memref<32x32xbf16, #tpu.memory_space<vmem>>, %arg8: memref<1x32xf32, #tpu.memory_space<vmem>>, %arg9: memref<1x32xf32, #tpu.memory_space<vmem>>, %arg10: memref<1x32xf32, #tpu.memory_space<vmem>>, %arg11: memref<32x64xbf16, #tpu.memory_space<vmem>>, %arg12: memref<1x64xf32, #tpu.memory_space<vmem>>, %arg13: memref<64x32xbf16, #tpu.memory_space<vmem>>, %arg14: memref<1x32xf32, #tpu.memory_space<vmem>>, %arg15: memref<1x32xf32, #tpu.memory_space<vmem>>, %arg16: memref<1x32xf32, #tpu.memory_space<vmem>>, %arg17: memref<1x32xf32, #tpu.memory_space<vmem>>, %arg18: memref<1x32xf32, #tpu.memory_space<vmem>>, %arg19: memref<2x8x32xf32, #tpu.memory_space<vmem>>) attributes {dimension_semantics = [#tpu.dimension_semantics<arbitrary>], iteration_bounds = array<i64: 1>, scalar_prefetch = 0 : i64, scratch_operands = 0 : i64, tpu.core_type = #tpu.core_type<tc>, window_params = [{pipeline_mode = #tpu.pipeline_mode<synchronous>, transform_indices = @transform_0, window_bounds = array<i64: 2, 8, 32>}, {pipeline_mode = #tpu.pipeline_mode<synchronous>, transform_indices = @transform_1, window_bounds = array<i64: 8, 8>}, {pipeline_mode = #tpu.pipeline_mode<synchronous>, transform_indices = @transform_2, window_bounds = array<i64: 2, 8>}, {pipeline_mode = #tpu.pipeline_mode<synchronous>, transform_indices = @transform_3, window_bounds = array<i64: 8, 32>}, {pipeline_mode = #tpu.pipeline_mode<synchronous>, transform_indices = @transform_4, window_bounds = array<i64: 32, 96>}, {pipeline_mode = #tpu.pipeline_mode<synchronous>, transform_indices = @transform_5, window_bounds = array<i64: 1, 96>}, {pipeline_mode = #tpu.pipeline_mode<synchronous>, transform_indices = @transform_6, window_bounds = array<i64: 32, 32>}, {pipeline_mode = #tpu.pipeline_mode<synchronous>, transform_indices = @transform_7, window_bounds = array<i64: 1, 32>}, {pipeline_mode = #tpu.pipeline_mode<synchronous>, transform_indices = @transform_8, window_bounds = array<i64: 1, 32>}, {pipeline_mode = #tpu.pipeline_mode<synchronous>, transform_indices = @transform_9, window_bounds = array<i64: 1, 32>}, {pipeline_mode = #tpu.pipeline_mode<synchronous>, transform_indices = @transform_10, window_bounds = array<i64: 32, 64>}, {pipeline_mode = #tpu.pipeline_mode<synchronous>, transform_indices = @transform_11, window_bounds = array<i64: 1, 64>}, {pipeline_mode = #tpu.pipeline_mode<synchronous>, transform_indices = @transform_12, window_bounds = array<i64: 64, 32>}, {pipeline_mode = #tpu.pipeline_mode<synchronous>, transform_indices = @transform_13, window_bounds = array<i64: 1, 32>}, {pipeline_mode = #tpu.pipeline_mode<synchronous>, transform_indices = @transform_14, window_bounds = array<i64: 1, 32>}, {pipeline_mode = #tpu.pipeline_mode<synchronous>, transform_indices = @transform_15, window_bounds = array<i64: 1, 32>}, {pipeline_mode = #tpu.pipeline_mode<synchronous>, transform_indices = @transform_16, window_bounds = array<i64: 1, 32>}, {pipeline_mode = #tpu.pipeline_mode<synchronous>, transform_indices = @transform_17, window_bounds = array<i64: 1, 32>}, {pipeline_mode = #tpu.pipeline_mode<synchronous>, transform_indices = @transform_18, window_bounds = array<i64: 2, 8, 32>}]} {
    %c0 = arith.constant 0 : index
    %c0_0 = arith.constant 0 : index
    %c0_1 = arith.constant 0 : index
    %0 = vector.load %arg1[%c0, %c0_0, %c0_1] : memref<2x8x32xf32, #tpu.memory_space<vmem>>, vector<2x8x32xf32>
    %cst = arith.constant 5.65685415 : f32
    %1 = vector.broadcast %cst : f32 to vector<2x8x32xf32>
    %2 = arith.mulf %0, %1 : vector<2x8x32xf32>
    %c0_2 = arith.constant 0 : index
    %c0_3 = arith.constant 0 : index
    %3 = vector.load %arg4[%c0_2, %c0_3] : memref<8x32xf32, #tpu.memory_space<vmem>>, vector<8x32xf32>
    %4 = vector.shape_cast %3 : vector<8x32xf32> to vector<1x8x32xf32>
    %5 = vector.broadcast %4 : vector<1x8x32xf32> to vector<2x8x32xf32>
    %6 = arith.addf %2, %5 : vector<2x8x32xf32>
    %7 = vector.shape_cast %6 : vector<2x8x32xf32> to vector<16x32xf32>
    %c0_4 = arith.constant 0 : index
    %c0_5 = arith.constant 0 : index
    %8 = vector.load %arg5[%c0_4, %c0_5] : memref<32x96xbf16, #tpu.memory_space<vmem>>, vector<32x96xbf16>
    %c0_6 = arith.constant 0 : index
    %c0_7 = arith.constant 0 : index
    %9 = vector.load %arg6[%c0_6, %c0_7] : memref<1x96xf32, #tpu.memory_space<vmem>>, vector<1x96xf32>
    %10 = arith.truncf %7 : vector<16x32xf32> to vector<16x32xbf16>
    %cst_8 = arith.constant dense<0.000000e+00> : vector<16x96xf32>
    %11 = tpu.matmul %10, %8, %cst_8 {dimension_numbers = #tpu.dot_dimension_numbers<[1], [0], [0], [1], [0, 0, 1, 1], [], []>} : vector<16x32xbf16>, vector<32x96xbf16>, vector<16x96xf32> -> vector<16x96xf32>
    %12 = vector.broadcast %9 : vector<1x96xf32> to vector<16x96xf32>
    %13 = arith.addf %11, %12 : vector<16x96xf32>
    %c0_9 = arith.constant 0 : index
    %c0_10 = arith.constant 0 : index
    %14 = vector.load %arg2[%c0_9, %c0_10] : memref<8x8xf32, #tpu.memory_space<vmem>>, vector<8x8xf32>
    %15 = vector.shape_cast %14 : vector<8x8xf32> to vector<1x1x8x8xf32>
    %c0_11 = arith.constant 0 : index
    %c0_12 = arith.constant 0 : index
    %16 = vector.load %arg3[%c0_11, %c0_12] : memref<2x8xf32, #tpu.memory_space<vmem>>, vector<2x8xf32>
    %17 = vector.shape_cast %16 : vector<2x8xf32> to vector<2x1x1x8xf32>
    %18 = vector.broadcast %15 : vector<1x1x8x8xf32> to vector<2x1x8x8xf32>
    %19 = vector.broadcast %17 : vector<2x1x1x8xf32> to vector<2x1x8x8xf32>
    %20 = arith.addf %18, %19 : vector<2x1x8x8xf32>
    %cst_13 = arith.constant -1.000000e+30 : f32
    %21 = vector.broadcast %cst_13 : f32 to vector<2x1x8x8xf32>
    %22 = arith.maximumf %20, %21 : vector<2x1x8x8xf32>
    %23 = vector.extract_strided_slice %13 {offsets = [0, 0], sizes = [16, 32], strides = [1, 1]} : vector<16x96xf32> to vector<16x32xf32>
    %24 = vector.extract_strided_slice %13 {offsets = [0, 32], sizes = [16, 32], strides = [1, 1]} : vector<16x96xf32> to vector<16x32xf32>
    %25 = vector.extract_strided_slice %13 {offsets = [0, 64], sizes = [16, 32], strides = [1, 1]} : vector<16x96xf32> to vector<16x32xf32>
    %26 = vector.extract_strided_slice %23 {offsets = [0, 0], sizes = [8, 8], strides = [1, 1]} : vector<16x32xf32> to vector<8x8xf32>
    %27 = vector.extract_strided_slice %23 {offsets = [0, 8], sizes = [8, 8], strides = [1, 1]} : vector<16x32xf32> to vector<8x8xf32>
    %28 = vector.extract_strided_slice %23 {offsets = [0, 16], sizes = [8, 8], strides = [1, 1]} : vector<16x32xf32> to vector<8x8xf32>
    %29 = vector.extract_strided_slice %23 {offsets = [0, 24], sizes = [8, 8], strides = [1, 1]} : vector<16x32xf32> to vector<8x8xf32>
    %30 = vector.extract_strided_slice %23 {offsets = [8, 0], sizes = [8, 8], strides = [1, 1]} : vector<16x32xf32> to vector<8x8xf32>
    %31 = vector.extract_strided_slice %23 {offsets = [8, 8], sizes = [8, 8], strides = [1, 1]} : vector<16x32xf32> to vector<8x8xf32>
    %32 = vector.extract_strided_slice %23 {offsets = [8, 16], sizes = [8, 8], strides = [1, 1]} : vector<16x32xf32> to vector<8x8xf32>
    %33 = vector.extract_strided_slice %23 {offsets = [8, 24], sizes = [8, 8], strides = [1, 1]} : vector<16x32xf32> to vector<8x8xf32>
    %34 = vector.shape_cast %26 : vector<8x8xf32> to vector<1x8x8xf32>
    %35 = vector.shape_cast %27 : vector<8x8xf32> to vector<1x8x8xf32>
    %36 = vector.shape_cast %28 : vector<8x8xf32> to vector<1x8x8xf32>
    %37 = vector.shape_cast %29 : vector<8x8xf32> to vector<1x8x8xf32>
    %38 = vector.shape_cast %30 : vector<8x8xf32> to vector<1x8x8xf32>
    %39 = vector.shape_cast %31 : vector<8x8xf32> to vector<1x8x8xf32>
    %40 = vector.shape_cast %32 : vector<8x8xf32> to vector<1x8x8xf32>
    %41 = vector.shape_cast %33 : vector<8x8xf32> to vector<1x8x8xf32>
    %42 = tpu.concatenate %34, %35, %36, %37, %38, %39, %40, %41 in 0 : vector<1x8x8xf32>, vector<1x8x8xf32>, vector<1x8x8xf32>, vector<1x8x8xf32>, vector<1x8x8xf32>, vector<1x8x8xf32>, vector<1x8x8xf32>, vector<1x8x8xf32> -> vector<8x8x8xf32>
    %43 = arith.truncf %42 : vector<8x8x8xf32> to vector<8x8x8xbf16>
    %44 = vector.extract_strided_slice %24 {offsets = [0, 0], sizes = [8, 8], strides = [1, 1]} : vector<16x32xf32> to vector<8x8xf32>
    %45 = vector.extract_strided_slice %24 {offsets = [0, 8], sizes = [8, 8], strides = [1, 1]} : vector<16x32xf32> to vector<8x8xf32>
    %46 = vector.extract_strided_slice %24 {offsets = [0, 16], sizes = [8, 8], strides = [1, 1]} : vector<16x32xf32> to vector<8x8xf32>
    %47 = vector.extract_strided_slice %24 {offsets = [0, 24], sizes = [8, 8], strides = [1, 1]} : vector<16x32xf32> to vector<8x8xf32>
    %48 = vector.extract_strided_slice %24 {offsets = [8, 0], sizes = [8, 8], strides = [1, 1]} : vector<16x32xf32> to vector<8x8xf32>
    %49 = vector.extract_strided_slice %24 {offsets = [8, 8], sizes = [8, 8], strides = [1, 1]} : vector<16x32xf32> to vector<8x8xf32>
    %50 = vector.extract_strided_slice %24 {offsets = [8, 16], sizes = [8, 8], strides = [1, 1]} : vector<16x32xf32> to vector<8x8xf32>
    %51 = vector.extract_strided_slice %24 {offsets = [8, 24], sizes = [8, 8], strides = [1, 1]} : vector<16x32xf32> to vector<8x8xf32>
    %52 = vector.shape_cast %44 : vector<8x8xf32> to vector<1x8x8xf32>
    %53 = vector.shape_cast %45 : vector<8x8xf32> to vector<1x8x8xf32>
    %54 = vector.shape_cast %46 : vector<8x8xf32> to vector<1x8x8xf32>
    %55 = vector.shape_cast %47 : vector<8x8xf32> to vector<1x8x8xf32>
    %56 = vector.shape_cast %48 : vector<8x8xf32> to vector<1x8x8xf32>
    %57 = vector.shape_cast %49 : vector<8x8xf32> to vector<1x8x8xf32>
    %58 = vector.shape_cast %50 : vector<8x8xf32> to vector<1x8x8xf32>
    %59 = vector.shape_cast %51 : vector<8x8xf32> to vector<1x8x8xf32>
    %60 = tpu.concatenate %52, %53, %54, %55, %56, %57, %58, %59 in 0 : vector<1x8x8xf32>, vector<1x8x8xf32>, vector<1x8x8xf32>, vector<1x8x8xf32>, vector<1x8x8xf32>, vector<1x8x8xf32>, vector<1x8x8xf32>, vector<1x8x8xf32> -> vector<8x8x8xf32>
    %61 = arith.truncf %60 : vector<8x8x8xf32> to vector<8x8x8xbf16>
    %62 = vector.extract_strided_slice %25 {offsets = [0, 0], sizes = [8, 8], strides = [1, 1]} : vector<16x32xf32> to vector<8x8xf32>
    %63 = vector.extract_strided_slice %25 {offsets = [0, 8], sizes = [8, 8], strides = [1, 1]} : vector<16x32xf32> to vector<8x8xf32>
    %64 = vector.extract_strided_slice %25 {offsets = [0, 16], sizes = [8, 8], strides = [1, 1]} : vector<16x32xf32> to vector<8x8xf32>
    %65 = vector.extract_strided_slice %25 {offsets = [0, 24], sizes = [8, 8], strides = [1, 1]} : vector<16x32xf32> to vector<8x8xf32>
    %66 = vector.extract_strided_slice %25 {offsets = [8, 0], sizes = [8, 8], strides = [1, 1]} : vector<16x32xf32> to vector<8x8xf32>
    %67 = vector.extract_strided_slice %25 {offsets = [8, 8], sizes = [8, 8], strides = [1, 1]} : vector<16x32xf32> to vector<8x8xf32>
    %68 = vector.extract_strided_slice %25 {offsets = [8, 16], sizes = [8, 8], strides = [1, 1]} : vector<16x32xf32> to vector<8x8xf32>
    %69 = vector.extract_strided_slice %25 {offsets = [8, 24], sizes = [8, 8], strides = [1, 1]} : vector<16x32xf32> to vector<8x8xf32>
    %70 = vector.shape_cast %62 : vector<8x8xf32> to vector<1x8x8xf32>
    %71 = vector.shape_cast %63 : vector<8x8xf32> to vector<1x8x8xf32>
    %72 = vector.shape_cast %64 : vector<8x8xf32> to vector<1x8x8xf32>
    %73 = vector.shape_cast %65 : vector<8x8xf32> to vector<1x8x8xf32>
    %74 = vector.shape_cast %66 : vector<8x8xf32> to vector<1x8x8xf32>
    %75 = vector.shape_cast %67 : vector<8x8xf32> to vector<1x8x8xf32>
    %76 = vector.shape_cast %68 : vector<8x8xf32> to vector<1x8x8xf32>
    %77 = vector.shape_cast %69 : vector<8x8xf32> to vector<1x8x8xf32>
    %78 = tpu.concatenate %70, %71, %72, %73, %74, %75, %76, %77 in 0 : vector<1x8x8xf32>, vector<1x8x8xf32>, vector<1x8x8xf32>, vector<1x8x8xf32>, vector<1x8x8xf32>, vector<1x8x8xf32>, vector<1x8x8xf32>, vector<1x8x8xf32> -> vector<8x8x8xf32>
    %79 = arith.truncf %78 : vector<8x8x8xf32> to vector<8x8x8xbf16>
    %cst_14 = arith.constant dense<0.000000e+00> : vector<8x8x8xf32>
    %80 = tpu.matmul %43, %61, %cst_14 {dimension_numbers = #tpu.dot_dimension_numbers<[2], [2], [1], [1], [0, 0, 0, 1, 1, 1], [0], [0]>} : vector<8x8x8xbf16>, vector<8x8x8xbf16>, vector<8x8x8xf32> -> vector<8x8x8xf32>
    %cst_15 = arith.constant 0.353553385 : f32
    %81 = vector.broadcast %cst_15 : f32 to vector<8x8x8xf32>
    %82 = arith.mulf %80, %81 : vector<8x8x8xf32>
    %83 = vector.shape_cast %82 : vector<8x8x8xf32> to vector<2x4x8x8xf32>
    %84 = vector.broadcast %22 : vector<2x1x8x8xf32> to vector<2x4x8x8xf32>
    %85 = arith.addf %83, %84 : vector<2x4x8x8xf32>
    %cst_16 = arith.constant dense<0xFF800000> : vector<2x4x8xf32>
    %86 = vector.multi_reduction <maximumf>, %85, %cst_16 [3] : vector<2x4x8x8xf32> to vector<2x4x8xf32>
    %87 = vector.shape_cast %86 : vector<2x4x8xf32> to vector<2x4x8x1xf32>
    %88 = vector.broadcast %87 : vector<2x4x8x1xf32> to vector<2x4x8x8xf32>
    %89 = arith.subf %85, %88 : vector<2x4x8x8xf32>
    %90 = math.exp %89 : vector<2x4x8x8xf32>
    %cst_17 = arith.constant dense<0.000000e+00> : vector<2x4x8xf32>
    %91 = vector.multi_reduction <add>, %90, %cst_17 [3] : vector<2x4x8x8xf32> to vector<2x4x8xf32>
    %92 = vector.shape_cast %91 : vector<2x4x8xf32> to vector<2x4x8x1xf32>
    %93 = tpu.reciprocal %92 {approx = true} : vector<2x4x8x1xf32> -> vector<2x4x8x1xf32>
    %94 = vector.broadcast %93 : vector<2x4x8x1xf32> to vector<2x4x8x8xf32>
    %95 = arith.mulf %90, %94 : vector<2x4x8x8xf32>
    %96 = vector.shape_cast %95 : vector<2x4x8x8xf32> to vector<8x8x8xf32>
    %97 = arith.truncf %96 : vector<8x8x8xf32> to vector<8x8x8xbf16>
    %cst_18 = arith.constant dense<0.000000e+00> : vector<8x8x8xf32>
    %98 = tpu.matmul %97, %79, %cst_18 {dimension_numbers = #tpu.dot_dimension_numbers<[2], [1], [1], [2], [0, 0, 0, 1, 1, 2], [0], [0]>} : vector<8x8x8xbf16>, vector<8x8x8xbf16>, vector<8x8x8xf32> -> vector<8x8x8xf32>
    %99 = vector.extract_strided_slice %98 {offsets = [0, 0, 0], sizes = [1, 8, 8], strides = [1, 1, 1]} : vector<8x8x8xf32> to vector<1x8x8xf32>
    %100 = vector.shape_cast %99 : vector<1x8x8xf32> to vector<8x8xf32>
    %101 = vector.extract_strided_slice %98 {offsets = [1, 0, 0], sizes = [1, 8, 8], strides = [1, 1, 1]} : vector<8x8x8xf32> to vector<1x8x8xf32>
    %102 = vector.shape_cast %101 : vector<1x8x8xf32> to vector<8x8xf32>
    %103 = vector.extract_strided_slice %98 {offsets = [2, 0, 0], sizes = [1, 8, 8], strides = [1, 1, 1]} : vector<8x8x8xf32> to vector<1x8x8xf32>
    %104 = vector.shape_cast %103 : vector<1x8x8xf32> to vector<8x8xf32>
    %105 = vector.extract_strided_slice %98 {offsets = [3, 0, 0], sizes = [1, 8, 8], strides = [1, 1, 1]} : vector<8x8x8xf32> to vector<1x8x8xf32>
    %106 = vector.shape_cast %105 : vector<1x8x8xf32> to vector<8x8xf32>
    %107 = tpu.concatenate %100, %102, %104, %106 in 1 : vector<8x8xf32>, vector<8x8xf32>, vector<8x8xf32>, vector<8x8xf32> -> vector<8x32xf32>
    %108 = vector.extract_strided_slice %98 {offsets = [4, 0, 0], sizes = [1, 8, 8], strides = [1, 1, 1]} : vector<8x8x8xf32> to vector<1x8x8xf32>
    %109 = vector.shape_cast %108 : vector<1x8x8xf32> to vector<8x8xf32>
    %110 = vector.extract_strided_slice %98 {offsets = [5, 0, 0], sizes = [1, 8, 8], strides = [1, 1, 1]} : vector<8x8x8xf32> to vector<1x8x8xf32>
    %111 = vector.shape_cast %110 : vector<1x8x8xf32> to vector<8x8xf32>
    %112 = vector.extract_strided_slice %98 {offsets = [6, 0, 0], sizes = [1, 8, 8], strides = [1, 1, 1]} : vector<8x8x8xf32> to vector<1x8x8xf32>
    %113 = vector.shape_cast %112 : vector<1x8x8xf32> to vector<8x8xf32>
    %114 = vector.extract_strided_slice %98 {offsets = [7, 0, 0], sizes = [1, 8, 8], strides = [1, 1, 1]} : vector<8x8x8xf32> to vector<1x8x8xf32>
    %115 = vector.shape_cast %114 : vector<1x8x8xf32> to vector<8x8xf32>
    %116 = tpu.concatenate %109, %111, %113, %115 in 1 : vector<8x8xf32>, vector<8x8xf32>, vector<8x8xf32>, vector<8x8xf32> -> vector<8x32xf32>
    %117 = tpu.concatenate %107, %116 in 0 : vector<8x32xf32>, vector<8x32xf32> -> vector<16x32xf32>
    %c0_19 = arith.constant 0 : index
    %c0_20 = arith.constant 0 : index
    %118 = vector.load %arg7[%c0_19, %c0_20] : memref<32x32xbf16, #tpu.memory_space<vmem>>, vector<32x32xbf16>
    %c0_21 = arith.constant 0 : index
    %c0_22 = arith.constant 0 : index
    %119 = vector.load %arg8[%c0_21, %c0_22] : memref<1x32xf32, #tpu.memory_space<vmem>>, vector<1x32xf32>
    %120 = arith.truncf %117 : vector<16x32xf32> to vector<16x32xbf16>
    %cst_23 = arith.constant dense<0.000000e+00> : vector<16x32xf32>
    %121 = tpu.matmul %120, %118, %cst_23 {dimension_numbers = #tpu.dot_dimension_numbers<[1], [0], [0], [1], [0, 0, 1, 1], [], []>} : vector<16x32xbf16>, vector<32x32xbf16>, vector<16x32xf32> -> vector<16x32xf32>
    %122 = vector.broadcast %119 : vector<1x32xf32> to vector<16x32xf32>
    %123 = arith.addf %121, %122 : vector<16x32xf32>
    %124 = arith.addf %7, %123 : vector<16x32xf32>
    %c0_24 = arith.constant 0 : index
    %c0_25 = arith.constant 0 : index
    %125 = vector.load %arg9[%c0_24, %c0_25] : memref<1x32xf32, #tpu.memory_space<vmem>>, vector<1x32xf32>
    %c0_26 = arith.constant 0 : index
    %c0_27 = arith.constant 0 : index
    %126 = vector.load %arg10[%c0_26, %c0_27] : memref<1x32xf32, #tpu.memory_space<vmem>>, vector<1x32xf32>
    %cst_28 = arith.constant dense<0.000000e+00> : vector<16xf32>
    %127 = vector.multi_reduction <add>, %124, %cst_28 [1] : vector<16x32xf32> to vector<16xf32>
    %128 = vector.shape_cast %127 : vector<16xf32> to vector<16x1xf32>
    %cst_29 = arith.constant 3.200000e+01 : f32
    %129 = vector.broadcast %cst_29 : f32 to vector<16x1xf32>
    %130 = arith.divf %128, %129 : vector<16x1xf32>
    %131 = vector.broadcast %130 : vector<16x1xf32> to vector<16x32xf32>
    %132 = arith.subf %124, %131 : vector<16x32xf32>
    %133 = arith.mulf %132, %132 : vector<16x32xf32>
    %cst_30 = arith.constant dense<0.000000e+00> : vector<16xf32>
    %134 = vector.multi_reduction <add>, %133, %cst_30 [1] : vector<16x32xf32> to vector<16xf32>
    %135 = vector.shape_cast %134 : vector<16xf32> to vector<16x1xf32>
    %cst_31 = arith.constant 3.200000e+01 : f32
    %136 = vector.broadcast %cst_31 : f32 to vector<16x1xf32>
    %137 = arith.divf %135, %136 : vector<16x1xf32>
    %138 = vector.broadcast %130 : vector<16x1xf32> to vector<16x32xf32>
    %139 = arith.subf %124, %138 : vector<16x32xf32>
    %cst_32 = arith.constant 9.99999974E-6 : f32
    %140 = vector.broadcast %cst_32 : f32 to vector<16x1xf32>
    %141 = arith.addf %137, %140 : vector<16x1xf32>
    %142 = math.rsqrt %141 : vector<16x1xf32>
    %143 = vector.broadcast %142 : vector<16x1xf32> to vector<16x32xf32>
    %144 = arith.mulf %139, %143 : vector<16x32xf32>
    %145 = vector.broadcast %125 : vector<1x32xf32> to vector<16x32xf32>
    %146 = arith.mulf %144, %145 : vector<16x32xf32>
    %147 = vector.broadcast %126 : vector<1x32xf32> to vector<16x32xf32>
    %148 = arith.addf %146, %147 : vector<16x32xf32>
    %c0_33 = arith.constant 0 : index
    %c0_34 = arith.constant 0 : index
    %149 = vector.load %arg11[%c0_33, %c0_34] : memref<32x64xbf16, #tpu.memory_space<vmem>>, vector<32x64xbf16>
    %c0_35 = arith.constant 0 : index
    %c0_36 = arith.constant 0 : index
    %150 = vector.load %arg12[%c0_35, %c0_36] : memref<1x64xf32, #tpu.memory_space<vmem>>, vector<1x64xf32>
    %151 = arith.truncf %148 : vector<16x32xf32> to vector<16x32xbf16>
    %cst_37 = arith.constant dense<0.000000e+00> : vector<16x64xf32>
    %152 = tpu.matmul %151, %149, %cst_37 {dimension_numbers = #tpu.dot_dimension_numbers<[1], [0], [0], [1], [0, 0, 1, 1], [], []>} : vector<16x32xbf16>, vector<32x64xbf16>, vector<16x64xf32> -> vector<16x64xf32>
    %153 = vector.broadcast %150 : vector<1x64xf32> to vector<16x64xf32>
    %154 = arith.addf %152, %153 : vector<16x64xf32>
    %cst_38 = arith.constant 0.000000e+00 : f32
    %155 = vector.broadcast %cst_38 : f32 to vector<16x64xf32>
    %156 = arith.maximumf %154, %155 : vector<16x64xf32>
    %c0_39 = arith.constant 0 : index
    %c0_40 = arith.constant 0 : index
    %157 = vector.load %arg13[%c0_39, %c0_40] : memref<64x32xbf16, #tpu.memory_space<vmem>>, vector<64x32xbf16>
    %c0_41 = arith.constant 0 : index
    %c0_42 = arith.constant 0 : index
    %158 = vector.load %arg14[%c0_41, %c0_42] : memref<1x32xf32, #tpu.memory_space<vmem>>, vector<1x32xf32>
    %159 = arith.truncf %156 : vector<16x64xf32> to vector<16x64xbf16>
    %cst_43 = arith.constant dense<0.000000e+00> : vector<16x32xf32>
    %160 = tpu.matmul %159, %157, %cst_43 {dimension_numbers = #tpu.dot_dimension_numbers<[1], [0], [0], [1], [0, 0, 1, 1], [], []>} : vector<16x64xbf16>, vector<64x32xbf16>, vector<16x32xf32> -> vector<16x32xf32>
    %161 = vector.broadcast %158 : vector<1x32xf32> to vector<16x32xf32>
    %162 = arith.addf %160, %161 : vector<16x32xf32>
    %163 = arith.addf %148, %162 : vector<16x32xf32>
    %c0_44 = arith.constant 0 : index
    %c0_45 = arith.constant 0 : index
    %164 = vector.load %arg15[%c0_44, %c0_45] : memref<1x32xf32, #tpu.memory_space<vmem>>, vector<1x32xf32>
    %c0_46 = arith.constant 0 : index
    %c0_47 = arith.constant 0 : index
    %165 = vector.load %arg16[%c0_46, %c0_47] : memref<1x32xf32, #tpu.memory_space<vmem>>, vector<1x32xf32>
    %cst_48 = arith.constant dense<0.000000e+00> : vector<16xf32>
    %166 = vector.multi_reduction <add>, %163, %cst_48 [1] : vector<16x32xf32> to vector<16xf32>
    %167 = vector.shape_cast %166 : vector<16xf32> to vector<16x1xf32>
    %cst_49 = arith.constant 3.200000e+01 : f32
    %168 = vector.broadcast %cst_49 : f32 to vector<16x1xf32>
    %169 = arith.divf %167, %168 : vector<16x1xf32>
    %170 = vector.broadcast %169 : vector<16x1xf32> to vector<16x32xf32>
    %171 = arith.subf %163, %170 : vector<16x32xf32>
    %172 = arith.mulf %171, %171 : vector<16x32xf32>
    %cst_50 = arith.constant dense<0.000000e+00> : vector<16xf32>
    %173 = vector.multi_reduction <add>, %172, %cst_50 [1] : vector<16x32xf32> to vector<16xf32>
    %174 = vector.shape_cast %173 : vector<16xf32> to vector<16x1xf32>
    %cst_51 = arith.constant 3.200000e+01 : f32
    %175 = vector.broadcast %cst_51 : f32 to vector<16x1xf32>
    %176 = arith.divf %174, %175 : vector<16x1xf32>
    %177 = vector.broadcast %169 : vector<16x1xf32> to vector<16x32xf32>
    %178 = arith.subf %163, %177 : vector<16x32xf32>
    %cst_52 = arith.constant 9.99999974E-6 : f32
    %179 = vector.broadcast %cst_52 : f32 to vector<16x1xf32>
    %180 = arith.addf %176, %179 : vector<16x1xf32>
    %181 = math.rsqrt %180 : vector<16x1xf32>
    %182 = vector.broadcast %181 : vector<16x1xf32> to vector<16x32xf32>
    %183 = arith.mulf %178, %182 : vector<16x32xf32>
    %184 = vector.broadcast %164 : vector<1x32xf32> to vector<16x32xf32>
    %185 = arith.mulf %183, %184 : vector<16x32xf32>
    %186 = vector.broadcast %165 : vector<1x32xf32> to vector<16x32xf32>
    %187 = arith.addf %185, %186 : vector<16x32xf32>
    %188 = vector.shape_cast %187 : vector<16x32xf32> to vector<2x8x32xf32>
    %c0_53 = arith.constant 0 : index
    %c0_54 = arith.constant 0 : index
    %c0_55 = arith.constant 0 : index
    %189 = vector.load %arg19[%c0_53, %c0_54, %c0_55] : memref<2x8x32xf32, #tpu.memory_space<vmem>>, vector<2x8x32xf32>
    tpu.vector_store %arg19[%c0_53, %c0_54, %c0_55], %188 {strides = array<i32>} : memref<2x8x32xf32, #tpu.memory_space<vmem>>, vector<2x8x32xf32>,
    return
  }
  func.func @transform_0(%arg0: i32) -> (i32, i32, i32) {
    %c0_i32 = arith.constant 0 : i32
    %c0_i32_0 = arith.constant 0 : i32
    %c0_i32_1 = arith.constant 0 : i32
    %c0_i32_2 = arith.constant 0 : i32
    return %c0_i32, %c0_i32_0, %c0_i32_1 : i32, i32, i32
  }
  func.func @transform_1(%arg0: i32) -> (i32, i32) {
    %c0_i32 = arith.constant 0 : i32
    %c0_i32_0 = arith.constant 0 : i32
    %c0_i32_1 = arith.constant 0 : i32
    return %c0_i32, %c0_i32_0 : i32, i32
  }
  func.func @transform_2(%arg0: i32) -> (i32, i32) {
    %c0_i32 = arith.constant 0 : i32
    %c0_i32_0 = arith.constant 0 : i32
    %c0_i32_1 = arith.constant 0 : i32
    return %c0_i32, %c0_i32_0 : i32, i32
  }
  func.func @transform_3(%arg0: i32) -> (i32, i32) {
    %c0_i32 = arith.constant 0 : i32
    %c0_i32_0 = arith.constant 0 : i32
    %c0_i32_1 = arith.constant 0 : i32
    return %c0_i32, %c0_i32_0 : i32, i32
  }
  func.func @transform_4(%arg0: i32) -> (i32, i32) {
    %c0_i32 = arith.constant 0 : i32
    %c0_i32_0 = arith.constant 0 : i32
    %c0_i32_1 = arith.constant 0 : i32
    return %c0_i32, %c0_i32_0 : i32, i32
  }
  func.func @transform_5(%arg0: i32) -> (i32, i32) {
    %c0_i32 = arith.constant 0 : i32
    %c0_i32_0 = arith.constant 0 : i32
    %c0_i32_1 = arith.constant 0 : i32
    return %c0_i32, %c0_i32_0 : i32, i32
  }
  func.func @transform_6(%arg0: i32) -> (i32, i32) {
    %c0_i32 = arith.constant 0 : i32
    %c0_i32_0 = arith.constant 0 : i32
    %c0_i32_1 = arith.constant 0 : i32
    return %c0_i32, %c0_i32_0 : i32, i32
  }
  func.func @transform_7(%arg0: i32) -> (i32, i32) {
    %c0_i32 = arith.constant 0 : i32
    %c0_i32_0 = arith.constant 0 : i32
    %c0_i32_1 = arith.constant 0 : i32
    return %c0_i32, %c0_i32_0 : i32, i32
  }
  func.func @transform_8(%arg0: i32) -> (i32, i32) {
    %c0_i32 = arith.constant 0 : i32
    %c0_i32_0 = arith.constant 0 : i32
    %c0_i32_1 = arith.constant 0 : i32
    return %c0_i32, %c0_i32_0 : i32, i32
  }
  func.func @transform_9(%arg0: i32) -> (i32, i32) {
    %c0_i32 = arith.constant 0 : i32
    %c0_i32_0 = arith.constant 0 : i32
    %c0_i32_1 = arith.constant 0 : i32
    return %c0_i32, %c0_i32_0 : i32, i32
  }
  func.func @transform_10(%arg0: i32) -> (i32, i32) {
    %c0_i32 = arith.constant 0 : i32
    %c0_i32_0 = arith.constant 0 : i32
    %c0_i32_1 = arith.constant 0 : i32
    return %c0_i32, %c0_i32_0 : i32, i32
  }
  func.func @transform_11(%arg0: i32) -> (i32, i32) {
    %c0_i32 = arith.constant 0 : i32
    %c0_i32_0 = arith.constant 0 : i32
    %c0_i32_1 = arith.constant 0 : i32
    return %c0_i32, %c0_i32_0 : i32, i32
  }
  func.func @transform_12(%arg0: i32) -> (i32, i32) {
    %c0_i32 = arith.constant 0 : i32
    %c0_i32_0 = arith.constant 0 : i32
    %c0_i32_1 = arith.constant 0 : i32
    return %c0_i32, %c0_i32_0 : i32, i32
  }
  func.func @transform_13(%arg0: i32) -> (i32, i32) {
    %c0_i32 = arith.constant 0 : i32
    %c0_i32_0 = arith.constant 0 : i32
    %c0_i32_1 = arith.constant 0 : i32
    return %c0_i32, %c0_i32_0 : i32, i32
  }
  func.func @transform_14(%arg0: i32) -> (i32, i32) {
    %c0_i32 = arith.constant 0 : i32
    %c0_i32_0 = arith.constant 0 : i32
    %c0_i32_1 = arith.constant 0 : i32
    return %c0_i32, %c0_i32_0 : i32, i32
  }
  func.func @transform_15(%arg0: i32) -> (i32, i32) {
    %c0_i32 = arith.constant 0 : i32
    %c0_i32_0 = arith.constant 0 : i32
    %c0_i32_1 = arith.constant 0 : i32
    return %c0_i32, %c0_i32_0 : i32, i32
  }
  func.func @transform_16(%arg0: i32) -> (i32, i32) {
    %c0_i32 = arith.constant 0 : i32
    %c0_i32_0 = arith.constant 0 : i32
    %c0_i32_1 = arith.constant 0 : i32
    return %c0_i32, %c0_i32_0 : i32, i32
  }
  func.func @transform_17(%arg0: i32) -> (i32, i32) {
    %c0_i32 = arith.constant 0 : i32
    %c0_i32_0 = arith.constant 0 : i32
    %c0_i32_1 = arith.constant 0 : i32
    return %c0_i32, %c0_i32_0 : i32, i32
  }
  func.func @transform_18(%arg0: i32) -> (i32, i32, i32) {
    %c0_i32 = arith.constant 0 : i32
    %c0_i32_0 = arith.constant 0 : i32
    %c0_i32_1 = arith.constant 0 : i32
    %c0_i32_2 = arith.constant 0 : i32
    return %c0_i32, %c0_i32_0, %c0_i32_1 : i32, i32, i32
  }
}

module attributes {stable_mosaic.version = 11 : i64} {
  func.func @_decoder_layer_kernel(%arg0: i32, %arg1: memref<2x6x32xf32, #tpu.memory_space<vmem>>, %arg2: memref<2x8x32xf32, #tpu.memory_space<vmem>>, %arg3: memref<6x6xf32, #tpu.memory_space<vmem>>, %arg4: memref<2x6xf32, #tpu.memory_space<vmem>>, %arg5: memref<2x8xf32, #tpu.memory_space<vmem>>, %arg6: memref<6x32xf32, #tpu.memory_space<vmem>>, %arg7: memref<32x96xbf16, #tpu.memory_space<vmem>>, %arg8: memref<1x96xf32, #tpu.memory_space<vmem>>, %arg9: memref<32x32xbf16, #tpu.memory_space<vmem>>, %arg10: memref<1x32xf32, #tpu.memory_space<vmem>>, %arg11: memref<1x32xf32, #tpu.memory_space<vmem>>, %arg12: memref<1x32xf32, #tpu.memory_space<vmem>>, %arg13: memref<32x32xbf16, #tpu.memory_space<vmem>>, %arg14: memref<1x32xf32, #tpu.memory_space<vmem>>, %arg15: memref<32x64xbf16, #tpu.memory_space<vmem>>, %arg16: memref<1x64xf32, #tpu.memory_space<vmem>>, %arg17: memref<32x32xbf16, #tpu.memory_space<vmem>>, %arg18: memref<1x32xf32, #tpu.memory_space<vmem>>, %arg19: memref<1x32xf32, #tpu.memory_space<vmem>>, %arg20: memref<1x32xf32, #tpu.memory_space<vmem>>, %arg21: memref<32x64xbf16, #tpu.memory_space<vmem>>, %arg22: memref<1x64xf32, #tpu.memory_space<vmem>>, %arg23: memref<64x32xbf16, #tpu.memory_space<vmem>>, %arg24: memref<1x32xf32, #tpu.memory_space<vmem>>, %arg25: memref<1x32xf32, #tpu.memory_space<vmem>>, %arg26: memref<1x32xf32, #tpu.memory_space<vmem>>, %arg27: memref<2x6x32xf32, #tpu.memory_space<vmem>>) attributes {dimension_semantics = [#tpu.dimension_semantics<arbitrary>], iteration_bounds = array<i64: 1>, scalar_prefetch = 0 : i64, scratch_operands = 0 : i64, tpu.core_type = #tpu.core_type<tc>, window_params = [{pipeline_mode = #tpu.pipeline_mode<synchronous>, transform_indices = @transform_0, window_bounds = array<i64: 2, 6, 32>}, {pipeline_mode = #tpu.pipeline_mode<synchronous>, transform_indices = @transform_1, window_bounds = array<i64: 2, 8, 32>}, {pipeline_mode = #tpu.pipeline_mode<synchronous>, transform_indices = @transform_2, window_bounds = array<i64: 6, 6>}, {pipeline_mode = #tpu.pipeline_mode<synchronous>, transform_indices = @transform_3, window_bounds = array<i64: 2, 6>}, {pipeline_mode = #tpu.pipeline_mode<synchronous>, transform_indices = @transform_4, window_bounds = array<i64: 2, 8>}, {pipeline_mode = #tpu.pipeline_mode<synchronous>, transform_indices = @transform_5, window_bounds = array<i64: 6, 32>}, {pipeline_mode = #tpu.pipeline_mode<synchronous>, transform_indices = @transform_6, window_bounds = array<i64: 32, 96>}, {pipeline_mode = #tpu.pipeline_mode<synchronous>, transform_indices = @transform_7, window_bounds = array<i64: 1, 96>}, {pipeline_mode = #tpu.pipeline_mode<synchronous>, transform_indices = @transform_8, window_bounds = array<i64: 32, 32>}, {pipeline_mode = #tpu.pipeline_mode<synchronous>, transform_indices = @transform_9, window_bounds = array<i64: 1, 32>}, {pipeline_mode = #tpu.pipeline_mode<synchronous>, transform_indices = @transform_10, window_bounds = array<i64: 1, 32>}, {pipeline_mode = #tpu.pipeline_mode<synchronous>, transform_indices = @transform_11, window_bounds = array<i64: 1, 32>}, {pipeline_mode = #tpu.pipeline_mode<synchronous>, transform_indices = @transform_12, window_bounds = array<i64: 32, 32>}, {pipeline_mode = #tpu.pipeline_mode<synchronous>, transform_indices = @transform_13, window_bounds = array<i64: 1, 32>}, {pipeline_mode = #tpu.pipeline_mode<synchronous>, transform_indices = @transform_14, window_bounds = array<i64: 32, 64>}, {pipeline_mode = #tpu.pipeline_mode<synchronous>, transform_indices = @transform_15, window_bounds = array<i64: 1, 64>}, {pipeline_mode = #tpu.pipeline_mode<synchronous>, transform_indices = @transform_16, window_bounds = array<i64: 32, 32>}, {pipeline_mode = #tpu.pipeline_mode<synchronous>, transform_indices = @transform_17, window_bounds = array<i64: 1, 32>}, {pipeline_mode = #tpu.pipeline_mode<synchronous>, transform_indices = @transform_18, window_bounds = array<i64: 1, 32>}, {pipeline_mode = #tpu.pipeline_mode<synchronous>, transform_indices = @transform_19, window_bounds = array<i64: 1, 32>}, {pipeline_mode = #tpu.pipeline_mode<synchronous>, transform_indices = @transform_20, window_bounds = array<i64: 32, 64>}, {pipeline_mode = #tpu.pipeline_mode<synchronous>, transform_indices = @transform_21, window_bounds = array<i64: 1, 64>}, {pipeline_mode = #tpu.pipeline_mode<synchronous>, transform_indices = @transform_22, window_bounds = array<i64: 64, 32>}, {pipeline_mode = #tpu.pipeline_mode<synchronous>, transform_indices = @transform_23, window_bounds = array<i64: 1, 32>}, {pipeline_mode = #tpu.pipeline_mode<synchronous>, transform_indices = @transform_24, window_bounds = array<i64: 1, 32>}, {pipeline_mode = #tpu.pipeline_mode<synchronous>, transform_indices = @transform_25, window_bounds = array<i64: 1, 32>}, {pipeline_mode = #tpu.pipeline_mode<synchronous>, transform_indices = @transform_26, window_bounds = array<i64: 2, 6, 32>}]} {
    %c0 = arith.constant 0 : index
    %c0_0 = arith.constant 0 : index
    %c0_1 = arith.constant 0 : index
    %0 = vector.load %arg1[%c0, %c0_0, %c0_1] : memref<2x6x32xf32, #tpu.memory_space<vmem>>, vector<2x6x32xf32>
    %cst = arith.constant 5.65685415 : f32
    %1 = vector.broadcast %cst : f32 to vector<2x6x32xf32>
    %2 = arith.mulf %0, %1 : vector<2x6x32xf32>
    %c0_2 = arith.constant 0 : index
    %c0_3 = arith.constant 0 : index
    %3 = vector.load %arg6[%c0_2, %c0_3] : memref<6x32xf32, #tpu.memory_space<vmem>>, vector<6x32xf32>
    %4 = vector.shape_cast %3 : vector<6x32xf32> to vector<1x6x32xf32>
    %5 = vector.broadcast %4 : vector<1x6x32xf32> to vector<2x6x32xf32>
    %6 = arith.addf %2, %5 : vector<2x6x32xf32>
    %7 = vector.shape_cast %6 : vector<2x6x32xf32> to vector<12x32xf32>
    %c0_4 = arith.constant 0 : index
    %c0_5 = arith.constant 0 : index
    %c0_6 = arith.constant 0 : index
    %8 = vector.load %arg2[%c0_4, %c0_5, %c0_6] : memref<2x8x32xf32, #tpu.memory_space<vmem>>, vector<2x8x32xf32>
    %9 = vector.shape_cast %8 : vector<2x8x32xf32> to vector<16x32xf32>
    %c0_7 = arith.constant 0 : index
    %c0_8 = arith.constant 0 : index
    %10 = vector.load %arg7[%c0_7, %c0_8] : memref<32x96xbf16, #tpu.memory_space<vmem>>, vector<32x96xbf16>
    %c0_9 = arith.constant 0 : index
    %c0_10 = arith.constant 0 : index
    %11 = vector.load %arg8[%c0_9, %c0_10] : memref<1x96xf32, #tpu.memory_space<vmem>>, vector<1x96xf32>
    %12 = arith.truncf %7 : vector<12x32xf32> to vector<12x32xbf16>
    %cst_11 = arith.constant dense<0.000000e+00> : vector<12x96xf32>
    %13 = tpu.matmul %12, %10, %cst_11 {dimension_numbers = #tpu.dot_dimension_numbers<[1], [0], [0], [1], [0, 0, 1, 1], [], []>} : vector<12x32xbf16>, vector<32x96xbf16>, vector<12x96xf32> -> vector<12x96xf32>
    %14 = vector.broadcast %11 : vector<1x96xf32> to vector<12x96xf32>
    %15 = arith.addf %13, %14 : vector<12x96xf32>
    %c0_12 = arith.constant 0 : index
    %c0_13 = arith.constant 0 : index
    %16 = vector.load %arg3[%c0_12, %c0_13] : memref<6x6xf32, #tpu.memory_space<vmem>>, vector<6x6xf32>
    %17 = vector.shape_cast %16 : vector<6x6xf32> to vector<1x1x6x6xf32>
    %c0_14 = arith.constant 0 : index
    %c0_15 = arith.constant 0 : index
    %18 = vector.load %arg4[%c0_14, %c0_15] : memref<2x6xf32, #tpu.memory_space<vmem>>, vector<2x6xf32>
    %19 = vector.shape_cast %18 : vector<2x6xf32> to vector<2x1x1x6xf32>
    %20 = vector.broadcast %17 : vector<1x1x6x6xf32> to vector<2x1x6x6xf32>
    %21 = vector.broadcast %19 : vector<2x1x1x6xf32> to vector<2x1x6x6xf32>
    %22 = arith.addf %20, %21 : vector<2x1x6x6xf32>
    %cst_16 = arith.constant -1.000000e+30 : f32
    %23 = vector.broadcast %cst_16 : f32 to vector<2x1x6x6xf32>
    %24 = arith.maximumf %22, %23 : vector<2x1x6x6xf32>
    %25 = vector.extract_strided_slice %15 {offsets = [0, 0], sizes = [12, 32], strides = [1, 1]} : vector<12x96xf32> to vector<12x32xf32>
    %26 = vector.extract_strided_slice %15 {offsets = [0, 32], sizes = [12, 32], strides = [1, 1]} : vector<12x96xf32> to vector<12x32xf32>
    %27 = vector.extract_strided_slice %15 {offsets = [0, 64], sizes = [12, 32], strides = [1, 1]} : vector<12x96xf32> to vector<12x32xf32>
    %28 = vector.extract_strided_slice %25 {offsets = [0, 0], sizes = [6, 8], strides = [1, 1]} : vector<12x32xf32> to vector<6x8xf32>
    %29 = vector.extract_strided_slice %25 {offsets = [0, 8], sizes = [6, 8], strides = [1, 1]} : vector<12x32xf32> to vector<6x8xf32>
    %30 = vector.extract_strided_slice %25 {offsets = [0, 16], sizes = [6, 8], strides = [1, 1]} : vector<12x32xf32> to vector<6x8xf32>
    %31 = vector.extract_strided_slice %25 {offsets = [0, 24], sizes = [6, 8], strides = [1, 1]} : vector<12x32xf32> to vector<6x8xf32>
    %32 = vector.extract_strided_slice %25 {offsets = [6, 0], sizes = [6, 8], strides = [1, 1]} : vector<12x32xf32> to vector<6x8xf32>
    %33 = vector.extract_strided_slice %25 {offsets = [6, 8], sizes = [6, 8], strides = [1, 1]} : vector<12x32xf32> to vector<6x8xf32>
    %34 = vector.extract_strided_slice %25 {offsets = [6, 16], sizes = [6, 8], strides = [1, 1]} : vector<12x32xf32> to vector<6x8xf32>
    %35 = vector.extract_strided_slice %25 {offsets = [6, 24], sizes = [6, 8], strides = [1, 1]} : vector<12x32xf32> to vector<6x8xf32>
    %36 = vector.shape_cast %28 : vector<6x8xf32> to vector<1x6x8xf32>
    %37 = vector.shape_cast %29 : vector<6x8xf32> to vector<1x6x8xf32>
    %38 = vector.shape_cast %30 : vector<6x8xf32> to vector<1x6x8xf32>
    %39 = vector.shape_cast %31 : vector<6x8xf32> to vector<1x6x8xf32>
    %40 = vector.shape_cast %32 : vector<6x8xf32> to vector<1x6x8xf32>
    %41 = vector.shape_cast %33 : vector<6x8xf32> to vector<1x6x8xf32>
    %42 = vector.shape_cast %34 : vector<6x8xf32> to vector<1x6x8xf32>
    %43 = vector.shape_cast %35 : vector<6x8xf32> to vector<1x6x8xf32>
    %44 = tpu.concatenate %36, %37, %38, %39, %40, %41, %42, %43 in 0 : vector<1x6x8xf32>, vector<1x6x8xf32>, vector<1x6x8xf32>, vector<1x6x8xf32>, vector<1x6x8xf32>, vector<1x6x8xf32>, vector<1x6x8xf32>, vector<1x6x8xf32> -> vector<8x6x8xf32>
    %45 = arith.truncf %44 : vector<8x6x8xf32> to vector<8x6x8xbf16>
    %46 = vector.extract_strided_slice %26 {offsets = [0, 0], sizes = [6, 8], strides = [1, 1]} : vector<12x32xf32> to vector<6x8xf32>
    %47 = vector.extract_strided_slice %26 {offsets = [0, 8], sizes = [6, 8], strides = [1, 1]} : vector<12x32xf32> to vector<6x8xf32>
    %48 = vector.extract_strided_slice %26 {offsets = [0, 16], sizes = [6, 8], strides = [1, 1]} : vector<12x32xf32> to vector<6x8xf32>
    %49 = vector.extract_strided_slice %26 {offsets = [0, 24], sizes = [6, 8], strides = [1, 1]} : vector<12x32xf32> to vector<6x8xf32>
    %50 = vector.extract_strided_slice %26 {offsets = [6, 0], sizes = [6, 8], strides = [1, 1]} : vector<12x32xf32> to vector<6x8xf32>
    %51 = vector.extract_strided_slice %26 {offsets = [6, 8], sizes = [6, 8], strides = [1, 1]} : vector<12x32xf32> to vector<6x8xf32>
    %52 = vector.extract_strided_slice %26 {offsets = [6, 16], sizes = [6, 8], strides = [1, 1]} : vector<12x32xf32> to vector<6x8xf32>
    %53 = vector.extract_strided_slice %26 {offsets = [6, 24], sizes = [6, 8], strides = [1, 1]} : vector<12x32xf32> to vector<6x8xf32>
    %54 = vector.shape_cast %46 : vector<6x8xf32> to vector<1x6x8xf32>
    %55 = vector.shape_cast %47 : vector<6x8xf32> to vector<1x6x8xf32>
    %56 = vector.shape_cast %48 : vector<6x8xf32> to vector<1x6x8xf32>
    %57 = vector.shape_cast %49 : vector<6x8xf32> to vector<1x6x8xf32>
    %58 = vector.shape_cast %50 : vector<6x8xf32> to vector<1x6x8xf32>
    %59 = vector.shape_cast %51 : vector<6x8xf32> to vector<1x6x8xf32>
    %60 = vector.shape_cast %52 : vector<6x8xf32> to vector<1x6x8xf32>
    %61 = vector.shape_cast %53 : vector<6x8xf32> to vector<1x6x8xf32>
    %62 = tpu.concatenate %54, %55, %56, %57, %58, %59, %60, %61 in 0 : vector<1x6x8xf32>, vector<1x6x8xf32>, vector<1x6x8xf32>, vector<1x6x8xf32>, vector<1x6x8xf32>, vector<1x6x8xf32>, vector<1x6x8xf32>, vector<1x6x8xf32> -> vector<8x6x8xf32>
    %63 = arith.truncf %62 : vector<8x6x8xf32> to vector<8x6x8xbf16>
    %64 = vector.extract_strided_slice %27 {offsets = [0, 0], sizes = [6, 8], strides = [1, 1]} : vector<12x32xf32> to vector<6x8xf32>
    %65 = vector.extract_strided_slice %27 {offsets = [0, 8], sizes = [6, 8], strides = [1, 1]} : vector<12x32xf32> to vector<6x8xf32>
    %66 = vector.extract_strided_slice %27 {offsets = [0, 16], sizes = [6, 8], strides = [1, 1]} : vector<12x32xf32> to vector<6x8xf32>
    %67 = vector.extract_strided_slice %27 {offsets = [0, 24], sizes = [6, 8], strides = [1, 1]} : vector<12x32xf32> to vector<6x8xf32>
    %68 = vector.extract_strided_slice %27 {offsets = [6, 0], sizes = [6, 8], strides = [1, 1]} : vector<12x32xf32> to vector<6x8xf32>
    %69 = vector.extract_strided_slice %27 {offsets = [6, 8], sizes = [6, 8], strides = [1, 1]} : vector<12x32xf32> to vector<6x8xf32>
    %70 = vector.extract_strided_slice %27 {offsets = [6, 16], sizes = [6, 8], strides = [1, 1]} : vector<12x32xf32> to vector<6x8xf32>
    %71 = vector.extract_strided_slice %27 {offsets = [6, 24], sizes = [6, 8], strides = [1, 1]} : vector<12x32xf32> to vector<6x8xf32>
    %72 = vector.shape_cast %64 : vector<6x8xf32> to vector<1x6x8xf32>
    %73 = vector.shape_cast %65 : vector<6x8xf32> to vector<1x6x8xf32>
    %74 = vector.shape_cast %66 : vector<6x8xf32> to vector<1x6x8xf32>
    %75 = vector.shape_cast %67 : vector<6x8xf32> to vector<1x6x8xf32>
    %76 = vector.shape_cast %68 : vector<6x8xf32> to vector<1x6x8xf32>
    %77 = vector.shape_cast %69 : vector<6x8xf32> to vector<1x6x8xf32>
    %78 = vector.shape_cast %70 : vector<6x8xf32> to vector<1x6x8xf32>
    %79 = vector.shape_cast %71 : vector<6x8xf32> to vector<1x6x8xf32>
    %80 = tpu.concatenate %72, %73, %74, %75, %76, %77, %78, %79 in 0 : vector<1x6x8xf32>, vector<1x6x8xf32>, vector<1x6x8xf32>, vector<1x6x8xf32>, vector<1x6x8xf32>, vector<1x6x8xf32>, vector<1x6x8xf32>, vector<1x6x8xf32> -> vector<8x6x8xf32>
    %81 = arith.truncf %80 : vector<8x6x8xf32> to vector<8x6x8xbf16>
    %cst_17 = arith.constant dense<0.000000e+00> : vector<8x6x6xf32>
    %82 = tpu.matmul %45, %63, %cst_17 {dimension_numbers = #tpu.dot_dimension_numbers<[2], [2], [1], [1], [0, 0, 0, 1, 1, 1], [0], [0]>} : vector<8x6x8xbf16>, vector<8x6x8xbf16>, vector<8x6x6xf32> -> vector<8x6x6xf32>
    %cst_18 = arith.constant 0.353553385 : f32
    %83 = vector.broadcast %cst_18 : f32 to vector<8x6x6xf32>
    %84 = arith.mulf %82, %83 : vector<8x6x6xf32>
    %85 = vector.shape_cast %84 : vector<8x6x6xf32> to vector<2x4x6x6xf32>
    %86 = vector.broadcast %24 : vector<2x1x6x6xf32> to vector<2x4x6x6xf32>
    %87 = arith.addf %85, %86 : vector<2x4x6x6xf32>
    %cst_19 = arith.constant dense<0xFF800000> : vector<2x4x6xf32>
    %88 = vector.multi_reduction <maximumf>, %87, %cst_19 [3] : vector<2x4x6x6xf32> to vector<2x4x6xf32>
    %89 = vector.shape_cast %88 : vector<2x4x6xf32> to vector<2x4x6x1xf32>
    %90 = vector.broadcast %89 : vector<2x4x6x1xf32> to vector<2x4x6x6xf32>
    %91 = arith.subf %87, %90 : vector<2x4x6x6xf32>
    %92 = math.exp %91 : vector<2x4x6x6xf32>
    %cst_20 = arith.constant dense<0.000000e+00> : vector<2x4x6xf32>
    %93 = vector.multi_reduction <add>, %92, %cst_20 [3] : vector<2x4x6x6xf32> to vector<2x4x6xf32>
    %94 = vector.shape_cast %93 : vector<2x4x6xf32> to vector<2x4x6x1xf32>
    %95 = tpu.reciprocal %94 {approx = true} : vector<2x4x6x1xf32> -> vector<2x4x6x1xf32>
    %96 = vector.broadcast %95 : vector<2x4x6x1xf32> to vector<2x4x6x6xf32>
    %97 = arith.mulf %92, %96 : vector<2x4x6x6xf32>
    %98 = vector.shape_cast %97 : vector<2x4x6x6xf32> to vector<8x6x6xf32>
    %99 = arith.truncf %98 : vector<8x6x6xf32> to vector<8x6x6xbf16>
    %cst_21 = arith.constant dense<0.000000e+00> : vector<8x6x8xf32>
    %100 = tpu.matmul %99, %81, %cst_21 {dimension_numbers = #tpu.dot_dimension_numbers<[2], [1], [1], [2], [0, 0, 0, 1, 1, 2], [0], [0]>} : vector<8x6x6xbf16>, vector<8x6x8xbf16>, vector<8x6x8xf32> -> vector<8x6x8xf32>
    %101 = vector.extract_strided_slice %100 {offsets = [0, 0, 0], sizes = [1, 6, 8], strides = [1, 1, 1]} : vector<8x6x8xf32> to vector<1x6x8xf32>
    %102 = vector.shape_cast %101 : vector<1x6x8xf32> to vector<6x8xf32>
    %103 = vector.extract_strided_slice %100 {offsets = [1, 0, 0], sizes = [1, 6, 8], strides = [1, 1, 1]} : vector<8x6x8xf32> to vector<1x6x8xf32>
    %104 = vector.shape_cast %103 : vector<1x6x8xf32> to vector<6x8xf32>
    %105 = vector.extract_strided_slice %100 {offsets = [2, 0, 0], sizes = [1, 6, 8], strides = [1, 1, 1]} : vector<8x6x8xf32> to vector<1x6x8xf32>
    %106 = vector.shape_cast %105 : vector<1x6x8xf32> to vector<6x8xf32>
    %107 = vector.extract_strided_slice %100 {offsets = [3, 0, 0], sizes = [1, 6, 8], strides = [1, 1, 1]} : vector<8x6x8xf32> to vector<1x6x8xf32>
    %108 = vector.shape_cast %107 : vector<1x6x8xf32> to vector<6x8xf32>
    %109 = tpu.concatenate %102, %104, %106, %108 in 1 : vector<6x8xf32>, vector<6x8xf32>, vector<6x8xf32>, vector<6x8xf32> -> vector<6x32xf32>
    %110 = vector.extract_strided_slice %100 {offsets = [4, 0, 0], sizes = [1, 6, 8], strides = [1, 1, 1]} : vector<8x6x8xf32> to vector<1x6x8xf32>
    %111 = vector.shape_cast %110 : vector<1x6x8xf32> to vector<6x8xf32>
    %112 = vector.extract_strided_slice %100 {offsets = [5, 0, 0], sizes = [1, 6, 8], strides = [1, 1, 1]} : vector<8x6x8xf32> to vector<1x6x8xf32>
    %113 = vector.shape_cast %112 : vector<1x6x8xf32> to vector<6x8xf32>
    %114 = vector.extract_strided_slice %100 {offsets = [6, 0, 0], sizes = [1, 6, 8], strides = [1, 1, 1]} : vector<8x6x8xf32> to vector<1x6x8xf32>
    %115 = vector.shape_cast %114 : vector<1x6x8xf32> to vector<6x8xf32>
    %116 = vector.extract_strided_slice %100 {offsets = [7, 0, 0], sizes = [1, 6, 8], strides = [1, 1, 1]} : vector<8x6x8xf32> to vector<1x6x8xf32>
    %117 = vector.shape_cast %116 : vector<1x6x8xf32> to vector<6x8xf32>
    %118 = tpu.concatenate %111, %113, %115, %117 in 1 : vector<6x8xf32>, vector<6x8xf32>, vector<6x8xf32>, vector<6x8xf32> -> vector<6x32xf32>
    %119 = tpu.concatenate %109, %118 in 0 : vector<6x32xf32>, vector<6x32xf32> -> vector<12x32xf32>
    %c0_22 = arith.constant 0 : index
    %c0_23 = arith.constant 0 : index
    %120 = vector.load %arg9[%c0_22, %c0_23] : memref<32x32xbf16, #tpu.memory_space<vmem>>, vector<32x32xbf16>
    %c0_24 = arith.constant 0 : index
    %c0_25 = arith.constant 0 : index
    %121 = vector.load %arg10[%c0_24, %c0_25] : memref<1x32xf32, #tpu.memory_space<vmem>>, vector<1x32xf32>
    %122 = arith.truncf %119 : vector<12x32xf32> to vector<12x32xbf16>
    %cst_26 = arith.constant dense<0.000000e+00> : vector<12x32xf32>
    %123 = tpu.matmul %122, %120, %cst_26 {dimension_numbers = #tpu.dot_dimension_numbers<[1], [0], [0], [1], [0, 0, 1, 1], [], []>} : vector<12x32xbf16>, vector<32x32xbf16>, vector<12x32xf32> -> vector<12x32xf32>
    %124 = vector.broadcast %121 : vector<1x32xf32> to vector<12x32xf32>
    %125 = arith.addf %123, %124 : vector<12x32xf32>
    %126 = arith.addf %7, %125 : vector<12x32xf32>
    %c0_27 = arith.constant 0 : index
    %c0_28 = arith.constant 0 : index
    %127 = vector.load %arg11[%c0_27, %c0_28] : memref<1x32xf32, #tpu.memory_space<vmem>>, vector<1x32xf32>
    %c0_29 = arith.constant 0 : index
    %c0_30 = arith.constant 0 : index
    %128 = vector.load %arg12[%c0_29, %c0_30] : memref<1x32xf32, #tpu.memory_space<vmem>>, vector<1x32xf32>
    %cst_31 = arith.constant dense<0.000000e+00> : vector<12xf32>
    %129 = vector.multi_reduction <add>, %126, %cst_31 [1] : vector<12x32xf32> to vector<12xf32>
    %130 = vector.shape_cast %129 : vector<12xf32> to vector<12x1xf32>
    %cst_32 = arith.constant 3.200000e+01 : f32
    %131 = vector.broadcast %cst_32 : f32 to vector<12x1xf32>
    %132 = arith.divf %130, %131 : vector<12x1xf32>
    %133 = vector.broadcast %132 : vector<12x1xf32> to vector<12x32xf32>
    %134 = arith.subf %126, %133 : vector<12x32xf32>
    %135 = arith.mulf %134, %134 : vector<12x32xf32>
    %cst_33 = arith.constant dense<0.000000e+00> : vector<12xf32>
    %136 = vector.multi_reduction <add>, %135, %cst_33 [1] : vector<12x32xf32> to vector<12xf32>
    %137 = vector.shape_cast %136 : vector<12xf32> to vector<12x1xf32>
    %cst_34 = arith.constant 3.200000e+01 : f32
    %138 = vector.broadcast %cst_34 : f32 to vector<12x1xf32>
    %139 = arith.divf %137, %138 : vector<12x1xf32>
    %140 = vector.broadcast %132 : vector<12x1xf32> to vector<12x32xf32>
    %141 = arith.subf %126, %140 : vector<12x32xf32>
    %cst_35 = arith.constant 9.99999974E-6 : f32
    %142 = vector.broadcast %cst_35 : f32 to vector<12x1xf32>
    %143 = arith.addf %139, %142 : vector<12x1xf32>
    %144 = math.rsqrt %143 : vector<12x1xf32>
    %145 = vector.broadcast %144 : vector<12x1xf32> to vector<12x32xf32>
    %146 = arith.mulf %141, %145 : vector<12x32xf32>
    %147 = vector.broadcast %127 : vector<1x32xf32> to vector<12x32xf32>
    %148 = arith.mulf %146, %147 : vector<12x32xf32>
    %149 = vector.broadcast %128 : vector<1x32xf32> to vector<12x32xf32>
    %150 = arith.addf %148, %149 : vector<12x32xf32>
    %c0_36 = arith.constant 0 : index
    %c0_37 = arith.constant 0 : index
    %151 = vector.load %arg13[%c0_36, %c0_37] : memref<32x32xbf16, #tpu.memory_space<vmem>>, vector<32x32xbf16>
    %c0_38 = arith.constant 0 : index
    %c0_39 = arith.constant 0 : index
    %152 = vector.load %arg14[%c0_38, %c0_39] : memref<1x32xf32, #tpu.memory_space<vmem>>, vector<1x32xf32>
    %153 = arith.truncf %150 : vector<12x32xf32> to vector<12x32xbf16>
    %cst_40 = arith.constant dense<0.000000e+00> : vector<12x32xf32>
    %154 = tpu.matmul %153, %151, %cst_40 {dimension_numbers = #tpu.dot_dimension_numbers<[1], [0], [0], [1], [0, 0, 1, 1], [], []>} : vector<12x32xbf16>, vector<32x32xbf16>, vector<12x32xf32> -> vector<12x32xf32>
    %155 = vector.broadcast %152 : vector<1x32xf32> to vector<12x32xf32>
    %156 = arith.addf %154, %155 : vector<12x32xf32>
    %c0_41 = arith.constant 0 : index
    %c0_42 = arith.constant 0 : index
    %157 = vector.load %arg15[%c0_41, %c0_42] : memref<32x64xbf16, #tpu.memory_space<vmem>>, vector<32x64xbf16>
    %c0_43 = arith.constant 0 : index
    %c0_44 = arith.constant 0 : index
    %158 = vector.load %arg16[%c0_43, %c0_44] : memref<1x64xf32, #tpu.memory_space<vmem>>, vector<1x64xf32>
    %159 = arith.truncf %9 : vector<16x32xf32> to vector<16x32xbf16>
    %cst_45 = arith.constant dense<0.000000e+00> : vector<16x64xf32>
    %160 = tpu.matmul %159, %157, %cst_45 {dimension_numbers = #tpu.dot_dimension_numbers<[1], [0], [0], [1], [0, 0, 1, 1], [], []>} : vector<16x32xbf16>, vector<32x64xbf16>, vector<16x64xf32> -> vector<16x64xf32>
    %161 = vector.broadcast %158 : vector<1x64xf32> to vector<16x64xf32>
    %162 = arith.addf %160, %161 : vector<16x64xf32>
    %c0_46 = arith.constant 0 : index
    %c0_47 = arith.constant 0 : index
    %163 = vector.load %arg5[%c0_46, %c0_47] : memref<2x8xf32, #tpu.memory_space<vmem>>, vector<2x8xf32>
    %164 = vector.shape_cast %163 : vector<2x8xf32> to vector<2x1x1x8xf32>
    %165 = vector.extract_strided_slice %162 {offsets = [0, 0], sizes = [16, 32], strides = [1, 1]} : vector<16x64xf32> to vector<16x32xf32>
    %166 = vector.extract_strided_slice %162 {offsets = [0, 32], sizes = [16, 32], strides = [1, 1]} : vector<16x64xf32> to vector<16x32xf32>
    %167 = vector.extract_strided_slice %156 {offsets = [0, 0], sizes = [6, 8], strides = [1, 1]} : vector<12x32xf32> to vector<6x8xf32>
    %168 = vector.extract_strided_slice %156 {offsets = [0, 8], sizes = [6, 8], strides = [1, 1]} : vector<12x32xf32> to vector<6x8xf32>
    %169 = vector.extract_strided_slice %156 {offsets = [0, 16], sizes = [6, 8], strides = [1, 1]} : vector<12x32xf32> to vector<6x8xf32>
    %170 = vector.extract_strided_slice %156 {offsets = [0, 24], sizes = [6, 8], strides = [1, 1]} : vector<12x32xf32> to vector<6x8xf32>
    %171 = vector.extract_strided_slice %156 {offsets = [6, 0], sizes = [6, 8], strides = [1, 1]} : vector<12x32xf32> to vector<6x8xf32>
    %172 = vector.extract_strided_slice %156 {offsets = [6, 8], sizes = [6, 8], strides = [1, 1]} : vector<12x32xf32> to vector<6x8xf32>
    %173 = vector.extract_strided_slice %156 {offsets = [6, 16], sizes = [6, 8], strides = [1, 1]} : vector<12x32xf32> to vector<6x8xf32>
    %174 = vector.extract_strided_slice %156 {offsets = [6, 24], sizes = [6, 8], strides = [1, 1]} : vector<12x32xf32> to vector<6x8xf32>
    %175 = vector.shape_cast %167 : vector<6x8xf32> to vector<1x6x8xf32>
    %176 = vector.shape_cast %168 : vector<6x8xf32> to vector<1x6x8xf32>
    %177 = vector.shape_cast %169 : vector<6x8xf32> to vector<1x6x8xf32>
    %178 = vector.shape_cast %170 : vector<6x8xf32> to vector<1x6x8xf32>
    %179 = vector.shape_cast %171 : vector<6x8xf32> to vector<1x6x8xf32>
    %180 = vector.shape_cast %172 : vector<6x8xf32> to vector<1x6x8xf32>
    %181 = vector.shape_cast %173 : vector<6x8xf32> to vector<1x6x8xf32>
    %182 = vector.shape_cast %174 : vector<6x8xf32> to vector<1x6x8xf32>
    %183 = tpu.concatenate %175, %176, %177, %178, %179, %180, %181, %182 in 0 : vector<1x6x8xf32>, vector<1x6x8xf32>, vector<1x6x8xf32>, vector<1x6x8xf32>, vector<1x6x8xf32>, vector<1x6x8xf32>, vector<1x6x8xf32>, vector<1x6x8xf32> -> vector<8x6x8xf32>
    %184 = arith.truncf %183 : vector<8x6x8xf32> to vector<8x6x8xbf16>
    %185 = vector.extract_strided_slice %165 {offsets = [0, 0], sizes = [8, 8], strides = [1, 1]} : vector<16x32xf32> to vector<8x8xf32>
    %186 = vector.extract_strided_slice %165 {offsets = [0, 8], sizes = [8, 8], strides = [1, 1]} : vector<16x32xf32> to vector<8x8xf32>
    %187 = vector.extract_strided_slice %165 {offsets = [0, 16], sizes = [8, 8], strides = [1, 1]} : vector<16x32xf32> to vector<8x8xf32>
    %188 = vector.extract_strided_slice %165 {offsets = [0, 24], sizes = [8, 8], strides = [1, 1]} : vector<16x32xf32> to vector<8x8xf32>
    %189 = vector.extract_strided_slice %165 {offsets = [8, 0], sizes = [8, 8], strides = [1, 1]} : vector<16x32xf32> to vector<8x8xf32>
    %190 = vector.extract_strided_slice %165 {offsets = [8, 8], sizes = [8, 8], strides = [1, 1]} : vector<16x32xf32> to vector<8x8xf32>
    %191 = vector.extract_strided_slice %165 {offsets = [8, 16], sizes = [8, 8], strides = [1, 1]} : vector<16x32xf32> to vector<8x8xf32>
    %192 = vector.extract_strided_slice %165 {offsets = [8, 24], sizes = [8, 8], strides = [1, 1]} : vector<16x32xf32> to vector<8x8xf32>
    %193 = vector.shape_cast %185 : vector<8x8xf32> to vector<1x8x8xf32>
    %194 = vector.shape_cast %186 : vector<8x8xf32> to vector<1x8x8xf32>
    %195 = vector.shape_cast %187 : vector<8x8xf32> to vector<1x8x8xf32>
    %196 = vector.shape_cast %188 : vector<8x8xf32> to vector<1x8x8xf32>
    %197 = vector.shape_cast %189 : vector<8x8xf32> to vector<1x8x8xf32>
    %198 = vector.shape_cast %190 : vector<8x8xf32> to vector<1x8x8xf32>
    %199 = vector.shape_cast %191 : vector<8x8xf32> to vector<1x8x8xf32>
    %200 = vector.shape_cast %192 : vector<8x8xf32> to vector<1x8x8xf32>
    %201 = tpu.concatenate %193, %194, %195, %196, %197, %198, %199, %200 in 0 : vector<1x8x8xf32>, vector<1x8x8xf32>, vector<1x8x8xf32>, vector<1x8x8xf32>, vector<1x8x8xf32>, vector<1x8x8xf32>, vector<1x8x8xf32>, vector<1x8x8xf32> -> vector<8x8x8xf32>
    %202 = arith.truncf %201 : vector<8x8x8xf32> to vector<8x8x8xbf16>
    %203 = vector.extract_strided_slice %166 {offsets = [0, 0], sizes = [8, 8], strides = [1, 1]} : vector<16x32xf32> to vector<8x8xf32>
    %204 = vector.extract_strided_slice %166 {offsets = [0, 8], sizes = [8, 8], strides = [1, 1]} : vector<16x32xf32> to vector<8x8xf32>
    %205 = vector.extract_strided_slice %166 {offsets = [0, 16], sizes = [8, 8], strides = [1, 1]} : vector<16x32xf32> to vector<8x8xf32>
    %206 = vector.extract_strided_slice %166 {offsets = [0, 24], sizes = [8, 8], strides = [1, 1]} : vector<16x32xf32> to vector<8x8xf32>
    %207 = vector.extract_strided_slice %166 {offsets = [8, 0], sizes = [8, 8], strides = [1, 1]} : vector<16x32xf32> to vector<8x8xf32>
    %208 = vector.extract_strided_slice %166 {offsets = [8, 8], sizes = [8, 8], strides = [1, 1]} : vector<16x32xf32> to vector<8x8xf32>
    %209 = vector.extract_strided_slice %166 {offsets = [8, 16], sizes = [8, 8], strides = [1, 1]} : vector<16x32xf32> to vector<8x8xf32>
    %210 = vector.extract_strided_slice %166 {offsets = [8, 24], sizes = [8, 8], strides = [1, 1]} : vector<16x32xf32> to vector<8x8xf32>
    %211 = vector.shape_cast %203 : vector<8x8xf32> to vector<1x8x8xf32>
    %212 = vector.shape_cast %204 : vector<8x8xf32> to vector<1x8x8xf32>
    %213 = vector.shape_cast %205 : vector<8x8xf32> to vector<1x8x8xf32>
    %214 = vector.shape_cast %206 : vector<8x8xf32> to vector<1x8x8xf32>
    %215 = vector.shape_cast %207 : vector<8x8xf32> to vector<1x8x8xf32>
    %216 = vector.shape_cast %208 : vector<8x8xf32> to vector<1x8x8xf32>
    %217 = vector.shape_cast %209 : vector<8x8xf32> to vector<1x8x8xf32>
    %218 = vector.shape_cast %210 : vector<8x8xf32> to vector<1x8x8xf32>
    %219 = tpu.concatenate %211, %212, %213, %214, %215, %216, %217, %218 in 0 : vector<1x8x8xf32>, vector<1x8x8xf32>, vector<1x8x8xf32>, vector<1x8x8xf32>, vector<1x8x8xf32>, vector<1x8x8xf32>, vector<1x8x8xf32>, vector<1x8x8xf32> -> vector<8x8x8xf32>
    %220 = arith.truncf %219 : vector<8x8x8xf32> to vector<8x8x8xbf16>
    %cst_48 = arith.constant dense<0.000000e+00> : vector<8x6x8xf32>
    %221 = tpu.matmul %184, %202, %cst_48 {dimension_numbers = #tpu.dot_dimension_numbers<[2], [2], [1], [1], [0, 0, 0, 1, 1, 1], [0], [0]>} : vector<8x6x8xbf16>, vector<8x8x8xbf16>, vector<8x6x8xf32> -> vector<8x6x8xf32>
    %cst_49 = arith.constant 0.353553385 : f32
    %222 = vector.broadcast %cst_49 : f32 to vector<8x6x8xf32>
    %223 = arith.mulf %221, %222 : vector<8x6x8xf32>
    %224 = vector.shape_cast %223 : vector<8x6x8xf32> to vector<2x4x6x8xf32>
    %225 = vector.broadcast %164 : vector<2x1x1x8xf32> to vector<2x4x6x8xf32>
    %226 = arith.addf %224, %225 : vector<2x4x6x8xf32>
    %cst_50 = arith.constant dense<0xFF800000> : vector<2x4x6xf32>
    %227 = vector.multi_reduction <maximumf>, %226, %cst_50 [3] : vector<2x4x6x8xf32> to vector<2x4x6xf32>
    %228 = vector.shape_cast %227 : vector<2x4x6xf32> to vector<2x4x6x1xf32>
    %229 = vector.broadcast %228 : vector<2x4x6x1xf32> to vector<2x4x6x8xf32>
    %230 = arith.subf %226, %229 : vector<2x4x6x8xf32>
    %231 = math.exp %230 : vector<2x4x6x8xf32>
    %cst_51 = arith.constant dense<0.000000e+00> : vector<2x4x6xf32>
    %232 = vector.multi_reduction <add>, %231, %cst_51 [3] : vector<2x4x6x8xf32> to vector<2x4x6xf32>
    %233 = vector.shape_cast %232 : vector<2x4x6xf32> to vector<2x4x6x1xf32>
    %234 = tpu.reciprocal %233 {approx = true} : vector<2x4x6x1xf32> -> vector<2x4x6x1xf32>
    %235 = vector.broadcast %234 : vector<2x4x6x1xf32> to vector<2x4x6x8xf32>
    %236 = arith.mulf %231, %235 : vector<2x4x6x8xf32>
    %237 = vector.shape_cast %236 : vector<2x4x6x8xf32> to vector<8x6x8xf32>
    %238 = arith.truncf %237 : vector<8x6x8xf32> to vector<8x6x8xbf16>
    %cst_52 = arith.constant dense<0.000000e+00> : vector<8x6x8xf32>
    %239 = tpu.matmul %238, %220, %cst_52 {dimension_numbers = #tpu.dot_dimension_numbers<[2], [1], [1], [2], [0, 0, 0, 1, 1, 2], [0], [0]>} : vector<8x6x8xbf16>, vector<8x8x8xbf16>, vector<8x6x8xf32> -> vector<8x6x8xf32>
    %240 = vector.extract_strided_slice %239 {offsets = [0, 0, 0], sizes = [1, 6, 8], strides = [1, 1, 1]} : vector<8x6x8xf32> to vector<1x6x8xf32>
    %241 = vector.shape_cast %240 : vector<1x6x8xf32> to vector<6x8xf32>
    %242 = vector.extract_strided_slice %239 {offsets = [1, 0, 0], sizes = [1, 6, 8], strides = [1, 1, 1]} : vector<8x6x8xf32> to vector<1x6x8xf32>
    %243 = vector.shape_cast %242 : vector<1x6x8xf32> to vector<6x8xf32>
    %244 = vector.extract_strided_slice %239 {offsets = [2, 0, 0], sizes = [1, 6, 8], strides = [1, 1, 1]} : vector<8x6x8xf32> to vector<1x6x8xf32>
    %245 = vector.shape_cast %244 : vector<1x6x8xf32> to vector<6x8xf32>
    %246 = vector.extract_strided_slice %239 {offsets = [3, 0, 0], sizes = [1, 6, 8], strides = [1, 1, 1]} : vector<8x6x8xf32> to vector<1x6x8xf32>
    %247 = vector.shape_cast %246 : vector<1x6x8xf32> to vector<6x8xf32>
    %248 = tpu.concatenate %241, %243, %245, %247 in 1 : vector<6x8xf32>, vector<6x8xf32>, vector<6x8xf32>, vector<6x8xf32> -> vector<6x32xf32>
    %249 = vector.extract_strided_slice %239 {offsets = [4, 0, 0], sizes = [1, 6, 8], strides = [1, 1, 1]} : vector<8x6x8xf32> to vector<1x6x8xf32>
    %250 = vector.shape_cast %249 : vector<1x6x8xf32> to vector<6x8xf32>
    %251 = vector.extract_strided_slice %239 {offsets = [5, 0, 0], sizes = [1, 6, 8], strides = [1, 1, 1]} : vector<8x6x8xf32> to vector<1x6x8xf32>
    %252 = vector.shape_cast %251 : vector<1x6x8xf32> to vector<6x8xf32>
    %253 = vector.extract_strided_slice %239 {offsets = [6, 0, 0], sizes = [1, 6, 8], strides = [1, 1, 1]} : vector<8x6x8xf32> to vector<1x6x8xf32>
    %254 = vector.shape_cast %253 : vector<1x6x8xf32> to vector<6x8xf32>
    %255 = vector.extract_strided_slice %239 {offsets = [7, 0, 0], sizes = [1, 6, 8], strides = [1, 1, 1]} : vector<8x6x8xf32> to vector<1x6x8xf32>
    %256 = vector.shape_cast %255 : vector<1x6x8xf32> to vector<6x8xf32>
    %257 = tpu.concatenate %250, %252, %254, %256 in 1 : vector<6x8xf32>, vector<6x8xf32>, vector<6x8xf32>, vector<6x8xf32> -> vector<6x32xf32>
    %258 = tpu.concatenate %248, %257 in 0 : vector<6x32xf32>, vector<6x32xf32> -> vector<12x32xf32>
    %c0_53 = arith.constant 0 : index
    %c0_54 = arith.constant 0 : index
    %259 = vector.load %arg17[%c0_53, %c0_54] : memref<32x32xbf16, #tpu.memory_space<vmem>>, vector<32x32xbf16>
    %c0_55 = arith.constant 0 : index
    %c0_56 = arith.constant 0 : index
    %260 = vector.load %arg18[%c0_55, %c0_56] : memref<1x32xf32, #tpu.memory_space<vmem>>, vector<1x32xf32>
    %261 = arith.truncf %258 : vector<12x32xf32> to vector<12x32xbf16>
    %cst_57 = arith.constant dense<0.000000e+00> : vector<12x32xf32>
    %262 = tpu.matmul %261, %259, %cst_57 {dimension_numbers = #tpu.dot_dimension_numbers<[1], [0], [0], [1], [0, 0, 1, 1], [], []>} : vector<12x32xbf16>, vector<32x32xbf16>, vector<12x32xf32> -> vector<12x32xf32>
    %263 = vector.broadcast %260 : vector<1x32xf32> to vector<12x32xf32>
    %264 = arith.addf %262, %263 : vector<12x32xf32>
    %265 = arith.addf %150, %264 : vector<12x32xf32>
    %c0_58 = arith.constant 0 : index
    %c0_59 = arith.constant 0 : index
    %266 = vector.load %arg19[%c0_58, %c0_59] : memref<1x32xf32, #tpu.memory_space<vmem>>, vector<1x32xf32>
    %c0_60 = arith.constant 0 : index
    %c0_61 = arith.constant 0 : index
    %267 = vector.load %arg20[%c0_60, %c0_61] : memref<1x32xf32, #tpu.memory_space<vmem>>, vector<1x32xf32>
    %cst_62 = arith.constant dense<0.000000e+00> : vector<12xf32>
    %268 = vector.multi_reduction <add>, %265, %cst_62 [1] : vector<12x32xf32> to vector<12xf32>
    %269 = vector.shape_cast %268 : vector<12xf32> to vector<12x1xf32>
    %cst_63 = arith.constant 3.200000e+01 : f32
    %270 = vector.broadcast %cst_63 : f32 to vector<12x1xf32>
    %271 = arith.divf %269, %270 : vector<12x1xf32>
    %272 = vector.broadcast %271 : vector<12x1xf32> to vector<12x32xf32>
    %273 = arith.subf %265, %272 : vector<12x32xf32>
    %274 = arith.mulf %273, %273 : vector<12x32xf32>
    %cst_64 = arith.constant dense<0.000000e+00> : vector<12xf32>
    %275 = vector.multi_reduction <add>, %274, %cst_64 [1] : vector<12x32xf32> to vector<12xf32>
    %276 = vector.shape_cast %275 : vector<12xf32> to vector<12x1xf32>
    %cst_65 = arith.constant 3.200000e+01 : f32
    %277 = vector.broadcast %cst_65 : f32 to vector<12x1xf32>
    %278 = arith.divf %276, %277 : vector<12x1xf32>
    %279 = vector.broadcast %271 : vector<12x1xf32> to vector<12x32xf32>
    %280 = arith.subf %265, %279 : vector<12x32xf32>
    %cst_66 = arith.constant 9.99999974E-6 : f32
    %281 = vector.broadcast %cst_66 : f32 to vector<12x1xf32>
    %282 = arith.addf %278, %281 : vector<12x1xf32>
    %283 = math.rsqrt %282 : vector<12x1xf32>
    %284 = vector.broadcast %283 : vector<12x1xf32> to vector<12x32xf32>
    %285 = arith.mulf %280, %284 : vector<12x32xf32>
    %286 = vector.broadcast %266 : vector<1x32xf32> to vector<12x32xf32>
    %287 = arith.mulf %285, %286 : vector<12x32xf32>
    %288 = vector.broadcast %267 : vector<1x32xf32> to vector<12x32xf32>
    %289 = arith.addf %287, %288 : vector<12x32xf32>
    %c0_67 = arith.constant 0 : index
    %c0_68 = arith.constant 0 : index
    %290 = vector.load %arg21[%c0_67, %c0_68] : memref<32x64xbf16, #tpu.memory_space<vmem>>, vector<32x64xbf16>
    %c0_69 = arith.constant 0 : index
    %c0_70 = arith.constant 0 : index
    %291 = vector.load %arg22[%c0_69, %c0_70] : memref<1x64xf32, #tpu.memory_space<vmem>>, vector<1x64xf32>
    %292 = arith.truncf %289 : vector<12x32xf32> to vector<12x32xbf16>
    %cst_71 = arith.constant dense<0.000000e+00> : vector<12x64xf32>
    %293 = tpu.matmul %292, %290, %cst_71 {dimension_numbers = #tpu.dot_dimension_numbers<[1], [0], [0], [1], [0, 0, 1, 1], [], []>} : vector<12x32xbf16>, vector<32x64xbf16>, vector<12x64xf32> -> vector<12x64xf32>
    %294 = vector.broadcast %291 : vector<1x64xf32> to vector<12x64xf32>
    %295 = arith.addf %293, %294 : vector<12x64xf32>
    %cst_72 = arith.constant 0.000000e+00 : f32
    %296 = vector.broadcast %cst_72 : f32 to vector<12x64xf32>
    %297 = arith.maximumf %295, %296 : vector<12x64xf32>
    %c0_73 = arith.constant 0 : index
    %c0_74 = arith.constant 0 : index
    %298 = vector.load %arg23[%c0_73, %c0_74] : memref<64x32xbf16, #tpu.memory_space<vmem>>, vector<64x32xbf16>
    %c0_75 = arith.constant 0 : index
    %c0_76 = arith.constant 0 : index
    %299 = vector.load %arg24[%c0_75, %c0_76] : memref<1x32xf32, #tpu.memory_space<vmem>>, vector<1x32xf32>
    %300 = arith.truncf %297 : vector<12x64xf32> to vector<12x64xbf16>
    %cst_77 = arith.constant dense<0.000000e+00> : vector<12x32xf32>
    %301 = tpu.matmul %300, %298, %cst_77 {dimension_numbers = #tpu.dot_dimension_numbers<[1], [0], [0], [1], [0, 0, 1, 1], [], []>} : vector<12x64xbf16>, vector<64x32xbf16>, vector<12x32xf32> -> vector<12x32xf32>
    %302 = vector.broadcast %299 : vector<1x32xf32> to vector<12x32xf32>
    %303 = arith.addf %301, %302 : vector<12x32xf32>
    %304 = arith.addf %289, %303 : vector<12x32xf32>
    %c0_78 = arith.constant 0 : index
    %c0_79 = arith.constant 0 : index
    %305 = vector.load %arg25[%c0_78, %c0_79] : memref<1x32xf32, #tpu.memory_space<vmem>>, vector<1x32xf32>
    %c0_80 = arith.constant 0 : index
    %c0_81 = arith.constant 0 : index
    %306 = vector.load %arg26[%c0_80, %c0_81] : memref<1x32xf32, #tpu.memory_space<vmem>>, vector<1x32xf32>
    %cst_82 = arith.constant dense<0.000000e+00> : vector<12xf32>
    %307 = vector.multi_reduction <add>, %304, %cst_82 [1] : vector<12x32xf32> to vector<12xf32>
    %308 = vector.shape_cast %307 : vector<12xf32> to vector<12x1xf32>
    %cst_83 = arith.constant 3.200000e+01 : f32
    %309 = vector.broadcast %cst_83 : f32 to vector<12x1xf32>
    %310 = arith.divf %308, %309 : vector<12x1xf32>
    %311 = vector.broadcast %310 : vector<12x1xf32> to vector<12x32xf32>
    %312 = arith.subf %304, %311 : vector<12x32xf32>
    %313 = arith.mulf %312, %312 : vector<12x32xf32>
    %cst_84 = arith.constant dense<0.000000e+00> : vector<12xf32>
    %314 = vector.multi_reduction <add>, %313, %cst_84 [1] : vector<12x32xf32> to vector<12xf32>
    %315 = vector.shape_cast %314 : vector<12xf32> to vector<12x1xf32>
    %cst_85 = arith.constant 3.200000e+01 : f32
    %316 = vector.broadcast %cst_85 : f32 to vector<12x1xf32>
    %317 = arith.divf %315, %316 : vector<12x1xf32>
    %318 = vector.broadcast %310 : vector<12x1xf32> to vector<12x32xf32>
    %319 = arith.subf %304, %318 : vector<12x32xf32>
    %cst_86 = arith.constant 9.99999974E-6 : f32
    %320 = vector.broadcast %cst_86 : f32 to vector<12x1xf32>
    %321 = arith.addf %317, %320 : vector<12x1xf32>
    %322 = math.rsqrt %321 : vector<12x1xf32>
    %323 = vector.broadcast %322 : vector<12x1xf32> to vector<12x32xf32>
    %324 = arith.mulf %319, %323 : vector<12x32xf32>
    %325 = vector.broadcast %305 : vector<1x32xf32> to vector<12x32xf32>
    %326 = arith.mulf %324, %325 : vector<12x32xf32>
    %327 = vector.broadcast %306 : vector<1x32xf32> to vector<12x32xf32>
    %328 = arith.addf %326, %327 : vector<12x32xf32>
    %329 = vector.shape_cast %328 : vector<12x32xf32> to vector<2x6x32xf32>
    %c0_87 = arith.constant 0 : index
    %c0_88 = arith.constant 0 : index
    %c0_89 = arith.constant 0 : index
    %330 = vector.load %arg27[%c0_87, %c0_88, %c0_89] : memref<2x6x32xf32, #tpu.memory_space<vmem>>, vector<2x6x32xf32>
    tpu.vector_store %arg27[%c0_87, %c0_88, %c0_89], %329 {strides = array<i32>} : memref<2x6x32xf32, #tpu.memory_space<vmem>>, vector<2x6x32xf32>,
    return
  }
  func.func @transform_0(%arg0: i32) -> (i32, i32, i32) {
    %c0_i32 = arith.constant 0 : i32
    %c0_i32_0 = arith.constant 0 : i32
    %c0_i32_1 = arith.constant 0 : i32
    %c0_i32_2 = arith.constant 0 : i32
    return %c0_i32, %c0_i32_0, %c0_i32_1 : i32, i32, i32
  }
  func.func @transform_1(%arg0: i32) -> (i32, i32, i32) {
    %c0_i32 = arith.constant 0 : i32
    %c0_i32_0 = arith.constant 0 : i32
    %c0_i32_1 = arith.constant 0 : i32
    %c0_i32_2 = arith.constant 0 : i32
    return %c0_i32, %c0_i32_0, %c0_i32_1 : i32, i32, i32
  }
  func.func @transform_2(%arg0: i32) -> (i32, i32) {
    %c0_i32 = arith.constant 0 : i32
    %c0_i32_0 = arith.constant 0 : i32
    %c0_i32_1 = arith.constant 0 : i32
    return %c0_i32, %c0_i32_0 : i32, i32
  }
  func.func @transform_3(%arg0: i32) -> (i32, i32) {
    %c0_i32 = arith.constant 0 : i32
    %c0_i32_0 = arith.constant 0 : i32
    %c0_i32_1 = arith.constant 0 : i32
    return %c0_i32, %c0_i32_0 : i32, i32
  }
  func.func @transform_4(%arg0: i32) -> (i32, i32) {
    %c0_i32 = arith.constant 0 : i32
    %c0_i32_0 = arith.constant 0 : i32
    %c0_i32_1 = arith.constant 0 : i32
    return %c0_i32, %c0_i32_0 : i32, i32
  }
  func.func @transform_5(%arg0: i32) -> (i32, i32) {
    %c0_i32 = arith.constant 0 : i32
    %c0_i32_0 = arith.constant 0 : i32
    %c0_i32_1 = arith.constant 0 : i32
    return %c0_i32, %c0_i32_0 : i32, i32
  }
  func.func @transform_6(%arg0: i32) -> (i32, i32) {
    %c0_i32 = arith.constant 0 : i32
    %c0_i32_0 = arith.constant 0 : i32
    %c0_i32_1 = arith.constant 0 : i32
    return %c0_i32, %c0_i32_0 : i32, i32
  }
  func.func @transform_7(%arg0: i32) -> (i32, i32) {
    %c0_i32 = arith.constant 0 : i32
    %c0_i32_0 = arith.constant 0 : i32
    %c0_i32_1 = arith.constant 0 : i32
    return %c0_i32, %c0_i32_0 : i32, i32
  }
  func.func @transform_8(%arg0: i32) -> (i32, i32) {
    %c0_i32 = arith.constant 0 : i32
    %c0_i32_0 = arith.constant 0 : i32
    %c0_i32_1 = arith.constant 0 : i32
    return %c0_i32, %c0_i32_0 : i32, i32
  }
  func.func @transform_9(%arg0: i32) -> (i32, i32) {
    %c0_i32 = arith.constant 0 : i32
    %c0_i32_0 = arith.constant 0 : i32
    %c0_i32_1 = arith.constant 0 : i32
    return %c0_i32, %c0_i32_0 : i32, i32
  }
  func.func @transform_10(%arg0: i32) -> (i32, i32) {
    %c0_i32 = arith.constant 0 : i32
    %c0_i32_0 = arith.constant 0 : i32
    %c0_i32_1 = arith.constant 0 : i32
    return %c0_i32, %c0_i32_0 : i32, i32
  }
  func.func @transform_11(%arg0: i32) -> (i32, i32) {
    %c0_i32 = arith.constant 0 : i32
    %c0_i32_0 = arith.constant 0 : i32
    %c0_i32_1 = arith.constant 0 : i32
    return %c0_i32, %c0_i32_0 : i32, i32
  }
  func.func @transform_12(%arg0: i32) -> (i32, i32) {
    %c0_i32 = arith.constant 0 : i32
    %c0_i32_0 = arith.constant 0 : i32
    %c0_i32_1 = arith.constant 0 : i32
    return %c0_i32, %c0_i32_0 : i32, i32
  }
  func.func @transform_13(%arg0: i32) -> (i32, i32) {
    %c0_i32 = arith.constant 0 : i32
    %c0_i32_0 = arith.constant 0 : i32
    %c0_i32_1 = arith.constant 0 : i32
    return %c0_i32, %c0_i32_0 : i32, i32
  }
  func.func @transform_14(%arg0: i32) -> (i32, i32) {
    %c0_i32 = arith.constant 0 : i32
    %c0_i32_0 = arith.constant 0 : i32
    %c0_i32_1 = arith.constant 0 : i32
    return %c0_i32, %c0_i32_0 : i32, i32
  }
  func.func @transform_15(%arg0: i32) -> (i32, i32) {
    %c0_i32 = arith.constant 0 : i32
    %c0_i32_0 = arith.constant 0 : i32
    %c0_i32_1 = arith.constant 0 : i32
    return %c0_i32, %c0_i32_0 : i32, i32
  }
  func.func @transform_16(%arg0: i32) -> (i32, i32) {
    %c0_i32 = arith.constant 0 : i32
    %c0_i32_0 = arith.constant 0 : i32
    %c0_i32_1 = arith.constant 0 : i32
    return %c0_i32, %c0_i32_0 : i32, i32
  }
  func.func @transform_17(%arg0: i32) -> (i32, i32) {
    %c0_i32 = arith.constant 0 : i32
    %c0_i32_0 = arith.constant 0 : i32
    %c0_i32_1 = arith.constant 0 : i32
    return %c0_i32, %c0_i32_0 : i32, i32
  }
  func.func @transform_18(%arg0: i32) -> (i32, i32) {
    %c0_i32 = arith.constant 0 : i32
    %c0_i32_0 = arith.constant 0 : i32
    %c0_i32_1 = arith.constant 0 : i32
    return %c0_i32, %c0_i32_0 : i32, i32
  }
  func.func @transform_19(%arg0: i32) -> (i32, i32) {
    %c0_i32 = arith.constant 0 : i32
    %c0_i32_0 = arith.constant 0 : i32
    %c0_i32_1 = arith.constant 0 : i32
    return %c0_i32, %c0_i32_0 : i32, i32
  }
  func.func @transform_20(%arg0: i32) -> (i32, i32) {
    %c0_i32 = arith.constant 0 : i32
    %c0_i32_0 = arith.constant 0 : i32
    %c0_i32_1 = arith.constant 0 : i32
    return %c0_i32, %c0_i32_0 : i32, i32
  }
  func.func @transform_21(%arg0: i32) -> (i32, i32) {
    %c0_i32 = arith.constant 0 : i32
    %c0_i32_0 = arith.constant 0 : i32
    %c0_i32_1 = arith.constant 0 : i32
    return %c0_i32, %c0_i32_0 : i32, i32
  }
  func.func @transform_22(%arg0: i32) -> (i32, i32) {
    %c0_i32 = arith.constant 0 : i32
    %c0_i32_0 = arith.constant 0 : i32
    %c0_i32_1 = arith.constant 0 : i32
    return %c0_i32, %c0_i32_0 : i32, i32
  }
  func.func @transform_23(%arg0: i32) -> (i32, i32) {
    %c0_i32 = arith.constant 0 : i32
    %c0_i32_0 = arith.constant 0 : i32
    %c0_i32_1 = arith.constant 0 : i32
    return %c0_i32, %c0_i32_0 : i32, i32
  }
  func.func @transform_24(%arg0: i32) -> (i32, i32) {
    %c0_i32 = arith.constant 0 : i32
    %c0_i32_0 = arith.constant 0 : i32
    %c0_i32_1 = arith.constant 0 : i32
    return %c0_i32, %c0_i32_0 : i32, i32
  }
  func.func @transform_25(%arg0: i32) -> (i32, i32) {
    %c0_i32 = arith.constant 0 : i32
    %c0_i32_0 = arith.constant 0 : i32
    %c0_i32_1 = arith.constant 0 : i32
    return %c0_i32, %c0_i32_0 : i32, i32
  }
  func.func @transform_26(%arg0: i32) -> (i32, i32, i32) {
    %c0_i32 = arith.constant 0 : i32
    %c0_i32_0 = arith.constant 0 : i32
    %c0_i32_1 = arith.constant 0 : i32
    %c0_i32_2 = arith.constant 0 : i32
    return %c0_i32, %c0_i32_0, %c0_i32_1 : i32, i32, i32
  }
}

module attributes {stable_mosaic.version = 11 : i64} {
  func.func @_decoder_layer_kernel(%arg0: i32, %arg1: memref<2x6x32xf32, #tpu.memory_space<vmem>>, %arg2: memref<2x8x32xf32, #tpu.memory_space<vmem>>, %arg3: memref<6x6xf32, #tpu.memory_space<vmem>>, %arg4: memref<2x6xf32, #tpu.memory_space<vmem>>, %arg5: memref<2x8xf32, #tpu.memory_space<vmem>>, %arg6: memref<6x32xf32, #tpu.memory_space<vmem>>, %arg7: memref<32x96xbf16, #tpu.memory_space<vmem>>, %arg8: memref<1x96xf32, #tpu.memory_space<vmem>>, %arg9: memref<32x32xbf16, #tpu.memory_space<vmem>>, %arg10: memref<1x32xf32, #tpu.memory_space<vmem>>, %arg11: memref<1x32xf32, #tpu.memory_space<vmem>>, %arg12: memref<1x32xf32, #tpu.memory_space<vmem>>, %arg13: memref<32x32xbf16, #tpu.memory_space<vmem>>, %arg14: memref<1x32xf32, #tpu.memory_space<vmem>>, %arg15: memref<32x64xbf16, #tpu.memory_space<vmem>>, %arg16: memref<1x64xf32, #tpu.memory_space<vmem>>, %arg17: memref<32x32xbf16, #tpu.memory_space<vmem>>, %arg18: memref<1x32xf32, #tpu.memory_space<vmem>>, %arg19: memref<1x32xf32, #tpu.memory_space<vmem>>, %arg20: memref<1x32xf32, #tpu.memory_space<vmem>>, %arg21: memref<32x64xbf16, #tpu.memory_space<vmem>>, %arg22: memref<1x64xf32, #tpu.memory_space<vmem>>, %arg23: memref<64x32xbf16, #tpu.memory_space<vmem>>, %arg24: memref<1x32xf32, #tpu.memory_space<vmem>>, %arg25: memref<1x32xf32, #tpu.memory_space<vmem>>, %arg26: memref<1x32xf32, #tpu.memory_space<vmem>>, %arg27: memref<2x6x32xf32, #tpu.memory_space<vmem>>) attributes {dimension_semantics = [#tpu.dimension_semantics<arbitrary>], iteration_bounds = array<i64: 1>, scalar_prefetch = 0 : i64, scratch_operands = 0 : i64, tpu.core_type = #tpu.core_type<tc>, window_params = [{pipeline_mode = #tpu.pipeline_mode<synchronous>, transform_indices = @transform_0, window_bounds = array<i64: 2, 6, 32>}, {pipeline_mode = #tpu.pipeline_mode<synchronous>, transform_indices = @transform_1, window_bounds = array<i64: 2, 8, 32>}, {pipeline_mode = #tpu.pipeline_mode<synchronous>, transform_indices = @transform_2, window_bounds = array<i64: 6, 6>}, {pipeline_mode = #tpu.pipeline_mode<synchronous>, transform_indices = @transform_3, window_bounds = array<i64: 2, 6>}, {pipeline_mode = #tpu.pipeline_mode<synchronous>, transform_indices = @transform_4, window_bounds = array<i64: 2, 8>}, {pipeline_mode = #tpu.pipeline_mode<synchronous>, transform_indices = @transform_5, window_bounds = array<i64: 6, 32>}, {pipeline_mode = #tpu.pipeline_mode<synchronous>, transform_indices = @transform_6, window_bounds = array<i64: 32, 96>}, {pipeline_mode = #tpu.pipeline_mode<synchronous>, transform_indices = @transform_7, window_bounds = array<i64: 1, 96>}, {pipeline_mode = #tpu.pipeline_mode<synchronous>, transform_indices = @transform_8, window_bounds = array<i64: 32, 32>}, {pipeline_mode = #tpu.pipeline_mode<synchronous>, transform_indices = @transform_9, window_bounds = array<i64: 1, 32>}, {pipeline_mode = #tpu.pipeline_mode<synchronous>, transform_indices = @transform_10, window_bounds = array<i64: 1, 32>}, {pipeline_mode = #tpu.pipeline_mode<synchronous>, transform_indices = @transform_11, window_bounds = array<i64: 1, 32>}, {pipeline_mode = #tpu.pipeline_mode<synchronous>, transform_indices = @transform_12, window_bounds = array<i64: 32, 32>}, {pipeline_mode = #tpu.pipeline_mode<synchronous>, transform_indices = @transform_13, window_bounds = array<i64: 1, 32>}, {pipeline_mode = #tpu.pipeline_mode<synchronous>, transform_indices = @transform_14, window_bounds = array<i64: 32, 64>}, {pipeline_mode = #tpu.pipeline_mode<synchronous>, transform_indices = @transform_15, window_bounds = array<i64: 1, 64>}, {pipeline_mode = #tpu.pipeline_mode<synchronous>, transform_indices = @transform_16, window_bounds = array<i64: 32, 32>}, {pipeline_mode = #tpu.pipeline_mode<synchronous>, transform_indices = @transform_17, window_bounds = array<i64: 1, 32>}, {pipeline_mode = #tpu.pipeline_mode<synchronous>, transform_indices = @transform_18, window_bounds = array<i64: 1, 32>}, {pipeline_mode = #tpu.pipeline_mode<synchronous>, transform_indices = @transform_19, window_bounds = array<i64: 1, 32>}, {pipeline_mode = #tpu.pipeline_mode<synchronous>, transform_indices = @transform_20, window_bounds = array<i64: 32, 64>}, {pipeline_mode = #tpu.pipeline_mode<synchronous>, transform_indices = @transform_21, window_bounds = array<i64: 1, 64>}, {pipeline_mode = #tpu.pipeline_mode<synchronous>, transform_indices = @transform_22, window_bounds = array<i64: 64, 32>}, {pipeline_mode = #tpu.pipeline_mode<synchronous>, transform_indices = @transform_23, window_bounds = array<i64: 1, 32>}, {pipeline_mode = #tpu.pipeline_mode<synchronous>, transform_indices = @transform_24, window_bounds = array<i64: 1, 32>}, {pipeline_mode = #tpu.pipeline_mode<synchronous>, transform_indices = @transform_25, window_bounds = array<i64: 1, 32>}, {pipeline_mode = #tpu.pipeline_mode<synchronous>, transform_indices = @transform_26, window_bounds = array<i64: 2, 6, 32>}]} {
    %c0 = arith.constant 0 : index
    %c0_0 = arith.constant 0 : index
    %c0_1 = arith.constant 0 : index
    %0 = vector.load %arg1[%c0, %c0_0, %c0_1] : memref<2x6x32xf32, #tpu.memory_space<vmem>>, vector<2x6x32xf32>
    %1 = vector.shape_cast %0 : vector<2x6x32xf32> to vector<12x32xf32>
    %c0_2 = arith.constant 0 : index
    %c0_3 = arith.constant 0 : index
    %c0_4 = arith.constant 0 : index
    %2 = vector.load %arg2[%c0_2, %c0_3, %c0_4] : memref<2x8x32xf32, #tpu.memory_space<vmem>>, vector<2x8x32xf32>
    %3 = vector.shape_cast %2 : vector<2x8x32xf32> to vector<16x32xf32>
    %c0_5 = arith.constant 0 : index
    %c0_6 = arith.constant 0 : index
    %4 = vector.load %arg7[%c0_5, %c0_6] : memref<32x96xbf16, #tpu.memory_space<vmem>>, vector<32x96xbf16>
    %c0_7 = arith.constant 0 : index
    %c0_8 = arith.constant 0 : index
    %5 = vector.load %arg8[%c0_7, %c0_8] : memref<1x96xf32, #tpu.memory_space<vmem>>, vector<1x96xf32>
    %6 = arith.truncf %1 : vector<12x32xf32> to vector<12x32xbf16>
    %cst = arith.constant dense<0.000000e+00> : vector<12x96xf32>
    %7 = tpu.matmul %6, %4, %cst {dimension_numbers = #tpu.dot_dimension_numbers<[1], [0], [0], [1], [0, 0, 1, 1], [], []>} : vector<12x32xbf16>, vector<32x96xbf16>, vector<12x96xf32> -> vector<12x96xf32>
    %8 = vector.broadcast %5 : vector<1x96xf32> to vector<12x96xf32>
    %9 = arith.addf %7, %8 : vector<12x96xf32>
    %c0_9 = arith.constant 0 : index
    %c0_10 = arith.constant 0 : index
    %10 = vector.load %arg3[%c0_9, %c0_10] : memref<6x6xf32, #tpu.memory_space<vmem>>, vector<6x6xf32>
    %11 = vector.shape_cast %10 : vector<6x6xf32> to vector<1x1x6x6xf32>
    %c0_11 = arith.constant 0 : index
    %c0_12 = arith.constant 0 : index
    %12 = vector.load %arg4[%c0_11, %c0_12] : memref<2x6xf32, #tpu.memory_space<vmem>>, vector<2x6xf32>
    %13 = vector.shape_cast %12 : vector<2x6xf32> to vector<2x1x1x6xf32>
    %14 = vector.broadcast %11 : vector<1x1x6x6xf32> to vector<2x1x6x6xf32>
    %15 = vector.broadcast %13 : vector<2x1x1x6xf32> to vector<2x1x6x6xf32>
    %16 = arith.addf %14, %15 : vector<2x1x6x6xf32>
    %cst_13 = arith.constant -1.000000e+30 : f32
    %17 = vector.broadcast %cst_13 : f32 to vector<2x1x6x6xf32>
    %18 = arith.maximumf %16, %17 : vector<2x1x6x6xf32>
    %19 = vector.extract_strided_slice %9 {offsets = [0, 0], sizes = [12, 32], strides = [1, 1]} : vector<12x96xf32> to vector<12x32xf32>
    %20 = vector.extract_strided_slice %9 {offsets = [0, 32], sizes = [12, 32], strides = [1, 1]} : vector<12x96xf32> to vector<12x32xf32>
    %21 = vector.extract_strided_slice %9 {offsets = [0, 64], sizes = [12, 32], strides = [1, 1]} : vector<12x96xf32> to vector<12x32xf32>
    %22 = vector.extract_strided_slice %19 {offsets = [0, 0], sizes = [6, 8], strides = [1, 1]} : vector<12x32xf32> to vector<6x8xf32>
    %23 = vector.extract_strided_slice %19 {offsets = [0, 8], sizes = [6, 8], strides = [1, 1]} : vector<12x32xf32> to vector<6x8xf32>
    %24 = vector.extract_strided_slice %19 {offsets = [0, 16], sizes = [6, 8], strides = [1, 1]} : vector<12x32xf32> to vector<6x8xf32>
    %25 = vector.extract_strided_slice %19 {offsets = [0, 24], sizes = [6, 8], strides = [1, 1]} : vector<12x32xf32> to vector<6x8xf32>
    %26 = vector.extract_strided_slice %19 {offsets = [6, 0], sizes = [6, 8], strides = [1, 1]} : vector<12x32xf32> to vector<6x8xf32>
    %27 = vector.extract_strided_slice %19 {offsets = [6, 8], sizes = [6, 8], strides = [1, 1]} : vector<12x32xf32> to vector<6x8xf32>
    %28 = vector.extract_strided_slice %19 {offsets = [6, 16], sizes = [6, 8], strides = [1, 1]} : vector<12x32xf32> to vector<6x8xf32>
    %29 = vector.extract_strided_slice %19 {offsets = [6, 24], sizes = [6, 8], strides = [1, 1]} : vector<12x32xf32> to vector<6x8xf32>
    %30 = vector.shape_cast %22 : vector<6x8xf32> to vector<1x6x8xf32>
    %31 = vector.shape_cast %23 : vector<6x8xf32> to vector<1x6x8xf32>
    %32 = vector.shape_cast %24 : vector<6x8xf32> to vector<1x6x8xf32>
    %33 = vector.shape_cast %25 : vector<6x8xf32> to vector<1x6x8xf32>
    %34 = vector.shape_cast %26 : vector<6x8xf32> to vector<1x6x8xf32>
    %35 = vector.shape_cast %27 : vector<6x8xf32> to vector<1x6x8xf32>
    %36 = vector.shape_cast %28 : vector<6x8xf32> to vector<1x6x8xf32>
    %37 = vector.shape_cast %29 : vector<6x8xf32> to vector<1x6x8xf32>
    %38 = tpu.concatenate %30, %31, %32, %33, %34, %35, %36, %37 in 0 : vector<1x6x8xf32>, vector<1x6x8xf32>, vector<1x6x8xf32>, vector<1x6x8xf32>, vector<1x6x8xf32>, vector<1x6x8xf32>, vector<1x6x8xf32>, vector<1x6x8xf32> -> vector<8x6x8xf32>
    %39 = arith.truncf %38 : vector<8x6x8xf32> to vector<8x6x8xbf16>
    %40 = vector.extract_strided_slice %20 {offsets = [0, 0], sizes = [6, 8], strides = [1, 1]} : vector<12x32xf32> to vector<6x8xf32>
    %41 = vector.extract_strided_slice %20 {offsets = [0, 8], sizes = [6, 8], strides = [1, 1]} : vector<12x32xf32> to vector<6x8xf32>
    %42 = vector.extract_strided_slice %20 {offsets = [0, 16], sizes = [6, 8], strides = [1, 1]} : vector<12x32xf32> to vector<6x8xf32>
    %43 = vector.extract_strided_slice %20 {offsets = [0, 24], sizes = [6, 8], strides = [1, 1]} : vector<12x32xf32> to vector<6x8xf32>
    %44 = vector.extract_strided_slice %20 {offsets = [6, 0], sizes = [6, 8], strides = [1, 1]} : vector<12x32xf32> to vector<6x8xf32>
    %45 = vector.extract_strided_slice %20 {offsets = [6, 8], sizes = [6, 8], strides = [1, 1]} : vector<12x32xf32> to vector<6x8xf32>
    %46 = vector.extract_strided_slice %20 {offsets = [6, 16], sizes = [6, 8], strides = [1, 1]} : vector<12x32xf32> to vector<6x8xf32>
    %47 = vector.extract_strided_slice %20 {offsets = [6, 24], sizes = [6, 8], strides = [1, 1]} : vector<12x32xf32> to vector<6x8xf32>
    %48 = vector.shape_cast %40 : vector<6x8xf32> to vector<1x6x8xf32>
    %49 = vector.shape_cast %41 : vector<6x8xf32> to vector<1x6x8xf32>
    %50 = vector.shape_cast %42 : vector<6x8xf32> to vector<1x6x8xf32>
    %51 = vector.shape_cast %43 : vector<6x8xf32> to vector<1x6x8xf32>
    %52 = vector.shape_cast %44 : vector<6x8xf32> to vector<1x6x8xf32>
    %53 = vector.shape_cast %45 : vector<6x8xf32> to vector<1x6x8xf32>
    %54 = vector.shape_cast %46 : vector<6x8xf32> to vector<1x6x8xf32>
    %55 = vector.shape_cast %47 : vector<6x8xf32> to vector<1x6x8xf32>
    %56 = tpu.concatenate %48, %49, %50, %51, %52, %53, %54, %55 in 0 : vector<1x6x8xf32>, vector<1x6x8xf32>, vector<1x6x8xf32>, vector<1x6x8xf32>, vector<1x6x8xf32>, vector<1x6x8xf32>, vector<1x6x8xf32>, vector<1x6x8xf32> -> vector<8x6x8xf32>
    %57 = arith.truncf %56 : vector<8x6x8xf32> to vector<8x6x8xbf16>
    %58 = vector.extract_strided_slice %21 {offsets = [0, 0], sizes = [6, 8], strides = [1, 1]} : vector<12x32xf32> to vector<6x8xf32>
    %59 = vector.extract_strided_slice %21 {offsets = [0, 8], sizes = [6, 8], strides = [1, 1]} : vector<12x32xf32> to vector<6x8xf32>
    %60 = vector.extract_strided_slice %21 {offsets = [0, 16], sizes = [6, 8], strides = [1, 1]} : vector<12x32xf32> to vector<6x8xf32>
    %61 = vector.extract_strided_slice %21 {offsets = [0, 24], sizes = [6, 8], strides = [1, 1]} : vector<12x32xf32> to vector<6x8xf32>
    %62 = vector.extract_strided_slice %21 {offsets = [6, 0], sizes = [6, 8], strides = [1, 1]} : vector<12x32xf32> to vector<6x8xf32>
    %63 = vector.extract_strided_slice %21 {offsets = [6, 8], sizes = [6, 8], strides = [1, 1]} : vector<12x32xf32> to vector<6x8xf32>
    %64 = vector.extract_strided_slice %21 {offsets = [6, 16], sizes = [6, 8], strides = [1, 1]} : vector<12x32xf32> to vector<6x8xf32>
    %65 = vector.extract_strided_slice %21 {offsets = [6, 24], sizes = [6, 8], strides = [1, 1]} : vector<12x32xf32> to vector<6x8xf32>
    %66 = vector.shape_cast %58 : vector<6x8xf32> to vector<1x6x8xf32>
    %67 = vector.shape_cast %59 : vector<6x8xf32> to vector<1x6x8xf32>
    %68 = vector.shape_cast %60 : vector<6x8xf32> to vector<1x6x8xf32>
    %69 = vector.shape_cast %61 : vector<6x8xf32> to vector<1x6x8xf32>
    %70 = vector.shape_cast %62 : vector<6x8xf32> to vector<1x6x8xf32>
    %71 = vector.shape_cast %63 : vector<6x8xf32> to vector<1x6x8xf32>
    %72 = vector.shape_cast %64 : vector<6x8xf32> to vector<1x6x8xf32>
    %73 = vector.shape_cast %65 : vector<6x8xf32> to vector<1x6x8xf32>
    %74 = tpu.concatenate %66, %67, %68, %69, %70, %71, %72, %73 in 0 : vector<1x6x8xf32>, vector<1x6x8xf32>, vector<1x6x8xf32>, vector<1x6x8xf32>, vector<1x6x8xf32>, vector<1x6x8xf32>, vector<1x6x8xf32>, vector<1x6x8xf32> -> vector<8x6x8xf32>
    %75 = arith.truncf %74 : vector<8x6x8xf32> to vector<8x6x8xbf16>
    %cst_14 = arith.constant dense<0.000000e+00> : vector<8x6x6xf32>
    %76 = tpu.matmul %39, %57, %cst_14 {dimension_numbers = #tpu.dot_dimension_numbers<[2], [2], [1], [1], [0, 0, 0, 1, 1, 1], [0], [0]>} : vector<8x6x8xbf16>, vector<8x6x8xbf16>, vector<8x6x6xf32> -> vector<8x6x6xf32>
    %cst_15 = arith.constant 0.353553385 : f32
    %77 = vector.broadcast %cst_15 : f32 to vector<8x6x6xf32>
    %78 = arith.mulf %76, %77 : vector<8x6x6xf32>
    %79 = vector.shape_cast %78 : vector<8x6x6xf32> to vector<2x4x6x6xf32>
    %80 = vector.broadcast %18 : vector<2x1x6x6xf32> to vector<2x4x6x6xf32>
    %81 = arith.addf %79, %80 : vector<2x4x6x6xf32>
    %cst_16 = arith.constant dense<0xFF800000> : vector<2x4x6xf32>
    %82 = vector.multi_reduction <maximumf>, %81, %cst_16 [3] : vector<2x4x6x6xf32> to vector<2x4x6xf32>
    %83 = vector.shape_cast %82 : vector<2x4x6xf32> to vector<2x4x6x1xf32>
    %84 = vector.broadcast %83 : vector<2x4x6x1xf32> to vector<2x4x6x6xf32>
    %85 = arith.subf %81, %84 : vector<2x4x6x6xf32>
    %86 = math.exp %85 : vector<2x4x6x6xf32>
    %cst_17 = arith.constant dense<0.000000e+00> : vector<2x4x6xf32>
    %87 = vector.multi_reduction <add>, %86, %cst_17 [3] : vector<2x4x6x6xf32> to vector<2x4x6xf32>
    %88 = vector.shape_cast %87 : vector<2x4x6xf32> to vector<2x4x6x1xf32>
    %89 = tpu.reciprocal %88 {approx = true} : vector<2x4x6x1xf32> -> vector<2x4x6x1xf32>
    %90 = vector.broadcast %89 : vector<2x4x6x1xf32> to vector<2x4x6x6xf32>
    %91 = arith.mulf %86, %90 : vector<2x4x6x6xf32>
    %92 = vector.shape_cast %91 : vector<2x4x6x6xf32> to vector<8x6x6xf32>
    %93 = arith.truncf %92 : vector<8x6x6xf32> to vector<8x6x6xbf16>
    %cst_18 = arith.constant dense<0.000000e+00> : vector<8x6x8xf32>
    %94 = tpu.matmul %93, %75, %cst_18 {dimension_numbers = #tpu.dot_dimension_numbers<[2], [1], [1], [2], [0, 0, 0, 1, 1, 2], [0], [0]>} : vector<8x6x6xbf16>, vector<8x6x8xbf16>, vector<8x6x8xf32> -> vector<8x6x8xf32>
    %95 = vector.extract_strided_slice %94 {offsets = [0, 0, 0], sizes = [1, 6, 8], strides = [1, 1, 1]} : vector<8x6x8xf32> to vector<1x6x8xf32>
    %96 = vector.shape_cast %95 : vector<1x6x8xf32> to vector<6x8xf32>
    %97 = vector.extract_strided_slice %94 {offsets = [1, 0, 0], sizes = [1, 6, 8], strides = [1, 1, 1]} : vector<8x6x8xf32> to vector<1x6x8xf32>
    %98 = vector.shape_cast %97 : vector<1x6x8xf32> to vector<6x8xf32>
    %99 = vector.extract_strided_slice %94 {offsets = [2, 0, 0], sizes = [1, 6, 8], strides = [1, 1, 1]} : vector<8x6x8xf32> to vector<1x6x8xf32>
    %100 = vector.shape_cast %99 : vector<1x6x8xf32> to vector<6x8xf32>
    %101 = vector.extract_strided_slice %94 {offsets = [3, 0, 0], sizes = [1, 6, 8], strides = [1, 1, 1]} : vector<8x6x8xf32> to vector<1x6x8xf32>
    %102 = vector.shape_cast %101 : vector<1x6x8xf32> to vector<6x8xf32>
    %103 = tpu.concatenate %96, %98, %100, %102 in 1 : vector<6x8xf32>, vector<6x8xf32>, vector<6x8xf32>, vector<6x8xf32> -> vector<6x32xf32>
    %104 = vector.extract_strided_slice %94 {offsets = [4, 0, 0], sizes = [1, 6, 8], strides = [1, 1, 1]} : vector<8x6x8xf32> to vector<1x6x8xf32>
    %105 = vector.shape_cast %104 : vector<1x6x8xf32> to vector<6x8xf32>
    %106 = vector.extract_strided_slice %94 {offsets = [5, 0, 0], sizes = [1, 6, 8], strides = [1, 1, 1]} : vector<8x6x8xf32> to vector<1x6x8xf32>
    %107 = vector.shape_cast %106 : vector<1x6x8xf32> to vector<6x8xf32>
    %108 = vector.extract_strided_slice %94 {offsets = [6, 0, 0], sizes = [1, 6, 8], strides = [1, 1, 1]} : vector<8x6x8xf32> to vector<1x6x8xf32>
    %109 = vector.shape_cast %108 : vector<1x6x8xf32> to vector<6x8xf32>
    %110 = vector.extract_strided_slice %94 {offsets = [7, 0, 0], sizes = [1, 6, 8], strides = [1, 1, 1]} : vector<8x6x8xf32> to vector<1x6x8xf32>
    %111 = vector.shape_cast %110 : vector<1x6x8xf32> to vector<6x8xf32>
    %112 = tpu.concatenate %105, %107, %109, %111 in 1 : vector<6x8xf32>, vector<6x8xf32>, vector<6x8xf32>, vector<6x8xf32> -> vector<6x32xf32>
    %113 = tpu.concatenate %103, %112 in 0 : vector<6x32xf32>, vector<6x32xf32> -> vector<12x32xf32>
    %c0_19 = arith.constant 0 : index
    %c0_20 = arith.constant 0 : index
    %114 = vector.load %arg9[%c0_19, %c0_20] : memref<32x32xbf16, #tpu.memory_space<vmem>>, vector<32x32xbf16>
    %c0_21 = arith.constant 0 : index
    %c0_22 = arith.constant 0 : index
    %115 = vector.load %arg10[%c0_21, %c0_22] : memref<1x32xf32, #tpu.memory_space<vmem>>, vector<1x32xf32>
    %116 = arith.truncf %113 : vector<12x32xf32> to vector<12x32xbf16>
    %cst_23 = arith.constant dense<0.000000e+00> : vector<12x32xf32>
    %117 = tpu.matmul %116, %114, %cst_23 {dimension_numbers = #tpu.dot_dimension_numbers<[1], [0], [0], [1], [0, 0, 1, 1], [], []>} : vector<12x32xbf16>, vector<32x32xbf16>, vector<12x32xf32> -> vector<12x32xf32>
    %118 = vector.broadcast %115 : vector<1x32xf32> to vector<12x32xf32>
    %119 = arith.addf %117, %118 : vector<12x32xf32>
    %120 = arith.addf %1, %119 : vector<12x32xf32>
    %c0_24 = arith.constant 0 : index
    %c0_25 = arith.constant 0 : index
    %121 = vector.load %arg11[%c0_24, %c0_25] : memref<1x32xf32, #tpu.memory_space<vmem>>, vector<1x32xf32>
    %c0_26 = arith.constant 0 : index
    %c0_27 = arith.constant 0 : index
    %122 = vector.load %arg12[%c0_26, %c0_27] : memref<1x32xf32, #tpu.memory_space<vmem>>, vector<1x32xf32>
    %cst_28 = arith.constant dense<0.000000e+00> : vector<12xf32>
    %123 = vector.multi_reduction <add>, %120, %cst_28 [1] : vector<12x32xf32> to vector<12xf32>
    %124 = vector.shape_cast %123 : vector<12xf32> to vector<12x1xf32>
    %cst_29 = arith.constant 3.200000e+01 : f32
    %125 = vector.broadcast %cst_29 : f32 to vector<12x1xf32>
    %126 = arith.divf %124, %125 : vector<12x1xf32>
    %127 = vector.broadcast %126 : vector<12x1xf32> to vector<12x32xf32>
    %128 = arith.subf %120, %127 : vector<12x32xf32>
    %129 = arith.mulf %128, %128 : vector<12x32xf32>
    %cst_30 = arith.constant dense<0.000000e+00> : vector<12xf32>
    %130 = vector.multi_reduction <add>, %129, %cst_30 [1] : vector<12x32xf32> to vector<12xf32>
    %131 = vector.shape_cast %130 : vector<12xf32> to vector<12x1xf32>
    %cst_31 = arith.constant 3.200000e+01 : f32
    %132 = vector.broadcast %cst_31 : f32 to vector<12x1xf32>
    %133 = arith.divf %131, %132 : vector<12x1xf32>
    %134 = vector.broadcast %126 : vector<12x1xf32> to vector<12x32xf32>
    %135 = arith.subf %120, %134 : vector<12x32xf32>
    %cst_32 = arith.constant 9.99999974E-6 : f32
    %136 = vector.broadcast %cst_32 : f32 to vector<12x1xf32>
    %137 = arith.addf %133, %136 : vector<12x1xf32>
    %138 = math.rsqrt %137 : vector<12x1xf32>
    %139 = vector.broadcast %138 : vector<12x1xf32> to vector<12x32xf32>
    %140 = arith.mulf %135, %139 : vector<12x32xf32>
    %141 = vector.broadcast %121 : vector<1x32xf32> to vector<12x32xf32>
    %142 = arith.mulf %140, %141 : vector<12x32xf32>
    %143 = vector.broadcast %122 : vector<1x32xf32> to vector<12x32xf32>
    %144 = arith.addf %142, %143 : vector<12x32xf32>
    %c0_33 = arith.constant 0 : index
    %c0_34 = arith.constant 0 : index
    %145 = vector.load %arg13[%c0_33, %c0_34] : memref<32x32xbf16, #tpu.memory_space<vmem>>, vector<32x32xbf16>
    %c0_35 = arith.constant 0 : index
    %c0_36 = arith.constant 0 : index
    %146 = vector.load %arg14[%c0_35, %c0_36] : memref<1x32xf32, #tpu.memory_space<vmem>>, vector<1x32xf32>
    %147 = arith.truncf %144 : vector<12x32xf32> to vector<12x32xbf16>
    %cst_37 = arith.constant dense<0.000000e+00> : vector<12x32xf32>
    %148 = tpu.matmul %147, %145, %cst_37 {dimension_numbers = #tpu.dot_dimension_numbers<[1], [0], [0], [1], [0, 0, 1, 1], [], []>} : vector<12x32xbf16>, vector<32x32xbf16>, vector<12x32xf32> -> vector<12x32xf32>
    %149 = vector.broadcast %146 : vector<1x32xf32> to vector<12x32xf32>
    %150 = arith.addf %148, %149 : vector<12x32xf32>
    %c0_38 = arith.constant 0 : index
    %c0_39 = arith.constant 0 : index
    %151 = vector.load %arg15[%c0_38, %c0_39] : memref<32x64xbf16, #tpu.memory_space<vmem>>, vector<32x64xbf16>
    %c0_40 = arith.constant 0 : index
    %c0_41 = arith.constant 0 : index
    %152 = vector.load %arg16[%c0_40, %c0_41] : memref<1x64xf32, #tpu.memory_space<vmem>>, vector<1x64xf32>
    %153 = arith.truncf %3 : vector<16x32xf32> to vector<16x32xbf16>
    %cst_42 = arith.constant dense<0.000000e+00> : vector<16x64xf32>
    %154 = tpu.matmul %153, %151, %cst_42 {dimension_numbers = #tpu.dot_dimension_numbers<[1], [0], [0], [1], [0, 0, 1, 1], [], []>} : vector<16x32xbf16>, vector<32x64xbf16>, vector<16x64xf32> -> vector<16x64xf32>
    %155 = vector.broadcast %152 : vector<1x64xf32> to vector<16x64xf32>
    %156 = arith.addf %154, %155 : vector<16x64xf32>
    %c0_43 = arith.constant 0 : index
    %c0_44 = arith.constant 0 : index
    %157 = vector.load %arg5[%c0_43, %c0_44] : memref<2x8xf32, #tpu.memory_space<vmem>>, vector<2x8xf32>
    %158 = vector.shape_cast %157 : vector<2x8xf32> to vector<2x1x1x8xf32>
    %159 = vector.extract_strided_slice %156 {offsets = [0, 0], sizes = [16, 32], strides = [1, 1]} : vector<16x64xf32> to vector<16x32xf32>
    %160 = vector.extract_strided_slice %156 {offsets = [0, 32], sizes = [16, 32], strides = [1, 1]} : vector<16x64xf32> to vector<16x32xf32>
    %161 = vector.extract_strided_slice %150 {offsets = [0, 0], sizes = [6, 8], strides = [1, 1]} : vector<12x32xf32> to vector<6x8xf32>
    %162 = vector.extract_strided_slice %150 {offsets = [0, 8], sizes = [6, 8], strides = [1, 1]} : vector<12x32xf32> to vector<6x8xf32>
    %163 = vector.extract_strided_slice %150 {offsets = [0, 16], sizes = [6, 8], strides = [1, 1]} : vector<12x32xf32> to vector<6x8xf32>
    %164 = vector.extract_strided_slice %150 {offsets = [0, 24], sizes = [6, 8], strides = [1, 1]} : vector<12x32xf32> to vector<6x8xf32>
    %165 = vector.extract_strided_slice %150 {offsets = [6, 0], sizes = [6, 8], strides = [1, 1]} : vector<12x32xf32> to vector<6x8xf32>
    %166 = vector.extract_strided_slice %150 {offsets = [6, 8], sizes = [6, 8], strides = [1, 1]} : vector<12x32xf32> to vector<6x8xf32>
    %167 = vector.extract_strided_slice %150 {offsets = [6, 16], sizes = [6, 8], strides = [1, 1]} : vector<12x32xf32> to vector<6x8xf32>
    %168 = vector.extract_strided_slice %150 {offsets = [6, 24], sizes = [6, 8], strides = [1, 1]} : vector<12x32xf32> to vector<6x8xf32>
    %169 = vector.shape_cast %161 : vector<6x8xf32> to vector<1x6x8xf32>
    %170 = vector.shape_cast %162 : vector<6x8xf32> to vector<1x6x8xf32>
    %171 = vector.shape_cast %163 : vector<6x8xf32> to vector<1x6x8xf32>
    %172 = vector.shape_cast %164 : vector<6x8xf32> to vector<1x6x8xf32>
    %173 = vector.shape_cast %165 : vector<6x8xf32> to vector<1x6x8xf32>
    %174 = vector.shape_cast %166 : vector<6x8xf32> to vector<1x6x8xf32>
    %175 = vector.shape_cast %167 : vector<6x8xf32> to vector<1x6x8xf32>
    %176 = vector.shape_cast %168 : vector<6x8xf32> to vector<1x6x8xf32>
    %177 = tpu.concatenate %169, %170, %171, %172, %173, %174, %175, %176 in 0 : vector<1x6x8xf32>, vector<1x6x8xf32>, vector<1x6x8xf32>, vector<1x6x8xf32>, vector<1x6x8xf32>, vector<1x6x8xf32>, vector<1x6x8xf32>, vector<1x6x8xf32> -> vector<8x6x8xf32>
    %178 = arith.truncf %177 : vector<8x6x8xf32> to vector<8x6x8xbf16>
    %179 = vector.extract_strided_slice %159 {offsets = [0, 0], sizes = [8, 8], strides = [1, 1]} : vector<16x32xf32> to vector<8x8xf32>
    %180 = vector.extract_strided_slice %159 {offsets = [0, 8], sizes = [8, 8], strides = [1, 1]} : vector<16x32xf32> to vector<8x8xf32>
    %181 = vector.extract_strided_slice %159 {offsets = [0, 16], sizes = [8, 8], strides = [1, 1]} : vector<16x32xf32> to vector<8x8xf32>
    %182 = vector.extract_strided_slice %159 {offsets = [0, 24], sizes = [8, 8], strides = [1, 1]} : vector<16x32xf32> to vector<8x8xf32>
    %183 = vector.extract_strided_slice %159 {offsets = [8, 0], sizes = [8, 8], strides = [1, 1]} : vector<16x32xf32> to vector<8x8xf32>
    %184 = vector.extract_strided_slice %159 {offsets = [8, 8], sizes = [8, 8], strides = [1, 1]} : vector<16x32xf32> to vector<8x8xf32>
    %185 = vector.extract_strided_slice %159 {offsets = [8, 16], sizes = [8, 8], strides = [1, 1]} : vector<16x32xf32> to vector<8x8xf32>
    %186 = vector.extract_strided_slice %159 {offsets = [8, 24], sizes = [8, 8], strides = [1, 1]} : vector<16x32xf32> to vector<8x8xf32>
    %187 = vector.shape_cast %179 : vector<8x8xf32> to vector<1x8x8xf32>
    %188 = vector.shape_cast %180 : vector<8x8xf32> to vector<1x8x8xf32>
    %189 = vector.shape_cast %181 : vector<8x8xf32> to vector<1x8x8xf32>
    %190 = vector.shape_cast %182 : vector<8x8xf32> to vector<1x8x8xf32>
    %191 = vector.shape_cast %183 : vector<8x8xf32> to vector<1x8x8xf32>
    %192 = vector.shape_cast %184 : vector<8x8xf32> to vector<1x8x8xf32>
    %193 = vector.shape_cast %185 : vector<8x8xf32> to vector<1x8x8xf32>
    %194 = vector.shape_cast %186 : vector<8x8xf32> to vector<1x8x8xf32>
    %195 = tpu.concatenate %187, %188, %189, %190, %191, %192, %193, %194 in 0 : vector<1x8x8xf32>, vector<1x8x8xf32>, vector<1x8x8xf32>, vector<1x8x8xf32>, vector<1x8x8xf32>, vector<1x8x8xf32>, vector<1x8x8xf32>, vector<1x8x8xf32> -> vector<8x8x8xf32>
    %196 = arith.truncf %195 : vector<8x8x8xf32> to vector<8x8x8xbf16>
    %197 = vector.extract_strided_slice %160 {offsets = [0, 0], sizes = [8, 8], strides = [1, 1]} : vector<16x32xf32> to vector<8x8xf32>
    %198 = vector.extract_strided_slice %160 {offsets = [0, 8], sizes = [8, 8], strides = [1, 1]} : vector<16x32xf32> to vector<8x8xf32>
    %199 = vector.extract_strided_slice %160 {offsets = [0, 16], sizes = [8, 8], strides = [1, 1]} : vector<16x32xf32> to vector<8x8xf32>
    %200 = vector.extract_strided_slice %160 {offsets = [0, 24], sizes = [8, 8], strides = [1, 1]} : vector<16x32xf32> to vector<8x8xf32>
    %201 = vector.extract_strided_slice %160 {offsets = [8, 0], sizes = [8, 8], strides = [1, 1]} : vector<16x32xf32> to vector<8x8xf32>
    %202 = vector.extract_strided_slice %160 {offsets = [8, 8], sizes = [8, 8], strides = [1, 1]} : vector<16x32xf32> to vector<8x8xf32>
    %203 = vector.extract_strided_slice %160 {offsets = [8, 16], sizes = [8, 8], strides = [1, 1]} : vector<16x32xf32> to vector<8x8xf32>
    %204 = vector.extract_strided_slice %160 {offsets = [8, 24], sizes = [8, 8], strides = [1, 1]} : vector<16x32xf32> to vector<8x8xf32>
    %205 = vector.shape_cast %197 : vector<8x8xf32> to vector<1x8x8xf32>
    %206 = vector.shape_cast %198 : vector<8x8xf32> to vector<1x8x8xf32>
    %207 = vector.shape_cast %199 : vector<8x8xf32> to vector<1x8x8xf32>
    %208 = vector.shape_cast %200 : vector<8x8xf32> to vector<1x8x8xf32>
    %209 = vector.shape_cast %201 : vector<8x8xf32> to vector<1x8x8xf32>
    %210 = vector.shape_cast %202 : vector<8x8xf32> to vector<1x8x8xf32>
    %211 = vector.shape_cast %203 : vector<8x8xf32> to vector<1x8x8xf32>
    %212 = vector.shape_cast %204 : vector<8x8xf32> to vector<1x8x8xf32>
    %213 = tpu.concatenate %205, %206, %207, %208, %209, %210, %211, %212 in 0 : vector<1x8x8xf32>, vector<1x8x8xf32>, vector<1x8x8xf32>, vector<1x8x8xf32>, vector<1x8x8xf32>, vector<1x8x8xf32>, vector<1x8x8xf32>, vector<1x8x8xf32> -> vector<8x8x8xf32>
    %214 = arith.truncf %213 : vector<8x8x8xf32> to vector<8x8x8xbf16>
    %cst_45 = arith.constant dense<0.000000e+00> : vector<8x6x8xf32>
    %215 = tpu.matmul %178, %196, %cst_45 {dimension_numbers = #tpu.dot_dimension_numbers<[2], [2], [1], [1], [0, 0, 0, 1, 1, 1], [0], [0]>} : vector<8x6x8xbf16>, vector<8x8x8xbf16>, vector<8x6x8xf32> -> vector<8x6x8xf32>
    %cst_46 = arith.constant 0.353553385 : f32
    %216 = vector.broadcast %cst_46 : f32 to vector<8x6x8xf32>
    %217 = arith.mulf %215, %216 : vector<8x6x8xf32>
    %218 = vector.shape_cast %217 : vector<8x6x8xf32> to vector<2x4x6x8xf32>
    %219 = vector.broadcast %158 : vector<2x1x1x8xf32> to vector<2x4x6x8xf32>
    %220 = arith.addf %218, %219 : vector<2x4x6x8xf32>
    %cst_47 = arith.constant dense<0xFF800000> : vector<2x4x6xf32>
    %221 = vector.multi_reduction <maximumf>, %220, %cst_47 [3] : vector<2x4x6x8xf32> to vector<2x4x6xf32>
    %222 = vector.shape_cast %221 : vector<2x4x6xf32> to vector<2x4x6x1xf32>
    %223 = vector.broadcast %222 : vector<2x4x6x1xf32> to vector<2x4x6x8xf32>
    %224 = arith.subf %220, %223 : vector<2x4x6x8xf32>
    %225 = math.exp %224 : vector<2x4x6x8xf32>
    %cst_48 = arith.constant dense<0.000000e+00> : vector<2x4x6xf32>
    %226 = vector.multi_reduction <add>, %225, %cst_48 [3] : vector<2x4x6x8xf32> to vector<2x4x6xf32>
    %227 = vector.shape_cast %226 : vector<2x4x6xf32> to vector<2x4x6x1xf32>
    %228 = tpu.reciprocal %227 {approx = true} : vector<2x4x6x1xf32> -> vector<2x4x6x1xf32>
    %229 = vector.broadcast %228 : vector<2x4x6x1xf32> to vector<2x4x6x8xf32>
    %230 = arith.mulf %225, %229 : vector<2x4x6x8xf32>
    %231 = vector.shape_cast %230 : vector<2x4x6x8xf32> to vector<8x6x8xf32>
    %232 = arith.truncf %231 : vector<8x6x8xf32> to vector<8x6x8xbf16>
    %cst_49 = arith.constant dense<0.000000e+00> : vector<8x6x8xf32>
    %233 = tpu.matmul %232, %214, %cst_49 {dimension_numbers = #tpu.dot_dimension_numbers<[2], [1], [1], [2], [0, 0, 0, 1, 1, 2], [0], [0]>} : vector<8x6x8xbf16>, vector<8x8x8xbf16>, vector<8x6x8xf32> -> vector<8x6x8xf32>
    %234 = vector.extract_strided_slice %233 {offsets = [0, 0, 0], sizes = [1, 6, 8], strides = [1, 1, 1]} : vector<8x6x8xf32> to vector<1x6x8xf32>
    %235 = vector.shape_cast %234 : vector<1x6x8xf32> to vector<6x8xf32>
    %236 = vector.extract_strided_slice %233 {offsets = [1, 0, 0], sizes = [1, 6, 8], strides = [1, 1, 1]} : vector<8x6x8xf32> to vector<1x6x8xf32>
    %237 = vector.shape_cast %236 : vector<1x6x8xf32> to vector<6x8xf32>
    %238 = vector.extract_strided_slice %233 {offsets = [2, 0, 0], sizes = [1, 6, 8], strides = [1, 1, 1]} : vector<8x6x8xf32> to vector<1x6x8xf32>
    %239 = vector.shape_cast %238 : vector<1x6x8xf32> to vector<6x8xf32>
    %240 = vector.extract_strided_slice %233 {offsets = [3, 0, 0], sizes = [1, 6, 8], strides = [1, 1, 1]} : vector<8x6x8xf32> to vector<1x6x8xf32>
    %241 = vector.shape_cast %240 : vector<1x6x8xf32> to vector<6x8xf32>
    %242 = tpu.concatenate %235, %237, %239, %241 in 1 : vector<6x8xf32>, vector<6x8xf32>, vector<6x8xf32>, vector<6x8xf32> -> vector<6x32xf32>
    %243 = vector.extract_strided_slice %233 {offsets = [4, 0, 0], sizes = [1, 6, 8], strides = [1, 1, 1]} : vector<8x6x8xf32> to vector<1x6x8xf32>
    %244 = vector.shape_cast %243 : vector<1x6x8xf32> to vector<6x8xf32>
    %245 = vector.extract_strided_slice %233 {offsets = [5, 0, 0], sizes = [1, 6, 8], strides = [1, 1, 1]} : vector<8x6x8xf32> to vector<1x6x8xf32>
    %246 = vector.shape_cast %245 : vector<1x6x8xf32> to vector<6x8xf32>
    %247 = vector.extract_strided_slice %233 {offsets = [6, 0, 0], sizes = [1, 6, 8], strides = [1, 1, 1]} : vector<8x6x8xf32> to vector<1x6x8xf32>
    %248 = vector.shape_cast %247 : vector<1x6x8xf32> to vector<6x8xf32>
    %249 = vector.extract_strided_slice %233 {offsets = [7, 0, 0], sizes = [1, 6, 8], strides = [1, 1, 1]} : vector<8x6x8xf32> to vector<1x6x8xf32>
    %250 = vector.shape_cast %249 : vector<1x6x8xf32> to vector<6x8xf32>
    %251 = tpu.concatenate %244, %246, %248, %250 in 1 : vector<6x8xf32>, vector<6x8xf32>, vector<6x8xf32>, vector<6x8xf32> -> vector<6x32xf32>
    %252 = tpu.concatenate %242, %251 in 0 : vector<6x32xf32>, vector<6x32xf32> -> vector<12x32xf32>
    %c0_50 = arith.constant 0 : index
    %c0_51 = arith.constant 0 : index
    %253 = vector.load %arg17[%c0_50, %c0_51] : memref<32x32xbf16, #tpu.memory_space<vmem>>, vector<32x32xbf16>
    %c0_52 = arith.constant 0 : index
    %c0_53 = arith.constant 0 : index
    %254 = vector.load %arg18[%c0_52, %c0_53] : memref<1x32xf32, #tpu.memory_space<vmem>>, vector<1x32xf32>
    %255 = arith.truncf %252 : vector<12x32xf32> to vector<12x32xbf16>
    %cst_54 = arith.constant dense<0.000000e+00> : vector<12x32xf32>
    %256 = tpu.matmul %255, %253, %cst_54 {dimension_numbers = #tpu.dot_dimension_numbers<[1], [0], [0], [1], [0, 0, 1, 1], [], []>} : vector<12x32xbf16>, vector<32x32xbf16>, vector<12x32xf32> -> vector<12x32xf32>
    %257 = vector.broadcast %254 : vector<1x32xf32> to vector<12x32xf32>
    %258 = arith.addf %256, %257 : vector<12x32xf32>
    %259 = arith.addf %144, %258 : vector<12x32xf32>
    %c0_55 = arith.constant 0 : index
    %c0_56 = arith.constant 0 : index
    %260 = vector.load %arg19[%c0_55, %c0_56] : memref<1x32xf32, #tpu.memory_space<vmem>>, vector<1x32xf32>
    %c0_57 = arith.constant 0 : index
    %c0_58 = arith.constant 0 : index
    %261 = vector.load %arg20[%c0_57, %c0_58] : memref<1x32xf32, #tpu.memory_space<vmem>>, vector<1x32xf32>
    %cst_59 = arith.constant dense<0.000000e+00> : vector<12xf32>
    %262 = vector.multi_reduction <add>, %259, %cst_59 [1] : vector<12x32xf32> to vector<12xf32>
    %263 = vector.shape_cast %262 : vector<12xf32> to vector<12x1xf32>
    %cst_60 = arith.constant 3.200000e+01 : f32
    %264 = vector.broadcast %cst_60 : f32 to vector<12x1xf32>
    %265 = arith.divf %263, %264 : vector<12x1xf32>
    %266 = vector.broadcast %265 : vector<12x1xf32> to vector<12x32xf32>
    %267 = arith.subf %259, %266 : vector<12x32xf32>
    %268 = arith.mulf %267, %267 : vector<12x32xf32>
    %cst_61 = arith.constant dense<0.000000e+00> : vector<12xf32>
    %269 = vector.multi_reduction <add>, %268, %cst_61 [1] : vector<12x32xf32> to vector<12xf32>
    %270 = vector.shape_cast %269 : vector<12xf32> to vector<12x1xf32>
    %cst_62 = arith.constant 3.200000e+01 : f32
    %271 = vector.broadcast %cst_62 : f32 to vector<12x1xf32>
    %272 = arith.divf %270, %271 : vector<12x1xf32>
    %273 = vector.broadcast %265 : vector<12x1xf32> to vector<12x32xf32>
    %274 = arith.subf %259, %273 : vector<12x32xf32>
    %cst_63 = arith.constant 9.99999974E-6 : f32
    %275 = vector.broadcast %cst_63 : f32 to vector<12x1xf32>
    %276 = arith.addf %272, %275 : vector<12x1xf32>
    %277 = math.rsqrt %276 : vector<12x1xf32>
    %278 = vector.broadcast %277 : vector<12x1xf32> to vector<12x32xf32>
    %279 = arith.mulf %274, %278 : vector<12x32xf32>
    %280 = vector.broadcast %260 : vector<1x32xf32> to vector<12x32xf32>
    %281 = arith.mulf %279, %280 : vector<12x32xf32>
    %282 = vector.broadcast %261 : vector<1x32xf32> to vector<12x32xf32>
    %283 = arith.addf %281, %282 : vector<12x32xf32>
    %c0_64 = arith.constant 0 : index
    %c0_65 = arith.constant 0 : index
    %284 = vector.load %arg21[%c0_64, %c0_65] : memref<32x64xbf16, #tpu.memory_space<vmem>>, vector<32x64xbf16>
    %c0_66 = arith.constant 0 : index
    %c0_67 = arith.constant 0 : index
    %285 = vector.load %arg22[%c0_66, %c0_67] : memref<1x64xf32, #tpu.memory_space<vmem>>, vector<1x64xf32>
    %286 = arith.truncf %283 : vector<12x32xf32> to vector<12x32xbf16>
    %cst_68 = arith.constant dense<0.000000e+00> : vector<12x64xf32>
    %287 = tpu.matmul %286, %284, %cst_68 {dimension_numbers = #tpu.dot_dimension_numbers<[1], [0], [0], [1], [0, 0, 1, 1], [], []>} : vector<12x32xbf16>, vector<32x64xbf16>, vector<12x64xf32> -> vector<12x64xf32>
    %288 = vector.broadcast %285 : vector<1x64xf32> to vector<12x64xf32>
    %289 = arith.addf %287, %288 : vector<12x64xf32>
    %cst_69 = arith.constant 0.000000e+00 : f32
    %290 = vector.broadcast %cst_69 : f32 to vector<12x64xf32>
    %291 = arith.maximumf %289, %290 : vector<12x64xf32>
    %c0_70 = arith.constant 0 : index
    %c0_71 = arith.constant 0 : index
    %292 = vector.load %arg23[%c0_70, %c0_71] : memref<64x32xbf16, #tpu.memory_space<vmem>>, vector<64x32xbf16>
    %c0_72 = arith.constant 0 : index
    %c0_73 = arith.constant 0 : index
    %293 = vector.load %arg24[%c0_72, %c0_73] : memref<1x32xf32, #tpu.memory_space<vmem>>, vector<1x32xf32>
    %294 = arith.truncf %291 : vector<12x64xf32> to vector<12x64xbf16>
    %cst_74 = arith.constant dense<0.000000e+00> : vector<12x32xf32>
    %295 = tpu.matmul %294, %292, %cst_74 {dimension_numbers = #tpu.dot_dimension_numbers<[1], [0], [0], [1], [0, 0, 1, 1], [], []>} : vector<12x64xbf16>, vector<64x32xbf16>, vector<12x32xf32> -> vector<12x32xf32>
    %296 = vector.broadcast %293 : vector<1x32xf32> to vector<12x32xf32>
    %297 = arith.addf %295, %296 : vector<12x32xf32>
    %298 = arith.addf %283, %297 : vector<12x32xf32>
    %c0_75 = arith.constant 0 : index
    %c0_76 = arith.constant 0 : index
    %299 = vector.load %arg25[%c0_75, %c0_76] : memref<1x32xf32, #tpu.memory_space<vmem>>, vector<1x32xf32>
    %c0_77 = arith.constant 0 : index
    %c0_78 = arith.constant 0 : index
    %300 = vector.load %arg26[%c0_77, %c0_78] : memref<1x32xf32, #tpu.memory_space<vmem>>, vector<1x32xf32>
    %cst_79 = arith.constant dense<0.000000e+00> : vector<12xf32>
    %301 = vector.multi_reduction <add>, %298, %cst_79 [1] : vector<12x32xf32> to vector<12xf32>
    %302 = vector.shape_cast %301 : vector<12xf32> to vector<12x1xf32>
    %cst_80 = arith.constant 3.200000e+01 : f32
    %303 = vector.broadcast %cst_80 : f32 to vector<12x1xf32>
    %304 = arith.divf %302, %303 : vector<12x1xf32>
    %305 = vector.broadcast %304 : vector<12x1xf32> to vector<12x32xf32>
    %306 = arith.subf %298, %305 : vector<12x32xf32>
    %307 = arith.mulf %306, %306 : vector<12x32xf32>
    %cst_81 = arith.constant dense<0.000000e+00> : vector<12xf32>
    %308 = vector.multi_reduction <add>, %307, %cst_81 [1] : vector<12x32xf32> to vector<12xf32>
    %309 = vector.shape_cast %308 : vector<12xf32> to vector<12x1xf32>
    %cst_82 = arith.constant 3.200000e+01 : f32
    %310 = vector.broadcast %cst_82 : f32 to vector<12x1xf32>
    %311 = arith.divf %309, %310 : vector<12x1xf32>
    %312 = vector.broadcast %304 : vector<12x1xf32> to vector<12x32xf32>
    %313 = arith.subf %298, %312 : vector<12x32xf32>
    %cst_83 = arith.constant 9.99999974E-6 : f32
    %314 = vector.broadcast %cst_83 : f32 to vector<12x1xf32>
    %315 = arith.addf %311, %314 : vector<12x1xf32>
    %316 = math.rsqrt %315 : vector<12x1xf32>
    %317 = vector.broadcast %316 : vector<12x1xf32> to vector<12x32xf32>
    %318 = arith.mulf %313, %317 : vector<12x32xf32>
    %319 = vector.broadcast %299 : vector<1x32xf32> to vector<12x32xf32>
    %320 = arith.mulf %318, %319 : vector<12x32xf32>
    %321 = vector.broadcast %300 : vector<1x32xf32> to vector<12x32xf32>
    %322 = arith.addf %320, %321 : vector<12x32xf32>
    %323 = vector.shape_cast %322 : vector<12x32xf32> to vector<2x6x32xf32>
    %c0_84 = arith.constant 0 : index
    %c0_85 = arith.constant 0 : index
    %c0_86 = arith.constant 0 : index
    %324 = vector.load %arg27[%c0_84, %c0_85, %c0_86] : memref<2x6x32xf32, #tpu.memory_space<vmem>>, vector<2x6x32xf32>
    tpu.vector_store %arg27[%c0_84, %c0_85, %c0_86], %323 {strides = array<i32>} : memref<2x6x32xf32, #tpu.memory_space<vmem>>, vector<2x6x32xf32>,
    return
  }
  func.func @transform_0(%arg0: i32) -> (i32, i32, i32) {
    %c0_i32 = arith.constant 0 : i32
    %c0_i32_0 = arith.constant 0 : i32
    %c0_i32_1 = arith.constant 0 : i32
    %c0_i32_2 = arith.constant 0 : i32
    return %c0_i32, %c0_i32_0, %c0_i32_1 : i32, i32, i32
  }
  func.func @transform_1(%arg0: i32) -> (i32, i32, i32) {
    %c0_i32 = arith.constant 0 : i32
    %c0_i32_0 = arith.constant 0 : i32
    %c0_i32_1 = arith.constant 0 : i32
    %c0_i32_2 = arith.constant 0 : i32
    return %c0_i32, %c0_i32_0, %c0_i32_1 : i32, i32, i32
  }
  func.func @transform_2(%arg0: i32) -> (i32, i32) {
    %c0_i32 = arith.constant 0 : i32
    %c0_i32_0 = arith.constant 0 : i32
    %c0_i32_1 = arith.constant 0 : i32
    return %c0_i32, %c0_i32_0 : i32, i32
  }
  func.func @transform_3(%arg0: i32) -> (i32, i32) {
    %c0_i32 = arith.constant 0 : i32
    %c0_i32_0 = arith.constant 0 : i32
    %c0_i32_1 = arith.constant 0 : i32
    return %c0_i32, %c0_i32_0 : i32, i32
  }
  func.func @transform_4(%arg0: i32) -> (i32, i32) {
    %c0_i32 = arith.constant 0 : i32
    %c0_i32_0 = arith.constant 0 : i32
    %c0_i32_1 = arith.constant 0 : i32
    return %c0_i32, %c0_i32_0 : i32, i32
  }
  func.func @transform_5(%arg0: i32) -> (i32, i32) {
    %c0_i32 = arith.constant 0 : i32
    %c0_i32_0 = arith.constant 0 : i32
    %c0_i32_1 = arith.constant 0 : i32
    return %c0_i32, %c0_i32_0 : i32, i32
  }
  func.func @transform_6(%arg0: i32) -> (i32, i32) {
    %c0_i32 = arith.constant 0 : i32
    %c0_i32_0 = arith.constant 0 : i32
    %c0_i32_1 = arith.constant 0 : i32
    return %c0_i32, %c0_i32_0 : i32, i32
  }
  func.func @transform_7(%arg0: i32) -> (i32, i32) {
    %c0_i32 = arith.constant 0 : i32
    %c0_i32_0 = arith.constant 0 : i32
    %c0_i32_1 = arith.constant 0 : i32
    return %c0_i32, %c0_i32_0 : i32, i32
  }
  func.func @transform_8(%arg0: i32) -> (i32, i32) {
    %c0_i32 = arith.constant 0 : i32
    %c0_i32_0 = arith.constant 0 : i32
    %c0_i32_1 = arith.constant 0 : i32
    return %c0_i32, %c0_i32_0 : i32, i32
  }
  func.func @transform_9(%arg0: i32) -> (i32, i32) {
    %c0_i32 = arith.constant 0 : i32
    %c0_i32_0 = arith.constant 0 : i32
    %c0_i32_1 = arith.constant 0 : i32
    return %c0_i32, %c0_i32_0 : i32, i32
  }
  func.func @transform_10(%arg0: i32) -> (i32, i32) {
    %c0_i32 = arith.constant 0 : i32
    %c0_i32_0 = arith.constant 0 : i32
    %c0_i32_1 = arith.constant 0 : i32
    return %c0_i32, %c0_i32_0 : i32, i32
  }
  func.func @transform_11(%arg0: i32) -> (i32, i32) {
    %c0_i32 = arith.constant 0 : i32
    %c0_i32_0 = arith.constant 0 : i32
    %c0_i32_1 = arith.constant 0 : i32
    return %c0_i32, %c0_i32_0 : i32, i32
  }
  func.func @transform_12(%arg0: i32) -> (i32, i32) {
    %c0_i32 = arith.constant 0 : i32
    %c0_i32_0 = arith.constant 0 : i32
    %c0_i32_1 = arith.constant 0 : i32
    return %c0_i32, %c0_i32_0 : i32, i32
  }
  func.func @transform_13(%arg0: i32) -> (i32, i32) {
    %c0_i32 = arith.constant 0 : i32
    %c0_i32_0 = arith.constant 0 : i32
    %c0_i32_1 = arith.constant 0 : i32
    return %c0_i32, %c0_i32_0 : i32, i32
  }
  func.func @transform_14(%arg0: i32) -> (i32, i32) {
    %c0_i32 = arith.constant 0 : i32
    %c0_i32_0 = arith.constant 0 : i32
    %c0_i32_1 = arith.constant 0 : i32
    return %c0_i32, %c0_i32_0 : i32, i32
  }
  func.func @transform_15(%arg0: i32) -> (i32, i32) {
    %c0_i32 = arith.constant 0 : i32
    %c0_i32_0 = arith.constant 0 : i32
    %c0_i32_1 = arith.constant 0 : i32
    return %c0_i32, %c0_i32_0 : i32, i32
  }
  func.func @transform_16(%arg0: i32) -> (i32, i32) {
    %c0_i32 = arith.constant 0 : i32
    %c0_i32_0 = arith.constant 0 : i32
    %c0_i32_1 = arith.constant 0 : i32
    return %c0_i32, %c0_i32_0 : i32, i32
  }
  func.func @transform_17(%arg0: i32) -> (i32, i32) {
    %c0_i32 = arith.constant 0 : i32
    %c0_i32_0 = arith.constant 0 : i32
    %c0_i32_1 = arith.constant 0 : i32
    return %c0_i32, %c0_i32_0 : i32, i32
  }
  func.func @transform_18(%arg0: i32) -> (i32, i32) {
    %c0_i32 = arith.constant 0 : i32
    %c0_i32_0 = arith.constant 0 : i32
    %c0_i32_1 = arith.constant 0 : i32
    return %c0_i32, %c0_i32_0 : i32, i32
  }
  func.func @transform_19(%arg0: i32) -> (i32, i32) {
    %c0_i32 = arith.constant 0 : i32
    %c0_i32_0 = arith.constant 0 : i32
    %c0_i32_1 = arith.constant 0 : i32
    return %c0_i32, %c0_i32_0 : i32, i32
  }
  func.func @transform_20(%arg0: i32) -> (i32, i32) {
    %c0_i32 = arith.constant 0 : i32
    %c0_i32_0 = arith.constant 0 : i32
    %c0_i32_1 = arith.constant 0 : i32
    return %c0_i32, %c0_i32_0 : i32, i32
  }
  func.func @transform_21(%arg0: i32) -> (i32, i32) {
    %c0_i32 = arith.constant 0 : i32
    %c0_i32_0 = arith.constant 0 : i32
    %c0_i32_1 = arith.constant 0 : i32
    return %c0_i32, %c0_i32_0 : i32, i32
  }
  func.func @transform_22(%arg0: i32) -> (i32, i32) {
    %c0_i32 = arith.constant 0 : i32
    %c0_i32_0 = arith.constant 0 : i32
    %c0_i32_1 = arith.constant 0 : i32
    return %c0_i32, %c0_i32_0 : i32, i32
  }
  func.func @transform_23(%arg0: i32) -> (i32, i32) {
    %c0_i32 = arith.constant 0 : i32
    %c0_i32_0 = arith.constant 0 : i32
    %c0_i32_1 = arith.constant 0 : i32
    return %c0_i32, %c0_i32_0 : i32, i32
  }
  func.func @transform_24(%arg0: i32) -> (i32, i32) {
    %c0_i32 = arith.constant 0 : i32
    %c0_i32_0 = arith.constant 0 : i32
    %c0_i32_1 = arith.constant 0 : i32
    return %c0_i32, %c0_i32_0 : i32, i32
  }
  func.func @transform_25(%arg0: i32) -> (i32, i32) {
    %c0_i32 = arith.constant 0 : i32
    %c0_i32_0 = arith.constant 0 : i32
    %c0_i32_1 = arith.constant 0 : i32
    return %c0_i32, %c0_i32_0 : i32, i32
  }
  func.func @transform_26(%arg0: i32) -> (i32, i32, i32) {
    %c0_i32 = arith.constant 0 : i32
    %c0_i32_0 = arith.constant 0 : i32
    %c0_i32_1 = arith.constant 0 : i32
    %c0_i32_2 = arith.constant 0 : i32
    return %c0_i32, %c0_i32_0, %c0_i32_1 : i32, i32, i32
  }
}

module attributes {stable_mosaic.version = 11 : i64} {
  func.func @_final_kernel(%arg0: i32, %arg1: memref<12x32xf32, #tpu.memory_space<vmem>>, %arg2: memref<1x32xf32, #tpu.memory_space<vmem>>, %arg3: memref<1x32xf32, #tpu.memory_space<vmem>>, %arg4: memref<32x128xbf16, #tpu.memory_space<vmem>>, %arg5: memref<1x128xf32, #tpu.memory_space<vmem>>, %arg6: memref<12x128xf32, #tpu.memory_space<vmem>>) attributes {dimension_semantics = [#tpu.dimension_semantics<parallel>], iteration_bounds = array<i64: 1>, scalar_prefetch = 0 : i64, scratch_operands = 0 : i64, tpu.core_type = #tpu.core_type<tc>, window_params = [{pipeline_mode = #tpu.pipeline_mode<synchronous>, transform_indices = @transform_0, window_bounds = array<i64: 12, 32>}, {pipeline_mode = #tpu.pipeline_mode<synchronous>, transform_indices = @transform_1, window_bounds = array<i64: 1, 32>}, {pipeline_mode = #tpu.pipeline_mode<synchronous>, transform_indices = @transform_2, window_bounds = array<i64: 1, 32>}, {transform_indices = @transform_3, window_bounds = array<i64: 32, 128>}, {transform_indices = @transform_4, window_bounds = array<i64: 1, 128>}, {transform_indices = @transform_5, window_bounds = array<i64: 12, 128>}]} {
    %c0 = arith.constant 0 : index
    %c0_0 = arith.constant 0 : index
    %0 = vector.load %arg1[%c0, %c0_0] : memref<12x32xf32, #tpu.memory_space<vmem>>, vector<12x32xf32>
    %c0_1 = arith.constant 0 : index
    %c0_2 = arith.constant 0 : index
    %1 = vector.load %arg2[%c0_1, %c0_2] : memref<1x32xf32, #tpu.memory_space<vmem>>, vector<1x32xf32>
    %c0_3 = arith.constant 0 : index
    %c0_4 = arith.constant 0 : index
    %2 = vector.load %arg3[%c0_3, %c0_4] : memref<1x32xf32, #tpu.memory_space<vmem>>, vector<1x32xf32>
    %cst = arith.constant dense<0.000000e+00> : vector<12xf32>
    %3 = vector.multi_reduction <add>, %0, %cst [1] : vector<12x32xf32> to vector<12xf32>
    %4 = vector.shape_cast %3 : vector<12xf32> to vector<12x1xf32>
    %cst_5 = arith.constant 3.200000e+01 : f32
    %5 = vector.broadcast %cst_5 : f32 to vector<12x1xf32>
    %6 = arith.divf %4, %5 : vector<12x1xf32>
    %7 = vector.broadcast %6 : vector<12x1xf32> to vector<12x32xf32>
    %8 = arith.subf %0, %7 : vector<12x32xf32>
    %9 = arith.mulf %8, %8 : vector<12x32xf32>
    %cst_6 = arith.constant dense<0.000000e+00> : vector<12xf32>
    %10 = vector.multi_reduction <add>, %9, %cst_6 [1] : vector<12x32xf32> to vector<12xf32>
    %11 = vector.shape_cast %10 : vector<12xf32> to vector<12x1xf32>
    %cst_7 = arith.constant 3.200000e+01 : f32
    %12 = vector.broadcast %cst_7 : f32 to vector<12x1xf32>
    %13 = arith.divf %11, %12 : vector<12x1xf32>
    %14 = vector.broadcast %6 : vector<12x1xf32> to vector<12x32xf32>
    %15 = arith.subf %0, %14 : vector<12x32xf32>
    %cst_8 = arith.constant 9.99999974E-6 : f32
    %16 = vector.broadcast %cst_8 : f32 to vector<12x1xf32>
    %17 = arith.addf %13, %16 : vector<12x1xf32>
    %18 = math.rsqrt %17 : vector<12x1xf32>
    %19 = vector.broadcast %18 : vector<12x1xf32> to vector<12x32xf32>
    %20 = arith.mulf %15, %19 : vector<12x32xf32>
    %21 = vector.broadcast %1 : vector<1x32xf32> to vector<12x32xf32>
    %22 = arith.mulf %20, %21 : vector<12x32xf32>
    %23 = vector.broadcast %2 : vector<1x32xf32> to vector<12x32xf32>
    %24 = arith.addf %22, %23 : vector<12x32xf32>
    %c0_9 = arith.constant 0 : index
    %c0_10 = arith.constant 0 : index
    %25 = vector.load %arg4[%c0_9, %c0_10] : memref<32x128xbf16, #tpu.memory_space<vmem>>, vector<32x128xbf16>
    %c0_11 = arith.constant 0 : index
    %c0_12 = arith.constant 0 : index
    %26 = vector.load %arg5[%c0_11, %c0_12] : memref<1x128xf32, #tpu.memory_space<vmem>>, vector<1x128xf32>
    %27 = arith.truncf %24 : vector<12x32xf32> to vector<12x32xbf16>
    %cst_13 = arith.constant dense<0.000000e+00> : vector<12x128xf32>
    %28 = tpu.matmul %27, %25, %cst_13 {dimension_numbers = #tpu.dot_dimension_numbers<[1], [0], [0], [1], [0, 0, 1, 1], [], []>} : vector<12x32xbf16>, vector<32x128xbf16>, vector<12x128xf32> -> vector<12x128xf32>
    %29 = vector.broadcast %26 : vector<1x128xf32> to vector<12x128xf32>
    %30 = arith.addf %28, %29 : vector<12x128xf32>
    %c0_14 = arith.constant 0 : index
    %c0_15 = arith.constant 0 : index
    %31 = vector.load %arg6[%c0_14, %c0_15] : memref<12x128xf32, #tpu.memory_space<vmem>>, vector<12x128xf32>
    tpu.vector_store %arg6[%c0_14, %c0_15], %30 {strides = array<i32>} : memref<12x128xf32, #tpu.memory_space<vmem>>, vector<12x128xf32>,
    return
  }
  func.func @transform_0(%arg0: i32) -> (i32, i32) {
    %c0_i32 = arith.constant 0 : i32
    %c0_i32_0 = arith.constant 0 : i32
    %c0_i32_1 = arith.constant 0 : i32
    return %c0_i32, %c0_i32_0 : i32, i32
  }
  func.func @transform_1(%arg0: i32) -> (i32, i32) {
    %c0_i32 = arith.constant 0 : i32
    %c0_i32_0 = arith.constant 0 : i32
    %c0_i32_1 = arith.constant 0 : i32
    return %c0_i32, %c0_i32_0 : i32, i32
  }
  func.func @transform_2(%arg0: i32) -> (i32, i32) {
    %c0_i32 = arith.constant 0 : i32
    %c0_i32_0 = arith.constant 0 : i32
    %c0_i32_1 = arith.constant 0 : i32
    return %c0_i32, %c0_i32_0 : i32, i32
  }
  func.func @transform_3(%arg0: i32) -> (i32, i32) {
    %c0_i32 = arith.constant 0 : i32
    %c0_i32_0 = arith.constant 0 : i32
    return %c0_i32, %arg0 : i32, i32
  }
  func.func @transform_4(%arg0: i32) -> (i32, i32) {
    %c0_i32 = arith.constant 0 : i32
    %c0_i32_0 = arith.constant 0 : i32
    return %c0_i32, %arg0 : i32, i32
  }
  func.func @transform_5(%arg0: i32) -> (i32, i32) {
    %c0_i32 = arith.constant 0 : i32
    %c0_i32_0 = arith.constant 0 : i32
    return %c0_i32, %arg0 : i32, i32
  }
}

</mosaic_0001>

<llo_original>
// kernel: seq2seq_forward.6
$region0: #{seq2seq_forward.6}
  #allocation0 [shape = 'u32[]', space=smem, size = 0x4, offset = 0x4, fixed_abs, tag = 'smem constant byte address 0x4 - core index']
  #allocation1 [shape = 'u32[72,128]{1,0:T(1,128)}', space=vmem, size = 0x9000, scoped, tag = 'internal scratch']
  %s0 = inlined_call_operand.vmem [shape: f32[2,8,32], index: 0, kind: input, shape index: {}]
  %s1 = inlined_call_operand.vmem [shape: f32[8,8], index: 1, kind: input, shape index: {}]
  %s2 = inlined_call_operand.vmem [shape: f32[2,8], index: 2, kind: input, shape index: {}]
  %s3 = inlined_call_operand.vmem [shape: f32[8,32], index: 3, kind: input, shape index: {}]
  %s4 = inlined_call_operand.vmem [shape: bf16[32,96], index: 4, kind: input, shape index: {}]
  %s5 = inlined_call_operand.vmem [shape: f32[1,96], index: 5, kind: input, shape index: {}]
  %s6 = inlined_call_operand.vmem [shape: bf16[32,32], index: 6, kind: input, shape index: {}]
  %s7 = inlined_call_operand.vmem [shape: f32[1,32], index: 7, kind: input, shape index: {}]
  %s8 = inlined_call_operand.vmem [shape: f32[1,32], index: 8, kind: input, shape index: {}]
  %s9 = inlined_call_operand.vmem [shape: f32[1,32], index: 9, kind: input, shape index: {}]
  %s10 = inlined_call_operand.vmem [shape: bf16[32,64], index: 10, kind: input, shape index: {}]
  %s11 = inlined_call_operand.vmem [shape: f32[1,64], index: 11, kind: input, shape index: {}]
  %s12 = inlined_call_operand.vmem [shape: bf16[64,32], index: 12, kind: input, shape index: {}]
  %s13 = inlined_call_operand.vmem [shape: f32[1,32], index: 13, kind: input, shape index: {}]
  %s14 = inlined_call_operand.vmem [shape: f32[1,32], index: 14, kind: input, shape index: {}]
  %s15 = inlined_call_operand.vmem [shape: f32[1,32], index: 15, kind: input, shape index: {}]
  %s16 = inlined_call_operand.vmem [shape: f32[1,32], index: 16, kind: input, shape index: {}]
  %s17 = inlined_call_operand.vmem [shape: f32[1,32], index: 17, kind: input, shape index: {}]
  %s18 = inlined_call_operand.vmem [shape: f32[2,8,32], index: 18, kind: output, shape index: {}]
  %s19 = sld [smem:[#allocation0]]
  $region82: #{seq2seq_forward.6} parent=0
    _
  %s21 = ssub.s32 1, %s19
  %s22 = scalar_select 0, %s21, %s19
  // Predicated region
  $region2: #{seq2seq_forward.6} parent=0 // pred_check
    _
  $region3: #{seq2seq_forward.6} parent=0 // pred_check_branch
    %24 = sbr.rel (0) target = $region5
  $region4: #{seq2seq_forward.6} parent=0 // pred_region
    _
  $region5: #{seq2seq_forward.6} parent=0 // pred_fallthru
    _
  // Predicated region
  $region6: #{seq2seq_forward.6} parent=0 // pred_check
    _
  $region7: #{seq2seq_forward.6} parent=0 // pred_check_branch
    %26 = sbr.rel (0) target = $region9
  $region8: #{seq2seq_forward.6} parent=0 // pred_region
    _
  $region9: #{seq2seq_forward.6} parent=0 // pred_fallthru
    _
  // Predicated region
  $region10: #{seq2seq_forward.6} parent=0 // pred_check
    _
  $region11: #{seq2seq_forward.6} parent=0 // pred_check_branch
    %28 = sbr.rel (0) target = $region13
  $region12: #{seq2seq_forward.6} parent=0 // pred_region
    _
  $region13: #{seq2seq_forward.6} parent=0 // pred_fallthru
    _
  // Predicated region
  $region14: #{seq2seq_forward.6} parent=0 // pred_check
    _
  $region15: #{seq2seq_forward.6} parent=0 // pred_check_branch
    %30 = sbr.rel (0) target = $region17
  $region16: #{seq2seq_forward.6} parent=0 // pred_region
    _
  $region17: #{seq2seq_forward.6} parent=0 // pred_fallthru
    _
  // Predicated region
  $region18: #{seq2seq_forward.6} parent=0 // pred_check
    _
  $region19: #{seq2seq_forward.6} parent=0 // pred_check_branch
    %32 = sbr.rel (0) target = $region21
  $region20: #{seq2seq_forward.6} parent=0 // pred_region
    _
  $region21: #{seq2seq_forward.6} parent=0 // pred_fallthru
    _
  // Predicated region
  $region22: #{seq2seq_forward.6} parent=0 // pred_check
    _
  $region23: #{seq2seq_forward.6} parent=0 // pred_check_branch
    %34 = sbr.rel (0) target = $region25
  $region24: #{seq2seq_forward.6} parent=0 // pred_region
    _
  $region25: #{seq2seq_forward.6} parent=0 // pred_fallthru
    _
  // Predicated region
  $region26: #{seq2seq_forward.6} parent=0 // pred_check
    _
  $region27: #{seq2seq_forward.6} parent=0 // pred_check_branch
    %36 = sbr.rel (0) target = $region29
  $region28: #{seq2seq_forward.6} parent=0 // pred_region
    _
  $region29: #{seq2seq_forward.6} parent=0 // pred_fallthru
    _
  // Predicated region
  $region30: #{seq2seq_forward.6} parent=0 // pred_check
    _
  $region31: #{seq2seq_forward.6} parent=0 // pred_check_branch
    %38 = sbr.rel (0) target = $region33
  $region32: #{seq2seq_forward.6} parent=0 // pred_region
    _
  $region33: #{seq2seq_forward.6} parent=0 // pred_fallthru
    _
  // Predicated region
  $region34: #{seq2seq_forward.6} parent=0 // pred_check
    _
  $region35: #{seq2seq_forward.6} parent=0 // pred_check_branch
    %40 = sbr.rel (0) target = $region37
  $region36: #{seq2seq_forward.6} parent=0 // pred_region
    _
  $region37: #{seq2seq_forward.6} parent=0 // pred_fallthru
    _
  // Predicated region
  $region38: #{seq2seq_forward.6} parent=0 // pred_check
    _
  $region39: #{seq2seq_forward.6} parent=0 // pred_check_branch
    %42 = sbr.rel (0) target = $region41
  $region40: #{seq2seq_forward.6} parent=0 // pred_region
    _
  $region41: #{seq2seq_forward.6} parent=0 // pred_fallthru
    _
  // Predicated region
  $region42: #{seq2seq_forward.6} parent=0 // pred_check
    _
  $region43: #{seq2seq_forward.6} parent=0 // pred_check_branch
    %44 = sbr.rel (0) target = $region45
  $region44: #{seq2seq_forward.6} parent=0 // pred_region
    _
  $region45: #{seq2seq_forward.6} parent=0 // pred_fallthru
    _
  // Predicated region
  $region46: #{seq2seq_forward.6} parent=0 // pred_check
    _
  $region47: #{seq2seq_forward.6} parent=0 // pred_check_branch
    %46 = sbr.rel (0) target = $region49
  $region48: #{seq2seq_forward.6} parent=0 // pred_region
    _
  $region49: #{seq2seq_forward.6} parent=0 // pred_fallthru
    _
  // Predicated region
  $region50: #{seq2seq_forward.6} parent=0 // pred_check
    _
  $region51: #{seq2seq_forward.6} parent=0 // pred_check_branch
    %48 = sbr.rel (0) target = $region53
  $region52: #{seq2seq_forward.6} parent=0 // pred_region
    _
  $region53: #{seq2seq_forward.6} parent=0 // pred_fallthru
    _
  // Predicated region
  $region54: #{seq2seq_forward.6} parent=0 // pred_check
    _
  $region55: #{seq2seq_forward.6} parent=0 // pred_check_branch
    %50 = sbr.rel (0) target = $region57
  $region56: #{seq2seq_forward.6} parent=0 // pred_region
    _
  $region57: #{seq2seq_forward.6} parent=0 // pred_fallthru
    _
  // Predicated region
  $region58: #{seq2seq_forward.6} parent=0 // pred_check
    _
  $region59: #{seq2seq_forward.6} parent=0 // pred_check_branch
    %52 = sbr.rel (0) target = $region61
  $region60: #{seq2seq_forward.6} parent=0 // pred_region
    _
  $region61: #{seq2seq_forward.6} parent=0 // pred_fallthru
    _
  // Predicated region
  $region62: #{seq2seq_forward.6} parent=0 // pred_check
    _
  $region63: #{seq2seq_forward.6} parent=0 // pred_check_branch
    %54 = sbr.rel (0) target = $region65
  $region64: #{seq2seq_forward.6} parent=0 // pred_region
    _
  $region65: #{seq2seq_forward.6} parent=0 // pred_fallthru
    _
  // Predicated region
  $region66: #{seq2seq_forward.6} parent=0 // pred_check
    _
  $region67: #{seq2seq_forward.6} parent=0 // pred_check_branch
    %56 = sbr.rel (0) target = $region69
  $region68: #{seq2seq_forward.6} parent=0 // pred_region
    _
  $region69: #{seq2seq_forward.6} parent=0 // pred_fallthru
    _
  // Predicated region
  $region70: #{seq2seq_forward.6} parent=0 // pred_check
    _
  $region71: #{seq2seq_forward.6} parent=0 // pred_check_branch
    %58 = sbr.rel (0) target = $region73
  $region72: #{seq2seq_forward.6} parent=0 // pred_region
    _
  $region73: #{seq2seq_forward.6} parent=0 // pred_fallthru
    _
  %v60 = vld [vmem:[%s0] sm:$0xff]
  %v61 = vld [vmem:[%s0 + $0x8] sm:$0xff]
  %v62 = vld [vmem:[%s4] sm:$0xf]
  %v63 = vld [vmem:[%s4 + $0x4] sm:$0xf]
  %v64 = vld [vmem:[%s4 + $0x8] sm:$0xf]
  %v65 = vld [vmem:[%s4 + $0xc] sm:$0xf]
  %v66 = vld [vmem:[%s5] sm:$0x1]
  %v67 = vpack.c.bf16 %v61, %v60
  %v69 = vperm.slane %v66, 0
  %v75 = vunpack.c.l.b16 %v62
  %v76 = vunpack.c.l.b16 %v63
  %v77 = vunpack.c.l.b16 %v64
  %v78 = vunpack.c.l.b16 %v65
  %v79 = vpack.c.b16 %v76, %v75
  %v80 = vpack.c.b16 %v78, %v77
  %vm83 = vcmask 261120
  %v85 = vsel %vm83, %v67, 0
  %87 = vmatpush.bf16.msra.mxu0 0
  %88 = vmatpush.bf16.msra.mxu0 0
  %89 = vmatpush.bf16.msra.mxu0 0
  %90 = vmatpush.bf16.msra.mxu0 0
  %91 = vmatpush.bf16.msra.mxu0 0
  %92 = vmatpush.bf16.msra.mxu0 0
  %93 = vmatpush.bf16.msra.mxu0 %v80
  %94 = vmatpush.bf16.msra.mxu0 %v79
  %95 = vmatmul.bf16.gmra.mxu0 %v85
  %v96 = vpop.f32.mrf.mxu0
  %v97 = vadd.f32 %v69, %v96
  %v98 = vpop.f32.mrf.mxu0
  %v99 = vadd.f32 %v69, %v98
  %100 = vdwg.mxu0
  %v101 = vld [vmem:[%s1] sm:$0xff]
  %v102 = vld [vmem:[%s2] sm:$0x3]
  %v104 = vrot.slane %v102, 1
  %v105 = vperm.slane %v102, 0
  %v106 = vperm.slane %v104, 0
  %v109 = vadd.f32 %v101, %v105
  %v110 = vadd.f32 %v101, %v106
  %v111 = vmax.f32 %v109, -1e+30
  %v112 = vmax.f32 %v110, -1e+30
  %114 = vrot.lane.b32.xlu0 %v97, 120
  %v115 = vpop.permute.xlu0 %114
  %117 = vrot.lane.b32.xlu0 %v97, 112
  %v118 = vpop.permute.xlu0 %117
  %120 = vrot.lane.b32.xlu0 %v97, 104
  %v121 = vpop.permute.xlu0 %120
  %124 = vrot.lane.b32.xlu0 %v99, 120
  %v125 = vpop.permute.xlu0 %124
  %127 = vrot.lane.b32.xlu0 %v99, 112
  %v128 = vpop.permute.xlu0 %127
  %130 = vrot.lane.b32.xlu0 %v99, 104
  %v131 = vpop.permute.xlu0 %130
  %v133 = vpack.c.bf16 %v97, %v97
  %v134 = vpack.c.bf16 %v115, %v115
  %v135 = vpack.c.bf16 %v118, %v118
  %v136 = vpack.c.bf16 %v121, %v121
  %v137 = vpack.c.bf16 %v99, %v99
  %v138 = vpack.c.bf16 %v125, %v125
  %v139 = vpack.c.bf16 %v128, %v128
  %v140 = vpack.c.bf16 %v131, %v131
  %v142 = vunpack.c.l.b16 %v133
  %v143 = vpack.c.b16 %v142, %v142
  %144 = vrot.lane.b32.xlu0 %v143, 96
  %v145 = vpop.permute.xlu0 %144
  %vm146 = vcmask 64512
  %v148 = vsel %vm146, %v133, 0
  %v151 = vsel %vm146, %v145, 0
  %153 = vmatpush.bf16.xpose.msra.mxu0 0
  %154 = vmatpush.bf16.xpose.msra.mxu0 0
  %155 = vmatpush.bf16.xpose.msra.mxu0 0
  %156 = vmatpush.bf16.xpose.msra.mxu0 0
  %157 = vmatpush.bf16.xpose.msra.mxu0 0
  %158 = vmatpush.bf16.xpose.msra.mxu0 0
  %159 = vmatpush.bf16.xpose.msra.mxu0 0
  %160 = vmatpush.bf16.xpose.msra.mxu0 %v151
  %161 = vmatmul.bf16.gmra.mxu0 %v148
  %v162 = vpop.f32.mrf.mxu0
  %v163 = vadd.f32 0.0, %v162
  %v164 = vpop.f32.mrf.mxu0
  %165 = vdwg.mxu0
  %v167 = vunpack.c.l.b16 %v134
  %v168 = vpack.c.b16 %v167, %v167
  %169 = vrot.lane.b32.xlu0 %v168, 96
  %v170 = vpop.permute.xlu0 %169
  %v172 = vsel %vm146, %v134, 0
  %v175 = vsel %vm146, %v170, 0
  %177 = vmatpush.bf16.xpose.msra.mxu0 0
  %178 = vmatpush.bf16.xpose.msra.mxu0 0
  %179 = vmatpush.bf16.xpose.msra.mxu0 0
  %180 = vmatpush.bf16.xpose.msra.mxu0 0
  %181 = vmatpush.bf16.xpose.msra.mxu0 0
  %182 = vmatpush.bf16.xpose.msra.mxu0 0
  %183 = vmatpush.bf16.xpose.msra.mxu0 0
  %184 = vmatpush.bf16.xpose.msra.mxu0 %v175
  %185 = vmatmul.bf16.gmra.mxu0 %v172
  %v186 = vpop.f32.mrf.mxu0
  %v187 = vadd.f32 0.0, %v186
  %v188 = vpop.f32.mrf.mxu0
  %189 = vdwg.mxu0
  %v191 = vunpack.c.l.b16 %v135
  %v192 = vpack.c.b16 %v191, %v191
  %193 = vrot.lane.b32.xlu0 %v192, 96
  %v194 = vpop.permute.xlu0 %193
  %v196 = vsel %vm146, %v135, 0
  %v199 = vsel %vm146, %v194, 0
  %201 = vmatpush.bf16.xpose.msra.mxu0 0
  %202 = vmatpush.bf16.xpose.msra.mxu0 0
  %203 = vmatpush.bf16.xpose.msra.mxu0 0
  %204 = vmatpush.bf16.xpose.msra.mxu0 0
  %205 = vmatpush.bf16.xpose.msra.mxu0 0
  %206 = vmatpush.bf16.xpose.msra.mxu0 0
  %207 = vmatpush.bf16.xpose.msra.mxu0 0
  %208 = vmatpush.bf16.xpose.msra.mxu0 %v199
  %209 = vmatmul.bf16.gmra.mxu0 %v196
  %v210 = vpop.f32.mrf.mxu0
  %v211 = vadd.f32 0.0, %v210
  %v212 = vpop.f32.mrf.mxu0
  %213 = vdwg.mxu0
  %v215 = vunpack.c.l.b16 %v136
  %v216 = vpack.c.b16 %v215, %v215
  %217 = vrot.lane.b32.xlu0 %v216, 96
  %v218 = vpop.permute.xlu0 %217
  %v220 = vsel %vm146, %v136, 0
  %v223 = vsel %vm146, %v218, 0
  %225 = vmatpush.bf16.xpose.msra.mxu0 0
  %226 = vmatpush.bf16.xpose.msra.mxu0 0
  %227 = vmatpush.bf16.xpose.msra.mxu0 0
  %228 = vmatpush.bf16.xpose.msra.mxu0 0
  %229 = vmatpush.bf16.xpose.msra.mxu0 0
  %230 = vmatpush.bf16.xpose.msra.mxu0 0
  %231 = vmatpush.bf16.xpose.msra.mxu0 0
  %232 = vmatpush.bf16.xpose.msra.mxu0 %v223
  %233 = vmatmul.bf16.gmra.mxu0 %v220
  %v234 = vpop.f32.mrf.mxu0
  %v235 = vadd.f32 0.0, %v234
  %v236 = vpop.f32.mrf.mxu0
  %237 = vdwg.mxu0
  %v239 = vunpack.c.l.b16 %v137
  %v240 = vpack.c.b16 %v239, %v239
  %241 = vrot.lane.b32.xlu0 %v240, 96
  %v242 = vpop.permute.xlu0 %241
  %v244 = vsel %vm146, %v137, 0
  %v247 = vsel %vm146, %v242, 0
  %249 = vmatpush.bf16.xpose.msra.mxu0 0
  %250 = vmatpush.bf16.xpose.msra.mxu0 0
  %251 = vmatpush.bf16.xpose.msra.mxu0 0
  %252 = vmatpush.bf16.xpose.msra.mxu0 0
  %253 = vmatpush.bf16.xpose.msra.mxu0 0
  %254 = vmatpush.bf16.xpose.msra.mxu0 0
  %255 = vmatpush.bf16.xpose.msra.mxu0 0
  %256 = vmatpush.bf16.xpose.msra.mxu0 %v247
  %257 = vmatmul.bf16.gmra.mxu0 %v244
  %v258 = vpop.f32.mrf.mxu0
  %v259 = vadd.f32 0.0, %v258
  %v260 = vpop.f32.mrf.mxu0
  %261 = vdwg.mxu0
  %v263 = vunpack.c.l.b16 %v138
  %v264 = vpack.c.b16 %v263, %v263
  %265 = vrot.lane.b32.xlu0 %v264, 96
  %v266 = vpop.permute.xlu0 %265
  %v268 = vsel %vm146, %v138, 0
  %v271 = vsel %vm146, %v266, 0
  %273 = vmatpush.bf16.xpose.msra.mxu0 0
  %274 = vmatpush.bf16.xpose.msra.mxu0 0
  %275 = vmatpush.bf16.xpose.msra.mxu0 0
  %276 = vmatpush.bf16.xpose.msra.mxu0 0
  %277 = vmatpush.bf16.xpose.msra.mxu0 0
  %278 = vmatpush.bf16.xpose.msra.mxu0 0
  %279 = vmatpush.bf16.xpose.msra.mxu0 0
  %280 = vmatpush.bf16.xpose.msra.mxu0 %v271
  %281 = vmatmul.bf16.gmra.mxu0 %v268
  %v282 = vpop.f32.mrf.mxu0
  %v283 = vadd.f32 0.0, %v282
  %v284 = vpop.f32.mrf.mxu0
  %285 = vdwg.mxu0
  %v287 = vunpack.c.l.b16 %v139
  %v288 = vpack.c.b16 %v287, %v287
  %289 = vrot.lane.b32.xlu0 %v288, 96
  %v290 = vpop.permute.xlu0 %289
  %v292 = vsel %vm146, %v139, 0
  %v295 = vsel %vm146, %v290, 0
  %297 = vmatpush.bf16.xpose.msra.mxu0 0
  %298 = vmatpush.bf16.xpose.msra.mxu0 0
  %299 = vmatpush.bf16.xpose.msra.mxu0 0
  %300 = vmatpush.bf16.xpose.msra.mxu0 0
  %301 = vmatpush.bf16.xpose.msra.mxu0 0
  %302 = vmatpush.bf16.xpose.msra.mxu0 0
  %303 = vmatpush.bf16.xpose.msra.mxu0 0
  %304 = vmatpush.bf16.xpose.msra.mxu0 %v295
  %305 = vmatmul.bf16.gmra.mxu0 %v292
  %v306 = vpop.f32.mrf.mxu0
  %v307 = vadd.f32 0.0, %v306
  %v308 = vpop.f32.mrf.mxu0
  %309 = vdwg.mxu0
  %v311 = vunpack.c.l.b16 %v140
  %v312 = vpack.c.b16 %v311, %v311
  %313 = vrot.lane.b32.xlu0 %v312, 96
  %v314 = vpop.permute.xlu0 %313
  %v316 = vsel %vm146, %v140, 0
  %v319 = vsel %vm146, %v314, 0
  %321 = vmatpush.bf16.xpose.msra.mxu0 0
  %322 = vmatpush.bf16.xpose.msra.mxu0 0
  %323 = vmatpush.bf16.xpose.msra.mxu0 0
  %324 = vmatpush.bf16.xpose.msra.mxu0 0
  %325 = vmatpush.bf16.xpose.msra.mxu0 0
  %326 = vmatpush.bf16.xpose.msra.mxu0 0
  %327 = vmatpush.bf16.xpose.msra.mxu0 0
  %328 = vmatpush.bf16.xpose.msra.mxu0 %v319
  %329 = vmatmul.bf16.gmra.mxu0 %v316
  %v330 = vpop.f32.mrf.mxu0
  %v331 = vadd.f32 0.0, %v330
  %v332 = vpop.f32.mrf.mxu0
  %333 = vdwg.mxu0
  %v334 = vmul.f32 %v163, 0.35355338
  %v335 = vmul.f32 %v187, 0.35355338
  %v336 = vmul.f32 %v211, 0.35355338
  %v337 = vmul.f32 %v235, 0.35355338
  %v338 = vmul.f32 %v259, 0.35355338
  %v339 = vmul.f32 %v283, 0.35355338
  %v340 = vmul.f32 %v307, 0.35355338
  %v341 = vmul.f32 %v331, 0.35355338
  %v342 = vadd.f32 %v334, %v111
  %v343 = vadd.f32 %v335, %v111
  %v344 = vadd.f32 %v336, %v111
  %v345 = vadd.f32 %v337, %v111
  %v346 = vadd.f32 %v338, %v112
  %v347 = vadd.f32 %v339, %v112
  %v348 = vadd.f32 %v340, %v112
  %v349 = vadd.f32 %v341, %v112
  %v350 = vsel %vm146, %v342, -inf
  %351 = vmax.xlane.f32.xlu0 %v350
  %v352 = vpop.xlane.xlu0 %351
  %v353 = vsel %vm146, %v343, -inf
  %354 = vmax.xlane.f32.xlu0 %v353
  %v355 = vpop.xlane.xlu0 %354
  %v356 = vsel %vm146, %v344, -inf
  %357 = vmax.xlane.f32.xlu0 %v356
  %v358 = vpop.xlane.xlu0 %357
  %v359 = vsel %vm146, %v345, -inf
  %360 = vmax.xlane.f32.xlu0 %v359
  %v361 = vpop.xlane.xlu0 %360
  %v362 = vsel %vm146, %v346, -inf
  %363 = vmax.xlane.f32.xlu0 %v362
  %v364 = vpop.xlane.xlu0 %363
  %v365 = vsel %vm146, %v347, -inf
  %366 = vmax.xlane.f32.xlu0 %v365
  %v367 = vpop.xlane.xlu0 %366
  %v368 = vsel %vm146, %v348, -inf
  %369 = vmax.xlane.f32.xlu0 %v368
  %v370 = vpop.xlane.xlu0 %369
  %v371 = vsel %vm146, %v349, -inf
  %372 = vmax.xlane.f32.xlu0 %v371
  %v373 = vpop.xlane.xlu0 %372
  %v374 = vsub.f32 %v342, %v352
  %v375 = vsub.f32 %v343, %v355
  %v376 = vsub.f32 %v344, %v358
  %v377 = vsub.f32 %v345, %v361
  %v378 = vsub.f32 %v346, %v364
  %v379 = vsub.f32 %v347, %v367
  %v380 = vsub.f32 %v348, %v370
  %v381 = vsub.f32 %v349, %v373
  %v382 = vmul.f32 %v374, 1.442695
  %v383 = vpow.pop %v382
  %v384 = vmul.f32 %v375, 1.442695
  %v385 = vpow.pop %v384
  %v386 = vmul.f32 %v376, 1.442695
  %v387 = vpow.pop %v386
  %v388 = vmul.f32 %v377, 1.442695
  %v389 = vpow.pop %v388
  %v390 = vmul.f32 %v378, 1.442695
  %v391 = vpow.pop %v390
  %v392 = vmul.f32 %v379, 1.442695
  %v393 = vpow.pop %v392
  %v394 = vmul.f32 %v380, 1.442695
  %v395 = vpow.pop %v394
  %v396 = vmul.f32 %v381, 1.442695
  %v397 = vpow.pop %v396
  %v398 = vsel %vm146, %v383, 0.0
  %399 = vadd.xlane.f32.xlu0 %v398
  %v400 = vpop.xlane.xlu0 %399
  %v401 = vsel %vm146, %v385, 0.0
  %402 = vadd.xlane.f32.xlu0 %v401
  %v403 = vpop.xlane.xlu0 %402
  %v404 = vsel %vm146, %v387, 0.0
  %405 = vadd.xlane.f32.xlu0 %v404
  %v406 = vpop.xlane.xlu0 %405
  %v407 = vsel %vm146, %v389, 0.0
  %408 = vadd.xlane.f32.xlu0 %v407
  %v409 = vpop.xlane.xlu0 %408
  %v410 = vsel %vm146, %v391, 0.0
  %411 = vadd.xlane.f32.xlu0 %v410
  %v412 = vpop.xlane.xlu0 %411
  %v413 = vsel %vm146, %v393, 0.0
  %414 = vadd.xlane.f32.xlu0 %v413
  %v415 = vpop.xlane.xlu0 %414
  %v416 = vsel %vm146, %v395, 0.0
  %417 = vadd.xlane.f32.xlu0 %v416
  %v418 = vpop.xlane.xlu0 %417
  %v419 = vsel %vm146, %v397, 0.0
  %420 = vadd.xlane.f32.xlu0 %v419
  %v421 = vpop.xlane.xlu0 %420
  %v422 = vrcp.pop %v400
  %v423 = vrcp.pop %v403
  %v424 = vrcp.pop %v406
  %v425 = vrcp.pop %v409
  %v426 = vrcp.pop %v412
  %v427 = vrcp.pop %v415
  %v428 = vrcp.pop %v418
  %v429 = vrcp.pop %v421
  %v430 = vmul.f32 %v383, %v422
  %v431 = vmul.f32 %v385, %v423
  %v432 = vmul.f32 %v387, %v424
  %v433 = vmul.f32 %v389, %v425
  %v434 = vmul.f32 %v391, %v426
  %v435 = vmul.f32 %v393, %v427
  %v436 = vmul.f32 %v395, %v428
  %v437 = vmul.f32 %v397, %v429
  %v438 = vpack.c.bf16 %v430, %v430
  %v439 = vpack.c.bf16 %v431, %v431
  %v440 = vpack.c.bf16 %v432, %v432
  %v441 = vpack.c.bf16 %v433, %v433
  %v442 = vpack.c.bf16 %v434, %v434
  %v443 = vpack.c.bf16 %v435, %v435
  %v444 = vpack.c.bf16 %v436, %v436
  %v445 = vpack.c.bf16 %v437, %v437
  %446 = vrot.lane.b32.xlu0 %v143, 64
  %v447 = vpop.permute.xlu0 %446
  %v449 = vsel %vm146, %v438, 0
  %vm451 = vcmask 1043456
  %v453 = vsel %vm451, %v447, 0
  %455 = vmatpush.bf16.msra.mxu0 0
  %456 = vmatpush.bf16.msra.mxu0 0
  %457 = vmatpush.bf16.msra.mxu0 0
  %458 = vmatpush.bf16.msra.mxu0 0
  %459 = vmatpush.bf16.msra.mxu0 0
  %460 = vmatpush.bf16.msra.mxu0 0
  %461 = vmatpush.bf16.msra.mxu0 0
  %462 = vmatpush.bf16.msra.mxu0 %v453
  %463 = vmatmul.bf16.gmra.mxu0 %v449
  %v464 = vpop.f32.mrf.mxu0
  %v465 = vadd.f32 0.0, %v464
  %v466 = vpop.f32.mrf.mxu0
  %467 = vdwg.mxu0
  %468 = vrot.lane.b32.xlu0 %v168, 64
  %v469 = vpop.permute.xlu0 %468
  %v471 = vsel %vm146, %v439, 0
  %v474 = vsel %vm451, %v469, 0
  %476 = vmatpush.bf16.msra.mxu0 0
  %477 = vmatpush.bf16.msra.mxu0 0
  %478 = vmatpush.bf16.msra.mxu0 0
  %479 = vmatpush.bf16.msra.mxu0 0
  %480 = vmatpush.bf16.msra.mxu0 0
  %481 = vmatpush.bf16.msra.mxu0 0
  %482 = vmatpush.bf16.msra.mxu0 0
  %483 = vmatpush.bf16.msra.mxu0 %v474
  %484 = vmatmul.bf16.gmra.mxu0 %v471
  %v485 = vpop.f32.mrf.mxu0
  %v486 = vadd.f32 0.0, %v485
  %v487 = vpop.f32.mrf.mxu0
  %488 = vdwg.mxu0
  %489 = vrot.lane.b32.xlu0 %v192, 64
  %v490 = vpop.permute.xlu0 %489
  %v492 = vsel %vm146, %v440, 0
  %v495 = vsel %vm451, %v490, 0
  %497 = vmatpush.bf16.msra.mxu0 0
  %498 = vmatpush.bf16.msra.mxu0 0
  %499 = vmatpush.bf16.msra.mxu0 0
  %500 = vmatpush.bf16.msra.mxu0 0
  %501 = vmatpush.bf16.msra.mxu0 0
  %502 = vmatpush.bf16.msra.mxu0 0
  %503 = vmatpush.bf16.msra.mxu0 0
  %504 = vmatpush.bf16.msra.mxu0 %v495
  %505 = vmatmul.bf16.gmra.mxu0 %v492
  %v506 = vpop.f32.mrf.mxu0
  %v507 = vadd.f32 0.0, %v506
  %v508 = vpop.f32.mrf.mxu0
  %509 = vdwg.mxu0
  %510 = vrot.lane.b32.xlu0 %v216, 64
  %v511 = vpop.permute.xlu0 %510
  %v513 = vsel %vm146, %v441, 0
  %v516 = vsel %vm451, %v511, 0
  %518 = vmatpush.bf16.msra.mxu0 0
  %519 = vmatpush.bf16.msra.mxu0 0
  %520 = vmatpush.bf16.msra.mxu0 0
  %521 = vmatpush.bf16.msra.mxu0 0
  %522 = vmatpush.bf16.msra.mxu0 0
  %523 = vmatpush.bf16.msra.mxu0 0
  %524 = vmatpush.bf16.msra.mxu0 0
  %525 = vmatpush.bf16.msra.mxu0 %v516
  %526 = vmatmul.bf16.gmra.mxu0 %v513
  %v527 = vpop.f32.mrf.mxu0
  %v528 = vadd.f32 0.0, %v527
  %v529 = vpop.f32.mrf.mxu0
  %530 = vdwg.mxu0
  %531 = vrot.lane.b32.xlu0 %v240, 64
  %v532 = vpop.permute.xlu0 %531
  %v534 = vsel %vm146, %v442, 0
  %v537 = vsel %vm451, %v532, 0
  %539 = vmatpush.bf16.msra.mxu0 0
  %540 = vmatpush.bf16.msra.mxu0 0
  %541 = vmatpush.bf16.msra.mxu0 0
  %542 = vmatpush.bf16.msra.mxu0 0
  %543 = vmatpush.bf16.msra.mxu0 0
  %544 = vmatpush.bf16.msra.mxu0 0
  %545 = vmatpush.bf16.msra.mxu0 0
  %546 = vmatpush.bf16.msra.mxu0 %v537
  %547 = vmatmul.bf16.gmra.mxu0 %v534
  %v548 = vpop.f32.mrf.mxu0
  %v549 = vadd.f32 0.0, %v548
  %v550 = vpop.f32.mrf.mxu0
  %551 = vdwg.mxu0
  %552 = vrot.lane.b32.xlu0 %v264, 64
  %v553 = vpop.permute.xlu0 %552
  %v555 = vsel %vm146, %v443, 0
  %v558 = vsel %vm451, %v553, 0
  %560 = vmatpush.bf16.msra.mxu0 0
  %561 = vmatpush.bf16.msra.mxu0 0
  %562 = vmatpush.bf16.msra.mxu0 0
  %563 = vmatpush.bf16.msra.mxu0 0
  %564 = vmatpush.bf16.msra.mxu0 0
  %565 = vmatpush.bf16.msra.mxu0 0
  %566 = vmatpush.bf16.msra.mxu0 0
  %567 = vmatpush.bf16.msra.mxu0 %v558
  %568 = vmatmul.bf16.gmra.mxu0 %v555
  %v569 = vpop.f32.mrf.mxu0
  %v570 = vadd.f32 0.0, %v569
  %v571 = vpop.f32.mrf.mxu0
  %572 = vdwg.mxu0
  %573 = vrot.lane.b32.xlu0 %v288, 64
  %v574 = vpop.permute.xlu0 %573
  %v576 = vsel %vm146, %v444, 0
  %v579 = vsel %vm451, %v574, 0
  %581 = vmatpush.bf16.msra.mxu0 0
  %582 = vmatpush.bf16.msra.mxu0 0
  %583 = vmatpush.bf16.msra.mxu0 0
  %584 = vmatpush.bf16.msra.mxu0 0
  %585 = vmatpush.bf16.msra.mxu0 0
  %586 = vmatpush.bf16.msra.mxu0 0
  %587 = vmatpush.bf16.msra.mxu0 0
  %588 = vmatpush.bf16.msra.mxu0 %v579
  %589 = vmatmul.bf16.gmra.mxu0 %v576
  %v590 = vpop.f32.mrf.mxu0
  %v591 = vadd.f32 0.0, %v590
  %v592 = vpop.f32.mrf.mxu0
  %593 = vdwg.mxu0
  %594 = vrot.lane.b32.xlu0 %v312, 64
  %v595 = vpop.permute.xlu0 %594
  %v597 = vsel %vm146, %v445, 0
  %v600 = vsel %vm451, %v595, 0
  %602 = vmatpush.bf16.msra.mxu0 0
  %603 = vmatpush.bf16.msra.mxu0 0
  %604 = vmatpush.bf16.msra.mxu0 0
  %605 = vmatpush.bf16.msra.mxu0 0
  %606 = vmatpush.bf16.msra.mxu0 0
  %607 = vmatpush.bf16.msra.mxu0 0
  %608 = vmatpush.bf16.msra.mxu0 0
  %609 = vmatpush.bf16.msra.mxu0 %v600
  %610 = vmatmul.bf16.gmra.mxu0 %v597
  %v611 = vpop.f32.mrf.mxu0
  %v612 = vadd.f32 0.0, %v611
  %v613 = vpop.f32.mrf.mxu0
  %614 = vdwg.mxu0
  %616 = vrot.lane.b32.xlu0 %v486, 8
  %v617 = vpop.permute.xlu0 %616
  %620 = vrot.lane.b32.xlu0 %v507, 16
  %v621 = vpop.permute.xlu0 %620
  %624 = vrot.lane.b32.xlu0 %v528, 24
  %v625 = vpop.permute.xlu0 %624
  %v627 = vsel %vm146, %v465, %v617
  %vm628 = vcmask 130048
  %v629 = vsel %vm628, %v627, %v621
  %vm630 = vcmask 195584
  %v631 = vsel %vm630, %v629, %v625
  %633 = vrot.lane.b32.xlu0 %v570, 8
  %v634 = vpop.permute.xlu0 %633
  %637 = vrot.lane.b32.xlu0 %v591, 16
  %v638 = vpop.permute.xlu0 %637
  %641 = vrot.lane.b32.xlu0 %v612, 24
  %v642 = vpop.permute.xlu0 %641
  %v644 = vsel %vm146, %v549, %v634
  %v645 = vsel %vm628, %v644, %v638
  %v646 = vsel %vm630, %v645, %v642
  %v647 = vld [vmem:[%s6] sm:$0xf]
  %v648 = vld [vmem:[%s6 + $0x4] sm:$0xf]
  %v649 = vld [vmem:[%s6 + $0x8] sm:$0xf]
  %v650 = vld [vmem:[%s6 + $0xc] sm:$0xf]
  %v651 = vld [vmem:[%s7] sm:$0x1]
  %v652 = vpack.c.bf16 %v646, %v631
  %v654 = vperm.slane %v651, 0
  %v660 = vunpack.c.l.b16 %v647
  %v661 = vunpack.c.l.b16 %v648
  %v662 = vunpack.c.l.b16 %v649
  %v663 = vunpack.c.l.b16 %v650
  %v664 = vpack.c.b16 %v661, %v660
  %v665 = vpack.c.b16 %v663, %v662
  %v669 = vsel %vm83, %v652, 0
  %671 = vmatpush.bf16.msra.mxu0 0
  %672 = vmatpush.bf16.msra.mxu0 0
  %673 = vmatpush.bf16.msra.mxu0 0
  %674 = vmatpush.bf16.msra.mxu0 0
  %675 = vmatpush.bf16.msra.mxu0 0
  %676 = vmatpush.bf16.msra.mxu0 0
  %677 = vmatpush.bf16.msra.mxu0 %v665
  %678 = vmatpush.bf16.msra.mxu0 %v664
  %679 = vmatmul.bf16.gmra.mxu0 %v669
  %v680 = vpop.f32.mrf.mxu0
  %v681 = vadd.f32 %v654, %v680
  %v682 = vpop.f32.mrf.mxu0
  %v683 = vadd.f32 %v654, %v682
  %684 = vdwg.mxu0
  %v685 = vadd.f32 %v60, %v681
  %v686 = vadd.f32 %v61, %v683
  %v687 = vld [vmem:[%s8] sm:$0x1]
  %v688 = vld [vmem:[%s9] sm:$0x1]
  %v689 = vsel %vm83, %v685, 0.0
  %690 = vadd.xlane.f32.xlu0 %v689
  %v691 = vpop.xlane.xlu0 %690
  %v692 = vsel %vm83, %v686, 0.0
  %693 = vadd.xlane.f32.xlu0 %v692
  %v694 = vpop.xlane.xlu0 %693
  %v695 = vrcp.pop 32.0
  %v696 = vmul.f32 32.0, %v695
  %v697 = vsub.f32 1.0, %v696
  %v698 = vmul.f32 %v695, %v697
  %v699 = vadd.f32 %v695, %v698
  %vm700 = vweird.f32 %v695
  %v701 = vsel %vm700, %v695, %v699
  %v702 = vmul.f32 %v691, %v701
  %v703 = vmul.f32 %v694, %v701
  %v704 = vsub.f32 %v685, %v702
  %v705 = vsub.f32 %v686, %v703
  %v706 = vmul.f32 %v704, %v704
  %v707 = vmul.f32 %v705, %v705
  %v708 = vsel %vm83, %v706, 0.0
  %709 = vadd.xlane.f32.xlu0 %v708
  %v710 = vpop.xlane.xlu0 %709
  %v711 = vsel %vm83, %v707, 0.0
  %712 = vadd.xlane.f32.xlu0 %v711
  %v713 = vpop.xlane.xlu0 %712
  %v714 = vmul.f32 %v710, %v701
  %v715 = vmul.f32 %v713, %v701
  %v716 = vadd.f32 %v714, 1e-05
  %v717 = vadd.f32 %v715, 1e-05
  %v718 = vrsqrt.pop %v716
  %v719 = vmul.f32 %v718, %v716
  %v720 = vmul.f32 %v719, %v718
  %v721 = vmul.f32 0.5, %v720
  %v722 = vsub.f32 1.5, %v721
  %v723 = vmul.f32 %v718, %v722
  %vm724 = vweird.f32 %v716
  %vm725 = vweird.f32 %v718
  %vm726 = vmor %vm724, %vm725
  %v727 = vsel %vm726, %v718, %v723
  %v728 = vrsqrt.pop %v717
  %v729 = vmul.f32 %v728, %v717
  %v730 = vmul.f32 %v729, %v728
  %v731 = vmul.f32 0.5, %v730
  %v732 = vsub.f32 1.5, %v731
  %v733 = vmul.f32 %v728, %v732
  %vm734 = vweird.f32 %v717
  %vm735 = vweird.f32 %v728
  %vm736 = vmor %vm734, %vm735
  %v737 = vsel %vm736, %v728, %v733
  %v738 = vmul.f32 %v704, %v727
  %v739 = vmul.f32 %v705, %v737
  %v741 = vperm.slane %v687, 0
  %v743 = vmul.f32 %v738, %v741
  %v744 = vmul.f32 %v739, %v741
  %v746 = vperm.slane %v688, 0
  %v748 = vadd.f32 %v743, %v746
  %v749 = vadd.f32 %v744, %v746
  %v750 = vld [vmem:[%s10] sm:$0xf]
  %v751 = vld [vmem:[%s10 + $0x4] sm:$0xf]
  %v752 = vld [vmem:[%s10 + $0x8] sm:$0xf]
  %v753 = vld [vmem:[%s10 + $0xc] sm:$0xf]
  %v754 = vld [vmem:[%s11] sm:$0x1]
  %v755 = vpack.c.bf16 %v749, %v748
  %v757 = vperm.slane %v754, 0
  %v763 = vunpack.c.l.b16 %v750
  %v764 = vunpack.c.l.b16 %v751
  %v765 = vunpack.c.l.b16 %v752
  %v766 = vunpack.c.l.b16 %v753
  %v767 = vpack.c.b16 %v764, %v763
  %v768 = vpack.c.b16 %v766, %v765
  %v772 = vsel %vm83, %v755, 0
  %774 = vmatpush.bf16.msra.mxu0 0
  %775 = vmatpush.bf16.msra.mxu0 0
  %776 = vmatpush.bf16.msra.mxu0 0
  %777 = vmatpush.bf16.msra.mxu0 0
  %778 = vmatpush.bf16.msra.mxu0 0
  %779 = vmatpush.bf16.msra.mxu0 0
  %780 = vmatpush.bf16.msra.mxu0 %v768
  %781 = vmatpush.bf16.msra.mxu0 %v767
  %782 = vmatmul.bf16.gmra.mxu0 %v772
  %v783 = vpop.f32.mrf.mxu0
  %v784 = vadd.f32 %v757, %v783
  %v785 = vpop.f32.mrf.mxu0
  %v786 = vadd.f32 %v757, %v785
  %787 = vdwg.mxu0
  %v788 = vmax.f32 %v784, 0.0
  %v789 = vmax.f32 %v786, 0.0
  %v790 = vld [vmem:[%s12] sm:$0xf]
  %v791 = vld [vmem:[%s12 + $0x4] sm:$0xf]
  %v792 = vld [vmem:[%s12 + $0x8] sm:$0xf]
  %v793 = vld [vmem:[%s12 + $0xc] sm:$0xf]
  %v794 = vld [vmem:[%s12 + $0x10] sm:$0xf]
  %v795 = vld [vmem:[%s12 + $0x14] sm:$0xf]
  %v796 = vld [vmem:[%s12 + $0x18] sm:$0xf]
  %v797 = vld [vmem:[%s12 + $0x1c] sm:$0xf]
  %v798 = vld [vmem:[%s13] sm:$0x1]
  %v799 = vpack.c.bf16 %v789, %v788
  %v801 = vperm.slane %v798, 0
  %v811 = vunpack.c.l.b16 %v790
  %v812 = vunpack.c.l.b16 %v791
  %v813 = vunpack.c.l.b16 %v792
  %v814 = vunpack.c.l.b16 %v793
  %v815 = vunpack.c.l.b16 %v794
  %v816 = vunpack.c.l.b16 %v795
  %v817 = vunpack.c.l.b16 %v796
  %v818 = vunpack.c.l.b16 %v797
  %v819 = vpack.c.b16 %v812, %v811
  %v820 = vpack.c.b16 %v814, %v813
  %v821 = vpack.c.b16 %v816, %v815
  %v822 = vpack.c.b16 %v818, %v817
  %vm827 = vcmask 523264
  %v829 = vsel %vm827, %v799, 0
  %831 = vmatpush.bf16.msra.mxu0 0
  %832 = vmatpush.bf16.msra.mxu0 0
  %833 = vmatpush.bf16.msra.mxu0 0
  %834 = vmatpush.bf16.msra.mxu0 0
  %835 = vmatpush.bf16.msra.mxu0 %v822
  %836 = vmatpush.bf16.msra.mxu0 %v821
  %837 = vmatpush.bf16.msra.mxu0 %v820
  %838 = vmatpush.bf16.msra.mxu0 %v819
  %839 = vmatmul.bf16.gmra.mxu0 %v829
  %v840 = vpop.f32.mrf.mxu0
  %v841 = vadd.f32 %v801, %v840
  %v842 = vpop.f32.mrf.mxu0
  %v843 = vadd.f32 %v801, %v842
  %844 = vdwg.mxu0
  %v845 = vadd.f32 %v748, %v841
  %v846 = vadd.f32 %v749, %v843
  %v847 = vld [vmem:[%s14] sm:$0x1]
  %v848 = vld [vmem:[%s15] sm:$0x1]
  %v849 = vsel %vm83, %v845, 0.0
  %850 = vadd.xlane.f32.xlu0 %v849
  %v851 = vpop.xlane.xlu0 %850
  %v852 = vsel %vm83, %v846, 0.0
  %853 = vadd.xlane.f32.xlu0 %v852
  %v854 = vpop.xlane.xlu0 %853
  %v855 = vmul.f32 %v851, %v701
  %v856 = vmul.f32 %v854, %v701
  %v857 = vsub.f32 %v845, %v855
  %v858 = vsub.f32 %v846, %v856
  %v859 = vmul.f32 %v857, %v857
  %v860 = vmul.f32 %v858, %v858
  %v861 = vsel %vm83, %v859, 0.0
  %862 = vadd.xlane.f32.xlu0 %v861
  %v863 = vpop.xlane.xlu0 %862
  %v864 = vsel %vm83, %v860, 0.0
  %865 = vadd.xlane.f32.xlu0 %v864
  %v866 = vpop.xlane.xlu0 %865
  %v867 = vmul.f32 %v863, %v701
  %v868 = vmul.f32 %v866, %v701
  %v869 = vadd.f32 %v867, 1e-05
  %v870 = vadd.f32 %v868, 1e-05
  %v871 = vrsqrt.pop %v869
  %v872 = vmul.f32 %v871, %v869
  %v873 = vmul.f32 %v872, %v871
  %v874 = vmul.f32 0.5, %v873
  %v875 = vsub.f32 1.5, %v874
  %v876 = vmul.f32 %v871, %v875
  %vm877 = vweird.f32 %v869
  %vm878 = vweird.f32 %v871
  %vm879 = vmor %vm877, %vm878
  %v880 = vsel %vm879, %v871, %v876
  %v881 = vrsqrt.pop %v870
  %v882 = vmul.f32 %v881, %v870
  %v883 = vmul.f32 %v882, %v881
  %v884 = vmul.f32 0.5, %v883
  %v885 = vsub.f32 1.5, %v884
  %v886 = vmul.f32 %v881, %v885
  %vm887 = vweird.f32 %v870
  %vm888 = vweird.f32 %v881
  %vm889 = vmor %vm887, %vm888
  %v890 = vsel %vm889, %v881, %v886
  %v891 = vmul.f32 %v857, %v880
  %v892 = vmul.f32 %v858, %v890
  %v894 = vperm.slane %v847, 0
  %v896 = vmul.f32 %v891, %v894
  %v897 = vmul.f32 %v892, %v894
  %v899 = vperm.slane %v848, 0
  %v901 = vadd.f32 %v896, %v899
  %v902 = vadd.f32 %v897, %v899
  %v903 = vld [vmem:[%s16] sm:$0x1]
  %v904 = vld [vmem:[%s17] sm:$0x1]
  %v905 = vsel %vm83, %v901, 0.0
  %906 = vadd.xlane.f32.xlu0 %v905
  %v907 = vpop.xlane.xlu0 %906
  %v908 = vsel %vm83, %v902, 0.0
  %909 = vadd.xlane.f32.xlu0 %v908
  %v910 = vpop.xlane.xlu0 %909
  %v911 = vmul.f32 %v907, %v701
  %v912 = vmul.f32 %v910, %v701
  %v913 = vsub.f32 %v901, %v911
  %v914 = vsub.f32 %v902, %v912
  %v915 = vmul.f32 %v913, %v913
  %v916 = vmul.f32 %v914, %v914
  %v917 = vsel %vm83, %v915, 0.0
  %918 = vadd.xlane.f32.xlu0 %v917
  %v919 = vpop.xlane.xlu0 %918
  %v920 = vsel %vm83, %v916, 0.0
  %921 = vadd.xlane.f32.xlu0 %v920
  %v922 = vpop.xlane.xlu0 %921
  %v923 = vmul.f32 %v919, %v701
  %v924 = vmul.f32 %v922, %v701
  %v925 = vadd.f32 %v923, 1e-05
  %v926 = vadd.f32 %v924, 1e-05
  %v927 = vrsqrt.pop %v925
  %v928 = vmul.f32 %v927, %v925
  %v929 = vmul.f32 %v928, %v927
  %v930 = vmul.f32 0.5, %v929
  %v931 = vsub.f32 1.5, %v930
  %v932 = vmul.f32 %v927, %v931
  %vm933 = vweird.f32 %v925
  %vm934 = vweird.f32 %v927
  %vm935 = vmor %vm933, %vm934
  %v936 = vsel %vm935, %v927, %v932
  %v937 = vrsqrt.pop %v926
  %v938 = vmul.f32 %v937, %v926
  %v939 = vmul.f32 %v938, %v937
  %v940 = vmul.f32 0.5, %v939
  %v941 = vsub.f32 1.5, %v940
  %v942 = vmul.f32 %v937, %v941
  %vm943 = vweird.f32 %v926
  %vm944 = vweird.f32 %v937
  %vm945 = vmor %vm943, %vm944
  %v946 = vsel %vm945, %v937, %v942
  %v947 = vmul.f32 %v913, %v936
  %v948 = vmul.f32 %v914, %v946
  %v950 = vperm.slane %v903, 0
  %v952 = vmul.f32 %v947, %v950
  %v953 = vmul.f32 %v948, %v950
  %v955 = vperm.slane %v904, 0
  %v957 = vadd.f32 %v952, %v955
  %v958 = vadd.f32 %v953, %v955
  %959 = vst.msk [vmem:[%s18] sm:$0xff] %vm83, %v957
  %960 = vst.msk [vmem:[%s18 + $0x8] sm:$0xff] %vm83, %v958
  // Predicated region
  $region74: #{seq2seq_forward.6} parent=0 // pred_check
    _
  $region75: #{seq2seq_forward.6} parent=0 // pred_check_branch
    %962 = sbr.rel (0) target = $region77
  $region76: #{seq2seq_forward.6} parent=0 // pred_region
    _
  $region77: #{seq2seq_forward.6} parent=0 // pred_fallthru
    _
  // Predicated region
  $region78: #{seq2seq_forward.6} parent=0 // pred_check
    _
  $region79: #{seq2seq_forward.6} parent=0 // pred_check_branch
    %964 = sbr.rel (0) target = $region81
  $region80: #{seq2seq_forward.6} parent=0 // pred_region
    _
  $region81: #{seq2seq_forward.6} parent=0 // pred_fallthru
    _

// kernel: seq2seq_forward.5
$region0: #{seq2seq_forward.5}
  #allocation0 [shape = 'u32[]', space=smem, size = 0x4, offset = 0x4, fixed_abs, tag = 'smem constant byte address 0x4 - core index']
  #allocation1 [shape = 'u32[72,128]{1,0:T(1,128)}', space=vmem, size = 0x9000, scoped, tag = 'internal scratch']
  %s0 = inlined_call_operand.vmem [shape: f32[2,8,32], index: 0, kind: input, shape index: {}]
  %s1 = inlined_call_operand.vmem [shape: f32[8,8], index: 1, kind: input, shape index: {}]
  %s2 = inlined_call_operand.vmem [shape: f32[2,8], index: 2, kind: input, shape index: {}]
  %s3 = inlined_call_operand.vmem [shape: f32[8,32], index: 3, kind: input, shape index: {}]
  %s4 = inlined_call_operand.vmem [shape: bf16[32,96], index: 4, kind: input, shape index: {}]
  %s5 = inlined_call_operand.vmem [shape: f32[1,96], index: 5, kind: input, shape index: {}]
  %s6 = inlined_call_operand.vmem [shape: bf16[32,32], index: 6, kind: input, shape index: {}]
  %s7 = inlined_call_operand.vmem [shape: f32[1,32], index: 7, kind: input, shape index: {}]
  %s8 = inlined_call_operand.vmem [shape: f32[1,32], index: 8, kind: input, shape index: {}]
  %s9 = inlined_call_operand.vmem [shape: f32[1,32], index: 9, kind: input, shape index: {}]
  %s10 = inlined_call_operand.vmem [shape: bf16[32,64], index: 10, kind: input, shape index: {}]
  %s11 = inlined_call_operand.vmem [shape: f32[1,64], index: 11, kind: input, shape index: {}]
  %s12 = inlined_call_operand.vmem [shape: bf16[64,32], index: 12, kind: input, shape index: {}]
  %s13 = inlined_call_operand.vmem [shape: f32[1,32], index: 13, kind: input, shape index: {}]
  %s14 = inlined_call_operand.vmem [shape: f32[1,32], index: 14, kind: input, shape index: {}]
  %s15 = inlined_call_operand.vmem [shape: f32[1,32], index: 15, kind: input, shape index: {}]
  %s16 = inlined_call_operand.vmem [shape: f32[1,32], index: 16, kind: input, shape index: {}]
  %s17 = inlined_call_operand.vmem [shape: f32[1,32], index: 17, kind: input, shape index: {}]
  %s18 = inlined_call_operand.vmem [shape: f32[2,8,32], index: 18, kind: output, shape index: {}]
  %s19 = sld [smem:[#allocation0]]
  $region82: #{seq2seq_forward.5} parent=0
    _
  %s21 = ssub.s32 1, %s19
  %s22 = scalar_select 0, %s21, %s19
  // Predicated region
  $region2: #{seq2seq_forward.5} parent=0 // pred_check
    _
  $region3: #{seq2seq_forward.5} parent=0 // pred_check_branch
    %24 = sbr.rel (0) target = $region5
  $region4: #{seq2seq_forward.5} parent=0 // pred_region
    _
  $region5: #{seq2seq_forward.5} parent=0 // pred_fallthru
    _
  // Predicated region
  $region6: #{seq2seq_forward.5} parent=0 // pred_check
    _
  $region7: #{seq2seq_forward.5} parent=0 // pred_check_branch
    %26 = sbr.rel (0) target = $region9
  $region8: #{seq2seq_forward.5} parent=0 // pred_region
    _
  $region9: #{seq2seq_forward.5} parent=0 // pred_fallthru
    _
  // Predicated region
  $region10: #{seq2seq_forward.5} parent=0 // pred_check
    _
  $region11: #{seq2seq_forward.5} parent=0 // pred_check_branch
    %28 = sbr.rel (0) target = $region13
  $region12: #{seq2seq_forward.5} parent=0 // pred_region
    _
  $region13: #{seq2seq_forward.5} parent=0 // pred_fallthru
    _
  // Predicated region
  $region14: #{seq2seq_forward.5} parent=0 // pred_check
    _
  $region15: #{seq2seq_forward.5} parent=0 // pred_check_branch
    %30 = sbr.rel (0) target = $region17
  $region16: #{seq2seq_forward.5} parent=0 // pred_region
    _
  $region17: #{seq2seq_forward.5} parent=0 // pred_fallthru
    _
  // Predicated region
  $region18: #{seq2seq_forward.5} parent=0 // pred_check
    _
  $region19: #{seq2seq_forward.5} parent=0 // pred_check_branch
    %32 = sbr.rel (0) target = $region21
  $region20: #{seq2seq_forward.5} parent=0 // pred_region
    _
  $region21: #{seq2seq_forward.5} parent=0 // pred_fallthru
    _
  // Predicated region
  $region22: #{seq2seq_forward.5} parent=0 // pred_check
    _
  $region23: #{seq2seq_forward.5} parent=0 // pred_check_branch
    %34 = sbr.rel (0) target = $region25
  $region24: #{seq2seq_forward.5} parent=0 // pred_region
    _
  $region25: #{seq2seq_forward.5} parent=0 // pred_fallthru
    _
  // Predicated region
  $region26: #{seq2seq_forward.5} parent=0 // pred_check
    _
  $region27: #{seq2seq_forward.5} parent=0 // pred_check_branch
    %36 = sbr.rel (0) target = $region29
  $region28: #{seq2seq_forward.5} parent=0 // pred_region
    _
  $region29: #{seq2seq_forward.5} parent=0 // pred_fallthru
    _
  // Predicated region
  $region30: #{seq2seq_forward.5} parent=0 // pred_check
    _
  $region31: #{seq2seq_forward.5} parent=0 // pred_check_branch
    %38 = sbr.rel (0) target = $region33
  $region32: #{seq2seq_forward.5} parent=0 // pred_region
    _
  $region33: #{seq2seq_forward.5} parent=0 // pred_fallthru
    _
  // Predicated region
  $region34: #{seq2seq_forward.5} parent=0 // pred_check
    _
  $region35: #{seq2seq_forward.5} parent=0 // pred_check_branch
    %40 = sbr.rel (0) target = $region37
  $region36: #{seq2seq_forward.5} parent=0 // pred_region
    _
  $region37: #{seq2seq_forward.5} parent=0 // pred_fallthru
    _
  // Predicated region
  $region38: #{seq2seq_forward.5} parent=0 // pred_check
    _
  $region39: #{seq2seq_forward.5} parent=0 // pred_check_branch
    %42 = sbr.rel (0) target = $region41
  $region40: #{seq2seq_forward.5} parent=0 // pred_region
    _
  $region41: #{seq2seq_forward.5} parent=0 // pred_fallthru
    _
  // Predicated region
  $region42: #{seq2seq_forward.5} parent=0 // pred_check
    _
  $region43: #{seq2seq_forward.5} parent=0 // pred_check_branch
    %44 = sbr.rel (0) target = $region45
  $region44: #{seq2seq_forward.5} parent=0 // pred_region
    _
  $region45: #{seq2seq_forward.5} parent=0 // pred_fallthru
    _
  // Predicated region
  $region46: #{seq2seq_forward.5} parent=0 // pred_check
    _
  $region47: #{seq2seq_forward.5} parent=0 // pred_check_branch
    %46 = sbr.rel (0) target = $region49
  $region48: #{seq2seq_forward.5} parent=0 // pred_region
    _
  $region49: #{seq2seq_forward.5} parent=0 // pred_fallthru
    _
  // Predicated region
  $region50: #{seq2seq_forward.5} parent=0 // pred_check
    _
  $region51: #{seq2seq_forward.5} parent=0 // pred_check_branch
    %48 = sbr.rel (0) target = $region53
  $region52: #{seq2seq_forward.5} parent=0 // pred_region
    _
  $region53: #{seq2seq_forward.5} parent=0 // pred_fallthru
    _
  // Predicated region
  $region54: #{seq2seq_forward.5} parent=0 // pred_check
    _
  $region55: #{seq2seq_forward.5} parent=0 // pred_check_branch
    %50 = sbr.rel (0) target = $region57
  $region56: #{seq2seq_forward.5} parent=0 // pred_region
    _
  $region57: #{seq2seq_forward.5} parent=0 // pred_fallthru
    _
  // Predicated region
  $region58: #{seq2seq_forward.5} parent=0 // pred_check
    _
  $region59: #{seq2seq_forward.5} parent=0 // pred_check_branch
    %52 = sbr.rel (0) target = $region61
  $region60: #{seq2seq_forward.5} parent=0 // pred_region
    _
  $region61: #{seq2seq_forward.5} parent=0 // pred_fallthru
    _
  // Predicated region
  $region62: #{seq2seq_forward.5} parent=0 // pred_check
    _
  $region63: #{seq2seq_forward.5} parent=0 // pred_check_branch
    %54 = sbr.rel (0) target = $region65
  $region64: #{seq2seq_forward.5} parent=0 // pred_region
    _
  $region65: #{seq2seq_forward.5} parent=0 // pred_fallthru
    _
  // Predicated region
  $region66: #{seq2seq_forward.5} parent=0 // pred_check
    _
  $region67: #{seq2seq_forward.5} parent=0 // pred_check_branch
    %56 = sbr.rel (0) target = $region69
  $region68: #{seq2seq_forward.5} parent=0 // pred_region
    _
  $region69: #{seq2seq_forward.5} parent=0 // pred_fallthru
    _
  // Predicated region
  $region70: #{seq2seq_forward.5} parent=0 // pred_check
    _
  $region71: #{seq2seq_forward.5} parent=0 // pred_check_branch
    %58 = sbr.rel (0) target = $region73
  $region72: #{seq2seq_forward.5} parent=0 // pred_region
    _
  $region73: #{seq2seq_forward.5} parent=0 // pred_fallthru
    _
  %v60 = vld [vmem:[%s0] sm:$0xff]
  %v61 = vld [vmem:[%s0 + $0x8] sm:$0xff]
  %v62 = vmul.f32 %v60, 5.656854
  %v63 = vmul.f32 %v61, 5.656854
  %v64 = vld [vmem:[%s3] sm:$0xff]
  %v65 = vadd.f32 %v62, %v64
  %v66 = vadd.f32 %v63, %v64
  %v67 = vld [vmem:[%s4] sm:$0xf]
  %v68 = vld [vmem:[%s4 + $0x4] sm:$0xf]
  %v69 = vld [vmem:[%s4 + $0x8] sm:$0xf]
  %v70 = vld [vmem:[%s4 + $0xc] sm:$0xf]
  %v71 = vld [vmem:[%s5] sm:$0x1]
  %v72 = vpack.c.bf16 %v66, %v65
  %v74 = vperm.slane %v71, 0
  %v80 = vunpack.c.l.b16 %v67
  %v81 = vunpack.c.l.b16 %v68
  %v82 = vunpack.c.l.b16 %v69
  %v83 = vunpack.c.l.b16 %v70
  %v84 = vpack.c.b16 %v81, %v80
  %v85 = vpack.c.b16 %v83, %v82
  %vm88 = vcmask 261120
  %v90 = vsel %vm88, %v72, 0
  %92 = vmatpush.bf16.msra.mxu0 0
  %93 = vmatpush.bf16.msra.mxu0 0
  %94 = vmatpush.bf16.msra.mxu0 0
  %95 = vmatpush.bf16.msra.mxu0 0
  %96 = vmatpush.bf16.msra.mxu0 0
  %97 = vmatpush.bf16.msra.mxu0 0
  %98 = vmatpush.bf16.msra.mxu0 %v85
  %99 = vmatpush.bf16.msra.mxu0 %v84
  %100 = vmatmul.bf16.gmra.mxu0 %v90
  %v101 = vpop.f32.mrf.mxu0
  %v102 = vadd.f32 %v74, %v101
  %v103 = vpop.f32.mrf.mxu0
  %v104 = vadd.f32 %v74, %v103
  %105 = vdwg.mxu0
  %v106 = vld [vmem:[%s1] sm:$0xff]
  %v107 = vld [vmem:[%s2] sm:$0x3]
  %v109 = vrot.slane %v107, 1
  %v110 = vperm.slane %v107, 0
  %v111 = vperm.slane %v109, 0
  %v114 = vadd.f32 %v106, %v110
  %v115 = vadd.f32 %v106, %v111
  %v116 = vmax.f32 %v114, -1e+30
  %v117 = vmax.f32 %v115, -1e+30
  %119 = vrot.lane.b32.xlu0 %v102, 120
  %v120 = vpop.permute.xlu0 %119
  %122 = vrot.lane.b32.xlu0 %v102, 112
  %v123 = vpop.permute.xlu0 %122
  %125 = vrot.lane.b32.xlu0 %v102, 104
  %v126 = vpop.permute.xlu0 %125
  %129 = vrot.lane.b32.xlu0 %v104, 120
  %v130 = vpop.permute.xlu0 %129
  %132 = vrot.lane.b32.xlu0 %v104, 112
  %v133 = vpop.permute.xlu0 %132
  %135 = vrot.lane.b32.xlu0 %v104, 104
  %v136 = vpop.permute.xlu0 %135
  %v138 = vpack.c.bf16 %v102, %v102
  %v139 = vpack.c.bf16 %v120, %v120
  %v140 = vpack.c.bf16 %v123, %v123
  %v141 = vpack.c.bf16 %v126, %v126
  %v142 = vpack.c.bf16 %v104, %v104
  %v143 = vpack.c.bf16 %v130, %v130
  %v144 = vpack.c.bf16 %v133, %v133
  %v145 = vpack.c.bf16 %v136, %v136
  %v147 = vunpack.c.l.b16 %v138
  %v148 = vpack.c.b16 %v147, %v147
  %149 = vrot.lane.b32.xlu0 %v148, 96
  %v150 = vpop.permute.xlu0 %149
  %vm151 = vcmask 64512
  %v153 = vsel %vm151, %v138, 0
  %v156 = vsel %vm151, %v150, 0
  %158 = vmatpush.bf16.xpose.msra.mxu0 0
  %159 = vmatpush.bf16.xpose.msra.mxu0 0
  %160 = vmatpush.bf16.xpose.msra.mxu0 0
  %161 = vmatpush.bf16.xpose.msra.mxu0 0
  %162 = vmatpush.bf16.xpose.msra.mxu0 0
  %163 = vmatpush.bf16.xpose.msra.mxu0 0
  %164 = vmatpush.bf16.xpose.msra.mxu0 0
  %165 = vmatpush.bf16.xpose.msra.mxu0 %v156
  %166 = vmatmul.bf16.gmra.mxu0 %v153
  %v167 = vpop.f32.mrf.mxu0
  %v168 = vadd.f32 0.0, %v167
  %v169 = vpop.f32.mrf.mxu0
  %170 = vdwg.mxu0
  %v172 = vunpack.c.l.b16 %v139
  %v173 = vpack.c.b16 %v172, %v172
  %174 = vrot.lane.b32.xlu0 %v173, 96
  %v175 = vpop.permute.xlu0 %174
  %v177 = vsel %vm151, %v139, 0
  %v180 = vsel %vm151, %v175, 0
  %182 = vmatpush.bf16.xpose.msra.mxu0 0
  %183 = vmatpush.bf16.xpose.msra.mxu0 0
  %184 = vmatpush.bf16.xpose.msra.mxu0 0
  %185 = vmatpush.bf16.xpose.msra.mxu0 0
  %186 = vmatpush.bf16.xpose.msra.mxu0 0
  %187 = vmatpush.bf16.xpose.msra.mxu0 0
  %188 = vmatpush.bf16.xpose.msra.mxu0 0
  %189 = vmatpush.bf16.xpose.msra.mxu0 %v180
  %190 = vmatmul.bf16.gmra.mxu0 %v177
  %v191 = vpop.f32.mrf.mxu0
  %v192 = vadd.f32 0.0, %v191
  %v193 = vpop.f32.mrf.mxu0
  %194 = vdwg.mxu0
  %v196 = vunpack.c.l.b16 %v140
  %v197 = vpack.c.b16 %v196, %v196
  %198 = vrot.lane.b32.xlu0 %v197, 96
  %v199 = vpop.permute.xlu0 %198
  %v201 = vsel %vm151, %v140, 0
  %v204 = vsel %vm151, %v199, 0
  %206 = vmatpush.bf16.xpose.msra.mxu0 0
  %207 = vmatpush.bf16.xpose.msra.mxu0 0
  %208 = vmatpush.bf16.xpose.msra.mxu0 0
  %209 = vmatpush.bf16.xpose.msra.mxu0 0
  %210 = vmatpush.bf16.xpose.msra.mxu0 0
  %211 = vmatpush.bf16.xpose.msra.mxu0 0
  %212 = vmatpush.bf16.xpose.msra.mxu0 0
  %213 = vmatpush.bf16.xpose.msra.mxu0 %v204
  %214 = vmatmul.bf16.gmra.mxu0 %v201
  %v215 = vpop.f32.mrf.mxu0
  %v216 = vadd.f32 0.0, %v215
  %v217 = vpop.f32.mrf.mxu0
  %218 = vdwg.mxu0
  %v220 = vunpack.c.l.b16 %v141
  %v221 = vpack.c.b16 %v220, %v220
  %222 = vrot.lane.b32.xlu0 %v221, 96
  %v223 = vpop.permute.xlu0 %222
  %v225 = vsel %vm151, %v141, 0
  %v228 = vsel %vm151, %v223, 0
  %230 = vmatpush.bf16.xpose.msra.mxu0 0
  %231 = vmatpush.bf16.xpose.msra.mxu0 0
  %232 = vmatpush.bf16.xpose.msra.mxu0 0
  %233 = vmatpush.bf16.xpose.msra.mxu0 0
  %234 = vmatpush.bf16.xpose.msra.mxu0 0
  %235 = vmatpush.bf16.xpose.msra.mxu0 0
  %236 = vmatpush.bf16.xpose.msra.mxu0 0
  %237 = vmatpush.bf16.xpose.msra.mxu0 %v228
  %238 = vmatmul.bf16.gmra.mxu0 %v225
  %v239 = vpop.f32.mrf.mxu0
  %v240 = vadd.f32 0.0, %v239
  %v241 = vpop.f32.mrf.mxu0
  %242 = vdwg.mxu0
  %v244 = vunpack.c.l.b16 %v142
  %v245 = vpack.c.b16 %v244, %v244
  %246 = vrot.lane.b32.xlu0 %v245, 96
  %v247 = vpop.permute.xlu0 %246
  %v249 = vsel %vm151, %v142, 0
  %v252 = vsel %vm151, %v247, 0
  %254 = vmatpush.bf16.xpose.msra.mxu0 0
  %255 = vmatpush.bf16.xpose.msra.mxu0 0
  %256 = vmatpush.bf16.xpose.msra.mxu0 0
  %257 = vmatpush.bf16.xpose.msra.mxu0 0
  %258 = vmatpush.bf16.xpose.msra.mxu0 0
  %259 = vmatpush.bf16.xpose.msra.mxu0 0
  %260 = vmatpush.bf16.xpose.msra.mxu0 0
  %261 = vmatpush.bf16.xpose.msra.mxu0 %v252
  %262 = vmatmul.bf16.gmra.mxu0 %v249
  %v263 = vpop.f32.mrf.mxu0
  %v264 = vadd.f32 0.0, %v263
  %v265 = vpop.f32.mrf.mxu0
  %266 = vdwg.mxu0
  %v268 = vunpack.c.l.b16 %v143
  %v269 = vpack.c.b16 %v268, %v268
  %270 = vrot.lane.b32.xlu0 %v269, 96
  %v271 = vpop.permute.xlu0 %270
  %v273 = vsel %vm151, %v143, 0
  %v276 = vsel %vm151, %v271, 0
  %278 = vmatpush.bf16.xpose.msra.mxu0 0
  %279 = vmatpush.bf16.xpose.msra.mxu0 0
  %280 = vmatpush.bf16.xpose.msra.mxu0 0
  %281 = vmatpush.bf16.xpose.msra.mxu0 0
  %282 = vmatpush.bf16.xpose.msra.mxu0 0
  %283 = vmatpush.bf16.xpose.msra.mxu0 0
  %284 = vmatpush.bf16.xpose.msra.mxu0 0
  %285 = vmatpush.bf16.xpose.msra.mxu0 %v276
  %286 = vmatmul.bf16.gmra.mxu0 %v273
  %v287 = vpop.f32.mrf.mxu0
  %v288 = vadd.f32 0.0, %v287
  %v289 = vpop.f32.mrf.mxu0
  %290 = vdwg.mxu0
  %v292 = vunpack.c.l.b16 %v144
  %v293 = vpack.c.b16 %v292, %v292
  %294 = vrot.lane.b32.xlu0 %v293, 96
  %v295 = vpop.permute.xlu0 %294
  %v297 = vsel %vm151, %v144, 0
  %v300 = vsel %vm151, %v295, 0
  %302 = vmatpush.bf16.xpose.msra.mxu0 0
  %303 = vmatpush.bf16.xpose.msra.mxu0 0
  %304 = vmatpush.bf16.xpose.msra.mxu0 0
  %305 = vmatpush.bf16.xpose.msra.mxu0 0
  %306 = vmatpush.bf16.xpose.msra.mxu0 0
  %307 = vmatpush.bf16.xpose.msra.mxu0 0
  %308 = vmatpush.bf16.xpose.msra.mxu0 0
  %309 = vmatpush.bf16.xpose.msra.mxu0 %v300
  %310 = vmatmul.bf16.gmra.mxu0 %v297
  %v311 = vpop.f32.mrf.mxu0
  %v312 = vadd.f32 0.0, %v311
  %v313 = vpop.f32.mrf.mxu0
  %314 = vdwg.mxu0
  %v316 = vunpack.c.l.b16 %v145
  %v317 = vpack.c.b16 %v316, %v316
  %318 = vrot.lane.b32.xlu0 %v317, 96
  %v319 = vpop.permute.xlu0 %318
  %v321 = vsel %vm151, %v145, 0
  %v324 = vsel %vm151, %v319, 0
  %326 = vmatpush.bf16.xpose.msra.mxu0 0
  %327 = vmatpush.bf16.xpose.msra.mxu0 0
  %328 = vmatpush.bf16.xpose.msra.mxu0 0
  %329 = vmatpush.bf16.xpose.msra.mxu0 0
  %330 = vmatpush.bf16.xpose.msra.mxu0 0
  %331 = vmatpush.bf16.xpose.msra.mxu0 0
  %332 = vmatpush.bf16.xpose.msra.mxu0 0
  %333 = vmatpush.bf16.xpose.msra.mxu0 %v324
  %334 = vmatmul.bf16.gmra.mxu0 %v321
  %v335 = vpop.f32.mrf.mxu0
  %v336 = vadd.f32 0.0, %v335
  %v337 = vpop.f32.mrf.mxu0
  %338 = vdwg.mxu0
  %v339 = vmul.f32 %v168, 0.35355338
  %v340 = vmul.f32 %v192, 0.35355338
  %v341 = vmul.f32 %v216, 0.35355338
  %v342 = vmul.f32 %v240, 0.35355338
  %v343 = vmul.f32 %v264, 0.35355338
  %v344 = vmul.f32 %v288, 0.35355338
  %v345 = vmul.f32 %v312, 0.35355338
  %v346 = vmul.f32 %v336, 0.35355338
  %v347 = vadd.f32 %v339, %v116
  %v348 = vadd.f32 %v340, %v116
  %v349 = vadd.f32 %v341, %v116
  %v350 = vadd.f32 %v342, %v116
  %v351 = vadd.f32 %v343, %v117
  %v352 = vadd.f32 %v344, %v117
  %v353 = vadd.f32 %v345, %v117
  %v354 = vadd.f32 %v346, %v117
  %v355 = vsel %vm151, %v347, -inf
  %356 = vmax.xlane.f32.xlu0 %v355
  %v357 = vpop.xlane.xlu0 %356
  %v358 = vsel %vm151, %v348, -inf
  %359 = vmax.xlane.f32.xlu0 %v358
  %v360 = vpop.xlane.xlu0 %359
  %v361 = vsel %vm151, %v349, -inf
  %362 = vmax.xlane.f32.xlu0 %v361
  %v363 = vpop.xlane.xlu0 %362
  %v364 = vsel %vm151, %v350, -inf
  %365 = vmax.xlane.f32.xlu0 %v364
  %v366 = vpop.xlane.xlu0 %365
  %v367 = vsel %vm151, %v351, -inf
  %368 = vmax.xlane.f32.xlu0 %v367
  %v369 = vpop.xlane.xlu0 %368
  %v370 = vsel %vm151, %v352, -inf
  %371 = vmax.xlane.f32.xlu0 %v370
  %v372 = vpop.xlane.xlu0 %371
  %v373 = vsel %vm151, %v353, -inf
  %374 = vmax.xlane.f32.xlu0 %v373
  %v375 = vpop.xlane.xlu0 %374
  %v376 = vsel %vm151, %v354, -inf
  %377 = vmax.xlane.f32.xlu0 %v376
  %v378 = vpop.xlane.xlu0 %377
  %v379 = vsub.f32 %v347, %v357
  %v380 = vsub.f32 %v348, %v360
  %v381 = vsub.f32 %v349, %v363
  %v382 = vsub.f32 %v350, %v366
  %v383 = vsub.f32 %v351, %v369
  %v384 = vsub.f32 %v352, %v372
  %v385 = vsub.f32 %v353, %v375
  %v386 = vsub.f32 %v354, %v378
  %v387 = vmul.f32 %v379, 1.442695
  %v388 = vpow.pop %v387
  %v389 = vmul.f32 %v380, 1.442695
  %v390 = vpow.pop %v389
  %v391 = vmul.f32 %v381, 1.442695
  %v392 = vpow.pop %v391
  %v393 = vmul.f32 %v382, 1.442695
  %v394 = vpow.pop %v393
  %v395 = vmul.f32 %v383, 1.442695
  %v396 = vpow.pop %v395
  %v397 = vmul.f32 %v384, 1.442695
  %v398 = vpow.pop %v397
  %v399 = vmul.f32 %v385, 1.442695
  %v400 = vpow.pop %v399
  %v401 = vmul.f32 %v386, 1.442695
  %v402 = vpow.pop %v401
  %v403 = vsel %vm151, %v388, 0.0
  %404 = vadd.xlane.f32.xlu0 %v403
  %v405 = vpop.xlane.xlu0 %404
  %v406 = vsel %vm151, %v390, 0.0
  %407 = vadd.xlane.f32.xlu0 %v406
  %v408 = vpop.xlane.xlu0 %407
  %v409 = vsel %vm151, %v392, 0.0
  %410 = vadd.xlane.f32.xlu0 %v409
  %v411 = vpop.xlane.xlu0 %410
  %v412 = vsel %vm151, %v394, 0.0
  %413 = vadd.xlane.f32.xlu0 %v412
  %v414 = vpop.xlane.xlu0 %413
  %v415 = vsel %vm151, %v396, 0.0
  %416 = vadd.xlane.f32.xlu0 %v415
  %v417 = vpop.xlane.xlu0 %416
  %v418 = vsel %vm151, %v398, 0.0
  %419 = vadd.xlane.f32.xlu0 %v418
  %v420 = vpop.xlane.xlu0 %419
  %v421 = vsel %vm151, %v400, 0.0
  %422 = vadd.xlane.f32.xlu0 %v421
  %v423 = vpop.xlane.xlu0 %422
  %v424 = vsel %vm151, %v402, 0.0
  %425 = vadd.xlane.f32.xlu0 %v424
  %v426 = vpop.xlane.xlu0 %425
  %v427 = vrcp.pop %v405
  %v428 = vrcp.pop %v408
  %v429 = vrcp.pop %v411
  %v430 = vrcp.pop %v414
  %v431 = vrcp.pop %v417
  %v432 = vrcp.pop %v420
  %v433 = vrcp.pop %v423
  %v434 = vrcp.pop %v426
  %v435 = vmul.f32 %v388, %v427
  %v436 = vmul.f32 %v390, %v428
  %v437 = vmul.f32 %v392, %v429
  %v438 = vmul.f32 %v394, %v430
  %v439 = vmul.f32 %v396, %v431
  %v440 = vmul.f32 %v398, %v432
  %v441 = vmul.f32 %v400, %v433
  %v442 = vmul.f32 %v402, %v434
  %v443 = vpack.c.bf16 %v435, %v435
  %v444 = vpack.c.bf16 %v436, %v436
  %v445 = vpack.c.bf16 %v437, %v437
  %v446 = vpack.c.bf16 %v438, %v438
  %v447 = vpack.c.bf16 %v439, %v439
  %v448 = vpack.c.bf16 %v440, %v440
  %v449 = vpack.c.bf16 %v441, %v441
  %v450 = vpack.c.bf16 %v442, %v442
  %451 = vrot.lane.b32.xlu0 %v148, 64
  %v452 = vpop.permute.xlu0 %451
  %v454 = vsel %vm151, %v443, 0
  %vm456 = vcmask 1043456
  %v458 = vsel %vm456, %v452, 0
  %460 = vmatpush.bf16.msra.mxu0 0
  %461 = vmatpush.bf16.msra.mxu0 0
  %462 = vmatpush.bf16.msra.mxu0 0
  %463 = vmatpush.bf16.msra.mxu0 0
  %464 = vmatpush.bf16.msra.mxu0 0
  %465 = vmatpush.bf16.msra.mxu0 0
  %466 = vmatpush.bf16.msra.mxu0 0
  %467 = vmatpush.bf16.msra.mxu0 %v458
  %468 = vmatmul.bf16.gmra.mxu0 %v454
  %v469 = vpop.f32.mrf.mxu0
  %v470 = vadd.f32 0.0, %v469
  %v471 = vpop.f32.mrf.mxu0
  %472 = vdwg.mxu0
  %473 = vrot.lane.b32.xlu0 %v173, 64
  %v474 = vpop.permute.xlu0 %473
  %v476 = vsel %vm151, %v444, 0
  %v479 = vsel %vm456, %v474, 0
  %481 = vmatpush.bf16.msra.mxu0 0
  %482 = vmatpush.bf16.msra.mxu0 0
  %483 = vmatpush.bf16.msra.mxu0 0
  %484 = vmatpush.bf16.msra.mxu0 0
  %485 = vmatpush.bf16.msra.mxu0 0
  %486 = vmatpush.bf16.msra.mxu0 0
  %487 = vmatpush.bf16.msra.mxu0 0
  %488 = vmatpush.bf16.msra.mxu0 %v479
  %489 = vmatmul.bf16.gmra.mxu0 %v476
  %v490 = vpop.f32.mrf.mxu0
  %v491 = vadd.f32 0.0, %v490
  %v492 = vpop.f32.mrf.mxu0
  %493 = vdwg.mxu0
  %494 = vrot.lane.b32.xlu0 %v197, 64
  %v495 = vpop.permute.xlu0 %494
  %v497 = vsel %vm151, %v445, 0
  %v500 = vsel %vm456, %v495, 0
  %502 = vmatpush.bf16.msra.mxu0 0
  %503 = vmatpush.bf16.msra.mxu0 0
  %504 = vmatpush.bf16.msra.mxu0 0
  %505 = vmatpush.bf16.msra.mxu0 0
  %506 = vmatpush.bf16.msra.mxu0 0
  %507 = vmatpush.bf16.msra.mxu0 0
  %508 = vmatpush.bf16.msra.mxu0 0
  %509 = vmatpush.bf16.msra.mxu0 %v500
  %510 = vmatmul.bf16.gmra.mxu0 %v497
  %v511 = vpop.f32.mrf.mxu0
  %v512 = vadd.f32 0.0, %v511
  %v513 = vpop.f32.mrf.mxu0
  %514 = vdwg.mxu0
  %515 = vrot.lane.b32.xlu0 %v221, 64
  %v516 = vpop.permute.xlu0 %515
  %v518 = vsel %vm151, %v446, 0
  %v521 = vsel %vm456, %v516, 0
  %523 = vmatpush.bf16.msra.mxu0 0
  %524 = vmatpush.bf16.msra.mxu0 0
  %525 = vmatpush.bf16.msra.mxu0 0
  %526 = vmatpush.bf16.msra.mxu0 0
  %527 = vmatpush.bf16.msra.mxu0 0
  %528 = vmatpush.bf16.msra.mxu0 0
  %529 = vmatpush.bf16.msra.mxu0 0
  %530 = vmatpush.bf16.msra.mxu0 %v521
  %531 = vmatmul.bf16.gmra.mxu0 %v518
  %v532 = vpop.f32.mrf.mxu0
  %v533 = vadd.f32 0.0, %v532
  %v534 = vpop.f32.mrf.mxu0
  %535 = vdwg.mxu0
  %536 = vrot.lane.b32.xlu0 %v245, 64
  %v537 = vpop.permute.xlu0 %536
  %v539 = vsel %vm151, %v447, 0
  %v542 = vsel %vm456, %v537, 0
  %544 = vmatpush.bf16.msra.mxu0 0
  %545 = vmatpush.bf16.msra.mxu0 0
  %546 = vmatpush.bf16.msra.mxu0 0
  %547 = vmatpush.bf16.msra.mxu0 0
  %548 = vmatpush.bf16.msra.mxu0 0
  %549 = vmatpush.bf16.msra.mxu0 0
  %550 = vmatpush.bf16.msra.mxu0 0
  %551 = vmatpush.bf16.msra.mxu0 %v542
  %552 = vmatmul.bf16.gmra.mxu0 %v539
  %v553 = vpop.f32.mrf.mxu0
  %v554 = vadd.f32 0.0, %v553
  %v555 = vpop.f32.mrf.mxu0
  %556 = vdwg.mxu0
  %557 = vrot.lane.b32.xlu0 %v269, 64
  %v558 = vpop.permute.xlu0 %557
  %v560 = vsel %vm151, %v448, 0
  %v563 = vsel %vm456, %v558, 0
  %565 = vmatpush.bf16.msra.mxu0 0
  %566 = vmatpush.bf16.msra.mxu0 0
  %567 = vmatpush.bf16.msra.mxu0 0
  %568 = vmatpush.bf16.msra.mxu0 0
  %569 = vmatpush.bf16.msra.mxu0 0
  %570 = vmatpush.bf16.msra.mxu0 0
  %571 = vmatpush.bf16.msra.mxu0 0
  %572 = vmatpush.bf16.msra.mxu0 %v563
  %573 = vmatmul.bf16.gmra.mxu0 %v560
  %v574 = vpop.f32.mrf.mxu0
  %v575 = vadd.f32 0.0, %v574
  %v576 = vpop.f32.mrf.mxu0
  %577 = vdwg.mxu0
  %578 = vrot.lane.b32.xlu0 %v293, 64
  %v579 = vpop.permute.xlu0 %578
  %v581 = vsel %vm151, %v449, 0
  %v584 = vsel %vm456, %v579, 0
  %586 = vmatpush.bf16.msra.mxu0 0
  %587 = vmatpush.bf16.msra.mxu0 0
  %588 = vmatpush.bf16.msra.mxu0 0
  %589 = vmatpush.bf16.msra.mxu0 0
  %590 = vmatpush.bf16.msra.mxu0 0
  %591 = vmatpush.bf16.msra.mxu0 0
  %592 = vmatpush.bf16.msra.mxu0 0
  %593 = vmatpush.bf16.msra.mxu0 %v584
  %594 = vmatmul.bf16.gmra.mxu0 %v581
  %v595 = vpop.f32.mrf.mxu0
  %v596 = vadd.f32 0.0, %v595
  %v597 = vpop.f32.mrf.mxu0
  %598 = vdwg.mxu0
  %599 = vrot.lane.b32.xlu0 %v317, 64
  %v600 = vpop.permute.xlu0 %599
  %v602 = vsel %vm151, %v450, 0
  %v605 = vsel %vm456, %v600, 0
  %607 = vmatpush.bf16.msra.mxu0 0
  %608 = vmatpush.bf16.msra.mxu0 0
  %609 = vmatpush.bf16.msra.mxu0 0
  %610 = vmatpush.bf16.msra.mxu0 0
  %611 = vmatpush.bf16.msra.mxu0 0
  %612 = vmatpush.bf16.msra.mxu0 0
  %613 = vmatpush.bf16.msra.mxu0 0
  %614 = vmatpush.bf16.msra.mxu0 %v605
  %615 = vmatmul.bf16.gmra.mxu0 %v602
  %v616 = vpop.f32.mrf.mxu0
  %v617 = vadd.f32 0.0, %v616
  %v618 = vpop.f32.mrf.mxu0
  %619 = vdwg.mxu0
  %621 = vrot.lane.b32.xlu0 %v491, 8
  %v622 = vpop.permute.xlu0 %621
  %625 = vrot.lane.b32.xlu0 %v512, 16
  %v626 = vpop.permute.xlu0 %625
  %629 = vrot.lane.b32.xlu0 %v533, 24
  %v630 = vpop.permute.xlu0 %629
  %v632 = vsel %vm151, %v470, %v622
  %vm633 = vcmask 130048
  %v634 = vsel %vm633, %v632, %v626
  %vm635 = vcmask 195584
  %v636 = vsel %vm635, %v634, %v630
  %638 = vrot.lane.b32.xlu0 %v575, 8
  %v639 = vpop.permute.xlu0 %638
  %642 = vrot.lane.b32.xlu0 %v596, 16
  %v643 = vpop.permute.xlu0 %642
  %646 = vrot.lane.b32.xlu0 %v617, 24
  %v647 = vpop.permute.xlu0 %646
  %v649 = vsel %vm151, %v554, %v639
  %v650 = vsel %vm633, %v649, %v643
  %v651 = vsel %vm635, %v650, %v647
  %v652 = vld [vmem:[%s6] sm:$0xf]
  %v653 = vld [vmem:[%s6 + $0x4] sm:$0xf]
  %v654 = vld [vmem:[%s6 + $0x8] sm:$0xf]
  %v655 = vld [vmem:[%s6 + $0xc] sm:$0xf]
  %v656 = vld [vmem:[%s7] sm:$0x1]
  %v657 = vpack.c.bf16 %v651, %v636
  %v659 = vperm.slane %v656, 0
  %v665 = vunpack.c.l.b16 %v652
  %v666 = vunpack.c.l.b16 %v653
  %v667 = vunpack.c.l.b16 %v654
  %v668 = vunpack.c.l.b16 %v655
  %v669 = vpack.c.b16 %v666, %v665
  %v670 = vpack.c.b16 %v668, %v667
  %v674 = vsel %vm88, %v657, 0
  %676 = vmatpush.bf16.msra.mxu0 0
  %677 = vmatpush.bf16.msra.mxu0 0
  %678 = vmatpush.bf16.msra.mxu0 0
  %679 = vmatpush.bf16.msra.mxu0 0
  %680 = vmatpush.bf16.msra.mxu0 0
  %681 = vmatpush.bf16.msra.mxu0 0
  %682 = vmatpush.bf16.msra.mxu0 %v670
  %683 = vmatpush.bf16.msra.mxu0 %v669
  %684 = vmatmul.bf16.gmra.mxu0 %v674
  %v685 = vpop.f32.mrf.mxu0
  %v686 = vadd.f32 %v659, %v685
  %v687 = vpop.f32.mrf.mxu0
  %v688 = vadd.f32 %v659, %v687
  %689 = vdwg.mxu0
  %v690 = vadd.f32 %v65, %v686
  %v691 = vadd.f32 %v66, %v688
  %v692 = vld [vmem:[%s8] sm:$0x1]
  %v693 = vld [vmem:[%s9] sm:$0x1]
  %v694 = vsel %vm88, %v690, 0.0
  %695 = vadd.xlane.f32.xlu0 %v694
  %v696 = vpop.xlane.xlu0 %695
  %v697 = vsel %vm88, %v691, 0.0
  %698 = vadd.xlane.f32.xlu0 %v697
  %v699 = vpop.xlane.xlu0 %698
  %v700 = vrcp.pop 32.0
  %v701 = vmul.f32 32.0, %v700
  %v702 = vsub.f32 1.0, %v701
  %v703 = vmul.f32 %v700, %v702
  %v704 = vadd.f32 %v700, %v703
  %vm705 = vweird.f32 %v700
  %v706 = vsel %vm705, %v700, %v704
  %v707 = vmul.f32 %v696, %v706
  %v708 = vmul.f32 %v699, %v706
  %v709 = vsub.f32 %v690, %v707
  %v710 = vsub.f32 %v691, %v708
  %v711 = vmul.f32 %v709, %v709
  %v712 = vmul.f32 %v710, %v710
  %v713 = vsel %vm88, %v711, 0.0
  %714 = vadd.xlane.f32.xlu0 %v713
  %v715 = vpop.xlane.xlu0 %714
  %v716 = vsel %vm88, %v712, 0.0
  %717 = vadd.xlane.f32.xlu0 %v716
  %v718 = vpop.xlane.xlu0 %717
  %v719 = vmul.f32 %v715, %v706
  %v720 = vmul.f32 %v718, %v706
  %v721 = vadd.f32 %v719, 1e-05
  %v722 = vadd.f32 %v720, 1e-05
  %v723 = vrsqrt.pop %v721
  %v724 = vmul.f32 %v723, %v721
  %v725 = vmul.f32 %v724, %v723
  %v726 = vmul.f32 0.5, %v725
  %v727 = vsub.f32 1.5, %v726
  %v728 = vmul.f32 %v723, %v727
  %vm729 = vweird.f32 %v721
  %vm730 = vweird.f32 %v723
  %vm731 = vmor %vm729, %vm730
  %v732 = vsel %vm731, %v723, %v728
  %v733 = vrsqrt.pop %v722
  %v734 = vmul.f32 %v733, %v722
  %v735 = vmul.f32 %v734, %v733
  %v736 = vmul.f32 0.5, %v735
  %v737 = vsub.f32 1.5, %v736
  %v738 = vmul.f32 %v733, %v737
  %vm739 = vweird.f32 %v722
  %vm740 = vweird.f32 %v733
  %vm741 = vmor %vm739, %vm740
  %v742 = vsel %vm741, %v733, %v738
  %v743 = vmul.f32 %v709, %v732
  %v744 = vmul.f32 %v710, %v742
  %v746 = vperm.slane %v692, 0
  %v748 = vmul.f32 %v743, %v746
  %v749 = vmul.f32 %v744, %v746
  %v751 = vperm.slane %v693, 0
  %v753 = vadd.f32 %v748, %v751
  %v754 = vadd.f32 %v749, %v751
  %v755 = vld [vmem:[%s10] sm:$0xf]
  %v756 = vld [vmem:[%s10 + $0x4] sm:$0xf]
  %v757 = vld [vmem:[%s10 + $0x8] sm:$0xf]
  %v758 = vld [vmem:[%s10 + $0xc] sm:$0xf]
  %v759 = vld [vmem:[%s11] sm:$0x1]
  %v760 = vpack.c.bf16 %v754, %v753
  %v762 = vperm.slane %v759, 0
  %v768 = vunpack.c.l.b16 %v755
  %v769 = vunpack.c.l.b16 %v756
  %v770 = vunpack.c.l.b16 %v757
  %v771 = vunpack.c.l.b16 %v758
  %v772 = vpack.c.b16 %v769, %v768
  %v773 = vpack.c.b16 %v771, %v770
  %v777 = vsel %vm88, %v760, 0
  %779 = vmatpush.bf16.msra.mxu0 0
  %780 = vmatpush.bf16.msra.mxu0 0
  %781 = vmatpush.bf16.msra.mxu0 0
  %782 = vmatpush.bf16.msra.mxu0 0
  %783 = vmatpush.bf16.msra.mxu0 0
  %784 = vmatpush.bf16.msra.mxu0 0
  %785 = vmatpush.bf16.msra.mxu0 %v773
  %786 = vmatpush.bf16.msra.mxu0 %v772
  %787 = vmatmul.bf16.gmra.mxu0 %v777
  %v788 = vpop.f32.mrf.mxu0
  %v789 = vadd.f32 %v762, %v788
  %v790 = vpop.f32.mrf.mxu0
  %v791 = vadd.f32 %v762, %v790
  %792 = vdwg.mxu0
  %v793 = vmax.f32 %v789, 0.0
  %v794 = vmax.f32 %v791, 0.0
  %v795 = vld [vmem:[%s12] sm:$0xf]
  %v796 = vld [vmem:[%s12 + $0x4] sm:$0xf]
  %v797 = vld [vmem:[%s12 + $0x8] sm:$0xf]
  %v798 = vld [vmem:[%s12 + $0xc] sm:$0xf]
  %v799 = vld [vmem:[%s12 + $0x10] sm:$0xf]
  %v800 = vld [vmem:[%s12 + $0x14] sm:$0xf]
  %v801 = vld [vmem:[%s12 + $0x18] sm:$0xf]
  %v802 = vld [vmem:[%s12 + $0x1c] sm:$0xf]
  %v803 = vld [vmem:[%s13] sm:$0x1]
  %v804 = vpack.c.bf16 %v794, %v793
  %v806 = vperm.slane %v803, 0
  %v816 = vunpack.c.l.b16 %v795
  %v817 = vunpack.c.l.b16 %v796
  %v818 = vunpack.c.l.b16 %v797
  %v819 = vunpack.c.l.b16 %v798
  %v820 = vunpack.c.l.b16 %v799
  %v821 = vunpack.c.l.b16 %v800
  %v822 = vunpack.c.l.b16 %v801
  %v823 = vunpack.c.l.b16 %v802
  %v824 = vpack.c.b16 %v817, %v816
  %v825 = vpack.c.b16 %v819, %v818
  %v826 = vpack.c.b16 %v821, %v820
  %v827 = vpack.c.b16 %v823, %v822
  %vm832 = vcmask 523264
  %v834 = vsel %vm832, %v804, 0
  %836 = vmatpush.bf16.msra.mxu0 0
  %837 = vmatpush.bf16.msra.mxu0 0
  %838 = vmatpush.bf16.msra.mxu0 0
  %839 = vmatpush.bf16.msra.mxu0 0
  %840 = vmatpush.bf16.msra.mxu0 %v827
  %841 = vmatpush.bf16.msra.mxu0 %v826
  %842 = vmatpush.bf16.msra.mxu0 %v825
  %843 = vmatpush.bf16.msra.mxu0 %v824
  %844 = vmatmul.bf16.gmra.mxu0 %v834
  %v845 = vpop.f32.mrf.mxu0
  %v846 = vadd.f32 %v806, %v845
  %v847 = vpop.f32.mrf.mxu0
  %v848 = vadd.f32 %v806, %v847
  %849 = vdwg.mxu0
  %v850 = vadd.f32 %v753, %v846
  %v851 = vadd.f32 %v754, %v848
  %v852 = vld [vmem:[%s14] sm:$0x1]
  %v853 = vld [vmem:[%s15] sm:$0x1]
  %v854 = vsel %vm88, %v850, 0.0
  %855 = vadd.xlane.f32.xlu0 %v854
  %v856 = vpop.xlane.xlu0 %855
  %v857 = vsel %vm88, %v851, 0.0
  %858 = vadd.xlane.f32.xlu0 %v857
  %v859 = vpop.xlane.xlu0 %858
  %v860 = vmul.f32 %v856, %v706
  %v861 = vmul.f32 %v859, %v706
  %v862 = vsub.f32 %v850, %v860
  %v863 = vsub.f32 %v851, %v861
  %v864 = vmul.f32 %v862, %v862
  %v865 = vmul.f32 %v863, %v863
  %v866 = vsel %vm88, %v864, 0.0
  %867 = vadd.xlane.f32.xlu0 %v866
  %v868 = vpop.xlane.xlu0 %867
  %v869 = vsel %vm88, %v865, 0.0
  %870 = vadd.xlane.f32.xlu0 %v869
  %v871 = vpop.xlane.xlu0 %870
  %v872 = vmul.f32 %v868, %v706
  %v873 = vmul.f32 %v871, %v706
  %v874 = vadd.f32 %v872, 1e-05
  %v875 = vadd.f32 %v873, 1e-05
  %v876 = vrsqrt.pop %v874
  %v877 = vmul.f32 %v876, %v874
  %v878 = vmul.f32 %v877, %v876
  %v879 = vmul.f32 0.5, %v878
  %v880 = vsub.f32 1.5, %v879
  %v881 = vmul.f32 %v876, %v880
  %vm882 = vweird.f32 %v874
  %vm883 = vweird.f32 %v876
  %vm884 = vmor %vm882, %vm883
  %v885 = vsel %vm884, %v876, %v881
  %v886 = vrsqrt.pop %v875
  %v887 = vmul.f32 %v886, %v875
  %v888 = vmul.f32 %v887, %v886
  %v889 = vmul.f32 0.5, %v888
  %v890 = vsub.f32 1.5, %v889
  %v891 = vmul.f32 %v886, %v890
  %vm892 = vweird.f32 %v875
  %vm893 = vweird.f32 %v886
  %vm894 = vmor %vm892, %vm893
  %v895 = vsel %vm894, %v886, %v891
  %v896 = vmul.f32 %v862, %v885
  %v897 = vmul.f32 %v863, %v895
  %v899 = vperm.slane %v852, 0
  %v901 = vmul.f32 %v896, %v899
  %v902 = vmul.f32 %v897, %v899
  %v904 = vperm.slane %v853, 0
  %v906 = vadd.f32 %v901, %v904
  %v907 = vadd.f32 %v902, %v904
  %908 = vst.msk [vmem:[%s18] sm:$0xff] %vm88, %v906
  %909 = vst.msk [vmem:[%s18 + $0x8] sm:$0xff] %vm88, %v907
  // Predicated region
  $region74: #{seq2seq_forward.5} parent=0 // pred_check
    _
  $region75: #{seq2seq_forward.5} parent=0 // pred_check_branch
    %911 = sbr.rel (0) target = $region77
  $region76: #{seq2seq_forward.5} parent=0 // pred_region
    _
  $region77: #{seq2seq_forward.5} parent=0 // pred_fallthru
    _
  // Predicated region
  $region78: #{seq2seq_forward.5} parent=0 // pred_check
    _
  $region79: #{seq2seq_forward.5} parent=0 // pred_check_branch
    %913 = sbr.rel (0) target = $region81
  $region80: #{seq2seq_forward.5} parent=0 // pred_region
    _
  $region81: #{seq2seq_forward.5} parent=0 // pred_fallthru
    _

// kernel: seq2seq_forward.9
$region0: #{seq2seq_forward.9}
  #allocation0 [shape = 'u32[]', space=smem, size = 0x4, offset = 0x4, fixed_abs, tag = 'smem constant byte address 0x4 - core index']
  #allocation1 [shape = 'u32[72,128]{1,0:T(1,128)}', space=vmem, size = 0x9000, scoped, tag = 'internal scratch']
  %s0 = inlined_call_operand.vmem [shape: f32[12,32], index: 0, kind: input, shape index: {}]
  %s1 = inlined_call_operand.vmem [shape: f32[1,32], index: 1, kind: input, shape index: {}]
  %s2 = inlined_call_operand.vmem [shape: f32[1,32], index: 2, kind: input, shape index: {}]
  %s3 = inlined_call_operand.vmem [shape: bf16[32,128], index: 3, kind: input, shape index: {}]
  %s4 = inlined_call_operand.vmem [shape: f32[1,128], index: 4, kind: input, shape index: {}]
  %s5 = inlined_call_operand.vmem [shape: f32[12,128], index: 5, kind: output, shape index: {}]
  %s6 = sld [smem:[#allocation0]]
  $region30: #{seq2seq_forward.9} parent=0
    _
  %s8 = ssub.s32 1, %s6
  %s9 = scalar_select 0, %s8, %s6
  // Predicated region
  $region2: #{seq2seq_forward.9} parent=0 // pred_check
    _
  $region3: #{seq2seq_forward.9} parent=0 // pred_check_branch
    %11 = sbr.rel (0) target = $region5
  $region4: #{seq2seq_forward.9} parent=0 // pred_region
    _
  $region5: #{seq2seq_forward.9} parent=0 // pred_fallthru
    _
  // Predicated region
  $region6: #{seq2seq_forward.9} parent=0 // pred_check
    _
  $region7: #{seq2seq_forward.9} parent=0 // pred_check_branch
    %13 = sbr.rel (0) target = $region9
  $region8: #{seq2seq_forward.9} parent=0 // pred_region
    _
  $region9: #{seq2seq_forward.9} parent=0 // pred_fallthru
    _
  // Predicated region
  $region10: #{seq2seq_forward.9} parent=0 // pred_check
    _
  $region11: #{seq2seq_forward.9} parent=0 // pred_check_branch
    %15 = sbr.rel (0) target = $region13
  $region12: #{seq2seq_forward.9} parent=0 // pred_region
    _
  $region13: #{seq2seq_forward.9} parent=0 // pred_fallthru
    _
  // Predicated region
  $region14: #{seq2seq_forward.9} parent=0 // pred_check
    _
  $region15: #{seq2seq_forward.9} parent=0 // pred_check_branch
    %17 = sbr.rel (0) target = $region17
  $region16: #{seq2seq_forward.9} parent=0 // pred_region
    _
  $region17: #{seq2seq_forward.9} parent=0 // pred_fallthru
    _
  // Predicated region
  $region18: #{seq2seq_forward.9} parent=0 // pred_check
    _
  $region19: #{seq2seq_forward.9} parent=0 // pred_check_branch
    %19 = sbr.rel (0) target = $region21
  $region20: #{seq2seq_forward.9} parent=0 // pred_region
    _
  $region21: #{seq2seq_forward.9} parent=0 // pred_fallthru
    _
  %v21 = vld [vmem:[%s0] sm:$0xff]
  %v22 = vld [vmem:[%s0 + $0x8] sm:$0xf]
  %v23 = vld [vmem:[%s1] sm:$0x1]
  %v24 = vld [vmem:[%s2] sm:$0x1]
  %vm25 = vcmask 261120
  %v26 = vsel %vm25, %v21, 0.0
  %27 = vadd.xlane.f32.xlu0 %v26
  %v28 = vpop.xlane.xlu0 %27
  %vm29 = vcmask 257024
  %v30 = vsel %vm29, %v22, 0.0
  %31 = vadd.xlane.f32.xlu0 %v30
  %v32 = vpop.xlane.xlu0 %31
  %v33 = vrcp.pop 32.0
  %v34 = vmul.f32 32.0, %v33
  %v35 = vsub.f32 1.0, %v34
  %v36 = vmul.f32 %v33, %v35
  %v37 = vadd.f32 %v33, %v36
  %vm38 = vweird.f32 %v33
  %v39 = vsel %vm38, %v33, %v37
  %v40 = vmul.f32 %v28, %v39
  %v41 = vmul.f32 %v32, %v39
  %v42 = vsub.f32 %v21, %v40
  %v43 = vsub.f32 %v22, %v41
  %v44 = vmul.f32 %v42, %v42
  %v45 = vmul.f32 %v43, %v43
  %v46 = vsel %vm25, %v44, 0.0
  %47 = vadd.xlane.f32.xlu0 %v46
  %v48 = vpop.xlane.xlu0 %47
  %v49 = vsel %vm29, %v45, 0.0
  %50 = vadd.xlane.f32.xlu0 %v49
  %v51 = vpop.xlane.xlu0 %50
  %v52 = vmul.f32 %v48, %v39
  %v53 = vmul.f32 %v51, %v39
  %v54 = vadd.f32 %v52, 1e-05
  %v55 = vadd.f32 %v53, 1e-05
  %v56 = vrsqrt.pop %v54
  %v57 = vmul.f32 %v56, %v54
  %v58 = vmul.f32 %v57, %v56
  %v59 = vmul.f32 0.5, %v58
  %v60 = vsub.f32 1.5, %v59
  %v61 = vmul.f32 %v56, %v60
  %vm62 = vweird.f32 %v54
  %vm63 = vweird.f32 %v56
  %vm64 = vmor %vm62, %vm63
  %v65 = vsel %vm64, %v56, %v61
  %v66 = vrsqrt.pop %v55
  %v67 = vmul.f32 %v66, %v55
  %v68 = vmul.f32 %v67, %v66
  %v69 = vmul.f32 0.5, %v68
  %v70 = vsub.f32 1.5, %v69
  %v71 = vmul.f32 %v66, %v70
  %vm72 = vweird.f32 %v55
  %vm73 = vweird.f32 %v66
  %vm74 = vmor %vm72, %vm73
  %v75 = vsel %vm74, %v66, %v71
  %v76 = vmul.f32 %v42, %v65
  %v77 = vmul.f32 %v43, %v75
  %v79 = vperm.slane %v23, 0
  %v81 = vmul.f32 %v76, %v79
  %v82 = vmul.f32 %v77, %v79
  %v84 = vperm.slane %v24, 0
  %v86 = vadd.f32 %v81, %v84
  %v87 = vadd.f32 %v82, %v84
  %v88 = vld [vmem:[%s3] sm:$0xf]
  %v89 = vld [vmem:[%s3 + $0x4] sm:$0xf]
  %v90 = vld [vmem:[%s3 + $0x8] sm:$0xf]
  %v91 = vld [vmem:[%s3 + $0xc] sm:$0xf]
  %v92 = vld [vmem:[%s4] sm:$0x1]
  %v93 = vpack.c.bf16 %v87, %v86
  %v95 = vperm.slane %v92, 0
  %v101 = vunpack.c.l.b16 %v88
  %v102 = vunpack.c.l.b16 %v89
  %v103 = vunpack.c.l.b16 %v90
  %v104 = vunpack.c.l.b16 %v91
  %v105 = vpack.c.b16 %v102, %v101
  %v106 = vpack.c.b16 %v104, %v103
  %v110 = vsel %vm25, %v93, 0
  %112 = vmatpush.bf16.msra.mxu0 0
  %113 = vmatpush.bf16.msra.mxu0 0
  %114 = vmatpush.bf16.msra.mxu0 0
  %115 = vmatpush.bf16.msra.mxu0 0
  %116 = vmatpush.bf16.msra.mxu0 0
  %117 = vmatpush.bf16.msra.mxu0 0
  %118 = vmatpush.bf16.msra.mxu0 %v106
  %119 = vmatpush.bf16.msra.mxu0 %v105
  %120 = vmatmul.bf16.gmra.mxu0 %v110
  %v121 = vpop.f32.mrf.mxu0
  %v122 = vadd.f32 %v95, %v121
  %v123 = vpop.f32.mrf.mxu0
  %v124 = vadd.f32 %v95, %v123
  %125 = vdwg.mxu0
  %126 = vst [vmem:[%s5] sm:$0xff] %v122
  %127 = vst [vmem:[%s5 + $0x8] sm:$0xf] %v124
  // Predicated region
  $region22: #{seq2seq_forward.9} parent=0 // pred_check
    _
  $region23: #{seq2seq_forward.9} parent=0 // pred_check_branch
    %129 = sbr.rel (0) target = $region25
  $region24: #{seq2seq_forward.9} parent=0 // pred_region
    _
  $region25: #{seq2seq_forward.9} parent=0 // pred_fallthru
    _
  // Predicated region
  $region26: #{seq2seq_forward.9} parent=0 // pred_check
    _
  $region27: #{seq2seq_forward.9} parent=0 // pred_check_branch
    %131 = sbr.rel (0) target = $region29
  $region28: #{seq2seq_forward.9} parent=0 // pred_region
    _
  $region29: #{seq2seq_forward.9} parent=0 // pred_fallthru
    _

// kernel: seq2seq_forward.8
$region0: #{seq2seq_forward.8}
  #allocation0 [shape = 'u32[]', space=smem, size = 0x4, offset = 0x4, fixed_abs, tag = 'smem constant byte address 0x4 - core index']
  #allocation1 [shape = 'u32[72,128]{1,0:T(1,128)}', space=vmem, size = 0x9000, scoped, tag = 'internal scratch']
  %s0 = inlined_call_operand.vmem [shape: f32[2,6,32], index: 0, kind: input, shape index: {}]
  %s1 = inlined_call_operand.vmem [shape: f32[2,8,32], index: 1, kind: input, shape index: {}]
  %s2 = inlined_call_operand.vmem [shape: f32[6,6], index: 2, kind: input, shape index: {}]
  %s3 = inlined_call_operand.vmem [shape: f32[2,6], index: 3, kind: input, shape index: {}]
  %s4 = inlined_call_operand.vmem [shape: f32[2,8], index: 4, kind: input, shape index: {}]
  %s5 = inlined_call_operand.vmem [shape: f32[6,32], index: 5, kind: input, shape index: {}]
  %s6 = inlined_call_operand.vmem [shape: bf16[32,96], index: 6, kind: input, shape index: {}]
  %s7 = inlined_call_operand.vmem [shape: f32[1,96], index: 7, kind: input, shape index: {}]
  %s8 = inlined_call_operand.vmem [shape: bf16[32,32], index: 8, kind: input, shape index: {}]
  %s9 = inlined_call_operand.vmem [shape: f32[1,32], index: 9, kind: input, shape index: {}]
  %s10 = inlined_call_operand.vmem [shape: f32[1,32], index: 10, kind: input, shape index: {}]
  %s11 = inlined_call_operand.vmem [shape: f32[1,32], index: 11, kind: input, shape index: {}]
  %s12 = inlined_call_operand.vmem [shape: bf16[32,32], index: 12, kind: input, shape index: {}]
  %s13 = inlined_call_operand.vmem [shape: f32[1,32], index: 13, kind: input, shape index: {}]
  %s14 = inlined_call_operand.vmem [shape: bf16[32,64], index: 14, kind: input, shape index: {}]
  %s15 = inlined_call_operand.vmem [shape: f32[1,64], index: 15, kind: input, shape index: {}]
  %s16 = inlined_call_operand.vmem [shape: bf16[32,32], index: 16, kind: input, shape index: {}]
  %s17 = inlined_call_operand.vmem [shape: f32[1,32], index: 17, kind: input, shape index: {}]
  %s18 = inlined_call_operand.vmem [shape: f32[1,32], index: 18, kind: input, shape index: {}]
  %s19 = inlined_call_operand.vmem [shape: f32[1,32], index: 19, kind: input, shape index: {}]
  %s20 = inlined_call_operand.vmem [shape: bf16[32,64], index: 20, kind: input, shape index: {}]
  %s21 = inlined_call_operand.vmem [shape: f32[1,64], index: 21, kind: input, shape index: {}]
  %s22 = inlined_call_operand.vmem [shape: bf16[64,32], index: 22, kind: input, shape index: {}]
  %s23 = inlined_call_operand.vmem [shape: f32[1,32], index: 23, kind: input, shape index: {}]
  %s24 = inlined_call_operand.vmem [shape: f32[1,32], index: 24, kind: input, shape index: {}]
  %s25 = inlined_call_operand.vmem [shape: f32[1,32], index: 25, kind: input, shape index: {}]
  %s26 = inlined_call_operand.vmem [shape: f32[2,6,32], index: 26, kind: output, shape index: {}]
  %s27 = sld [smem:[#allocation0]]
  $region114: #{seq2seq_forward.8} parent=0
    _
  %s29 = ssub.s32 1, %s27
  %s30 = scalar_select 0, %s29, %s27
  // Predicated region
  $region2: #{seq2seq_forward.8} parent=0 // pred_check
    _
  $region3: #{seq2seq_forward.8} parent=0 // pred_check_branch
    %32 = sbr.rel (0) target = $region5
  $region4: #{seq2seq_forward.8} parent=0 // pred_region
    _
  $region5: #{seq2seq_forward.8} parent=0 // pred_fallthru
    _
  // Predicated region
  $region6: #{seq2seq_forward.8} parent=0 // pred_check
    _
  $region7: #{seq2seq_forward.8} parent=0 // pred_check_branch
    %34 = sbr.rel (0) target = $region9
  $region8: #{seq2seq_forward.8} parent=0 // pred_region
    _
  $region9: #{seq2seq_forward.8} parent=0 // pred_fallthru
    _
  // Predicated region
  $region10: #{seq2seq_forward.8} parent=0 // pred_check
    _
  $region11: #{seq2seq_forward.8} parent=0 // pred_check_branch
    %36 = sbr.rel (0) target = $region13
  $region12: #{seq2seq_forward.8} parent=0 // pred_region
    _
  $region13: #{seq2seq_forward.8} parent=0 // pred_fallthru
    _
  // Predicated region
  $region14: #{seq2seq_forward.8} parent=0 // pred_check
    _
  $region15: #{seq2seq_forward.8} parent=0 // pred_check_branch
    %38 = sbr.rel (0) target = $region17
  $region16: #{seq2seq_forward.8} parent=0 // pred_region
    _
  $region17: #{seq2seq_forward.8} parent=0 // pred_fallthru
    _
  // Predicated region
  $region18: #{seq2seq_forward.8} parent=0 // pred_check
    _
  $region19: #{seq2seq_forward.8} parent=0 // pred_check_branch
    %40 = sbr.rel (0) target = $region21
  $region20: #{seq2seq_forward.8} parent=0 // pred_region
    _
  $region21: #{seq2seq_forward.8} parent=0 // pred_fallthru
    _
  // Predicated region
  $region22: #{seq2seq_forward.8} parent=0 // pred_check
    _
  $region23: #{seq2seq_forward.8} parent=0 // pred_check_branch
    %42 = sbr.rel (0) target = $region25
  $region24: #{seq2seq_forward.8} parent=0 // pred_region
    _
  $region25: #{seq2seq_forward.8} parent=0 // pred_fallthru
    _
  // Predicated region
  $region26: #{seq2seq_forward.8} parent=0 // pred_check
    _
  $region27: #{seq2seq_forward.8} parent=0 // pred_check_branch
    %44 = sbr.rel (0) target = $region29
  $region28: #{seq2seq_forward.8} parent=0 // pred_region
    _
  $region29: #{seq2seq_forward.8} parent=0 // pred_fallthru
    _
  // Predicated region
  $region30: #{seq2seq_forward.8} parent=0 // pred_check
    _
  $region31: #{seq2seq_forward.8} parent=0 // pred_check_branch
    %46 = sbr.rel (0) target = $region33
  $region32: #{seq2seq_forward.8} parent=0 // pred_region
    _
  $region33: #{seq2seq_forward.8} parent=0 // pred_fallthru
    _
  // Predicated region
  $region34: #{seq2seq_forward.8} parent=0 // pred_check
    _
  $region35: #{seq2seq_forward.8} parent=0 // pred_check_branch
    %48 = sbr.rel (0) target = $region37
  $region36: #{seq2seq_forward.8} parent=0 // pred_region
    _
  $region37: #{seq2seq_forward.8} parent=0 // pred_fallthru
    _
  // Predicated region
  $region38: #{seq2seq_forward.8} parent=0 // pred_check
    _
  $region39: #{seq2seq_forward.8} parent=0 // pred_check_branch
    %50 = sbr.rel (0) target = $region41
  $region40: #{seq2seq_forward.8} parent=0 // pred_region
    _
  $region41: #{seq2seq_forward.8} parent=0 // pred_fallthru
    _
  // Predicated region
  $region42: #{seq2seq_forward.8} parent=0 // pred_check
    _
  $region43: #{seq2seq_forward.8} parent=0 // pred_check_branch
    %52 = sbr.rel (0) target = $region45
  $region44: #{seq2seq_forward.8} parent=0 // pred_region
    _
  $region45: #{seq2seq_forward.8} parent=0 // pred_fallthru
    _
  // Predicated region
  $region46: #{seq2seq_forward.8} parent=0 // pred_check
    _
  $region47: #{seq2seq_forward.8} parent=0 // pred_check_branch
    %54 = sbr.rel (0) target = $region49
  $region48: #{seq2seq_forward.8} parent=0 // pred_region
    _
  $region49: #{seq2seq_forward.8} parent=0 // pred_fallthru
    _
  // Predicated region
  $region50: #{seq2seq_forward.8} parent=0 // pred_check
    _
  $region51: #{seq2seq_forward.8} parent=0 // pred_check_branch
    %56 = sbr.rel (0) target = $region53
  $region52: #{seq2seq_forward.8} parent=0 // pred_region
    _
  $region53: #{seq2seq_forward.8} parent=0 // pred_fallthru
    _
  // Predicated region
  $region54: #{seq2seq_forward.8} parent=0 // pred_check
    _
  $region55: #{seq2seq_forward.8} parent=0 // pred_check_branch
    %58 = sbr.rel (0) target = $region57
  $region56: #{seq2seq_forward.8} parent=0 // pred_region
    _
  $region57: #{seq2seq_forward.8} parent=0 // pred_fallthru
    _
  // Predicated region
  $region58: #{seq2seq_forward.8} parent=0 // pred_check
    _
  $region59: #{seq2seq_forward.8} parent=0 // pred_check_branch
    %60 = sbr.rel (0) target = $region61
  $region60: #{seq2seq_forward.8} parent=0 // pred_region
    _
  $region61: #{seq2seq_forward.8} parent=0 // pred_fallthru
    _
  // Predicated region
  $region62: #{seq2seq_forward.8} parent=0 // pred_check
    _
  $region63: #{seq2seq_forward.8} parent=0 // pred_check_branch
    %62 = sbr.rel (0) target = $region65
  $region64: #{seq2seq_forward.8} parent=0 // pred_region
    _
  $region65: #{seq2seq_forward.8} parent=0 // pred_fallthru
    _
  // Predicated region
  $region66: #{seq2seq_forward.8} parent=0 // pred_check
    _
  $region67: #{seq2seq_forward.8} parent=0 // pred_check_branch
    %64 = sbr.rel (0) target = $region69
  $region68: #{seq2seq_forward.8} parent=0 // pred_region
    _
  $region69: #{seq2seq_forward.8} parent=0 // pred_fallthru
    _
  // Predicated region
  $region70: #{seq2seq_forward.8} parent=0 // pred_check
    _
  $region71: #{seq2seq_forward.8} parent=0 // pred_check_branch
    %66 = sbr.rel (0) target = $region73
  $region72: #{seq2seq_forward.8} parent=0 // pred_region
    _
  $region73: #{seq2seq_forward.8} parent=0 // pred_fallthru
    _
  // Predicated region
  $region74: #{seq2seq_forward.8} parent=0 // pred_check
    _
  $region75: #{seq2seq_forward.8} parent=0 // pred_check_branch
    %68 = sbr.rel (0) target = $region77
  $region76: #{seq2seq_forward.8} parent=0 // pred_region
    _
  $region77: #{seq2seq_forward.8} parent=0 // pred_fallthru
    _
  // Predicated region
  $region78: #{seq2seq_forward.8} parent=0 // pred_check
    _
  $region79: #{seq2seq_forward.8} parent=0 // pred_check_branch
    %70 = sbr.rel (0) target = $region81
  $region80: #{seq2seq_forward.8} parent=0 // pred_region
    _
  $region81: #{seq2seq_forward.8} parent=0 // pred_fallthru
    _
  // Predicated region
  $region82: #{seq2seq_forward.8} parent=0 // pred_check
    _
  $region83: #{seq2seq_forward.8} parent=0 // pred_check_branch
    %72 = sbr.rel (0) target = $region85
  $region84: #{seq2seq_forward.8} parent=0 // pred_region
    _
  $region85: #{seq2seq_forward.8} parent=0 // pred_fallthru
    _
  // Predicated region
  $region86: #{seq2seq_forward.8} parent=0 // pred_check
    _
  $region87: #{seq2seq_forward.8} parent=0 // pred_check_branch
    %74 = sbr.rel (0) target = $region89
  $region88: #{seq2seq_forward.8} parent=0 // pred_region
    _
  $region89: #{seq2seq_forward.8} parent=0 // pred_fallthru
    _
  // Predicated region
  $region90: #{seq2seq_forward.8} parent=0 // pred_check
    _
  $region91: #{seq2seq_forward.8} parent=0 // pred_check_branch
    %76 = sbr.rel (0) target = $region93
  $region92: #{seq2seq_forward.8} parent=0 // pred_region
    _
  $region93: #{seq2seq_forward.8} parent=0 // pred_fallthru
    _
  // Predicated region
  $region94: #{seq2seq_forward.8} parent=0 // pred_check
    _
  $region95: #{seq2seq_forward.8} parent=0 // pred_check_branch
    %78 = sbr.rel (0) target = $region97
  $region96: #{seq2seq_forward.8} parent=0 // pred_region
    _
  $region97: #{seq2seq_forward.8} parent=0 // pred_fallthru
    _
  // Predicated region
  $region98: #{seq2seq_forward.8} parent=0 // pred_check
    _
  $region99: #{seq2seq_forward.8} parent=0 // pred_check_branch
    %80 = sbr.rel (0) target = $region101
  $region100: #{seq2seq_forward.8} parent=0 // pred_region
    _
  $region101: #{seq2seq_forward.8} parent=0 // pred_fallthru
    _
  // Predicated region
  $region102: #{seq2seq_forward.8} parent=0 // pred_check
    _
  $region103: #{seq2seq_forward.8} parent=0 // pred_check_branch
    %82 = sbr.rel (0) target = $region105
  $region104: #{seq2seq_forward.8} parent=0 // pred_region
    _
  $region105: #{seq2seq_forward.8} parent=0 // pred_fallthru
    _
  %v84 = vld [vmem:[%s0] sm:$0x3f]
  %v85 = vld [vmem:[%s0 + $0x8] sm:$0x3f]
  %v88 = vrot.slane %v84, 2
  %v89 = vrot.slane %v84, 4
  %v90 = vrot.slane %v85, 2
  %v91 = vrot.slane %v85, 4
  %v96 = vld [vmem:[%s1] sm:$0xff]
  %v97 = vld [vmem:[%s1 + $0x8] sm:$0xff]
  %v98 = vld [vmem:[%s6] sm:$0xf]
  %v99 = vld [vmem:[%s6 + $0x4] sm:$0xf]
  %v100 = vld [vmem:[%s6 + $0x8] sm:$0xf]
  %v101 = vld [vmem:[%s6 + $0xc] sm:$0xf]
  %v102 = vld [vmem:[%s7] sm:$0x1]
  %103 = vst [vmem:[#allocation1] ss:$4 sm:$0xff] %v84
  %s104 = scalar_lea.vmem [#allocation1], 1
  %105 = vst [vmem:[%s104] ss:$4 sm:$0xff] %v88
  %s106 = scalar_lea.vmem [#allocation1], 2
  %107 = vst [vmem:[%s106] ss:$4 sm:$0xff] %v89
  %s108 = scalar_lea.vmem [#allocation1], 3
  %109 = vst [vmem:[%s108] ss:$4 sm:$0xff] %v85
  %s110 = scalar_lea.vmem [#allocation1], 32
  %111 = vst [vmem:[%s110] ss:$4 sm:$0xff] %v90
  %s112 = scalar_lea.vmem [#allocation1], 33
  %113 = vst [vmem:[%s112] ss:$4 sm:$0xff] %v91
  %v114 = vld.sshfl [vmem:[#allocation1] sm:$0xff pattern:$0x73625140]
  %v115 = vld.sshfl [vmem:[#allocation1 + $0x20] sm:$0xff pattern:$0x73625140]
  %v118 = vpack.c.bf16 %v115, %v114
  %v120 = vperm.slane %v102, 0
  %v126 = vunpack.c.l.b16 %v98
  %v127 = vunpack.c.l.b16 %v99
  %v128 = vunpack.c.l.b16 %v100
  %v129 = vunpack.c.l.b16 %v101
  %v130 = vpack.c.b16 %v127, %v126
  %v131 = vpack.c.b16 %v129, %v128
  %vm134 = vcmask 261120
  %v136 = vsel %vm134, %v118, 0
  %138 = vmatpush.bf16.msra.mxu0 0
  %139 = vmatpush.bf16.msra.mxu0 0
  %140 = vmatpush.bf16.msra.mxu0 0
  %141 = vmatpush.bf16.msra.mxu0 0
  %142 = vmatpush.bf16.msra.mxu0 0
  %143 = vmatpush.bf16.msra.mxu0 0
  %144 = vmatpush.bf16.msra.mxu0 %v131
  %145 = vmatpush.bf16.msra.mxu0 %v130
  %146 = vmatmul.bf16.gmra.mxu0 %v136
  %v147 = vpop.f32.mrf.mxu0
  %v148 = vadd.f32 %v120, %v147
  %v149 = vpop.f32.mrf.mxu0
  %v150 = vadd.f32 %v120, %v149
  %151 = vdwg.mxu0
  %v152 = vld [vmem:[%s2] sm:$0x3f]
  %v153 = vld [vmem:[%s3] sm:$0x3]
  %v155 = vrot.slane %v153, 1
  %v156 = vperm.slane %v153, 0
  %v157 = vperm.slane %v155, 0
  %v160 = vadd.f32 %v152, %v156
  %v161 = vadd.f32 %v152, %v157
  %v162 = vmax.f32 %v160, -1e+30
  %v163 = vmax.f32 %v161, -1e+30
  %165 = vrot.lane.b32.xlu0 %v148, 120
  %v166 = vpop.permute.xlu0 %165
  %168 = vrot.lane.b32.xlu0 %v148, 112
  %v169 = vpop.permute.xlu0 %168
  %171 = vrot.lane.b32.xlu0 %v148, 104
  %v172 = vpop.permute.xlu0 %171
  %vm175 = vcmask 1041408
  %v176 = vrot.slane %v148, 6
  %v177 = vrot.slane %v150, 6
  %v178 = vsel %vm175, %v176, %v177
  %180 = vrot.lane.b32.xlu0 %v178, 120
  %v181 = vpop.permute.xlu0 %180
  %183 = vrot.lane.b32.xlu0 %v178, 112
  %v184 = vpop.permute.xlu0 %183
  %186 = vrot.lane.b32.xlu0 %v178, 104
  %v187 = vpop.permute.xlu0 %186
  %v189 = vpack.c.bf16 %v148, %v148
  %v190 = vpack.c.bf16 %v166, %v166
  %v191 = vpack.c.bf16 %v169, %v169
  %v192 = vpack.c.bf16 %v172, %v172
  %v193 = vpack.c.bf16 %v178, %v178
  %v194 = vpack.c.bf16 %v181, %v181
  %v195 = vpack.c.bf16 %v184, %v184
  %v196 = vpack.c.bf16 %v187, %v187
  %v198 = vunpack.c.l.b16 %v189
  %v199 = vpack.c.b16 %v198, %v198
  %200 = vrot.lane.b32.xlu0 %v199, 96
  %v201 = vpop.permute.xlu0 %200
  %vm202 = vcmask 64512
  %v204 = vsel %vm202, %v189, 0
  %v207 = vsel %vm202, %v201, 0
  %209 = vmatpush.bf16.xpose.msra.mxu0 0
  %210 = vmatpush.bf16.xpose.msra.mxu0 0
  %211 = vmatpush.bf16.xpose.msra.mxu0 0
  %212 = vmatpush.bf16.xpose.msra.mxu0 0
  %213 = vmatpush.bf16.xpose.msra.mxu0 0
  %214 = vmatpush.bf16.xpose.msra.mxu0 0
  %215 = vmatpush.bf16.xpose.msra.mxu0 0
  %216 = vmatpush.bf16.xpose.msra.mxu0 %v207
  %217 = vmatmul.bf16.gmra.mxu0 %v204
  %v218 = vpop.f32.mrf.mxu0
  %v219 = vadd.f32 0.0, %v218
  %v220 = vpop.f32.mrf.mxu0
  %221 = vdwg.mxu0
  %v223 = vunpack.c.l.b16 %v190
  %v224 = vpack.c.b16 %v223, %v223
  %225 = vrot.lane.b32.xlu0 %v224, 96
  %v226 = vpop.permute.xlu0 %225
  %v228 = vsel %vm202, %v190, 0
  %v231 = vsel %vm202, %v226, 0
  %233 = vmatpush.bf16.xpose.msra.mxu0 0
  %234 = vmatpush.bf16.xpose.msra.mxu0 0
  %235 = vmatpush.bf16.xpose.msra.mxu0 0
  %236 = vmatpush.bf16.xpose.msra.mxu0 0
  %237 = vmatpush.bf16.xpose.msra.mxu0 0
  %238 = vmatpush.bf16.xpose.msra.mxu0 0
  %239 = vmatpush.bf16.xpose.msra.mxu0 0
  %240 = vmatpush.bf16.xpose.msra.mxu0 %v231
  %241 = vmatmul.bf16.gmra.mxu0 %v228
  %v242 = vpop.f32.mrf.mxu0
  %v243 = vadd.f32 0.0, %v242
  %v244 = vpop.f32.mrf.mxu0
  %245 = vdwg.mxu0
  %v247 = vunpack.c.l.b16 %v191
  %v248 = vpack.c.b16 %v247, %v247
  %249 = vrot.lane.b32.xlu0 %v248, 96
  %v250 = vpop.permute.xlu0 %249
  %v252 = vsel %vm202, %v191, 0
  %v255 = vsel %vm202, %v250, 0
  %257 = vmatpush.bf16.xpose.msra.mxu0 0
  %258 = vmatpush.bf16.xpose.msra.mxu0 0
  %259 = vmatpush.bf16.xpose.msra.mxu0 0
  %260 = vmatpush.bf16.xpose.msra.mxu0 0
  %261 = vmatpush.bf16.xpose.msra.mxu0 0
  %262 = vmatpush.bf16.xpose.msra.mxu0 0
  %263 = vmatpush.bf16.xpose.msra.mxu0 0
  %264 = vmatpush.bf16.xpose.msra.mxu0 %v255
  %265 = vmatmul.bf16.gmra.mxu0 %v252
  %v266 = vpop.f32.mrf.mxu0
  %v267 = vadd.f32 0.0, %v266
  %v268 = vpop.f32.mrf.mxu0
  %269 = vdwg.mxu0
  %v271 = vunpack.c.l.b16 %v192
  %v272 = vpack.c.b16 %v271, %v271
  %273 = vrot.lane.b32.xlu0 %v272, 96
  %v274 = vpop.permute.xlu0 %273
  %v276 = vsel %vm202, %v192, 0
  %v279 = vsel %vm202, %v274, 0
  %281 = vmatpush.bf16.xpose.msra.mxu0 0
  %282 = vmatpush.bf16.xpose.msra.mxu0 0
  %283 = vmatpush.bf16.xpose.msra.mxu0 0
  %284 = vmatpush.bf16.xpose.msra.mxu0 0
  %285 = vmatpush.bf16.xpose.msra.mxu0 0
  %286 = vmatpush.bf16.xpose.msra.mxu0 0
  %287 = vmatpush.bf16.xpose.msra.mxu0 0
  %288 = vmatpush.bf16.xpose.msra.mxu0 %v279
  %289 = vmatmul.bf16.gmra.mxu0 %v276
  %v290 = vpop.f32.mrf.mxu0
  %v291 = vadd.f32 0.0, %v290
  %v292 = vpop.f32.mrf.mxu0
  %293 = vdwg.mxu0
  %v295 = vunpack.c.l.b16 %v193
  %v296 = vpack.c.b16 %v295, %v295
  %297 = vrot.lane.b32.xlu0 %v296, 96
  %v298 = vpop.permute.xlu0 %297
  %v300 = vsel %vm202, %v193, 0
  %v303 = vsel %vm202, %v298, 0
  %305 = vmatpush.bf16.xpose.msra.mxu0 0
  %306 = vmatpush.bf16.xpose.msra.mxu0 0
  %307 = vmatpush.bf16.xpose.msra.mxu0 0
  %308 = vmatpush.bf16.xpose.msra.mxu0 0
  %309 = vmatpush.bf16.xpose.msra.mxu0 0
  %310 = vmatpush.bf16.xpose.msra.mxu0 0
  %311 = vmatpush.bf16.xpose.msra.mxu0 0
  %312 = vmatpush.bf16.xpose.msra.mxu0 %v303
  %313 = vmatmul.bf16.gmra.mxu0 %v300
  %v314 = vpop.f32.mrf.mxu0
  %v315 = vadd.f32 0.0, %v314
  %v316 = vpop.f32.mrf.mxu0
  %317 = vdwg.mxu0
  %v319 = vunpack.c.l.b16 %v194
  %v320 = vpack.c.b16 %v319, %v319
  %321 = vrot.lane.b32.xlu0 %v320, 96
  %v322 = vpop.permute.xlu0 %321
  %v324 = vsel %vm202, %v194, 0
  %v327 = vsel %vm202, %v322, 0
  %329 = vmatpush.bf16.xpose.msra.mxu0 0
  %330 = vmatpush.bf16.xpose.msra.mxu0 0
  %331 = vmatpush.bf16.xpose.msra.mxu0 0
  %332 = vmatpush.bf16.xpose.msra.mxu0 0
  %333 = vmatpush.bf16.xpose.msra.mxu0 0
  %334 = vmatpush.bf16.xpose.msra.mxu0 0
  %335 = vmatpush.bf16.xpose.msra.mxu0 0
  %336 = vmatpush.bf16.xpose.msra.mxu0 %v327
  %337 = vmatmul.bf16.gmra.mxu0 %v324
  %v338 = vpop.f32.mrf.mxu0
  %v339 = vadd.f32 0.0, %v338
  %v340 = vpop.f32.mrf.mxu0
  %341 = vdwg.mxu0
  %v343 = vunpack.c.l.b16 %v195
  %v344 = vpack.c.b16 %v343, %v343
  %345 = vrot.lane.b32.xlu0 %v344, 96
  %v346 = vpop.permute.xlu0 %345
  %v348 = vsel %vm202, %v195, 0
  %v351 = vsel %vm202, %v346, 0
  %353 = vmatpush.bf16.xpose.msra.mxu0 0
  %354 = vmatpush.bf16.xpose.msra.mxu0 0
  %355 = vmatpush.bf16.xpose.msra.mxu0 0
  %356 = vmatpush.bf16.xpose.msra.mxu0 0
  %357 = vmatpush.bf16.xpose.msra.mxu0 0
  %358 = vmatpush.bf16.xpose.msra.mxu0 0
  %359 = vmatpush.bf16.xpose.msra.mxu0 0
  %360 = vmatpush.bf16.xpose.msra.mxu0 %v351
  %361 = vmatmul.bf16.gmra.mxu0 %v348
  %v362 = vpop.f32.mrf.mxu0
  %v363 = vadd.f32 0.0, %v362
  %v364 = vpop.f32.mrf.mxu0
  %365 = vdwg.mxu0
  %v367 = vunpack.c.l.b16 %v196
  %v368 = vpack.c.b16 %v367, %v367
  %369 = vrot.lane.b32.xlu0 %v368, 96
  %v370 = vpop.permute.xlu0 %369
  %v372 = vsel %vm202, %v196, 0
  %v375 = vsel %vm202, %v370, 0
  %377 = vmatpush.bf16.xpose.msra.mxu0 0
  %378 = vmatpush.bf16.xpose.msra.mxu0 0
  %379 = vmatpush.bf16.xpose.msra.mxu0 0
  %380 = vmatpush.bf16.xpose.msra.mxu0 0
  %381 = vmatpush.bf16.xpose.msra.mxu0 0
  %382 = vmatpush.bf16.xpose.msra.mxu0 0
  %383 = vmatpush.bf16.xpose.msra.mxu0 0
  %384 = vmatpush.bf16.xpose.msra.mxu0 %v375
  %385 = vmatmul.bf16.gmra.mxu0 %v372
  %v386 = vpop.f32.mrf.mxu0
  %v387 = vadd.f32 0.0, %v386
  %v388 = vpop.f32.mrf.mxu0
  %389 = vdwg.mxu0
  %v390 = vmul.f32 %v219, 0.35355338
  %v391 = vmul.f32 %v243, 0.35355338
  %v392 = vmul.f32 %v267, 0.35355338
  %v393 = vmul.f32 %v291, 0.35355338
  %v394 = vmul.f32 %v315, 0.35355338
  %v395 = vmul.f32 %v339, 0.35355338
  %v396 = vmul.f32 %v363, 0.35355338
  %v397 = vmul.f32 %v387, 0.35355338
  %v398 = vadd.f32 %v390, %v162
  %v399 = vadd.f32 %v391, %v162
  %v400 = vadd.f32 %v392, %v162
  %v401 = vadd.f32 %v393, %v162
  %v402 = vadd.f32 %v394, %v163
  %v403 = vadd.f32 %v395, %v163
  %v404 = vadd.f32 %v396, %v163
  %v405 = vadd.f32 %v397, %v163
  %vm406 = vcmask 46080
  %v407 = vsel %vm406, %v398, -inf
  %408 = vmax.xlane.f32.xlu0 %v407
  %v409 = vpop.xlane.xlu0 %408
  %v410 = vsel %vm406, %v399, -inf
  %411 = vmax.xlane.f32.xlu0 %v410
  %v412 = vpop.xlane.xlu0 %411
  %v413 = vsel %vm406, %v400, -inf
  %414 = vmax.xlane.f32.xlu0 %v413
  %v415 = vpop.xlane.xlu0 %414
  %v416 = vsel %vm406, %v401, -inf
  %417 = vmax.xlane.f32.xlu0 %v416
  %v418 = vpop.xlane.xlu0 %417
  %v419 = vsel %vm406, %v402, -inf
  %420 = vmax.xlane.f32.xlu0 %v419
  %v421 = vpop.xlane.xlu0 %420
  %v422 = vsel %vm406, %v403, -inf
  %423 = vmax.xlane.f32.xlu0 %v422
  %v424 = vpop.xlane.xlu0 %423
  %v425 = vsel %vm406, %v404, -inf
  %426 = vmax.xlane.f32.xlu0 %v425
  %v427 = vpop.xlane.xlu0 %426
  %v428 = vsel %vm406, %v405, -inf
  %429 = vmax.xlane.f32.xlu0 %v428
  %v430 = vpop.xlane.xlu0 %429
  %v431 = vsub.f32 %v398, %v409
  %v432 = vsub.f32 %v399, %v412
  %v433 = vsub.f32 %v400, %v415
  %v434 = vsub.f32 %v401, %v418
  %v435 = vsub.f32 %v402, %v421
  %v436 = vsub.f32 %v403, %v424
  %v437 = vsub.f32 %v404, %v427
  %v438 = vsub.f32 %v405, %v430
  %v439 = vmul.f32 %v431, 1.442695
  %v440 = vpow.pop %v439
  %v441 = vmul.f32 %v432, 1.442695
  %v442 = vpow.pop %v441
  %v443 = vmul.f32 %v433, 1.442695
  %v444 = vpow.pop %v443
  %v445 = vmul.f32 %v434, 1.442695
  %v446 = vpow.pop %v445
  %v447 = vmul.f32 %v435, 1.442695
  %v448 = vpow.pop %v447
  %v449 = vmul.f32 %v436, 1.442695
  %v450 = vpow.pop %v449
  %v451 = vmul.f32 %v437, 1.442695
  %v452 = vpow.pop %v451
  %v453 = vmul.f32 %v438, 1.442695
  %v454 = vpow.pop %v453
  %v455 = vsel %vm406, %v440, 0.0
  %456 = vadd.xlane.f32.xlu0 %v455
  %v457 = vpop.xlane.xlu0 %456
  %v458 = vsel %vm406, %v442, 0.0
  %459 = vadd.xlane.f32.xlu0 %v458
  %v460 = vpop.xlane.xlu0 %459
  %v461 = vsel %vm406, %v444, 0.0
  %462 = vadd.xlane.f32.xlu0 %v461
  %v463 = vpop.xlane.xlu0 %462
  %v464 = vsel %vm406, %v446, 0.0
  %465 = vadd.xlane.f32.xlu0 %v464
  %v466 = vpop.xlane.xlu0 %465
  %v467 = vsel %vm406, %v448, 0.0
  %468 = vadd.xlane.f32.xlu0 %v467
  %v469 = vpop.xlane.xlu0 %468
  %v470 = vsel %vm406, %v450, 0.0
  %471 = vadd.xlane.f32.xlu0 %v470
  %v472 = vpop.xlane.xlu0 %471
  %v473 = vsel %vm406, %v452, 0.0
  %474 = vadd.xlane.f32.xlu0 %v473
  %v475 = vpop.xlane.xlu0 %474
  %v476 = vsel %vm406, %v454, 0.0
  %477 = vadd.xlane.f32.xlu0 %v476
  %v478 = vpop.xlane.xlu0 %477
  %v479 = vrcp.pop %v457
  %v480 = vrcp.pop %v460
  %v481 = vrcp.pop %v463
  %v482 = vrcp.pop %v466
  %v483 = vrcp.pop %v469
  %v484 = vrcp.pop %v472
  %v485 = vrcp.pop %v475
  %v486 = vrcp.pop %v478
  %v487 = vmul.f32 %v440, %v479
  %v488 = vmul.f32 %v442, %v480
  %v489 = vmul.f32 %v444, %v481
  %v490 = vmul.f32 %v446, %v482
  %v491 = vmul.f32 %v448, %v483
  %v492 = vmul.f32 %v450, %v484
  %v493 = vmul.f32 %v452, %v485
  %v494 = vmul.f32 %v454, %v486
  %v495 = vpack.c.bf16 %v487, %v487
  %v496 = vpack.c.bf16 %v488, %v488
  %v497 = vpack.c.bf16 %v489, %v489
  %v498 = vpack.c.bf16 %v490, %v490
  %v499 = vpack.c.bf16 %v491, %v491
  %v500 = vpack.c.bf16 %v492, %v492
  %v501 = vpack.c.bf16 %v493, %v493
  %v502 = vpack.c.bf16 %v494, %v494
  %503 = vrot.lane.b32.xlu0 %v199, 64
  %v504 = vpop.permute.xlu0 %503
  %vm505 = vcmask 48128
  %v507 = vsel %vm505, %v495, 0
  %vm509 = vcmask 1042432
  %v511 = vsel %vm509, %v504, 0
  %513 = vmatpush.bf16.msra.mxu0 0
  %514 = vmatpush.bf16.msra.mxu0 0
  %515 = vmatpush.bf16.msra.mxu0 0
  %516 = vmatpush.bf16.msra.mxu0 0
  %517 = vmatpush.bf16.msra.mxu0 0
  %518 = vmatpush.bf16.msra.mxu0 0
  %519 = vmatpush.bf16.msra.mxu0 0
  %520 = vmatpush.bf16.msra.mxu0 %v511
  %521 = vmatmul.bf16.gmra.mxu0 %v507
  %v522 = vpop.f32.mrf.mxu0
  %v523 = vadd.f32 0.0, %v522
  %v524 = vpop.f32.mrf.mxu0
  %525 = vdwg.mxu0
  %526 = vrot.lane.b32.xlu0 %v224, 64
  %v527 = vpop.permute.xlu0 %526
  %v529 = vsel %vm505, %v496, 0
  %v532 = vsel %vm509, %v527, 0
  %534 = vmatpush.bf16.msra.mxu0 0
  %535 = vmatpush.bf16.msra.mxu0 0
  %536 = vmatpush.bf16.msra.mxu0 0
  %537 = vmatpush.bf16.msra.mxu0 0
  %538 = vmatpush.bf16.msra.mxu0 0
  %539 = vmatpush.bf16.msra.mxu0 0
  %540 = vmatpush.bf16.msra.mxu0 0
  %541 = vmatpush.bf16.msra.mxu0 %v532
  %542 = vmatmul.bf16.gmra.mxu0 %v529
  %v543 = vpop.f32.mrf.mxu0
  %v544 = vadd.f32 0.0, %v543
  %v545 = vpop.f32.mrf.mxu0
  %546 = vdwg.mxu0
  %547 = vrot.lane.b32.xlu0 %v248, 64
  %v548 = vpop.permute.xlu0 %547
  %v550 = vsel %vm505, %v497, 0
  %v553 = vsel %vm509, %v548, 0
  %555 = vmatpush.bf16.msra.mxu0 0
  %556 = vmatpush.bf16.msra.mxu0 0
  %557 = vmatpush.bf16.msra.mxu0 0
  %558 = vmatpush.bf16.msra.mxu0 0
  %559 = vmatpush.bf16.msra.mxu0 0
  %560 = vmatpush.bf16.msra.mxu0 0
  %561 = vmatpush.bf16.msra.mxu0 0
  %562 = vmatpush.bf16.msra.mxu0 %v553
  %563 = vmatmul.bf16.gmra.mxu0 %v550
  %v564 = vpop.f32.mrf.mxu0
  %v565 = vadd.f32 0.0, %v564
  %v566 = vpop.f32.mrf.mxu0
  %567 = vdwg.mxu0
  %568 = vrot.lane.b32.xlu0 %v272, 64
  %v569 = vpop.permute.xlu0 %568
  %v571 = vsel %vm505, %v498, 0
  %v574 = vsel %vm509, %v569, 0
  %576 = vmatpush.bf16.msra.mxu0 0
  %577 = vmatpush.bf16.msra.mxu0 0
  %578 = vmatpush.bf16.msra.mxu0 0
  %579 = vmatpush.bf16.msra.mxu0 0
  %580 = vmatpush.bf16.msra.mxu0 0
  %581 = vmatpush.bf16.msra.mxu0 0
  %582 = vmatpush.bf16.msra.mxu0 0
  %583 = vmatpush.bf16.msra.mxu0 %v574
  %584 = vmatmul.bf16.gmra.mxu0 %v571
  %v585 = vpop.f32.mrf.mxu0
  %v586 = vadd.f32 0.0, %v585
  %v587 = vpop.f32.mrf.mxu0
  %588 = vdwg.mxu0
  %589 = vrot.lane.b32.xlu0 %v296, 64
  %v590 = vpop.permute.xlu0 %589
  %v592 = vsel %vm505, %v499, 0
  %v595 = vsel %vm509, %v590, 0
  %597 = vmatpush.bf16.msra.mxu0 0
  %598 = vmatpush.bf16.msra.mxu0 0
  %599 = vmatpush.bf16.msra.mxu0 0
  %600 = vmatpush.bf16.msra.mxu0 0
  %601 = vmatpush.bf16.msra.mxu0 0
  %602 = vmatpush.bf16.msra.mxu0 0
  %603 = vmatpush.bf16.msra.mxu0 0
  %604 = vmatpush.bf16.msra.mxu0 %v595
  %605 = vmatmul.bf16.gmra.mxu0 %v592
  %v606 = vpop.f32.mrf.mxu0
  %v607 = vadd.f32 0.0, %v606
  %v608 = vpop.f32.mrf.mxu0
  %609 = vdwg.mxu0
  %610 = vrot.lane.b32.xlu0 %v320, 64
  %v611 = vpop.permute.xlu0 %610
  %v613 = vsel %vm505, %v500, 0
  %v616 = vsel %vm509, %v611, 0
  %618 = vmatpush.bf16.msra.mxu0 0
  %619 = vmatpush.bf16.msra.mxu0 0
  %620 = vmatpush.bf16.msra.mxu0 0
  %621 = vmatpush.bf16.msra.mxu0 0
  %622 = vmatpush.bf16.msra.mxu0 0
  %623 = vmatpush.bf16.msra.mxu0 0
  %624 = vmatpush.bf16.msra.mxu0 0
  %625 = vmatpush.bf16.msra.mxu0 %v616
  %626 = vmatmul.bf16.gmra.mxu0 %v613
  %v627 = vpop.f32.mrf.mxu0
  %v628 = vadd.f32 0.0, %v627
  %v629 = vpop.f32.mrf.mxu0
  %630 = vdwg.mxu0
  %631 = vrot.lane.b32.xlu0 %v344, 64
  %v632 = vpop.permute.xlu0 %631
  %v634 = vsel %vm505, %v501, 0
  %v637 = vsel %vm509, %v632, 0
  %639 = vmatpush.bf16.msra.mxu0 0
  %640 = vmatpush.bf16.msra.mxu0 0
  %641 = vmatpush.bf16.msra.mxu0 0
  %642 = vmatpush.bf16.msra.mxu0 0
  %643 = vmatpush.bf16.msra.mxu0 0
  %644 = vmatpush.bf16.msra.mxu0 0
  %645 = vmatpush.bf16.msra.mxu0 0
  %646 = vmatpush.bf16.msra.mxu0 %v637
  %647 = vmatmul.bf16.gmra.mxu0 %v634
  %v648 = vpop.f32.mrf.mxu0
  %v649 = vadd.f32 0.0, %v648
  %v650 = vpop.f32.mrf.mxu0
  %651 = vdwg.mxu0
  %652 = vrot.lane.b32.xlu0 %v368, 64
  %v653 = vpop.permute.xlu0 %652
  %v655 = vsel %vm505, %v502, 0
  %v658 = vsel %vm509, %v653, 0
  %660 = vmatpush.bf16.msra.mxu0 0
  %661 = vmatpush.bf16.msra.mxu0 0
  %662 = vmatpush.bf16.msra.mxu0 0
  %663 = vmatpush.bf16.msra.mxu0 0
  %664 = vmatpush.bf16.msra.mxu0 0
  %665 = vmatpush.bf16.msra.mxu0 0
  %666 = vmatpush.bf16.msra.mxu0 0
  %667 = vmatpush.bf16.msra.mxu0 %v658
  %668 = vmatmul.bf16.gmra.mxu0 %v655
  %v669 = vpop.f32.mrf.mxu0
  %v670 = vadd.f32 0.0, %v669
  %v671 = vpop.f32.mrf.mxu0
  %672 = vdwg.mxu0
  %674 = vrot.lane.b32.xlu0 %v544, 8
  %v675 = vpop.permute.xlu0 %674
  %678 = vrot.lane.b32.xlu0 %v565, 16
  %v679 = vpop.permute.xlu0 %678
  %682 = vrot.lane.b32.xlu0 %v586, 24
  %v683 = vpop.permute.xlu0 %682
  %v685 = vsel %vm202, %v523, %v675
  %vm686 = vcmask 130048
  %v687 = vsel %vm686, %v685, %v679
  %vm688 = vcmask 195584
  %v689 = vsel %vm688, %v687, %v683
  %691 = vrot.lane.b32.xlu0 %v628, 8
  %v692 = vpop.permute.xlu0 %691
  %695 = vrot.lane.b32.xlu0 %v649, 16
  %v696 = vpop.permute.xlu0 %695
  %699 = vrot.lane.b32.xlu0 %v670, 24
  %v700 = vpop.permute.xlu0 %699
  %v702 = vsel %vm202, %v607, %v692
  %v703 = vsel %vm686, %v702, %v696
  %v704 = vsel %vm688, %v703, %v700
  %v706 = vrot.slane %v704, 2
  %vm708 = vcmask 1045504
  %v709 = vsel %vm708, %v689, %v706
  %v710 = vld [vmem:[%s8] sm:$0xf]
  %v711 = vld [vmem:[%s8 + $0x4] sm:$0xf]
  %v712 = vld [vmem:[%s8 + $0x8] sm:$0xf]
  %v713 = vld [vmem:[%s8 + $0xc] sm:$0xf]
  %v714 = vld [vmem:[%s9] sm:$0x1]
  %v715 = vpack.c.bf16 %v706, %v709
  %v717 = vperm.slane %v714, 0
  %v723 = vunpack.c.l.b16 %v710
  %v724 = vunpack.c.l.b16 %v711
  %v725 = vunpack.c.l.b16 %v712
  %v726 = vunpack.c.l.b16 %v713
  %v727 = vpack.c.b16 %v724, %v723
  %v728 = vpack.c.b16 %v726, %v725
  %v732 = vsel %vm134, %v715, 0
  %734 = vmatpush.bf16.msra.mxu0 0
  %735 = vmatpush.bf16.msra.mxu0 0
  %736 = vmatpush.bf16.msra.mxu0 0
  %737 = vmatpush.bf16.msra.mxu0 0
  %738 = vmatpush.bf16.msra.mxu0 0
  %739 = vmatpush.bf16.msra.mxu0 0
  %740 = vmatpush.bf16.msra.mxu0 %v728
  %741 = vmatpush.bf16.msra.mxu0 %v727
  %742 = vmatmul.bf16.gmra.mxu0 %v732
  %v743 = vpop.f32.mrf.mxu0
  %v744 = vadd.f32 %v717, %v743
  %v745 = vpop.f32.mrf.mxu0
  %v746 = vadd.f32 %v717, %v745
  %747 = vdwg.mxu0
  %v750 = vrot.slane %v744, 2
  %v751 = vrot.slane %v744, 4
  %v752 = vrot.slane %v744, 6
  %v753 = vrot.slane %v746, 2
  %v758 = vadd.f32 %v84, %v744
  %v759 = vadd.f32 %v88, %v750
  %v760 = vadd.f32 %v89, %v751
  %v761 = vadd.f32 %v85, %v752
  %v762 = vadd.f32 %v90, %v746
  %v763 = vadd.f32 %v91, %v753
  %v764 = vld [vmem:[%s10] sm:$0x1]
  %v765 = vld [vmem:[%s11] sm:$0x1]
  %772 = vst [vmem:[#allocation1] ss:$4 sm:$0xff] %v758
  %s773 = scalar_lea.vmem [#allocation1], 1
  %774 = vst [vmem:[%s773] ss:$4 sm:$0xff] %v759
  %s775 = scalar_lea.vmem [#allocation1], 2
  %776 = vst [vmem:[%s775] ss:$4 sm:$0xff] %v760
  %s777 = scalar_lea.vmem [#allocation1], 3
  %778 = vst [vmem:[%s777] ss:$4 sm:$0xff] %v761
  %s779 = scalar_lea.vmem [#allocation1], 32
  %780 = vst [vmem:[%s779] ss:$4 sm:$0xff] %v762
  %s781 = scalar_lea.vmem [#allocation1], 33
  %782 = vst [vmem:[%s781] ss:$4 sm:$0xff] %v763
  %v783 = vld.sshfl [vmem:[#allocation1] sm:$0xff pattern:$0x73625140]
  %v784 = vld.sshfl [vmem:[#allocation1 + $0x20] sm:$0xff pattern:$0x73625140]
  %v787 = vsel %vm134, %v783, 0.0
  %788 = vadd.xlane.f32.xlu0 %v787
  %v789 = vpop.xlane.xlu0 %788
  %vm790 = vcmask 257024
  %v791 = vsel %vm790, %v784, 0.0
  %792 = vadd.xlane.f32.xlu0 %v791
  %v793 = vpop.xlane.xlu0 %792
  %v794 = vrcp.pop 32.0
  %v795 = vmul.f32 32.0, %v794
  %v796 = vsub.f32 1.0, %v795
  %v797 = vmul.f32 %v794, %v796
  %v798 = vadd.f32 %v794, %v797
  %vm799 = vweird.f32 %v794
  %v800 = vsel %vm799, %v794, %v798
  %v801 = vmul.f32 %v789, %v800
  %v802 = vmul.f32 %v793, %v800
  %v806 = vunpack.c.l.s4 269488144
  %v807 = vunpack.c.0.s8 %v806
  %v808 = vperm.slane %v801, %v807
  %v810 = vunpack.c.l.s4 842150450
  %v811 = vunpack.c.0.s8 %v810
  %v812 = vperm.slane %v801, %v811
  %v814 = vunpack.c.l.s4 1414812756
  %v815 = vunpack.c.0.s8 %v814
  %v816 = vperm.slane %v801, %v815
  %v818 = vunpack.c.l.s4 1987475062
  %v819 = vunpack.c.0.s8 %v818
  %v820 = vperm.slane %v801, %v819
  %v822 = vunpack.c.l.s4 269488144
  %v823 = vunpack.c.0.s8 %v822
  %v824 = vperm.slane %v802, %v823
  %v826 = vunpack.c.l.s4 842150450
  %v827 = vunpack.c.0.s8 %v826
  %v828 = vperm.slane %v802, %v827
  %v835 = vsub.f32 %v758, %v808
  %v836 = vsub.f32 %v759, %v812
  %v837 = vsub.f32 %v760, %v816
  %v838 = vsub.f32 %v761, %v820
  %v839 = vsub.f32 %v762, %v824
  %v840 = vsub.f32 %v763, %v828
  %v841 = vmul.f32 %v835, %v835
  %v842 = vmul.f32 %v836, %v836
  %v843 = vmul.f32 %v837, %v837
  %v844 = vmul.f32 %v838, %v838
  %v845 = vmul.f32 %v839, %v839
  %v846 = vmul.f32 %v840, %v840
  %853 = vst [vmem:[#allocation1] ss:$4 sm:$0xff] %v841
  %s854 = scalar_lea.vmem [#allocation1], 1
  %855 = vst [vmem:[%s854] ss:$4 sm:$0xff] %v842
  %s856 = scalar_lea.vmem [#allocation1], 2
  %857 = vst [vmem:[%s856] ss:$4 sm:$0xff] %v843
  %s858 = scalar_lea.vmem [#allocation1], 3
  %859 = vst [vmem:[%s858] ss:$4 sm:$0xff] %v844
  %s860 = scalar_lea.vmem [#allocation1], 32
  %861 = vst [vmem:[%s860] ss:$4 sm:$0xff] %v845
  %s862 = scalar_lea.vmem [#allocation1], 33
  %863 = vst [vmem:[%s862] ss:$4 sm:$0xff] %v846
  %v864 = vld.sshfl [vmem:[#allocation1] sm:$0xff pattern:$0x73625140]
  %v865 = vld.sshfl [vmem:[#allocation1 + $0x20] sm:$0xff pattern:$0x73625140]
  %v868 = vsel %vm134, %v864, 0.0
  %869 = vadd.xlane.f32.xlu0 %v868
  %v870 = vpop.xlane.xlu0 %869
  %v871 = vsel %vm790, %v865, 0.0
  %872 = vadd.xlane.f32.xlu0 %v871
  %v873 = vpop.xlane.xlu0 %872
  %v874 = vmul.f32 %v870, %v800
  %v875 = vmul.f32 %v873, %v800
  %v876 = vadd.f32 %v874, 1e-05
  %v877 = vadd.f32 %v875, 1e-05
  %v878 = vrsqrt.pop %v876
  %v879 = vmul.f32 %v878, %v876
  %v880 = vmul.f32 %v879, %v878
  %v881 = vmul.f32 0.5, %v880
  %v882 = vsub.f32 1.5, %v881
  %v883 = vmul.f32 %v878, %v882
  %vm884 = vweird.f32 %v876
  %vm885 = vweird.f32 %v878
  %vm886 = vmor %vm884, %vm885
  %v887 = vsel %vm886, %v878, %v883
  %v888 = vrsqrt.pop %v877
  %v889 = vmul.f32 %v888, %v877
  %v890 = vmul.f32 %v889, %v888
  %v891 = vmul.f32 0.5, %v890
  %v892 = vsub.f32 1.5, %v891
  %v893 = vmul.f32 %v888, %v892
  %vm894 = vweird.f32 %v877
  %vm895 = vweird.f32 %v888
  %vm896 = vmor %vm894, %vm895
  %v897 = vsel %vm896, %v888, %v893
  %v901 = vunpack.c.l.s4 269488144
  %v902 = vunpack.c.0.s8 %v901
  %v903 = vperm.slane %v887, %v902
  %v905 = vunpack.c.l.s4 842150450
  %v906 = vunpack.c.0.s8 %v905
  %v907 = vperm.slane %v887, %v906
  %v909 = vunpack.c.l.s4 1414812756
  %v910 = vunpack.c.0.s8 %v909
  %v911 = vperm.slane %v887, %v910
  %v913 = vunpack.c.l.s4 1987475062
  %v914 = vunpack.c.0.s8 %v913
  %v915 = vperm.slane %v887, %v914
  %v917 = vunpack.c.l.s4 269488144
  %v918 = vunpack.c.0.s8 %v917
  %v919 = vperm.slane %v897, %v918
  %v921 = vunpack.c.l.s4 842150450
  %v922 = vunpack.c.0.s8 %v921
  %v923 = vperm.slane %v897, %v922
  %v930 = vmul.f32 %v835, %v903
  %v931 = vmul.f32 %v836, %v907
  %v932 = vmul.f32 %v837, %v911
  %v933 = vmul.f32 %v838, %v915
  %v934 = vmul.f32 %v839, %v919
  %v935 = vmul.f32 %v840, %v923
  %v937 = vperm.slane %v764, 0
  %v939 = vrot.slane %v937, 2
  %v940 = vrot.slane %v937, 4
  %v941 = vrot.slane %v937, 6
  %v945 = vmul.f32 %v930, %v937
  %v946 = vmul.f32 %v931, %v939
  %v947 = vmul.f32 %v932, %v940
  %v948 = vmul.f32 %v933, %v941
  %v949 = vmul.f32 %v934, %v937
  %v950 = vmul.f32 %v935, %v939
  %v952 = vperm.slane %v765, 0
  %v954 = vrot.slane %v952, 2
  %v955 = vrot.slane %v952, 4
  %v956 = vrot.slane %v952, 6
  %v960 = vadd.f32 %v945, %v952
  %v961 = vadd.f32 %v946, %v954
  %v962 = vadd.f32 %v947, %v955
  %v963 = vadd.f32 %v948, %v956
  %v964 = vadd.f32 %v949, %v952
  %v965 = vadd.f32 %v950, %v954
  %v966 = vld [vmem:[%s12] sm:$0xf]
  %v967 = vld [vmem:[%s12 + $0x4] sm:$0xf]
  %v968 = vld [vmem:[%s12 + $0x8] sm:$0xf]
  %v969 = vld [vmem:[%s12 + $0xc] sm:$0xf]
  %v970 = vld [vmem:[%s13] sm:$0x1]
  %977 = vst [vmem:[#allocation1] ss:$4 sm:$0xff] %v960
  %s978 = scalar_lea.vmem [#allocation1], 1
  %979 = vst [vmem:[%s978] ss:$4 sm:$0xff] %v961
  %s980 = scalar_lea.vmem [#allocation1], 2
  %981 = vst [vmem:[%s980] ss:$4 sm:$0xff] %v962
  %s982 = scalar_lea.vmem [#allocation1], 3
  %983 = vst [vmem:[%s982] ss:$4 sm:$0xff] %v963
  %s984 = scalar_lea.vmem [#allocation1], 32
  %985 = vst [vmem:[%s984] ss:$4 sm:$0xff] %v964
  %s986 = scalar_lea.vmem [#allocation1], 33
  %987 = vst [vmem:[%s986] ss:$4 sm:$0xff] %v965
  %v988 = vld.sshfl [vmem:[#allocation1] sm:$0xff pattern:$0x73625140]
  %v989 = vld.sshfl [vmem:[#allocation1 + $0x20] sm:$0xff pattern:$0x73625140]
  %v992 = vpack.c.bf16 %v989, %v988
  %v994 = vperm.slane %v970, 0
  %v1000 = vunpack.c.l.b16 %v966
  %v1001 = vunpack.c.l.b16 %v967
  %v1002 = vunpack.c.l.b16 %v968
  %v1003 = vunpack.c.l.b16 %v969
  %v1004 = vpack.c.b16 %v1001, %v1000
  %v1005 = vpack.c.b16 %v1003, %v1002
  %v1009 = vsel %vm134, %v992, 0
  %1011 = vmatpush.bf16.msra.mxu0 0
  %1012 = vmatpush.bf16.msra.mxu0 0
  %1013 = vmatpush.bf16.msra.mxu0 0
  %1014 = vmatpush.bf16.msra.mxu0 0
  %1015 = vmatpush.bf16.msra.mxu0 0
  %1016 = vmatpush.bf16.msra.mxu0 0
  %1017 = vmatpush.bf16.msra.mxu0 %v1005
  %1018 = vmatpush.bf16.msra.mxu0 %v1004
  %1019 = vmatmul.bf16.gmra.mxu0 %v1009
  %v1020 = vpop.f32.mrf.mxu0
  %v1021 = vadd.f32 %v994, %v1020
  %v1022 = vpop.f32.mrf.mxu0
  %v1023 = vadd.f32 %v994, %v1022
  %1024 = vdwg.mxu0
  %v1025 = vld [vmem:[%s14] sm:$0xf]
  %v1026 = vld [vmem:[%s14 + $0x4] sm:$0xf]
  %v1027 = vld [vmem:[%s14 + $0x8] sm:$0xf]
  %v1028 = vld [vmem:[%s14 + $0xc] sm:$0xf]
  %v1029 = vld [vmem:[%s15] sm:$0x1]
  %v1030 = vpack.c.bf16 %v97, %v96
  %v1032 = vperm.slane %v1029, 0
  %v1038 = vunpack.c.l.b16 %v1025
  %v1039 = vunpack.c.l.b16 %v1026
  %v1040 = vunpack.c.l.b16 %v1027
  %v1041 = vunpack.c.l.b16 %v1028
  %v1042 = vpack.c.b16 %v1039, %v1038
  %v1043 = vpack.c.b16 %v1041, %v1040
  %v1047 = vsel %vm134, %v1030, 0
  %1049 = vmatpush.bf16.msra.mxu0 0
  %1050 = vmatpush.bf16.msra.mxu0 0
  %1051 = vmatpush.bf16.msra.mxu0 0
  %1052 = vmatpush.bf16.msra.mxu0 0
  %1053 = vmatpush.bf16.msra.mxu0 0
  %1054 = vmatpush.bf16.msra.mxu0 0
  %1055 = vmatpush.bf16.msra.mxu0 %v1043
  %1056 = vmatpush.bf16.msra.mxu0 %v1042
  %1057 = vmatmul.bf16.gmra.mxu0 %v1047
  %v1058 = vpop.f32.mrf.mxu0
  %v1059 = vadd.f32 %v1032, %v1058
  %v1060 = vpop.f32.mrf.mxu0
  %v1061 = vadd.f32 %v1032, %v1060
  %1062 = vdwg.mxu0
  %v1063 = vld [vmem:[%s4] sm:$0x3]
  %v1065 = vrot.slane %v1063, 1
  %1067 = vrot.lane.b32.xlu0 %v1021, 120
  %v1068 = vpop.permute.xlu0 %1067
  %1070 = vrot.lane.b32.xlu0 %v1021, 112
  %v1071 = vpop.permute.xlu0 %1070
  %1073 = vrot.lane.b32.xlu0 %v1021, 104
  %v1074 = vpop.permute.xlu0 %1073
  %v1077 = vrot.slane %v1021, 6
  %v1078 = vrot.slane %v1023, 6
  %v1079 = vsel %vm175, %v1077, %v1078
  %1081 = vrot.lane.b32.xlu0 %v1079, 120
  %v1082 = vpop.permute.xlu0 %1081
  %1084 = vrot.lane.b32.xlu0 %v1079, 112
  %v1085 = vpop.permute.xlu0 %1084
  %1087 = vrot.lane.b32.xlu0 %v1079, 104
  %v1088 = vpop.permute.xlu0 %1087
  %v1090 = vpack.c.bf16 %v1021, %v1021
  %v1091 = vpack.c.bf16 %v1068, %v1068
  %v1092 = vpack.c.bf16 %v1071, %v1071
  %v1093 = vpack.c.bf16 %v1074, %v1074
  %v1094 = vpack.c.bf16 %v1079, %v1079
  %v1095 = vpack.c.bf16 %v1082, %v1082
  %v1096 = vpack.c.bf16 %v1085, %v1085
  %v1097 = vpack.c.bf16 %v1088, %v1088
  %1099 = vrot.lane.b32.xlu0 %v1059, 120
  %v1100 = vpop.permute.xlu0 %1099
  %1102 = vrot.lane.b32.xlu0 %v1059, 112
  %v1103 = vpop.permute.xlu0 %1102
  %1105 = vrot.lane.b32.xlu0 %v1059, 104
  %v1106 = vpop.permute.xlu0 %1105
  %1109 = vrot.lane.b32.xlu0 %v1061, 120
  %v1110 = vpop.permute.xlu0 %1109
  %1112 = vrot.lane.b32.xlu0 %v1061, 112
  %v1113 = vpop.permute.xlu0 %1112
  %1115 = vrot.lane.b32.xlu0 %v1061, 104
  %v1116 = vpop.permute.xlu0 %1115
  %v1118 = vpack.c.bf16 %v1059, %v1059
  %v1119 = vpack.c.bf16 %v1100, %v1100
  %v1120 = vpack.c.bf16 %v1103, %v1103
  %v1121 = vpack.c.bf16 %v1106, %v1106
  %v1122 = vpack.c.bf16 %v1061, %v1061
  %v1123 = vpack.c.bf16 %v1110, %v1110
  %v1124 = vpack.c.bf16 %v1113, %v1113
  %v1125 = vpack.c.bf16 %v1116, %v1116
  %v1127 = vsel %vm202, %v1090, 0
  %v1130 = vsel %vm202, %v1118, 0
  %1132 = vmatpush.bf16.xpose.msra.mxu0 0
  %1133 = vmatpush.bf16.xpose.msra.mxu0 0
  %1134 = vmatpush.bf16.xpose.msra.mxu0 0
  %1135 = vmatpush.bf16.xpose.msra.mxu0 0
  %1136 = vmatpush.bf16.xpose.msra.mxu0 0
  %1137 = vmatpush.bf16.xpose.msra.mxu0 0
  %1138 = vmatpush.bf16.xpose.msra.mxu0 0
  %1139 = vmatpush.bf16.xpose.msra.mxu0 %v1130
  %1140 = vmatmul.bf16.gmra.mxu0 %v1127
  %v1141 = vpop.f32.mrf.mxu0
  %v1142 = vadd.f32 0.0, %v1141
  %v1143 = vpop.f32.mrf.mxu0
  %1144 = vdwg.mxu0
  %v1146 = vsel %vm202, %v1091, 0
  %v1149 = vsel %vm202, %v1119, 0
  %1151 = vmatpush.bf16.xpose.msra.mxu0 0
  %1152 = vmatpush.bf16.xpose.msra.mxu0 0
  %1153 = vmatpush.bf16.xpose.msra.mxu0 0
  %1154 = vmatpush.bf16.xpose.msra.mxu0 0
  %1155 = vmatpush.bf16.xpose.msra.mxu0 0
  %1156 = vmatpush.bf16.xpose.msra.mxu0 0
  %1157 = vmatpush.bf16.xpose.msra.mxu0 0
  %1158 = vmatpush.bf16.xpose.msra.mxu0 %v1149
  %1159 = vmatmul.bf16.gmra.mxu0 %v1146
  %v1160 = vpop.f32.mrf.mxu0
  %v1161 = vadd.f32 0.0, %v1160
  %v1162 = vpop.f32.mrf.mxu0
  %1163 = vdwg.mxu0
  %v1165 = vsel %vm202, %v1092, 0
  %v1168 = vsel %vm202, %v1120, 0
  %1170 = vmatpush.bf16.xpose.msra.mxu0 0
  %1171 = vmatpush.bf16.xpose.msra.mxu0 0
  %1172 = vmatpush.bf16.xpose.msra.mxu0 0
  %1173 = vmatpush.bf16.xpose.msra.mxu0 0
  %1174 = vmatpush.bf16.xpose.msra.mxu0 0
  %1175 = vmatpush.bf16.xpose.msra.mxu0 0
  %1176 = vmatpush.bf16.xpose.msra.mxu0 0
  %1177 = vmatpush.bf16.xpose.msra.mxu0 %v1168
  %1178 = vmatmul.bf16.gmra.mxu0 %v1165
  %v1179 = vpop.f32.mrf.mxu0
  %v1180 = vadd.f32 0.0, %v1179
  %v1181 = vpop.f32.mrf.mxu0
  %1182 = vdwg.mxu0
  %v1184 = vsel %vm202, %v1093, 0
  %v1187 = vsel %vm202, %v1121, 0
  %1189 = vmatpush.bf16.xpose.msra.mxu0 0
  %1190 = vmatpush.bf16.xpose.msra.mxu0 0
  %1191 = vmatpush.bf16.xpose.msra.mxu0 0
  %1192 = vmatpush.bf16.xpose.msra.mxu0 0
  %1193 = vmatpush.bf16.xpose.msra.mxu0 0
  %1194 = vmatpush.bf16.xpose.msra.mxu0 0
  %1195 = vmatpush.bf16.xpose.msra.mxu0 0
  %1196 = vmatpush.bf16.xpose.msra.mxu0 %v1187
  %1197 = vmatmul.bf16.gmra.mxu0 %v1184
  %v1198 = vpop.f32.mrf.mxu0
  %v1199 = vadd.f32 0.0, %v1198
  %v1200 = vpop.f32.mrf.mxu0
  %1201 = vdwg.mxu0
  %v1203 = vsel %vm202, %v1094, 0
  %v1206 = vsel %vm202, %v1122, 0
  %1208 = vmatpush.bf16.xpose.msra.mxu0 0
  %1209 = vmatpush.bf16.xpose.msra.mxu0 0
  %1210 = vmatpush.bf16.xpose.msra.mxu0 0
  %1211 = vmatpush.bf16.xpose.msra.mxu0 0
  %1212 = vmatpush.bf16.xpose.msra.mxu0 0
  %1213 = vmatpush.bf16.xpose.msra.mxu0 0
  %1214 = vmatpush.bf16.xpose.msra.mxu0 0
  %1215 = vmatpush.bf16.xpose.msra.mxu0 %v1206
  %1216 = vmatmul.bf16.gmra.mxu0 %v1203
  %v1217 = vpop.f32.mrf.mxu0
  %v1218 = vadd.f32 0.0, %v1217
  %v1219 = vpop.f32.mrf.mxu0
  %1220 = vdwg.mxu0
  %v1222 = vsel %vm202, %v1095, 0
  %v1225 = vsel %vm202, %v1123, 0
  %1227 = vmatpush.bf16.xpose.msra.mxu0 0
  %1228 = vmatpush.bf16.xpose.msra.mxu0 0
  %1229 = vmatpush.bf16.xpose.msra.mxu0 0
  %1230 = vmatpush.bf16.xpose.msra.mxu0 0
  %1231 = vmatpush.bf16.xpose.msra.mxu0 0
  %1232 = vmatpush.bf16.xpose.msra.mxu0 0
  %1233 = vmatpush.bf16.xpose.msra.mxu0 0
  %1234 = vmatpush.bf16.xpose.msra.mxu0 %v1225
  %1235 = vmatmul.bf16.gmra.mxu0 %v1222
  %v1236 = vpop.f32.mrf.mxu0
  %v1237 = vadd.f32 0.0, %v1236
  %v1238 = vpop.f32.mrf.mxu0
  %1239 = vdwg.mxu0
  %v1241 = vsel %vm202, %v1096, 0
  %v1244 = vsel %vm202, %v1124, 0
  %1246 = vmatpush.bf16.xpose.msra.mxu0 0
  %1247 = vmatpush.bf16.xpose.msra.mxu0 0
  %1248 = vmatpush.bf16.xpose.msra.mxu0 0
  %1249 = vmatpush.bf16.xpose.msra.mxu0 0
  %1250 = vmatpush.bf16.xpose.msra.mxu0 0
  %1251 = vmatpush.bf16.xpose.msra.mxu0 0
  %1252 = vmatpush.bf16.xpose.msra.mxu0 0
  %1253 = vmatpush.bf16.xpose.msra.mxu0 %v1244
  %1254 = vmatmul.bf16.gmra.mxu0 %v1241
  %v1255 = vpop.f32.mrf.mxu0
  %v1256 = vadd.f32 0.0, %v1255
  %v1257 = vpop.f32.mrf.mxu0
  %1258 = vdwg.mxu0
  %v1260 = vsel %vm202, %v1097, 0
  %v1263 = vsel %vm202, %v1125, 0
  %1265 = vmatpush.bf16.xpose.msra.mxu0 0
  %1266 = vmatpush.bf16.xpose.msra.mxu0 0
  %1267 = vmatpush.bf16.xpose.msra.mxu0 0
  %1268 = vmatpush.bf16.xpose.msra.mxu0 0
  %1269 = vmatpush.bf16.xpose.msra.mxu0 0
  %1270 = vmatpush.bf16.xpose.msra.mxu0 0
  %1271 = vmatpush.bf16.xpose.msra.mxu0 0
  %1272 = vmatpush.bf16.xpose.msra.mxu0 %v1263
  %1273 = vmatmul.bf16.gmra.mxu0 %v1260
  %v1274 = vpop.f32.mrf.mxu0
  %v1275 = vadd.f32 0.0, %v1274
  %v1276 = vpop.f32.mrf.mxu0
  %1277 = vdwg.mxu0
  %v1278 = vmul.f32 %v1142, 0.35355338
  %v1279 = vmul.f32 %v1161, 0.35355338
  %v1280 = vmul.f32 %v1180, 0.35355338
  %v1281 = vmul.f32 %v1199, 0.35355338
  %v1282 = vmul.f32 %v1218, 0.35355338
  %v1283 = vmul.f32 %v1237, 0.35355338
  %v1284 = vmul.f32 %v1256, 0.35355338
  %v1285 = vmul.f32 %v1275, 0.35355338
  %v1286 = vperm.slane %v1063, 0
  %v1287 = vperm.slane %v1065, 0
  %v1290 = vadd.f32 %v1278, %v1286
  %v1291 = vadd.f32 %v1279, %v1286
  %v1292 = vadd.f32 %v1280, %v1286
  %v1293 = vadd.f32 %v1281, %v1286
  %v1294 = vadd.f32 %v1282, %v1287
  %v1295 = vadd.f32 %v1283, %v1287
  %v1296 = vadd.f32 %v1284, %v1287
  %v1297 = vadd.f32 %v1285, %v1287
  %vm1298 = vcmask 62464
  %v1299 = vsel %vm1298, %v1290, -inf
  %1300 = vmax.xlane.f32.xlu0 %v1299
  %v1301 = vpop.xlane.xlu0 %1300
  %v1302 = vsel %vm1298, %v1291, -inf
  %1303 = vmax.xlane.f32.xlu0 %v1302
  %v1304 = vpop.xlane.xlu0 %1303
  %v1305 = vsel %vm1298, %v1292, -inf
  %1306 = vmax.xlane.f32.xlu0 %v1305
  %v1307 = vpop.xlane.xlu0 %1306
  %v1308 = vsel %vm1298, %v1293, -inf
  %1309 = vmax.xlane.f32.xlu0 %v1308
  %v1310 = vpop.xlane.xlu0 %1309
  %v1311 = vsel %vm1298, %v1294, -inf
  %1312 = vmax.xlane.f32.xlu0 %v1311
  %v1313 = vpop.xlane.xlu0 %1312
  %v1314 = vsel %vm1298, %v1295, -inf
  %1315 = vmax.xlane.f32.xlu0 %v1314
  %v1316 = vpop.xlane.xlu0 %1315
  %v1317 = vsel %vm1298, %v1296, -inf
  %1318 = vmax.xlane.f32.xlu0 %v1317
  %v1319 = vpop.xlane.xlu0 %1318
  %v1320 = vsel %vm1298, %v1297, -inf
  %1321 = vmax.xlane.f32.xlu0 %v1320
  %v1322 = vpop.xlane.xlu0 %1321
  %v1323 = vsub.f32 %v1290, %v1301
  %v1324 = vsub.f32 %v1291, %v1304
  %v1325 = vsub.f32 %v1292, %v1307
  %v1326 = vsub.f32 %v1293, %v1310
  %v1327 = vsub.f32 %v1294, %v1313
  %v1328 = vsub.f32 %v1295, %v1316
  %v1329 = vsub.f32 %v1296, %v1319
  %v1330 = vsub.f32 %v1297, %v1322
  %v1331 = vmul.f32 %v1323, 1.442695
  %v1332 = vpow.pop %v1331
  %v1333 = vmul.f32 %v1324, 1.442695
  %v1334 = vpow.pop %v1333
  %v1335 = vmul.f32 %v1325, 1.442695
  %v1336 = vpow.pop %v1335
  %v1337 = vmul.f32 %v1326, 1.442695
  %v1338 = vpow.pop %v1337
  %v1339 = vmul.f32 %v1327, 1.442695
  %v1340 = vpow.pop %v1339
  %v1341 = vmul.f32 %v1328, 1.442695
  %v1342 = vpow.pop %v1341
  %v1343 = vmul.f32 %v1329, 1.442695
  %v1344 = vpow.pop %v1343
  %v1345 = vmul.f32 %v1330, 1.442695
  %v1346 = vpow.pop %v1345
  %v1347 = vsel %vm1298, %v1332, 0.0
  %1348 = vadd.xlane.f32.xlu0 %v1347
  %v1349 = vpop.xlane.xlu0 %1348
  %v1350 = vsel %vm1298, %v1334, 0.0
  %1351 = vadd.xlane.f32.xlu0 %v1350
  %v1352 = vpop.xlane.xlu0 %1351
  %v1353 = vsel %vm1298, %v1336, 0.0
  %1354 = vadd.xlane.f32.xlu0 %v1353
  %v1355 = vpop.xlane.xlu0 %1354
  %v1356 = vsel %vm1298, %v1338, 0.0
  %1357 = vadd.xlane.f32.xlu0 %v1356
  %v1358 = vpop.xlane.xlu0 %1357
  %v1359 = vsel %vm1298, %v1340, 0.0
  %1360 = vadd.xlane.f32.xlu0 %v1359
  %v1361 = vpop.xlane.xlu0 %1360
  %v1362 = vsel %vm1298, %v1342, 0.0
  %1363 = vadd.xlane.f32.xlu0 %v1362
  %v1364 = vpop.xlane.xlu0 %1363
  %v1365 = vsel %vm1298, %v1344, 0.0
  %1366 = vadd.xlane.f32.xlu0 %v1365
  %v1367 = vpop.xlane.xlu0 %1366
  %v1368 = vsel %vm1298, %v1346, 0.0
  %1369 = vadd.xlane.f32.xlu0 %v1368
  %v1370 = vpop.xlane.xlu0 %1369
  %v1371 = vrcp.pop %v1349
  %v1372 = vrcp.pop %v1352
  %v1373 = vrcp.pop %v1355
  %v1374 = vrcp.pop %v1358
  %v1375 = vrcp.pop %v1361
  %v1376 = vrcp.pop %v1364
  %v1377 = vrcp.pop %v1367
  %v1378 = vrcp.pop %v1370
  %v1379 = vmul.f32 %v1332, %v1371
  %v1380 = vmul.f32 %v1334, %v1372
  %v1381 = vmul.f32 %v1336, %v1373
  %v1382 = vmul.f32 %v1338, %v1374
  %v1383 = vmul.f32 %v1340, %v1375
  %v1384 = vmul.f32 %v1342, %v1376
  %v1385 = vmul.f32 %v1344, %v1377
  %v1386 = vmul.f32 %v1346, %v1378
  %v1387 = vpack.c.bf16 %v1379, %v1379
  %v1388 = vpack.c.bf16 %v1380, %v1380
  %v1389 = vpack.c.bf16 %v1381, %v1381
  %v1390 = vpack.c.bf16 %v1382, %v1382
  %v1391 = vpack.c.bf16 %v1383, %v1383
  %v1392 = vpack.c.bf16 %v1384, %v1384
  %v1393 = vpack.c.bf16 %v1385, %v1385
  %v1394 = vpack.c.bf16 %v1386, %v1386
  %v1396 = vunpack.c.l.b16 %v1118
  %v1397 = vpack.c.b16 %v1396, %v1396
  %1398 = vrot.lane.b32.xlu0 %v1397, 96
  %v1399 = vpop.permute.xlu0 %1398
  %v1401 = vsel %vm202, %v1387, 0
  %vm1403 = vcmask 1043456
  %v1405 = vsel %vm1403, %v1399, 0
  %1407 = vmatpush.bf16.msra.mxu0 0
  %1408 = vmatpush.bf16.msra.mxu0 0
  %1409 = vmatpush.bf16.msra.mxu0 0
  %1410 = vmatpush.bf16.msra.mxu0 0
  %1411 = vmatpush.bf16.msra.mxu0 0
  %1412 = vmatpush.bf16.msra.mxu0 0
  %1413 = vmatpush.bf16.msra.mxu0 0
  %1414 = vmatpush.bf16.msra.mxu0 %v1405
  %1415 = vmatmul.bf16.gmra.mxu0 %v1401
  %v1416 = vpop.f32.mrf.mxu0
  %v1417 = vadd.f32 0.0, %v1416
  %v1418 = vpop.f32.mrf.mxu0
  %1419 = vdwg.mxu0
  %v1421 = vunpack.c.l.b16 %v1119
  %v1422 = vpack.c.b16 %v1421, %v1421
  %1423 = vrot.lane.b32.xlu0 %v1422, 96
  %v1424 = vpop.permute.xlu0 %1423
  %v1426 = vsel %vm202, %v1388, 0
  %v1429 = vsel %vm1403, %v1424, 0
  %1431 = vmatpush.bf16.msra.mxu0 0
  %1432 = vmatpush.bf16.msra.mxu0 0
  %1433 = vmatpush.bf16.msra.mxu0 0
  %1434 = vmatpush.bf16.msra.mxu0 0
  %1435 = vmatpush.bf16.msra.mxu0 0
  %1436 = vmatpush.bf16.msra.mxu0 0
  %1437 = vmatpush.bf16.msra.mxu0 0
  %1438 = vmatpush.bf16.msra.mxu0 %v1429
  %1439 = vmatmul.bf16.gmra.mxu0 %v1426
  %v1440 = vpop.f32.mrf.mxu0
  %v1441 = vadd.f32 0.0, %v1440
  %v1442 = vpop.f32.mrf.mxu0
  %1443 = vdwg.mxu0
  %v1445 = vunpack.c.l.b16 %v1120
  %v1446 = vpack.c.b16 %v1445, %v1445
  %1447 = vrot.lane.b32.xlu0 %v1446, 96
  %v1448 = vpop.permute.xlu0 %1447
  %v1450 = vsel %vm202, %v1389, 0
  %v1453 = vsel %vm1403, %v1448, 0
  %1455 = vmatpush.bf16.msra.mxu0 0
  %1456 = vmatpush.bf16.msra.mxu0 0
  %1457 = vmatpush.bf16.msra.mxu0 0
  %1458 = vmatpush.bf16.msra.mxu0 0
  %1459 = vmatpush.bf16.msra.mxu0 0
  %1460 = vmatpush.bf16.msra.mxu0 0
  %1461 = vmatpush.bf16.msra.mxu0 0
  %1462 = vmatpush.bf16.msra.mxu0 %v1453
  %1463 = vmatmul.bf16.gmra.mxu0 %v1450
  %v1464 = vpop.f32.mrf.mxu0
  %v1465 = vadd.f32 0.0, %v1464
  %v1466 = vpop.f32.mrf.mxu0
  %1467 = vdwg.mxu0
  %v1469 = vunpack.c.l.b16 %v1121
  %v1470 = vpack.c.b16 %v1469, %v1469
  %1471 = vrot.lane.b32.xlu0 %v1470, 96
  %v1472 = vpop.permute.xlu0 %1471
  %v1474 = vsel %vm202, %v1390, 0
  %v1477 = vsel %vm1403, %v1472, 0
  %1479 = vmatpush.bf16.msra.mxu0 0
  %1480 = vmatpush.bf16.msra.mxu0 0
  %1481 = vmatpush.bf16.msra.mxu0 0
  %1482 = vmatpush.bf16.msra.mxu0 0
  %1483 = vmatpush.bf16.msra.mxu0 0
  %1484 = vmatpush.bf16.msra.mxu0 0
  %1485 = vmatpush.bf16.msra.mxu0 0
  %1486 = vmatpush.bf16.msra.mxu0 %v1477
  %1487 = vmatmul.bf16.gmra.mxu0 %v1474
  %v1488 = vpop.f32.mrf.mxu0
  %v1489 = vadd.f32 0.0, %v1488
  %v1490 = vpop.f32.mrf.mxu0
  %1491 = vdwg.mxu0
  %v1493 = vunpack.c.l.b16 %v1122
  %v1494 = vpack.c.b16 %v1493, %v1493
  %1495 = vrot.lane.b32.xlu0 %v1494, 96
  %v1496 = vpop.permute.xlu0 %1495
  %v1498 = vsel %vm202, %v1391, 0
  %v1501 = vsel %vm1403, %v1496, 0
  %1503 = vmatpush.bf16.msra.mxu0 0
  %1504 = vmatpush.bf16.msra.mxu0 0
  %1505 = vmatpush.bf16.msra.mxu0 0
  %1506 = vmatpush.bf16.msra.mxu0 0
  %1507 = vmatpush.bf16.msra.mxu0 0
  %1508 = vmatpush.bf16.msra.mxu0 0
  %1509 = vmatpush.bf16.msra.mxu0 0
  %1510 = vmatpush.bf16.msra.mxu0 %v1501
  %1511 = vmatmul.bf16.gmra.mxu0 %v1498
  %v1512 = vpop.f32.mrf.mxu0
  %v1513 = vadd.f32 0.0, %v1512
  %v1514 = vpop.f32.mrf.mxu0
  %1515 = vdwg.mxu0
  %v1517 = vunpack.c.l.b16 %v1123
  %v1518 = vpack.c.b16 %v1517, %v1517
  %1519 = vrot.lane.b32.xlu0 %v1518, 96
  %v1520 = vpop.permute.xlu0 %1519
  %v1522 = vsel %vm202, %v1392, 0
  %v1525 = vsel %vm1403, %v1520, 0
  %1527 = vmatpush.bf16.msra.mxu0 0
  %1528 = vmatpush.bf16.msra.mxu0 0
  %1529 = vmatpush.bf16.msra.mxu0 0
  %1530 = vmatpush.bf16.msra.mxu0 0
  %1531 = vmatpush.bf16.msra.mxu0 0
  %1532 = vmatpush.bf16.msra.mxu0 0
  %1533 = vmatpush.bf16.msra.mxu0 0
  %1534 = vmatpush.bf16.msra.mxu0 %v1525
  %1535 = vmatmul.bf16.gmra.mxu0 %v1522
  %v1536 = vpop.f32.mrf.mxu0
  %v1537 = vadd.f32 0.0, %v1536
  %v1538 = vpop.f32.mrf.mxu0
  %1539 = vdwg.mxu0
  %v1541 = vunpack.c.l.b16 %v1124
  %v1542 = vpack.c.b16 %v1541, %v1541
  %1543 = vrot.lane.b32.xlu0 %v1542, 96
  %v1544 = vpop.permute.xlu0 %1543
  %v1546 = vsel %vm202, %v1393, 0
  %v1549 = vsel %vm1403, %v1544, 0
  %1551 = vmatpush.bf16.msra.mxu0 0
  %1552 = vmatpush.bf16.msra.mxu0 0
  %1553 = vmatpush.bf16.msra.mxu0 0
  %1554 = vmatpush.bf16.msra.mxu0 0
  %1555 = vmatpush.bf16.msra.mxu0 0
  %1556 = vmatpush.bf16.msra.mxu0 0
  %1557 = vmatpush.bf16.msra.mxu0 0
  %1558 = vmatpush.bf16.msra.mxu0 %v1549
  %1559 = vmatmul.bf16.gmra.mxu0 %v1546
  %v1560 = vpop.f32.mrf.mxu0
  %v1561 = vadd.f32 0.0, %v1560
  %v1562 = vpop.f32.mrf.mxu0
  %1563 = vdwg.mxu0
  %v1565 = vunpack.c.l.b16 %v1125
  %v1566 = vpack.c.b16 %v1565, %v1565
  %1567 = vrot.lane.b32.xlu0 %v1566, 96
  %v1568 = vpop.permute.xlu0 %1567
  %v1570 = vsel %vm202, %v1394, 0
  %v1573 = vsel %vm1403, %v1568, 0
  %1575 = vmatpush.bf16.msra.mxu0 0
  %1576 = vmatpush.bf16.msra.mxu0 0
  %1577 = vmatpush.bf16.msra.mxu0 0
  %1578 = vmatpush.bf16.msra.mxu0 0
  %1579 = vmatpush.bf16.msra.mxu0 0
  %1580 = vmatpush.bf16.msra.mxu0 0
  %1581 = vmatpush.bf16.msra.mxu0 0
  %1582 = vmatpush.bf16.msra.mxu0 %v1573
  %1583 = vmatmul.bf16.gmra.mxu0 %v1570
  %v1584 = vpop.f32.mrf.mxu0
  %v1585 = vadd.f32 0.0, %v1584
  %v1586 = vpop.f32.mrf.mxu0
  %1587 = vdwg.mxu0
  %1589 = vrot.lane.b32.xlu0 %v1441, 8
  %v1590 = vpop.permute.xlu0 %1589
  %1593 = vrot.lane.b32.xlu0 %v1465, 16
  %v1594 = vpop.permute.xlu0 %1593
  %1597 = vrot.lane.b32.xlu0 %v1489, 24
  %v1598 = vpop.permute.xlu0 %1597
  %v1600 = vsel %vm202, %v1417, %v1590
  %v1601 = vsel %vm686, %v1600, %v1594
  %v1602 = vsel %vm688, %v1601, %v1598
  %1604 = vrot.lane.b32.xlu0 %v1537, 8
  %v1605 = vpop.permute.xlu0 %1604
  %1608 = vrot.lane.b32.xlu0 %v1561, 16
  %v1609 = vpop.permute.xlu0 %1608
  %1612 = vrot.lane.b32.xlu0 %v1585, 24
  %v1613 = vpop.permute.xlu0 %1612
  %v1615 = vsel %vm202, %v1513, %v1605
  %v1616 = vsel %vm686, %v1615, %v1609
  %v1617 = vsel %vm688, %v1616, %v1613
  %v1619 = vrot.slane %v1617, 2
  %v1621 = vsel %vm708, %v1602, %v1619
  %v1622 = vld [vmem:[%s16] sm:$0xf]
  %v1623 = vld [vmem:[%s16 + $0x4] sm:$0xf]
  %v1624 = vld [vmem:[%s16 + $0x8] sm:$0xf]
  %v1625 = vld [vmem:[%s16 + $0xc] sm:$0xf]
  %v1626 = vld [vmem:[%s17] sm:$0x1]
  %v1627 = vpack.c.bf16 %v1619, %v1621
  %v1629 = vperm.slane %v1626, 0
  %v1635 = vunpack.c.l.b16 %v1622
  %v1636 = vunpack.c.l.b16 %v1623
  %v1637 = vunpack.c.l.b16 %v1624
  %v1638 = vunpack.c.l.b16 %v1625
  %v1639 = vpack.c.b16 %v1636, %v1635
  %v1640 = vpack.c.b16 %v1638, %v1637
  %v1644 = vsel %vm134, %v1627, 0
  %1646 = vmatpush.bf16.msra.mxu0 0
  %1647 = vmatpush.bf16.msra.mxu0 0
  %1648 = vmatpush.bf16.msra.mxu0 0
  %1649 = vmatpush.bf16.msra.mxu0 0
  %1650 = vmatpush.bf16.msra.mxu0 0
  %1651 = vmatpush.bf16.msra.mxu0 0
  %1652 = vmatpush.bf16.msra.mxu0 %v1640
  %1653 = vmatpush.bf16.msra.mxu0 %v1639
  %1654 = vmatmul.bf16.gmra.mxu0 %v1644
  %v1655 = vpop.f32.mrf.mxu0
  %v1656 = vadd.f32 %v1629, %v1655
  %v1657 = vpop.f32.mrf.mxu0
  %v1658 = vadd.f32 %v1629, %v1657
  %1659 = vdwg.mxu0
  %v1662 = vrot.slane %v1656, 2
  %v1663 = vrot.slane %v1656, 4
  %v1664 = vrot.slane %v1656, 6
  %v1665 = vrot.slane %v1658, 2
  %v1670 = vadd.f32 %v960, %v1656
  %v1671 = vadd.f32 %v961, %v1662
  %v1672 = vadd.f32 %v962, %v1663
  %v1673 = vadd.f32 %v963, %v1664
  %v1674 = vadd.f32 %v964, %v1658
  %v1675 = vadd.f32 %v965, %v1665
  %v1676 = vld [vmem:[%s18] sm:$0x1]
  %v1677 = vld [vmem:[%s19] sm:$0x1]
  %1684 = vst [vmem:[#allocation1] ss:$4 sm:$0xff] %v1670
  %s1685 = scalar_lea.vmem [#allocation1], 1
  %1686 = vst [vmem:[%s1685] ss:$4 sm:$0xff] %v1671
  %s1687 = scalar_lea.vmem [#allocation1], 2
  %1688 = vst [vmem:[%s1687] ss:$4 sm:$0xff] %v1672
  %s1689 = scalar_lea.vmem [#allocation1], 3
  %1690 = vst [vmem:[%s1689] ss:$4 sm:$0xff] %v1673
  %s1691 = scalar_lea.vmem [#allocation1], 32
  %1692 = vst [vmem:[%s1691] ss:$4 sm:$0xff] %v1674
  %s1693 = scalar_lea.vmem [#allocation1], 33
  %1694 = vst [vmem:[%s1693] ss:$4 sm:$0xff] %v1675
  %v1695 = vld.sshfl [vmem:[#allocation1] sm:$0xff pattern:$0x73625140]
  %v1696 = vld.sshfl [vmem:[#allocation1 + $0x20] sm:$0xff pattern:$0x73625140]
  %v1699 = vsel %vm134, %v1695, 0.0
  %1700 = vadd.xlane.f32.xlu0 %v1699
  %v1701 = vpop.xlane.xlu0 %1700
  %v1702 = vsel %vm790, %v1696, 0.0
  %1703 = vadd.xlane.f32.xlu0 %v1702
  %v1704 = vpop.xlane.xlu0 %1703
  %v1705 = vmul.f32 %v1701, %v800
  %v1706 = vmul.f32 %v1704, %v800
  %v1710 = vunpack.c.l.s4 269488144
  %v1711 = vunpack.c.0.s8 %v1710
  %v1712 = vperm.slane %v1705, %v1711
  %v1714 = vunpack.c.l.s4 842150450
  %v1715 = vunpack.c.0.s8 %v1714
  %v1716 = vperm.slane %v1705, %v1715
  %v1718 = vunpack.c.l.s4 1414812756
  %v1719 = vunpack.c.0.s8 %v1718
  %v1720 = vperm.slane %v1705, %v1719
  %v1722 = vunpack.c.l.s4 1987475062
  %v1723 = vunpack.c.0.s8 %v1722
  %v1724 = vperm.slane %v1705, %v1723
  %v1726 = vunpack.c.l.s4 269488144
  %v1727 = vunpack.c.0.s8 %v1726
  %v1728 = vperm.slane %v1706, %v1727
  %v1730 = vunpack.c.l.s4 842150450
  %v1731 = vunpack.c.0.s8 %v1730
  %v1732 = vperm.slane %v1706, %v1731
  %v1739 = vsub.f32 %v1670, %v1712
  %v1740 = vsub.f32 %v1671, %v1716
  %v1741 = vsub.f32 %v1672, %v1720
  %v1742 = vsub.f32 %v1673, %v1724
  %v1743 = vsub.f32 %v1674, %v1728
  %v1744 = vsub.f32 %v1675, %v1732
  %v1745 = vmul.f32 %v1739, %v1739
  %v1746 = vmul.f32 %v1740, %v1740
  %v1747 = vmul.f32 %v1741, %v1741
  %v1748 = vmul.f32 %v1742, %v1742
  %v1749 = vmul.f32 %v1743, %v1743
  %v1750 = vmul.f32 %v1744, %v1744
  %1757 = vst [vmem:[#allocation1] ss:$4 sm:$0xff] %v1745
  %s1758 = scalar_lea.vmem [#allocation1], 1
  %1759 = vst [vmem:[%s1758] ss:$4 sm:$0xff] %v1746
  %s1760 = scalar_lea.vmem [#allocation1], 2
  %1761 = vst [vmem:[%s1760] ss:$4 sm:$0xff] %v1747
  %s1762 = scalar_lea.vmem [#allocation1], 3
  %1763 = vst [vmem:[%s1762] ss:$4 sm:$0xff] %v1748
  %s1764 = scalar_lea.vmem [#allocation1], 32
  %1765 = vst [vmem:[%s1764] ss:$4 sm:$0xff] %v1749
  %s1766 = scalar_lea.vmem [#allocation1], 33
  %1767 = vst [vmem:[%s1766] ss:$4 sm:$0xff] %v1750
  %v1768 = vld.sshfl [vmem:[#allocation1] sm:$0xff pattern:$0x73625140]
  %v1769 = vld.sshfl [vmem:[#allocation1 + $0x20] sm:$0xff pattern:$0x73625140]
  %v1772 = vsel %vm134, %v1768, 0.0
  %1773 = vadd.xlane.f32.xlu0 %v1772
  %v1774 = vpop.xlane.xlu0 %1773
  %v1775 = vsel %vm790, %v1769, 0.0
  %1776 = vadd.xlane.f32.xlu0 %v1775
  %v1777 = vpop.xlane.xlu0 %1776
  %v1778 = vmul.f32 %v1774, %v800
  %v1779 = vmul.f32 %v1777, %v800
  %v1780 = vadd.f32 %v1778, 1e-05
  %v1781 = vadd.f32 %v1779, 1e-05
  %v1782 = vrsqrt.pop %v1780
  %v1783 = vmul.f32 %v1782, %v1780
  %v1784 = vmul.f32 %v1783, %v1782
  %v1785 = vmul.f32 0.5, %v1784
  %v1786 = vsub.f32 1.5, %v1785
  %v1787 = vmul.f32 %v1782, %v1786
  %vm1788 = vweird.f32 %v1780
  %vm1789 = vweird.f32 %v1782
  %vm1790 = vmor %vm1788, %vm1789
  %v1791 = vsel %vm1790, %v1782, %v1787
  %v1792 = vrsqrt.pop %v1781
  %v1793 = vmul.f32 %v1792, %v1781
  %v1794 = vmul.f32 %v1793, %v1792
  %v1795 = vmul.f32 0.5, %v1794
  %v1796 = vsub.f32 1.5, %v1795
  %v1797 = vmul.f32 %v1792, %v1796
  %vm1798 = vweird.f32 %v1781
  %vm1799 = vweird.f32 %v1792
  %vm1800 = vmor %vm1798, %vm1799
  %v1801 = vsel %vm1800, %v1792, %v1797
  %v1805 = vunpack.c.l.s4 269488144
  %v1806 = vunpack.c.0.s8 %v1805
  %v1807 = vperm.slane %v1791, %v1806
  %v1809 = vunpack.c.l.s4 842150450
  %v1810 = vunpack.c.0.s8 %v1809
  %v1811 = vperm.slane %v1791, %v1810
  %v1813 = vunpack.c.l.s4 1414812756
  %v1814 = vunpack.c.0.s8 %v1813
  %v1815 = vperm.slane %v1791, %v1814
  %v1817 = vunpack.c.l.s4 1987475062
  %v1818 = vunpack.c.0.s8 %v1817
  %v1819 = vperm.slane %v1791, %v1818
  %v1821 = vunpack.c.l.s4 269488144
  %v1822 = vunpack.c.0.s8 %v1821
  %v1823 = vperm.slane %v1801, %v1822
  %v1825 = vunpack.c.l.s4 842150450
  %v1826 = vunpack.c.0.s8 %v1825
  %v1827 = vperm.slane %v1801, %v1826
  %v1834 = vmul.f32 %v1739, %v1807
  %v1835 = vmul.f32 %v1740, %v1811
  %v1836 = vmul.f32 %v1741, %v1815
  %v1837 = vmul.f32 %v1742, %v1819
  %v1838 = vmul.f32 %v1743, %v1823
  %v1839 = vmul.f32 %v1744, %v1827
  %v1841 = vperm.slane %v1676, 0
  %v1843 = vrot.slane %v1841, 2
  %v1844 = vrot.slane %v1841, 4
  %v1845 = vrot.slane %v1841, 6
  %v1849 = vmul.f32 %v1834, %v1841
  %v1850 = vmul.f32 %v1835, %v1843
  %v1851 = vmul.f32 %v1836, %v1844
  %v1852 = vmul.f32 %v1837, %v1845
  %v1853 = vmul.f32 %v1838, %v1841
  %v1854 = vmul.f32 %v1839, %v1843
  %v1856 = vperm.slane %v1677, 0
  %v1858 = vrot.slane %v1856, 2
  %v1859 = vrot.slane %v1856, 4
  %v1860 = vrot.slane %v1856, 6
  %v1864 = vadd.f32 %v1849, %v1856
  %v1865 = vadd.f32 %v1850, %v1858
  %v1866 = vadd.f32 %v1851, %v1859
  %v1867 = vadd.f32 %v1852, %v1860
  %v1868 = vadd.f32 %v1853, %v1856
  %v1869 = vadd.f32 %v1854, %v1858
  %v1870 = vld [vmem:[%s20] sm:$0xf]
  %v1871 = vld [vmem:[%s20 + $0x4] sm:$0xf]
  %v1872 = vld [vmem:[%s20 + $0x8] sm:$0xf]
  %v1873 = vld [vmem:[%s20 + $0xc] sm:$0xf]
  %v1874 = vld [vmem:[%s21] sm:$0x1]
  %1881 = vst [vmem:[#allocation1] ss:$4 sm:$0xff] %v1864
  %s1882 = scalar_lea.vmem [#allocation1], 1
  %1883 = vst [vmem:[%s1882] ss:$4 sm:$0xff] %v1865
  %s1884 = scalar_lea.vmem [#allocation1], 2
  %1885 = vst [vmem:[%s1884] ss:$4 sm:$0xff] %v1866
  %s1886 = scalar_lea.vmem [#allocation1], 3
  %1887 = vst [vmem:[%s1886] ss:$4 sm:$0xff] %v1867
  %s1888 = scalar_lea.vmem [#allocation1], 32
  %1889 = vst [vmem:[%s1888] ss:$4 sm:$0xff] %v1868
  %s1890 = scalar_lea.vmem [#allocation1], 33
  %1891 = vst [vmem:[%s1890] ss:$4 sm:$0xff] %v1869
  %v1892 = vld.sshfl [vmem:[#allocation1] sm:$0xff pattern:$0x73625140]
  %v1893 = vld.sshfl [vmem:[#allocation1 + $0x20] sm:$0xff pattern:$0x73625140]
  %v1896 = vpack.c.bf16 %v1893, %v1892
  %v1898 = vperm.slane %v1874, 0
  %v1904 = vunpack.c.l.b16 %v1870
  %v1905 = vunpack.c.l.b16 %v1871
  %v1906 = vunpack.c.l.b16 %v1872
  %v1907 = vunpack.c.l.b16 %v1873
  %v1908 = vpack.c.b16 %v1905, %v1904
  %v1909 = vpack.c.b16 %v1907, %v1906
  %v1913 = vsel %vm134, %v1896, 0
  %1915 = vmatpush.bf16.msra.mxu0 0
  %1916 = vmatpush.bf16.msra.mxu0 0
  %1917 = vmatpush.bf16.msra.mxu0 0
  %1918 = vmatpush.bf16.msra.mxu0 0
  %1919 = vmatpush.bf16.msra.mxu0 0
  %1920 = vmatpush.bf16.msra.mxu0 0
  %1921 = vmatpush.bf16.msra.mxu0 %v1909
  %1922 = vmatpush.bf16.msra.mxu0 %v1908
  %1923 = vmatmul.bf16.gmra.mxu0 %v1913
  %v1924 = vpop.f32.mrf.mxu0
  %v1925 = vadd.f32 %v1898, %v1924
  %v1926 = vpop.f32.mrf.mxu0
  %v1927 = vadd.f32 %v1898, %v1926
  %1928 = vdwg.mxu0
  %v1929 = vmax.f32 %v1925, 0.0
  %v1930 = vmax.f32 %v1927, 0.0
  %v1931 = vld [vmem:[%s22] sm:$0xf]
  %v1932 = vld [vmem:[%s22 + $0x4] sm:$0xf]
  %v1933 = vld [vmem:[%s22 + $0x8] sm:$0xf]
  %v1934 = vld [vmem:[%s22 + $0xc] sm:$0xf]
  %v1935 = vld [vmem:[%s22 + $0x10] sm:$0xf]
  %v1936 = vld [vmem:[%s22 + $0x14] sm:$0xf]
  %v1937 = vld [vmem:[%s22 + $0x18] sm:$0xf]
  %v1938 = vld [vmem:[%s22 + $0x1c] sm:$0xf]
  %v1939 = vld [vmem:[%s23] sm:$0x1]
  %v1940 = vpack.c.bf16 %v1930, %v1929
  %v1942 = vperm.slane %v1939, 0
  %v1952 = vunpack.c.l.b16 %v1931
  %v1953 = vunpack.c.l.b16 %v1932
  %v1954 = vunpack.c.l.b16 %v1933
  %v1955 = vunpack.c.l.b16 %v1934
  %v1956 = vunpack.c.l.b16 %v1935
  %v1957 = vunpack.c.l.b16 %v1936
  %v1958 = vunpack.c.l.b16 %v1937
  %v1959 = vunpack.c.l.b16 %v1938
  %v1960 = vpack.c.b16 %v1953, %v1952
  %v1961 = vpack.c.b16 %v1955, %v1954
  %v1962 = vpack.c.b16 %v1957, %v1956
  %v1963 = vpack.c.b16 %v1959, %v1958
  %vm1968 = vcmask 523264
  %v1970 = vsel %vm1968, %v1940, 0
  %1972 = vmatpush.bf16.msra.mxu0 0
  %1973 = vmatpush.bf16.msra.mxu0 0
  %1974 = vmatpush.bf16.msra.mxu0 0
  %1975 = vmatpush.bf16.msra.mxu0 0
  %1976 = vmatpush.bf16.msra.mxu0 %v1963
  %1977 = vmatpush.bf16.msra.mxu0 %v1962
  %1978 = vmatpush.bf16.msra.mxu0 %v1961
  %1979 = vmatpush.bf16.msra.mxu0 %v1960
  %1980 = vmatmul.bf16.gmra.mxu0 %v1970
  %v1981 = vpop.f32.mrf.mxu0
  %v1982 = vadd.f32 %v1942, %v1981
  %v1983 = vpop.f32.mrf.mxu0
  %v1984 = vadd.f32 %v1942, %v1983
  %1985 = vdwg.mxu0
  %v1988 = vrot.slane %v1982, 2
  %v1989 = vrot.slane %v1982, 4
  %v1990 = vrot.slane %v1982, 6
  %v1991 = vrot.slane %v1984, 2
  %v1996 = vadd.f32 %v1864, %v1982
  %v1997 = vadd.f32 %v1865, %v1988
  %v1998 = vadd.f32 %v1866, %v1989
  %v1999 = vadd.f32 %v1867, %v1990
  %v2000 = vadd.f32 %v1868, %v1984
  %v2001 = vadd.f32 %v1869, %v1991
  %v2002 = vld [vmem:[%s24] sm:$0x1]
  %v2003 = vld [vmem:[%s25] sm:$0x1]
  %2010 = vst [vmem:[#allocation1] ss:$4 sm:$0xff] %v1996
  %s2011 = scalar_lea.vmem [#allocation1], 1
  %2012 = vst [vmem:[%s2011] ss:$4 sm:$0xff] %v1997
  %s2013 = scalar_lea.vmem [#allocation1], 2
  %2014 = vst [vmem:[%s2013] ss:$4 sm:$0xff] %v1998
  %s2015 = scalar_lea.vmem [#allocation1], 3
  %2016 = vst [vmem:[%s2015] ss:$4 sm:$0xff] %v1999
  %s2017 = scalar_lea.vmem [#allocation1], 32
  %2018 = vst [vmem:[%s2017] ss:$4 sm:$0xff] %v2000
  %s2019 = scalar_lea.vmem [#allocation1], 33
  %2020 = vst [vmem:[%s2019] ss:$4 sm:$0xff] %v2001
  %v2021 = vld.sshfl [vmem:[#allocation1] sm:$0xff pattern:$0x73625140]
  %v2022 = vld.sshfl [vmem:[#allocation1 + $0x20] sm:$0xff pattern:$0x73625140]
  %v2025 = vsel %vm134, %v2021, 0.0
  %2026 = vadd.xlane.f32.xlu0 %v2025
  %v2027 = vpop.xlane.xlu0 %2026
  %v2028 = vsel %vm790, %v2022, 0.0
  %2029 = vadd.xlane.f32.xlu0 %v2028
  %v2030 = vpop.xlane.xlu0 %2029
  %v2031 = vmul.f32 %v2027, %v800
  %v2032 = vmul.f32 %v2030, %v800
  %v2036 = vunpack.c.l.s4 269488144
  %v2037 = vunpack.c.0.s8 %v2036
  %v2038 = vperm.slane %v2031, %v2037
  %v2040 = vunpack.c.l.s4 842150450
  %v2041 = vunpack.c.0.s8 %v2040
  %v2042 = vperm.slane %v2031, %v2041
  %v2044 = vunpack.c.l.s4 1414812756
  %v2045 = vunpack.c.0.s8 %v2044
  %v2046 = vperm.slane %v2031, %v2045
  %v2048 = vunpack.c.l.s4 1987475062
  %v2049 = vunpack.c.0.s8 %v2048
  %v2050 = vperm.slane %v2031, %v2049
  %v2052 = vunpack.c.l.s4 269488144
  %v2053 = vunpack.c.0.s8 %v2052
  %v2054 = vperm.slane %v2032, %v2053
  %v2056 = vunpack.c.l.s4 842150450
  %v2057 = vunpack.c.0.s8 %v2056
  %v2058 = vperm.slane %v2032, %v2057
  %v2065 = vsub.f32 %v1996, %v2038
  %v2066 = vsub.f32 %v1997, %v2042
  %v2067 = vsub.f32 %v1998, %v2046
  %v2068 = vsub.f32 %v1999, %v2050
  %v2069 = vsub.f32 %v2000, %v2054
  %v2070 = vsub.f32 %v2001, %v2058
  %v2071 = vmul.f32 %v2065, %v2065
  %v2072 = vmul.f32 %v2066, %v2066
  %v2073 = vmul.f32 %v2067, %v2067
  %v2074 = vmul.f32 %v2068, %v2068
  %v2075 = vmul.f32 %v2069, %v2069
  %v2076 = vmul.f32 %v2070, %v2070
  %2083 = vst [vmem:[#allocation1] ss:$4 sm:$0xff] %v2071
  %s2084 = scalar_lea.vmem [#allocation1], 1
  %2085 = vst [vmem:[%s2084] ss:$4 sm:$0xff] %v2072
  %s2086 = scalar_lea.vmem [#allocation1], 2
  %2087 = vst [vmem:[%s2086] ss:$4 sm:$0xff] %v2073
  %s2088 = scalar_lea.vmem [#allocation1], 3
  %2089 = vst [vmem:[%s2088] ss:$4 sm:$0xff] %v2074
  %s2090 = scalar_lea.vmem [#allocation1], 32
  %2091 = vst [vmem:[%s2090] ss:$4 sm:$0xff] %v2075
  %s2092 = scalar_lea.vmem [#allocation1], 33
  %2093 = vst [vmem:[%s2092] ss:$4 sm:$0xff] %v2076
  %v2094 = vld.sshfl [vmem:[#allocation1] sm:$0xff pattern:$0x73625140]
  %v2095 = vld.sshfl [vmem:[#allocation1 + $0x20] sm:$0xff pattern:$0x73625140]
  %v2098 = vsel %vm134, %v2094, 0.0
  %2099 = vadd.xlane.f32.xlu0 %v2098
  %v2100 = vpop.xlane.xlu0 %2099
  %v2101 = vsel %vm790, %v2095, 0.0
  %2102 = vadd.xlane.f32.xlu0 %v2101
  %v2103 = vpop.xlane.xlu0 %2102
  %v2104 = vmul.f32 %v2100, %v800
  %v2105 = vmul.f32 %v2103, %v800
  %v2106 = vadd.f32 %v2104, 1e-05
  %v2107 = vadd.f32 %v2105, 1e-05
  %v2108 = vrsqrt.pop %v2106
  %v2109 = vmul.f32 %v2108, %v2106
  %v2110 = vmul.f32 %v2109, %v2108
  %v2111 = vmul.f32 0.5, %v2110
  %v2112 = vsub.f32 1.5, %v2111
  %v2113 = vmul.f32 %v2108, %v2112
  %vm2114 = vweird.f32 %v2106
  %vm2115 = vweird.f32 %v2108
  %vm2116 = vmor %vm2114, %vm2115
  %v2117 = vsel %vm2116, %v2108, %v2113
  %v2118 = vrsqrt.pop %v2107
  %v2119 = vmul.f32 %v2118, %v2107
  %v2120 = vmul.f32 %v2119, %v2118
  %v2121 = vmul.f32 0.5, %v2120
  %v2122 = vsub.f32 1.5, %v2121
  %v2123 = vmul.f32 %v2118, %v2122
  %vm2124 = vweird.f32 %v2107
  %vm2125 = vweird.f32 %v2118
  %vm2126 = vmor %vm2124, %vm2125
  %v2127 = vsel %vm2126, %v2118, %v2123
  %v2131 = vunpack.c.l.s4 269488144
  %v2132 = vunpack.c.0.s8 %v2131
  %v2133 = vperm.slane %v2117, %v2132
  %v2135 = vunpack.c.l.s4 842150450
  %v2136 = vunpack.c.0.s8 %v2135
  %v2137 = vperm.slane %v2117, %v2136
  %v2139 = vunpack.c.l.s4 1414812756
  %v2140 = vunpack.c.0.s8 %v2139
  %v2141 = vperm.slane %v2117, %v2140
  %v2143 = vunpack.c.l.s4 1987475062
  %v2144 = vunpack.c.0.s8 %v2143
  %v2145 = vperm.slane %v2117, %v2144
  %v2147 = vunpack.c.l.s4 269488144
  %v2148 = vunpack.c.0.s8 %v2147
  %v2149 = vperm.slane %v2127, %v2148
  %v2151 = vunpack.c.l.s4 842150450
  %v2152 = vunpack.c.0.s8 %v2151
  %v2153 = vperm.slane %v2127, %v2152
  %v2160 = vmul.f32 %v2065, %v2133
  %v2161 = vmul.f32 %v2066, %v2137
  %v2162 = vmul.f32 %v2067, %v2141
  %v2163 = vmul.f32 %v2068, %v2145
  %v2164 = vmul.f32 %v2069, %v2149
  %v2165 = vmul.f32 %v2070, %v2153
  %v2167 = vperm.slane %v2002, 0
  %v2169 = vrot.slane %v2167, 2
  %v2170 = vrot.slane %v2167, 4
  %v2171 = vrot.slane %v2167, 6
  %v2175 = vmul.f32 %v2160, %v2167
  %v2176 = vmul.f32 %v2161, %v2169
  %v2177 = vmul.f32 %v2162, %v2170
  %v2178 = vmul.f32 %v2163, %v2171
  %v2179 = vmul.f32 %v2164, %v2167
  %v2180 = vmul.f32 %v2165, %v2169
  %v2182 = vperm.slane %v2003, 0
  %v2184 = vrot.slane %v2182, 2
  %v2185 = vrot.slane %v2182, 4
  %v2186 = vrot.slane %v2182, 6
  %v2190 = vadd.f32 %v2175, %v2182
  %v2191 = vadd.f32 %v2176, %v2184
  %v2192 = vadd.f32 %v2177, %v2185
  %v2193 = vadd.f32 %v2178, %v2186
  %v2194 = vadd.f32 %v2179, %v2182
  %v2195 = vadd.f32 %v2180, %v2184
  %2202 = vst [vmem:[#allocation1] ss:$4 sm:$0xff] %v2190
  %s2203 = scalar_lea.vmem [#allocation1], 1
  %2204 = vst [vmem:[%s2203] ss:$4 sm:$0xff] %v2191
  %s2205 = scalar_lea.vmem [#allocation1], 2
  %2206 = vst [vmem:[%s2205] ss:$4 sm:$0xff] %v2192
  %v2207 = vld.sshfl [vmem:[#allocation1] sm:$0xff pattern:$0x73625140]
  %s2208 = scalar_lea.vmem [#allocation1], 32
  %2209 = vst [vmem:[%s2208] ss:$4 sm:$0xff] %v2193
  %s2210 = scalar_lea.vmem [#allocation1], 33
  %2211 = vst [vmem:[%s2210] ss:$4 sm:$0xff] %v2194
  %s2212 = scalar_lea.vmem [#allocation1], 34
  %2213 = vst [vmem:[%s2212] ss:$4 sm:$0xff] %v2195
  %v2214 = vld.sshfl [vmem:[#allocation1 + $0x20] sm:$0xff pattern:$0x73625140]
  %vm2217 = vcmask 259072
  %2218 = vst.msk [vmem:[%s26] sm:$0x3f] %vm2217, %v2207
  %2219 = vst.msk [vmem:[%s26 + $0x8] sm:$0x3f] %vm2217, %v2214
  // Predicated region
  $region106: #{seq2seq_forward.8} parent=0 // pred_check
    _
  $region107: #{seq2seq_forward.8} parent=0 // pred_check_branch
    %2221 = sbr.rel (0) target = $region109
  $region108: #{seq2seq_forward.8} parent=0 // pred_region
    _
  $region109: #{seq2seq_forward.8} parent=0 // pred_fallthru
    _
  // Predicated region
  $region110: #{seq2seq_forward.8} parent=0 // pred_check
    _
  $region111: #{seq2seq_forward.8} parent=0 // pred_check_branch
    %2223 = sbr.rel (0) target = $region113
  $region112: #{seq2seq_forward.8} parent=0 // pred_region
    _
  $region113: #{seq2seq_forward.8} parent=0 // pred_fallthru
    _

// kernel: seq2seq_forward.7
$region0: #{seq2seq_forward.7}
  #allocation0 [shape = 'u32[]', space=smem, size = 0x4, offset = 0x4, fixed_abs, tag = 'smem constant byte address 0x4 - core index']
  #allocation1 [shape = 'u32[72,128]{1,0:T(1,128)}', space=vmem, size = 0x9000, scoped, tag = 'internal scratch']
  %s0 = inlined_call_operand.vmem [shape: f32[2,6,32], index: 0, kind: input, shape index: {}]
  %s1 = inlined_call_operand.vmem [shape: f32[2,8,32], index: 1, kind: input, shape index: {}]
  %s2 = inlined_call_operand.vmem [shape: f32[6,6], index: 2, kind: input, shape index: {}]
  %s3 = inlined_call_operand.vmem [shape: f32[2,6], index: 3, kind: input, shape index: {}]
  %s4 = inlined_call_operand.vmem [shape: f32[2,8], index: 4, kind: input, shape index: {}]
  %s5 = inlined_call_operand.vmem [shape: f32[6,32], index: 5, kind: input, shape index: {}]
  %s6 = inlined_call_operand.vmem [shape: bf16[32,96], index: 6, kind: input, shape index: {}]
  %s7 = inlined_call_operand.vmem [shape: f32[1,96], index: 7, kind: input, shape index: {}]
  %s8 = inlined_call_operand.vmem [shape: bf16[32,32], index: 8, kind: input, shape index: {}]
  %s9 = inlined_call_operand.vmem [shape: f32[1,32], index: 9, kind: input, shape index: {}]
  %s10 = inlined_call_operand.vmem [shape: f32[1,32], index: 10, kind: input, shape index: {}]
  %s11 = inlined_call_operand.vmem [shape: f32[1,32], index: 11, kind: input, shape index: {}]
  %s12 = inlined_call_operand.vmem [shape: bf16[32,32], index: 12, kind: input, shape index: {}]
  %s13 = inlined_call_operand.vmem [shape: f32[1,32], index: 13, kind: input, shape index: {}]
  %s14 = inlined_call_operand.vmem [shape: bf16[32,64], index: 14, kind: input, shape index: {}]
  %s15 = inlined_call_operand.vmem [shape: f32[1,64], index: 15, kind: input, shape index: {}]
  %s16 = inlined_call_operand.vmem [shape: bf16[32,32], index: 16, kind: input, shape index: {}]
  %s17 = inlined_call_operand.vmem [shape: f32[1,32], index: 17, kind: input, shape index: {}]
  %s18 = inlined_call_operand.vmem [shape: f32[1,32], index: 18, kind: input, shape index: {}]
  %s19 = inlined_call_operand.vmem [shape: f32[1,32], index: 19, kind: input, shape index: {}]
  %s20 = inlined_call_operand.vmem [shape: bf16[32,64], index: 20, kind: input, shape index: {}]
  %s21 = inlined_call_operand.vmem [shape: f32[1,64], index: 21, kind: input, shape index: {}]
  %s22 = inlined_call_operand.vmem [shape: bf16[64,32], index: 22, kind: input, shape index: {}]
  %s23 = inlined_call_operand.vmem [shape: f32[1,32], index: 23, kind: input, shape index: {}]
  %s24 = inlined_call_operand.vmem [shape: f32[1,32], index: 24, kind: input, shape index: {}]
  %s25 = inlined_call_operand.vmem [shape: f32[1,32], index: 25, kind: input, shape index: {}]
  %s26 = inlined_call_operand.vmem [shape: f32[2,6,32], index: 26, kind: output, shape index: {}]
  %s27 = sld [smem:[#allocation0]]
  $region114: #{seq2seq_forward.7} parent=0
    _
  %s29 = ssub.s32 1, %s27
  %s30 = scalar_select 0, %s29, %s27
  // Predicated region
  $region2: #{seq2seq_forward.7} parent=0 // pred_check
    _
  $region3: #{seq2seq_forward.7} parent=0 // pred_check_branch
    %32 = sbr.rel (0) target = $region5
  $region4: #{seq2seq_forward.7} parent=0 // pred_region
    _
  $region5: #{seq2seq_forward.7} parent=0 // pred_fallthru
    _
  // Predicated region
  $region6: #{seq2seq_forward.7} parent=0 // pred_check
    _
  $region7: #{seq2seq_forward.7} parent=0 // pred_check_branch
    %34 = sbr.rel (0) target = $region9
  $region8: #{seq2seq_forward.7} parent=0 // pred_region
    _
  $region9: #{seq2seq_forward.7} parent=0 // pred_fallthru
    _
  // Predicated region
  $region10: #{seq2seq_forward.7} parent=0 // pred_check
    _
  $region11: #{seq2seq_forward.7} parent=0 // pred_check_branch
    %36 = sbr.rel (0) target = $region13
  $region12: #{seq2seq_forward.7} parent=0 // pred_region
    _
  $region13: #{seq2seq_forward.7} parent=0 // pred_fallthru
    _
  // Predicated region
  $region14: #{seq2seq_forward.7} parent=0 // pred_check
    _
  $region15: #{seq2seq_forward.7} parent=0 // pred_check_branch
    %38 = sbr.rel (0) target = $region17
  $region16: #{seq2seq_forward.7} parent=0 // pred_region
    _
  $region17: #{seq2seq_forward.7} parent=0 // pred_fallthru
    _
  // Predicated region
  $region18: #{seq2seq_forward.7} parent=0 // pred_check
    _
  $region19: #{seq2seq_forward.7} parent=0 // pred_check_branch
    %40 = sbr.rel (0) target = $region21
  $region20: #{seq2seq_forward.7} parent=0 // pred_region
    _
  $region21: #{seq2seq_forward.7} parent=0 // pred_fallthru
    _
  // Predicated region
  $region22: #{seq2seq_forward.7} parent=0 // pred_check
    _
  $region23: #{seq2seq_forward.7} parent=0 // pred_check_branch
    %42 = sbr.rel (0) target = $region25
  $region24: #{seq2seq_forward.7} parent=0 // pred_region
    _
  $region25: #{seq2seq_forward.7} parent=0 // pred_fallthru
    _
  // Predicated region
  $region26: #{seq2seq_forward.7} parent=0 // pred_check
    _
  $region27: #{seq2seq_forward.7} parent=0 // pred_check_branch
    %44 = sbr.rel (0) target = $region29
  $region28: #{seq2seq_forward.7} parent=0 // pred_region
    _
  $region29: #{seq2seq_forward.7} parent=0 // pred_fallthru
    _
  // Predicated region
  $region30: #{seq2seq_forward.7} parent=0 // pred_check
    _
  $region31: #{seq2seq_forward.7} parent=0 // pred_check_branch
    %46 = sbr.rel (0) target = $region33
  $region32: #{seq2seq_forward.7} parent=0 // pred_region
    _
  $region33: #{seq2seq_forward.7} parent=0 // pred_fallthru
    _
  // Predicated region
  $region34: #{seq2seq_forward.7} parent=0 // pred_check
    _
  $region35: #{seq2seq_forward.7} parent=0 // pred_check_branch
    %48 = sbr.rel (0) target = $region37
  $region36: #{seq2seq_forward.7} parent=0 // pred_region
    _
  $region37: #{seq2seq_forward.7} parent=0 // pred_fallthru
    _
  // Predicated region
  $region38: #{seq2seq_forward.7} parent=0 // pred_check
    _
  $region39: #{seq2seq_forward.7} parent=0 // pred_check_branch
    %50 = sbr.rel (0) target = $region41
  $region40: #{seq2seq_forward.7} parent=0 // pred_region
    _
  $region41: #{seq2seq_forward.7} parent=0 // pred_fallthru
    _
  // Predicated region
  $region42: #{seq2seq_forward.7} parent=0 // pred_check
    _
  $region43: #{seq2seq_forward.7} parent=0 // pred_check_branch
    %52 = sbr.rel (0) target = $region45
  $region44: #{seq2seq_forward.7} parent=0 // pred_region
    _
  $region45: #{seq2seq_forward.7} parent=0 // pred_fallthru
    _
  // Predicated region
  $region46: #{seq2seq_forward.7} parent=0 // pred_check
    _
  $region47: #{seq2seq_forward.7} parent=0 // pred_check_branch
    %54 = sbr.rel (0) target = $region49
  $region48: #{seq2seq_forward.7} parent=0 // pred_region
    _
  $region49: #{seq2seq_forward.7} parent=0 // pred_fallthru
    _
  // Predicated region
  $region50: #{seq2seq_forward.7} parent=0 // pred_check
    _
  $region51: #{seq2seq_forward.7} parent=0 // pred_check_branch
    %56 = sbr.rel (0) target = $region53
  $region52: #{seq2seq_forward.7} parent=0 // pred_region
    _
  $region53: #{seq2seq_forward.7} parent=0 // pred_fallthru
    _
  // Predicated region
  $region54: #{seq2seq_forward.7} parent=0 // pred_check
    _
  $region55: #{seq2seq_forward.7} parent=0 // pred_check_branch
    %58 = sbr.rel (0) target = $region57
  $region56: #{seq2seq_forward.7} parent=0 // pred_region
    _
  $region57: #{seq2seq_forward.7} parent=0 // pred_fallthru
    _
  // Predicated region
  $region58: #{seq2seq_forward.7} parent=0 // pred_check
    _
  $region59: #{seq2seq_forward.7} parent=0 // pred_check_branch
    %60 = sbr.rel (0) target = $region61
  $region60: #{seq2seq_forward.7} parent=0 // pred_region
    _
  $region61: #{seq2seq_forward.7} parent=0 // pred_fallthru
    _
  // Predicated region
  $region62: #{seq2seq_forward.7} parent=0 // pred_check
    _
  $region63: #{seq2seq_forward.7} parent=0 // pred_check_branch
    %62 = sbr.rel (0) target = $region65
  $region64: #{seq2seq_forward.7} parent=0 // pred_region
    _
  $region65: #{seq2seq_forward.7} parent=0 // pred_fallthru
    _
  // Predicated region
  $region66: #{seq2seq_forward.7} parent=0 // pred_check
    _
  $region67: #{seq2seq_forward.7} parent=0 // pred_check_branch
    %64 = sbr.rel (0) target = $region69
  $region68: #{seq2seq_forward.7} parent=0 // pred_region
    _
  $region69: #{seq2seq_forward.7} parent=0 // pred_fallthru
    _
  // Predicated region
  $region70: #{seq2seq_forward.7} parent=0 // pred_check
    _
  $region71: #{seq2seq_forward.7} parent=0 // pred_check_branch
    %66 = sbr.rel (0) target = $region73
  $region72: #{seq2seq_forward.7} parent=0 // pred_region
    _
  $region73: #{seq2seq_forward.7} parent=0 // pred_fallthru
    _
  // Predicated region
  $region74: #{seq2seq_forward.7} parent=0 // pred_check
    _
  $region75: #{seq2seq_forward.7} parent=0 // pred_check_branch
    %68 = sbr.rel (0) target = $region77
  $region76: #{seq2seq_forward.7} parent=0 // pred_region
    _
  $region77: #{seq2seq_forward.7} parent=0 // pred_fallthru
    _
  // Predicated region
  $region78: #{seq2seq_forward.7} parent=0 // pred_check
    _
  $region79: #{seq2seq_forward.7} parent=0 // pred_check_branch
    %70 = sbr.rel (0) target = $region81
  $region80: #{seq2seq_forward.7} parent=0 // pred_region
    _
  $region81: #{seq2seq_forward.7} parent=0 // pred_fallthru
    _
  // Predicated region
  $region82: #{seq2seq_forward.7} parent=0 // pred_check
    _
  $region83: #{seq2seq_forward.7} parent=0 // pred_check_branch
    %72 = sbr.rel (0) target = $region85
  $region84: #{seq2seq_forward.7} parent=0 // pred_region
    _
  $region85: #{seq2seq_forward.7} parent=0 // pred_fallthru
    _
  // Predicated region
  $region86: #{seq2seq_forward.7} parent=0 // pred_check
    _
  $region87: #{seq2seq_forward.7} parent=0 // pred_check_branch
    %74 = sbr.rel (0) target = $region89
  $region88: #{seq2seq_forward.7} parent=0 // pred_region
    _
  $region89: #{seq2seq_forward.7} parent=0 // pred_fallthru
    _
  // Predicated region
  $region90: #{seq2seq_forward.7} parent=0 // pred_check
    _
  $region91: #{seq2seq_forward.7} parent=0 // pred_check_branch
    %76 = sbr.rel (0) target = $region93
  $region92: #{seq2seq_forward.7} parent=0 // pred_region
    _
  $region93: #{seq2seq_forward.7} parent=0 // pred_fallthru
    _
  // Predicated region
  $region94: #{seq2seq_forward.7} parent=0 // pred_check
    _
  $region95: #{seq2seq_forward.7} parent=0 // pred_check_branch
    %78 = sbr.rel (0) target = $region97
  $region96: #{seq2seq_forward.7} parent=0 // pred_region
    _
  $region97: #{seq2seq_forward.7} parent=0 // pred_fallthru
    _
  // Predicated region
  $region98: #{seq2seq_forward.7} parent=0 // pred_check
    _
  $region99: #{seq2seq_forward.7} parent=0 // pred_check_branch
    %80 = sbr.rel (0) target = $region101
  $region100: #{seq2seq_forward.7} parent=0 // pred_region
    _
  $region101: #{seq2seq_forward.7} parent=0 // pred_fallthru
    _
  // Predicated region
  $region102: #{seq2seq_forward.7} parent=0 // pred_check
    _
  $region103: #{seq2seq_forward.7} parent=0 // pred_check_branch
    %82 = sbr.rel (0) target = $region105
  $region104: #{seq2seq_forward.7} parent=0 // pred_region
    _
  $region105: #{seq2seq_forward.7} parent=0 // pred_fallthru
    _
  %v84 = vld [vmem:[%s0] sm:$0x3f]
  %v85 = vld [vmem:[%s0 + $0x8] sm:$0x3f]
  %v86 = vmul.f32 %v84, 5.656854
  %v87 = vmul.f32 %v85, 5.656854
  %v88 = vld [vmem:[%s5] sm:$0x3f]
  %v89 = vadd.f32 %v86, %v88
  %v90 = vadd.f32 %v87, %v88
  %v93 = vrot.slane %v89, 2
  %v94 = vrot.slane %v89, 4
  %v95 = vrot.slane %v90, 2
  %v96 = vrot.slane %v90, 4
  %v101 = vld [vmem:[%s1] sm:$0xff]
  %v102 = vld [vmem:[%s1 + $0x8] sm:$0xff]
  %v103 = vld [vmem:[%s6] sm:$0xf]
  %v104 = vld [vmem:[%s6 + $0x4] sm:$0xf]
  %v105 = vld [vmem:[%s6 + $0x8] sm:$0xf]
  %v106 = vld [vmem:[%s6 + $0xc] sm:$0xf]
  %v107 = vld [vmem:[%s7] sm:$0x1]
  %108 = vst [vmem:[#allocation1] ss:$4 sm:$0xff] %v89
  %s109 = scalar_lea.vmem [#allocation1], 1
  %110 = vst [vmem:[%s109] ss:$4 sm:$0xff] %v93
  %s111 = scalar_lea.vmem [#allocation1], 2
  %112 = vst [vmem:[%s111] ss:$4 sm:$0xff] %v94
  %s113 = scalar_lea.vmem [#allocation1], 3
  %114 = vst [vmem:[%s113] ss:$4 sm:$0xff] %v90
  %s115 = scalar_lea.vmem [#allocation1], 32
  %116 = vst [vmem:[%s115] ss:$4 sm:$0xff] %v95
  %s117 = scalar_lea.vmem [#allocation1], 33
  %118 = vst [vmem:[%s117] ss:$4 sm:$0xff] %v96
  %v119 = vld.sshfl [vmem:[#allocation1] sm:$0xff pattern:$0x73625140]
  %v120 = vld.sshfl [vmem:[#allocation1 + $0x20] sm:$0xff pattern:$0x73625140]
  %v123 = vpack.c.bf16 %v120, %v119
  %v125 = vperm.slane %v107, 0
  %v131 = vunpack.c.l.b16 %v103
  %v132 = vunpack.c.l.b16 %v104
  %v133 = vunpack.c.l.b16 %v105
  %v134 = vunpack.c.l.b16 %v106
  %v135 = vpack.c.b16 %v132, %v131
  %v136 = vpack.c.b16 %v134, %v133
  %vm139 = vcmask 261120
  %v141 = vsel %vm139, %v123, 0
  %143 = vmatpush.bf16.msra.mxu0 0
  %144 = vmatpush.bf16.msra.mxu0 0
  %145 = vmatpush.bf16.msra.mxu0 0
  %146 = vmatpush.bf16.msra.mxu0 0
  %147 = vmatpush.bf16.msra.mxu0 0
  %148 = vmatpush.bf16.msra.mxu0 0
  %149 = vmatpush.bf16.msra.mxu0 %v136
  %150 = vmatpush.bf16.msra.mxu0 %v135
  %151 = vmatmul.bf16.gmra.mxu0 %v141
  %v152 = vpop.f32.mrf.mxu0
  %v153 = vadd.f32 %v125, %v152
  %v154 = vpop.f32.mrf.mxu0
  %v155 = vadd.f32 %v125, %v154
  %156 = vdwg.mxu0
  %v157 = vld [vmem:[%s2] sm:$0x3f]
  %v158 = vld [vmem:[%s3] sm:$0x3]
  %v160 = vrot.slane %v158, 1
  %v161 = vperm.slane %v158, 0
  %v162 = vperm.slane %v160, 0
  %v165 = vadd.f32 %v157, %v161
  %v166 = vadd.f32 %v157, %v162
  %v167 = vmax.f32 %v165, -1e+30
  %v168 = vmax.f32 %v166, -1e+30
  %170 = vrot.lane.b32.xlu0 %v153, 120
  %v171 = vpop.permute.xlu0 %170
  %173 = vrot.lane.b32.xlu0 %v153, 112
  %v174 = vpop.permute.xlu0 %173
  %176 = vrot.lane.b32.xlu0 %v153, 104
  %v177 = vpop.permute.xlu0 %176
  %vm180 = vcmask 1041408
  %v181 = vrot.slane %v153, 6
  %v182 = vrot.slane %v155, 6
  %v183 = vsel %vm180, %v181, %v182
  %185 = vrot.lane.b32.xlu0 %v183, 120
  %v186 = vpop.permute.xlu0 %185
  %188 = vrot.lane.b32.xlu0 %v183, 112
  %v189 = vpop.permute.xlu0 %188
  %191 = vrot.lane.b32.xlu0 %v183, 104
  %v192 = vpop.permute.xlu0 %191
  %v194 = vpack.c.bf16 %v153, %v153
  %v195 = vpack.c.bf16 %v171, %v171
  %v196 = vpack.c.bf16 %v174, %v174
  %v197 = vpack.c.bf16 %v177, %v177
  %v198 = vpack.c.bf16 %v183, %v183
  %v199 = vpack.c.bf16 %v186, %v186
  %v200 = vpack.c.bf16 %v189, %v189
  %v201 = vpack.c.bf16 %v192, %v192
  %v203 = vunpack.c.l.b16 %v194
  %v204 = vpack.c.b16 %v203, %v203
  %205 = vrot.lane.b32.xlu0 %v204, 96
  %v206 = vpop.permute.xlu0 %205
  %vm207 = vcmask 64512
  %v209 = vsel %vm207, %v194, 0
  %v212 = vsel %vm207, %v206, 0
  %214 = vmatpush.bf16.xpose.msra.mxu0 0
  %215 = vmatpush.bf16.xpose.msra.mxu0 0
  %216 = vmatpush.bf16.xpose.msra.mxu0 0
  %217 = vmatpush.bf16.xpose.msra.mxu0 0
  %218 = vmatpush.bf16.xpose.msra.mxu0 0
  %219 = vmatpush.bf16.xpose.msra.mxu0 0
  %220 = vmatpush.bf16.xpose.msra.mxu0 0
  %221 = vmatpush.bf16.xpose.msra.mxu0 %v212
  %222 = vmatmul.bf16.gmra.mxu0 %v209
  %v223 = vpop.f32.mrf.mxu0
  %v224 = vadd.f32 0.0, %v223
  %v225 = vpop.f32.mrf.mxu0
  %226 = vdwg.mxu0
  %v228 = vunpack.c.l.b16 %v195
  %v229 = vpack.c.b16 %v228, %v228
  %230 = vrot.lane.b32.xlu0 %v229, 96
  %v231 = vpop.permute.xlu0 %230
  %v233 = vsel %vm207, %v195, 0
  %v236 = vsel %vm207, %v231, 0
  %238 = vmatpush.bf16.xpose.msra.mxu0 0
  %239 = vmatpush.bf16.xpose.msra.mxu0 0
  %240 = vmatpush.bf16.xpose.msra.mxu0 0
  %241 = vmatpush.bf16.xpose.msra.mxu0 0
  %242 = vmatpush.bf16.xpose.msra.mxu0 0
  %243 = vmatpush.bf16.xpose.msra.mxu0 0
  %244 = vmatpush.bf16.xpose.msra.mxu0 0
  %245 = vmatpush.bf16.xpose.msra.mxu0 %v236
  %246 = vmatmul.bf16.gmra.mxu0 %v233
  %v247 = vpop.f32.mrf.mxu0
  %v248 = vadd.f32 0.0, %v247
  %v249 = vpop.f32.mrf.mxu0
  %250 = vdwg.mxu0
  %v252 = vunpack.c.l.b16 %v196
  %v253 = vpack.c.b16 %v252, %v252
  %254 = vrot.lane.b32.xlu0 %v253, 96
  %v255 = vpop.permute.xlu0 %254
  %v257 = vsel %vm207, %v196, 0
  %v260 = vsel %vm207, %v255, 0
  %262 = vmatpush.bf16.xpose.msra.mxu0 0
  %263 = vmatpush.bf16.xpose.msra.mxu0 0
  %264 = vmatpush.bf16.xpose.msra.mxu0 0
  %265 = vmatpush.bf16.xpose.msra.mxu0 0
  %266 = vmatpush.bf16.xpose.msra.mxu0 0
  %267 = vmatpush.bf16.xpose.msra.mxu0 0
  %268 = vmatpush.bf16.xpose.msra.mxu0 0
  %269 = vmatpush.bf16.xpose.msra.mxu0 %v260
  %270 = vmatmul.bf16.gmra.mxu0 %v257
  %v271 = vpop.f32.mrf.mxu0
  %v272 = vadd.f32 0.0, %v271
  %v273 = vpop.f32.mrf.mxu0
  %274 = vdwg.mxu0
  %v276 = vunpack.c.l.b16 %v197
  %v277 = vpack.c.b16 %v276, %v276
  %278 = vrot.lane.b32.xlu0 %v277, 96
  %v279 = vpop.permute.xlu0 %278
  %v281 = vsel %vm207, %v197, 0
  %v284 = vsel %vm207, %v279, 0
  %286 = vmatpush.bf16.xpose.msra.mxu0 0
  %287 = vmatpush.bf16.xpose.msra.mxu0 0
  %288 = vmatpush.bf16.xpose.msra.mxu0 0
  %289 = vmatpush.bf16.xpose.msra.mxu0 0
  %290 = vmatpush.bf16.xpose.msra.mxu0 0
  %291 = vmatpush.bf16.xpose.msra.mxu0 0
  %292 = vmatpush.bf16.xpose.msra.mxu0 0
  %293 = vmatpush.bf16.xpose.msra.mxu0 %v284
  %294 = vmatmul.bf16.gmra.mxu0 %v281
  %v295 = vpop.f32.mrf.mxu0
  %v296 = vadd.f32 0.0, %v295
  %v297 = vpop.f32.mrf.mxu0
  %298 = vdwg.mxu0
  %v300 = vunpack.c.l.b16 %v198
  %v301 = vpack.c.b16 %v300, %v300
  %302 = vrot.lane.b32.xlu0 %v301, 96
  %v303 = vpop.permute.xlu0 %302
  %v305 = vsel %vm207, %v198, 0
  %v308 = vsel %vm207, %v303, 0
  %310 = vmatpush.bf16.xpose.msra.mxu0 0
  %311 = vmatpush.bf16.xpose.msra.mxu0 0
  %312 = vmatpush.bf16.xpose.msra.mxu0 0
  %313 = vmatpush.bf16.xpose.msra.mxu0 0
  %314 = vmatpush.bf16.xpose.msra.mxu0 0
  %315 = vmatpush.bf16.xpose.msra.mxu0 0
  %316 = vmatpush.bf16.xpose.msra.mxu0 0
  %317 = vmatpush.bf16.xpose.msra.mxu0 %v308
  %318 = vmatmul.bf16.gmra.mxu0 %v305
  %v319 = vpop.f32.mrf.mxu0
  %v320 = vadd.f32 0.0, %v319
  %v321 = vpop.f32.mrf.mxu0
  %322 = vdwg.mxu0
  %v324 = vunpack.c.l.b16 %v199
  %v325 = vpack.c.b16 %v324, %v324
  %326 = vrot.lane.b32.xlu0 %v325, 96
  %v327 = vpop.permute.xlu0 %326
  %v329 = vsel %vm207, %v199, 0
  %v332 = vsel %vm207, %v327, 0
  %334 = vmatpush.bf16.xpose.msra.mxu0 0
  %335 = vmatpush.bf16.xpose.msra.mxu0 0
  %336 = vmatpush.bf16.xpose.msra.mxu0 0
  %337 = vmatpush.bf16.xpose.msra.mxu0 0
  %338 = vmatpush.bf16.xpose.msra.mxu0 0
  %339 = vmatpush.bf16.xpose.msra.mxu0 0
  %340 = vmatpush.bf16.xpose.msra.mxu0 0
  %341 = vmatpush.bf16.xpose.msra.mxu0 %v332
  %342 = vmatmul.bf16.gmra.mxu0 %v329
  %v343 = vpop.f32.mrf.mxu0
  %v344 = vadd.f32 0.0, %v343
  %v345 = vpop.f32.mrf.mxu0
  %346 = vdwg.mxu0
  %v348 = vunpack.c.l.b16 %v200
  %v349 = vpack.c.b16 %v348, %v348
  %350 = vrot.lane.b32.xlu0 %v349, 96
  %v351 = vpop.permute.xlu0 %350
  %v353 = vsel %vm207, %v200, 0
  %v356 = vsel %vm207, %v351, 0
  %358 = vmatpush.bf16.xpose.msra.mxu0 0
  %359 = vmatpush.bf16.xpose.msra.mxu0 0
  %360 = vmatpush.bf16.xpose.msra.mxu0 0
  %361 = vmatpush.bf16.xpose.msra.mxu0 0
  %362 = vmatpush.bf16.xpose.msra.mxu0 0
  %363 = vmatpush.bf16.xpose.msra.mxu0 0
  %364 = vmatpush.bf16.xpose.msra.mxu0 0
  %365 = vmatpush.bf16.xpose.msra.mxu0 %v356
  %366 = vmatmul.bf16.gmra.mxu0 %v353
  %v367 = vpop.f32.mrf.mxu0
  %v368 = vadd.f32 0.0, %v367
  %v369 = vpop.f32.mrf.mxu0
  %370 = vdwg.mxu0
  %v372 = vunpack.c.l.b16 %v201
  %v373 = vpack.c.b16 %v372, %v372
  %374 = vrot.lane.b32.xlu0 %v373, 96
  %v375 = vpop.permute.xlu0 %374
  %v377 = vsel %vm207, %v201, 0
  %v380 = vsel %vm207, %v375, 0
  %382 = vmatpush.bf16.xpose.msra.mxu0 0
  %383 = vmatpush.bf16.xpose.msra.mxu0 0
  %384 = vmatpush.bf16.xpose.msra.mxu0 0
  %385 = vmatpush.bf16.xpose.msra.mxu0 0
  %386 = vmatpush.bf16.xpose.msra.mxu0 0
  %387 = vmatpush.bf16.xpose.msra.mxu0 0
  %388 = vmatpush.bf16.xpose.msra.mxu0 0
  %389 = vmatpush.bf16.xpose.msra.mxu0 %v380
  %390 = vmatmul.bf16.gmra.mxu0 %v377
  %v391 = vpop.f32.mrf.mxu0
  %v392 = vadd.f32 0.0, %v391
  %v393 = vpop.f32.mrf.mxu0
  %394 = vdwg.mxu0
  %v395 = vmul.f32 %v224, 0.35355338
  %v396 = vmul.f32 %v248, 0.35355338
  %v397 = vmul.f32 %v272, 0.35355338
  %v398 = vmul.f32 %v296, 0.35355338
  %v399 = vmul.f32 %v320, 0.35355338
  %v400 = vmul.f32 %v344, 0.35355338
  %v401 = vmul.f32 %v368, 0.35355338
  %v402 = vmul.f32 %v392, 0.35355338
  %v403 = vadd.f32 %v395, %v167
  %v404 = vadd.f32 %v396, %v167
  %v405 = vadd.f32 %v397, %v167
  %v406 = vadd.f32 %v398, %v167
  %v407 = vadd.f32 %v399, %v168
  %v408 = vadd.f32 %v400, %v168
  %v409 = vadd.f32 %v401, %v168
  %v410 = vadd.f32 %v402, %v168
  %vm411 = vcmask 46080
  %v412 = vsel %vm411, %v403, -inf
  %413 = vmax.xlane.f32.xlu0 %v412
  %v414 = vpop.xlane.xlu0 %413
  %v415 = vsel %vm411, %v404, -inf
  %416 = vmax.xlane.f32.xlu0 %v415
  %v417 = vpop.xlane.xlu0 %416
  %v418 = vsel %vm411, %v405, -inf
  %419 = vmax.xlane.f32.xlu0 %v418
  %v420 = vpop.xlane.xlu0 %419
  %v421 = vsel %vm411, %v406, -inf
  %422 = vmax.xlane.f32.xlu0 %v421
  %v423 = vpop.xlane.xlu0 %422
  %v424 = vsel %vm411, %v407, -inf
  %425 = vmax.xlane.f32.xlu0 %v424
  %v426 = vpop.xlane.xlu0 %425
  %v427 = vsel %vm411, %v408, -inf
  %428 = vmax.xlane.f32.xlu0 %v427
  %v429 = vpop.xlane.xlu0 %428
  %v430 = vsel %vm411, %v409, -inf
  %431 = vmax.xlane.f32.xlu0 %v430
  %v432 = vpop.xlane.xlu0 %431
  %v433 = vsel %vm411, %v410, -inf
  %434 = vmax.xlane.f32.xlu0 %v433
  %v435 = vpop.xlane.xlu0 %434
  %v436 = vsub.f32 %v403, %v414
  %v437 = vsub.f32 %v404, %v417
  %v438 = vsub.f32 %v405, %v420
  %v439 = vsub.f32 %v406, %v423
  %v440 = vsub.f32 %v407, %v426
  %v441 = vsub.f32 %v408, %v429
  %v442 = vsub.f32 %v409, %v432
  %v443 = vsub.f32 %v410, %v435
  %v444 = vmul.f32 %v436, 1.442695
  %v445 = vpow.pop %v444
  %v446 = vmul.f32 %v437, 1.442695
  %v447 = vpow.pop %v446
  %v448 = vmul.f32 %v438, 1.442695
  %v449 = vpow.pop %v448
  %v450 = vmul.f32 %v439, 1.442695
  %v451 = vpow.pop %v450
  %v452 = vmul.f32 %v440, 1.442695
  %v453 = vpow.pop %v452
  %v454 = vmul.f32 %v441, 1.442695
  %v455 = vpow.pop %v454
  %v456 = vmul.f32 %v442, 1.442695
  %v457 = vpow.pop %v456
  %v458 = vmul.f32 %v443, 1.442695
  %v459 = vpow.pop %v458
  %v460 = vsel %vm411, %v445, 0.0
  %461 = vadd.xlane.f32.xlu0 %v460
  %v462 = vpop.xlane.xlu0 %461
  %v463 = vsel %vm411, %v447, 0.0
  %464 = vadd.xlane.f32.xlu0 %v463
  %v465 = vpop.xlane.xlu0 %464
  %v466 = vsel %vm411, %v449, 0.0
  %467 = vadd.xlane.f32.xlu0 %v466
  %v468 = vpop.xlane.xlu0 %467
  %v469 = vsel %vm411, %v451, 0.0
  %470 = vadd.xlane.f32.xlu0 %v469
  %v471 = vpop.xlane.xlu0 %470
  %v472 = vsel %vm411, %v453, 0.0
  %473 = vadd.xlane.f32.xlu0 %v472
  %v474 = vpop.xlane.xlu0 %473
  %v475 = vsel %vm411, %v455, 0.0
  %476 = vadd.xlane.f32.xlu0 %v475
  %v477 = vpop.xlane.xlu0 %476
  %v478 = vsel %vm411, %v457, 0.0
  %479 = vadd.xlane.f32.xlu0 %v478
  %v480 = vpop.xlane.xlu0 %479
  %v481 = vsel %vm411, %v459, 0.0
  %482 = vadd.xlane.f32.xlu0 %v481
  %v483 = vpop.xlane.xlu0 %482
  %v484 = vrcp.pop %v462
  %v485 = vrcp.pop %v465
  %v486 = vrcp.pop %v468
  %v487 = vrcp.pop %v471
  %v488 = vrcp.pop %v474
  %v489 = vrcp.pop %v477
  %v490 = vrcp.pop %v480
  %v491 = vrcp.pop %v483
  %v492 = vmul.f32 %v445, %v484
  %v493 = vmul.f32 %v447, %v485
  %v494 = vmul.f32 %v449, %v486
  %v495 = vmul.f32 %v451, %v487
  %v496 = vmul.f32 %v453, %v488
  %v497 = vmul.f32 %v455, %v489
  %v498 = vmul.f32 %v457, %v490
  %v499 = vmul.f32 %v459, %v491
  %v500 = vpack.c.bf16 %v492, %v492
  %v501 = vpack.c.bf16 %v493, %v493
  %v502 = vpack.c.bf16 %v494, %v494
  %v503 = vpack.c.bf16 %v495, %v495
  %v504 = vpack.c.bf16 %v496, %v496
  %v505 = vpack.c.bf16 %v497, %v497
  %v506 = vpack.c.bf16 %v498, %v498
  %v507 = vpack.c.bf16 %v499, %v499
  %508 = vrot.lane.b32.xlu0 %v204, 64
  %v509 = vpop.permute.xlu0 %508
  %vm510 = vcmask 48128
  %v512 = vsel %vm510, %v500, 0
  %vm514 = vcmask 1042432
  %v516 = vsel %vm514, %v509, 0
  %518 = vmatpush.bf16.msra.mxu0 0
  %519 = vmatpush.bf16.msra.mxu0 0
  %520 = vmatpush.bf16.msra.mxu0 0
  %521 = vmatpush.bf16.msra.mxu0 0
  %522 = vmatpush.bf16.msra.mxu0 0
  %523 = vmatpush.bf16.msra.mxu0 0
  %524 = vmatpush.bf16.msra.mxu0 0
  %525 = vmatpush.bf16.msra.mxu0 %v516
  %526 = vmatmul.bf16.gmra.mxu0 %v512
  %v527 = vpop.f32.mrf.mxu0
  %v528 = vadd.f32 0.0, %v527
  %v529 = vpop.f32.mrf.mxu0
  %530 = vdwg.mxu0
  %531 = vrot.lane.b32.xlu0 %v229, 64
  %v532 = vpop.permute.xlu0 %531
  %v534 = vsel %vm510, %v501, 0
  %v537 = vsel %vm514, %v532, 0
  %539 = vmatpush.bf16.msra.mxu0 0
  %540 = vmatpush.bf16.msra.mxu0 0
  %541 = vmatpush.bf16.msra.mxu0 0
  %542 = vmatpush.bf16.msra.mxu0 0
  %543 = vmatpush.bf16.msra.mxu0 0
  %544 = vmatpush.bf16.msra.mxu0 0
  %545 = vmatpush.bf16.msra.mxu0 0
  %546 = vmatpush.bf16.msra.mxu0 %v537
  %547 = vmatmul.bf16.gmra.mxu0 %v534
  %v548 = vpop.f32.mrf.mxu0
  %v549 = vadd.f32 0.0, %v548
  %v550 = vpop.f32.mrf.mxu0
  %551 = vdwg.mxu0
  %552 = vrot.lane.b32.xlu0 %v253, 64
  %v553 = vpop.permute.xlu0 %552
  %v555 = vsel %vm510, %v502, 0
  %v558 = vsel %vm514, %v553, 0
  %560 = vmatpush.bf16.msra.mxu0 0
  %561 = vmatpush.bf16.msra.mxu0 0
  %562 = vmatpush.bf16.msra.mxu0 0
  %563 = vmatpush.bf16.msra.mxu0 0
  %564 = vmatpush.bf16.msra.mxu0 0
  %565 = vmatpush.bf16.msra.mxu0 0
  %566 = vmatpush.bf16.msra.mxu0 0
  %567 = vmatpush.bf16.msra.mxu0 %v558
  %568 = vmatmul.bf16.gmra.mxu0 %v555
  %v569 = vpop.f32.mrf.mxu0
  %v570 = vadd.f32 0.0, %v569
  %v571 = vpop.f32.mrf.mxu0
  %572 = vdwg.mxu0
  %573 = vrot.lane.b32.xlu0 %v277, 64
  %v574 = vpop.permute.xlu0 %573
  %v576 = vsel %vm510, %v503, 0
  %v579 = vsel %vm514, %v574, 0
  %581 = vmatpush.bf16.msra.mxu0 0
  %582 = vmatpush.bf16.msra.mxu0 0
  %583 = vmatpush.bf16.msra.mxu0 0
  %584 = vmatpush.bf16.msra.mxu0 0
  %585 = vmatpush.bf16.msra.mxu0 0
  %586 = vmatpush.bf16.msra.mxu0 0
  %587 = vmatpush.bf16.msra.mxu0 0
  %588 = vmatpush.bf16.msra.mxu0 %v579
  %589 = vmatmul.bf16.gmra.mxu0 %v576
  %v590 = vpop.f32.mrf.mxu0
  %v591 = vadd.f32 0.0, %v590
  %v592 = vpop.f32.mrf.mxu0
  %593 = vdwg.mxu0
  %594 = vrot.lane.b32.xlu0 %v301, 64
  %v595 = vpop.permute.xlu0 %594
  %v597 = vsel %vm510, %v504, 0
  %v600 = vsel %vm514, %v595, 0
  %602 = vmatpush.bf16.msra.mxu0 0
  %603 = vmatpush.bf16.msra.mxu0 0
  %604 = vmatpush.bf16.msra.mxu0 0
  %605 = vmatpush.bf16.msra.mxu0 0
  %606 = vmatpush.bf16.msra.mxu0 0
  %607 = vmatpush.bf16.msra.mxu0 0
  %608 = vmatpush.bf16.msra.mxu0 0
  %609 = vmatpush.bf16.msra.mxu0 %v600
  %610 = vmatmul.bf16.gmra.mxu0 %v597
  %v611 = vpop.f32.mrf.mxu0
  %v612 = vadd.f32 0.0, %v611
  %v613 = vpop.f32.mrf.mxu0
  %614 = vdwg.mxu0
  %615 = vrot.lane.b32.xlu0 %v325, 64
  %v616 = vpop.permute.xlu0 %615
  %v618 = vsel %vm510, %v505, 0
  %v621 = vsel %vm514, %v616, 0
  %623 = vmatpush.bf16.msra.mxu0 0
  %624 = vmatpush.bf16.msra.mxu0 0
  %625 = vmatpush.bf16.msra.mxu0 0
  %626 = vmatpush.bf16.msra.mxu0 0
  %627 = vmatpush.bf16.msra.mxu0 0
  %628 = vmatpush.bf16.msra.mxu0 0
  %629 = vmatpush.bf16.msra.mxu0 0
  %630 = vmatpush.bf16.msra.mxu0 %v621
  %631 = vmatmul.bf16.gmra.mxu0 %v618
  %v632 = vpop.f32.mrf.mxu0
  %v633 = vadd.f32 0.0, %v632
  %v634 = vpop.f32.mrf.mxu0
  %635 = vdwg.mxu0
  %636 = vrot.lane.b32.xlu0 %v349, 64
  %v637 = vpop.permute.xlu0 %636
  %v639 = vsel %vm510, %v506, 0
  %v642 = vsel %vm514, %v637, 0
  %644 = vmatpush.bf16.msra.mxu0 0
  %645 = vmatpush.bf16.msra.mxu0 0
  %646 = vmatpush.bf16.msra.mxu0 0
  %647 = vmatpush.bf16.msra.mxu0 0
  %648 = vmatpush.bf16.msra.mxu0 0
  %649 = vmatpush.bf16.msra.mxu0 0
  %650 = vmatpush.bf16.msra.mxu0 0
  %651 = vmatpush.bf16.msra.mxu0 %v642
  %652 = vmatmul.bf16.gmra.mxu0 %v639
  %v653 = vpop.f32.mrf.mxu0
  %v654 = vadd.f32 0.0, %v653
  %v655 = vpop.f32.mrf.mxu0
  %656 = vdwg.mxu0
  %657 = vrot.lane.b32.xlu0 %v373, 64
  %v658 = vpop.permute.xlu0 %657
  %v660 = vsel %vm510, %v507, 0
  %v663 = vsel %vm514, %v658, 0
  %665 = vmatpush.bf16.msra.mxu0 0
  %666 = vmatpush.bf16.msra.mxu0 0
  %667 = vmatpush.bf16.msra.mxu0 0
  %668 = vmatpush.bf16.msra.mxu0 0
  %669 = vmatpush.bf16.msra.mxu0 0
  %670 = vmatpush.bf16.msra.mxu0 0
  %671 = vmatpush.bf16.msra.mxu0 0
  %672 = vmatpush.bf16.msra.mxu0 %v663
  %673 = vmatmul.bf16.gmra.mxu0 %v660
  %v674 = vpop.f32.mrf.mxu0
  %v675 = vadd.f32 0.0, %v674
  %v676 = vpop.f32.mrf.mxu0
  %677 = vdwg.mxu0
  %679 = vrot.lane.b32.xlu0 %v549, 8
  %v680 = vpop.permute.xlu0 %679
  %683 = vrot.lane.b32.xlu0 %v570, 16
  %v684 = vpop.permute.xlu0 %683
  %687 = vrot.lane.b32.xlu0 %v591, 24
  %v688 = vpop.permute.xlu0 %687
  %v690 = vsel %vm207, %v528, %v680
  %vm691 = vcmask 130048
  %v692 = vsel %vm691, %v690, %v684
  %vm693 = vcmask 195584
  %v694 = vsel %vm693, %v692, %v688
  %696 = vrot.lane.b32.xlu0 %v633, 8
  %v697 = vpop.permute.xlu0 %696
  %700 = vrot.lane.b32.xlu0 %v654, 16
  %v701 = vpop.permute.xlu0 %700
  %704 = vrot.lane.b32.xlu0 %v675, 24
  %v705 = vpop.permute.xlu0 %704
  %v707 = vsel %vm207, %v612, %v697
  %v708 = vsel %vm691, %v707, %v701
  %v709 = vsel %vm693, %v708, %v705
  %v711 = vrot.slane %v709, 2
  %vm713 = vcmask 1045504
  %v714 = vsel %vm713, %v694, %v711
  %v715 = vld [vmem:[%s8] sm:$0xf]
  %v716 = vld [vmem:[%s8 + $0x4] sm:$0xf]
  %v717 = vld [vmem:[%s8 + $0x8] sm:$0xf]
  %v718 = vld [vmem:[%s8 + $0xc] sm:$0xf]
  %v719 = vld [vmem:[%s9] sm:$0x1]
  %v720 = vpack.c.bf16 %v711, %v714
  %v722 = vperm.slane %v719, 0
  %v728 = vunpack.c.l.b16 %v715
  %v729 = vunpack.c.l.b16 %v716
  %v730 = vunpack.c.l.b16 %v717
  %v731 = vunpack.c.l.b16 %v718
  %v732 = vpack.c.b16 %v729, %v728
  %v733 = vpack.c.b16 %v731, %v730
  %v737 = vsel %vm139, %v720, 0
  %739 = vmatpush.bf16.msra.mxu0 0
  %740 = vmatpush.bf16.msra.mxu0 0
  %741 = vmatpush.bf16.msra.mxu0 0
  %742 = vmatpush.bf16.msra.mxu0 0
  %743 = vmatpush.bf16.msra.mxu0 0
  %744 = vmatpush.bf16.msra.mxu0 0
  %745 = vmatpush.bf16.msra.mxu0 %v733
  %746 = vmatpush.bf16.msra.mxu0 %v732
  %747 = vmatmul.bf16.gmra.mxu0 %v737
  %v748 = vpop.f32.mrf.mxu0
  %v749 = vadd.f32 %v722, %v748
  %v750 = vpop.f32.mrf.mxu0
  %v751 = vadd.f32 %v722, %v750
  %752 = vdwg.mxu0
  %v755 = vrot.slane %v749, 2
  %v756 = vrot.slane %v749, 4
  %v757 = vrot.slane %v749, 6
  %v758 = vrot.slane %v751, 2
  %v763 = vadd.f32 %v89, %v749
  %v764 = vadd.f32 %v93, %v755
  %v765 = vadd.f32 %v94, %v756
  %v766 = vadd.f32 %v90, %v757
  %v767 = vadd.f32 %v95, %v751
  %v768 = vadd.f32 %v96, %v758
  %v769 = vld [vmem:[%s10] sm:$0x1]
  %v770 = vld [vmem:[%s11] sm:$0x1]
  %777 = vst [vmem:[#allocation1] ss:$4 sm:$0xff] %v763
  %s778 = scalar_lea.vmem [#allocation1], 1
  %779 = vst [vmem:[%s778] ss:$4 sm:$0xff] %v764
  %s780 = scalar_lea.vmem [#allocation1], 2
  %781 = vst [vmem:[%s780] ss:$4 sm:$0xff] %v765
  %s782 = scalar_lea.vmem [#allocation1], 3
  %783 = vst [vmem:[%s782] ss:$4 sm:$0xff] %v766
  %s784 = scalar_lea.vmem [#allocation1], 32
  %785 = vst [vmem:[%s784] ss:$4 sm:$0xff] %v767
  %s786 = scalar_lea.vmem [#allocation1], 33
  %787 = vst [vmem:[%s786] ss:$4 sm:$0xff] %v768
  %v788 = vld.sshfl [vmem:[#allocation1] sm:$0xff pattern:$0x73625140]
  %v789 = vld.sshfl [vmem:[#allocation1 + $0x20] sm:$0xff pattern:$0x73625140]
  %v792 = vsel %vm139, %v788, 0.0
  %793 = vadd.xlane.f32.xlu0 %v792
  %v794 = vpop.xlane.xlu0 %793
  %vm795 = vcmask 257024
  %v796 = vsel %vm795, %v789, 0.0
  %797 = vadd.xlane.f32.xlu0 %v796
  %v798 = vpop.xlane.xlu0 %797
  %v799 = vrcp.pop 32.0
  %v800 = vmul.f32 32.0, %v799
  %v801 = vsub.f32 1.0, %v800
  %v802 = vmul.f32 %v799, %v801
  %v803 = vadd.f32 %v799, %v802
  %vm804 = vweird.f32 %v799
  %v805 = vsel %vm804, %v799, %v803
  %v806 = vmul.f32 %v794, %v805
  %v807 = vmul.f32 %v798, %v805
  %v811 = vunpack.c.l.s4 269488144
  %v812 = vunpack.c.0.s8 %v811
  %v813 = vperm.slane %v806, %v812
  %v815 = vunpack.c.l.s4 842150450
  %v816 = vunpack.c.0.s8 %v815
  %v817 = vperm.slane %v806, %v816
  %v819 = vunpack.c.l.s4 1414812756
  %v820 = vunpack.c.0.s8 %v819
  %v821 = vperm.slane %v806, %v820
  %v823 = vunpack.c.l.s4 1987475062
  %v824 = vunpack.c.0.s8 %v823
  %v825 = vperm.slane %v806, %v824
  %v827 = vunpack.c.l.s4 269488144
  %v828 = vunpack.c.0.s8 %v827
  %v829 = vperm.slane %v807, %v828
  %v831 = vunpack.c.l.s4 842150450
  %v832 = vunpack.c.0.s8 %v831
  %v833 = vperm.slane %v807, %v832
  %v840 = vsub.f32 %v763, %v813
  %v841 = vsub.f32 %v764, %v817
  %v842 = vsub.f32 %v765, %v821
  %v843 = vsub.f32 %v766, %v825
  %v844 = vsub.f32 %v767, %v829
  %v845 = vsub.f32 %v768, %v833
  %v846 = vmul.f32 %v840, %v840
  %v847 = vmul.f32 %v841, %v841
  %v848 = vmul.f32 %v842, %v842
  %v849 = vmul.f32 %v843, %v843
  %v850 = vmul.f32 %v844, %v844
  %v851 = vmul.f32 %v845, %v845
  %858 = vst [vmem:[#allocation1] ss:$4 sm:$0xff] %v846
  %s859 = scalar_lea.vmem [#allocation1], 1
  %860 = vst [vmem:[%s859] ss:$4 sm:$0xff] %v847
  %s861 = scalar_lea.vmem [#allocation1], 2
  %862 = vst [vmem:[%s861] ss:$4 sm:$0xff] %v848
  %s863 = scalar_lea.vmem [#allocation1], 3
  %864 = vst [vmem:[%s863] ss:$4 sm:$0xff] %v849
  %s865 = scalar_lea.vmem [#allocation1], 32
  %866 = vst [vmem:[%s865] ss:$4 sm:$0xff] %v850
  %s867 = scalar_lea.vmem [#allocation1], 33
  %868 = vst [vmem:[%s867] ss:$4 sm:$0xff] %v851
  %v869 = vld.sshfl [vmem:[#allocation1] sm:$0xff pattern:$0x73625140]
  %v870 = vld.sshfl [vmem:[#allocation1 + $0x20] sm:$0xff pattern:$0x73625140]
  %v873 = vsel %vm139, %v869, 0.0
  %874 = vadd.xlane.f32.xlu0 %v873
  %v875 = vpop.xlane.xlu0 %874
  %v876 = vsel %vm795, %v870, 0.0
  %877 = vadd.xlane.f32.xlu0 %v876
  %v878 = vpop.xlane.xlu0 %877
  %v879 = vmul.f32 %v875, %v805
  %v880 = vmul.f32 %v878, %v805
  %v881 = vadd.f32 %v879, 1e-05
  %v882 = vadd.f32 %v880, 1e-05
  %v883 = vrsqrt.pop %v881
  %v884 = vmul.f32 %v883, %v881
  %v885 = vmul.f32 %v884, %v883
  %v886 = vmul.f32 0.5, %v885
  %v887 = vsub.f32 1.5, %v886
  %v888 = vmul.f32 %v883, %v887
  %vm889 = vweird.f32 %v881
  %vm890 = vweird.f32 %v883
  %vm891 = vmor %vm889, %vm890
  %v892 = vsel %vm891, %v883, %v888
  %v893 = vrsqrt.pop %v882
  %v894 = vmul.f32 %v893, %v882
  %v895 = vmul.f32 %v894, %v893
  %v896 = vmul.f32 0.5, %v895
  %v897 = vsub.f32 1.5, %v896
  %v898 = vmul.f32 %v893, %v897
  %vm899 = vweird.f32 %v882
  %vm900 = vweird.f32 %v893
  %vm901 = vmor %vm899, %vm900
  %v902 = vsel %vm901, %v893, %v898
  %v906 = vunpack.c.l.s4 269488144
  %v907 = vunpack.c.0.s8 %v906
  %v908 = vperm.slane %v892, %v907
  %v910 = vunpack.c.l.s4 842150450
  %v911 = vunpack.c.0.s8 %v910
  %v912 = vperm.slane %v892, %v911
  %v914 = vunpack.c.l.s4 1414812756
  %v915 = vunpack.c.0.s8 %v914
  %v916 = vperm.slane %v892, %v915
  %v918 = vunpack.c.l.s4 1987475062
  %v919 = vunpack.c.0.s8 %v918
  %v920 = vperm.slane %v892, %v919
  %v922 = vunpack.c.l.s4 269488144
  %v923 = vunpack.c.0.s8 %v922
  %v924 = vperm.slane %v902, %v923
  %v926 = vunpack.c.l.s4 842150450
  %v927 = vunpack.c.0.s8 %v926
  %v928 = vperm.slane %v902, %v927
  %v935 = vmul.f32 %v840, %v908
  %v936 = vmul.f32 %v841, %v912
  %v937 = vmul.f32 %v842, %v916
  %v938 = vmul.f32 %v843, %v920
  %v939 = vmul.f32 %v844, %v924
  %v940 = vmul.f32 %v845, %v928
  %v942 = vperm.slane %v769, 0
  %v944 = vrot.slane %v942, 2
  %v945 = vrot.slane %v942, 4
  %v946 = vrot.slane %v942, 6
  %v950 = vmul.f32 %v935, %v942
  %v951 = vmul.f32 %v936, %v944
  %v952 = vmul.f32 %v937, %v945
  %v953 = vmul.f32 %v938, %v946
  %v954 = vmul.f32 %v939, %v942
  %v955 = vmul.f32 %v940, %v944
  %v957 = vperm.slane %v770, 0
  %v959 = vrot.slane %v957, 2
  %v960 = vrot.slane %v957, 4
  %v961 = vrot.slane %v957, 6
  %v965 = vadd.f32 %v950, %v957
  %v966 = vadd.f32 %v951, %v959
  %v967 = vadd.f32 %v952, %v960
  %v968 = vadd.f32 %v953, %v961
  %v969 = vadd.f32 %v954, %v957
  %v970 = vadd.f32 %v955, %v959
  %v971 = vld [vmem:[%s12] sm:$0xf]
  %v972 = vld [vmem:[%s12 + $0x4] sm:$0xf]
  %v973 = vld [vmem:[%s12 + $0x8] sm:$0xf]
  %v974 = vld [vmem:[%s12 + $0xc] sm:$0xf]
  %v975 = vld [vmem:[%s13] sm:$0x1]
  %982 = vst [vmem:[#allocation1] ss:$4 sm:$0xff] %v965
  %s983 = scalar_lea.vmem [#allocation1], 1
  %984 = vst [vmem:[%s983] ss:$4 sm:$0xff] %v966
  %s985 = scalar_lea.vmem [#allocation1], 2
  %986 = vst [vmem:[%s985] ss:$4 sm:$0xff] %v967
  %s987 = scalar_lea.vmem [#allocation1], 3
  %988 = vst [vmem:[%s987] ss:$4 sm:$0xff] %v968
  %s989 = scalar_lea.vmem [#allocation1], 32
  %990 = vst [vmem:[%s989] ss:$4 sm:$0xff] %v969
  %s991 = scalar_lea.vmem [#allocation1], 33
  %992 = vst [vmem:[%s991] ss:$4 sm:$0xff] %v970
  %v993 = vld.sshfl [vmem:[#allocation1] sm:$0xff pattern:$0x73625140]
  %v994 = vld.sshfl [vmem:[#allocation1 + $0x20] sm:$0xff pattern:$0x73625140]
  %v997 = vpack.c.bf16 %v994, %v993
  %v999 = vperm.slane %v975, 0
  %v1005 = vunpack.c.l.b16 %v971
  %v1006 = vunpack.c.l.b16 %v972
  %v1007 = vunpack.c.l.b16 %v973
  %v1008 = vunpack.c.l.b16 %v974
  %v1009 = vpack.c.b16 %v1006, %v1005
  %v1010 = vpack.c.b16 %v1008, %v1007
  %v1014 = vsel %vm139, %v997, 0
  %1016 = vmatpush.bf16.msra.mxu0 0
  %1017 = vmatpush.bf16.msra.mxu0 0
  %1018 = vmatpush.bf16.msra.mxu0 0
  %1019 = vmatpush.bf16.msra.mxu0 0
  %1020 = vmatpush.bf16.msra.mxu0 0
  %1021 = vmatpush.bf16.msra.mxu0 0
  %1022 = vmatpush.bf16.msra.mxu0 %v1010
  %1023 = vmatpush.bf16.msra.mxu0 %v1009
  %1024 = vmatmul.bf16.gmra.mxu0 %v1014
  %v1025 = vpop.f32.mrf.mxu0
  %v1026 = vadd.f32 %v999, %v1025
  %v1027 = vpop.f32.mrf.mxu0
  %v1028 = vadd.f32 %v999, %v1027
  %1029 = vdwg.mxu0
  %v1030 = vld [vmem:[%s14] sm:$0xf]
  %v1031 = vld [vmem:[%s14 + $0x4] sm:$0xf]
  %v1032 = vld [vmem:[%s14 + $0x8] sm:$0xf]
  %v1033 = vld [vmem:[%s14 + $0xc] sm:$0xf]
  %v1034 = vld [vmem:[%s15] sm:$0x1]
  %v1035 = vpack.c.bf16 %v102, %v101
  %v1037 = vperm.slane %v1034, 0
  %v1043 = vunpack.c.l.b16 %v1030
  %v1044 = vunpack.c.l.b16 %v1031
  %v1045 = vunpack.c.l.b16 %v1032
  %v1046 = vunpack.c.l.b16 %v1033
  %v1047 = vpack.c.b16 %v1044, %v1043
  %v1048 = vpack.c.b16 %v1046, %v1045
  %v1052 = vsel %vm139, %v1035, 0
  %1054 = vmatpush.bf16.msra.mxu0 0
  %1055 = vmatpush.bf16.msra.mxu0 0
  %1056 = vmatpush.bf16.msra.mxu0 0
  %1057 = vmatpush.bf16.msra.mxu0 0
  %1058 = vmatpush.bf16.msra.mxu0 0
  %1059 = vmatpush.bf16.msra.mxu0 0
  %1060 = vmatpush.bf16.msra.mxu0 %v1048
  %1061 = vmatpush.bf16.msra.mxu0 %v1047
  %1062 = vmatmul.bf16.gmra.mxu0 %v1052
  %v1063 = vpop.f32.mrf.mxu0
  %v1064 = vadd.f32 %v1037, %v1063
  %v1065 = vpop.f32.mrf.mxu0
  %v1066 = vadd.f32 %v1037, %v1065
  %1067 = vdwg.mxu0
  %v1068 = vld [vmem:[%s4] sm:$0x3]
  %v1070 = vrot.slane %v1068, 1
  %1072 = vrot.lane.b32.xlu0 %v1026, 120
  %v1073 = vpop.permute.xlu0 %1072
  %1075 = vrot.lane.b32.xlu0 %v1026, 112
  %v1076 = vpop.permute.xlu0 %1075
  %1078 = vrot.lane.b32.xlu0 %v1026, 104
  %v1079 = vpop.permute.xlu0 %1078
  %v1082 = vrot.slane %v1026, 6
  %v1083 = vrot.slane %v1028, 6
  %v1084 = vsel %vm180, %v1082, %v1083
  %1086 = vrot.lane.b32.xlu0 %v1084, 120
  %v1087 = vpop.permute.xlu0 %1086
  %1089 = vrot.lane.b32.xlu0 %v1084, 112
  %v1090 = vpop.permute.xlu0 %1089
  %1092 = vrot.lane.b32.xlu0 %v1084, 104
  %v1093 = vpop.permute.xlu0 %1092
  %v1095 = vpack.c.bf16 %v1026, %v1026
  %v1096 = vpack.c.bf16 %v1073, %v1073
  %v1097 = vpack.c.bf16 %v1076, %v1076
  %v1098 = vpack.c.bf16 %v1079, %v1079
  %v1099 = vpack.c.bf16 %v1084, %v1084
  %v1100 = vpack.c.bf16 %v1087, %v1087
  %v1101 = vpack.c.bf16 %v1090, %v1090
  %v1102 = vpack.c.bf16 %v1093, %v1093
  %1104 = vrot.lane.b32.xlu0 %v1064, 120
  %v1105 = vpop.permute.xlu0 %1104
  %1107 = vrot.lane.b32.xlu0 %v1064, 112
  %v1108 = vpop.permute.xlu0 %1107
  %1110 = vrot.lane.b32.xlu0 %v1064, 104
  %v1111 = vpop.permute.xlu0 %1110
  %1114 = vrot.lane.b32.xlu0 %v1066, 120
  %v1115 = vpop.permute.xlu0 %1114
  %1117 = vrot.lane.b32.xlu0 %v1066, 112
  %v1118 = vpop.permute.xlu0 %1117
  %1120 = vrot.lane.b32.xlu0 %v1066, 104
  %v1121 = vpop.permute.xlu0 %1120
  %v1123 = vpack.c.bf16 %v1064, %v1064
  %v1124 = vpack.c.bf16 %v1105, %v1105
  %v1125 = vpack.c.bf16 %v1108, %v1108
  %v1126 = vpack.c.bf16 %v1111, %v1111
  %v1127 = vpack.c.bf16 %v1066, %v1066
  %v1128 = vpack.c.bf16 %v1115, %v1115
  %v1129 = vpack.c.bf16 %v1118, %v1118
  %v1130 = vpack.c.bf16 %v1121, %v1121
  %v1132 = vsel %vm207, %v1095, 0
  %v1135 = vsel %vm207, %v1123, 0
  %1137 = vmatpush.bf16.xpose.msra.mxu0 0
  %1138 = vmatpush.bf16.xpose.msra.mxu0 0
  %1139 = vmatpush.bf16.xpose.msra.mxu0 0
  %1140 = vmatpush.bf16.xpose.msra.mxu0 0
  %1141 = vmatpush.bf16.xpose.msra.mxu0 0
  %1142 = vmatpush.bf16.xpose.msra.mxu0 0
  %1143 = vmatpush.bf16.xpose.msra.mxu0 0
  %1144 = vmatpush.bf16.xpose.msra.mxu0 %v1135
  %1145 = vmatmul.bf16.gmra.mxu0 %v1132
  %v1146 = vpop.f32.mrf.mxu0
  %v1147 = vadd.f32 0.0, %v1146
  %v1148 = vpop.f32.mrf.mxu0
  %1149 = vdwg.mxu0
  %v1151 = vsel %vm207, %v1096, 0
  %v1154 = vsel %vm207, %v1124, 0
  %1156 = vmatpush.bf16.xpose.msra.mxu0 0
  %1157 = vmatpush.bf16.xpose.msra.mxu0 0
  %1158 = vmatpush.bf16.xpose.msra.mxu0 0
  %1159 = vmatpush.bf16.xpose.msra.mxu0 0
  %1160 = vmatpush.bf16.xpose.msra.mxu0 0
  %1161 = vmatpush.bf16.xpose.msra.mxu0 0
  %1162 = vmatpush.bf16.xpose.msra.mxu0 0
  %1163 = vmatpush.bf16.xpose.msra.mxu0 %v1154
  %1164 = vmatmul.bf16.gmra.mxu0 %v1151
  %v1165 = vpop.f32.mrf.mxu0
  %v1166 = vadd.f32 0.0, %v1165
  %v1167 = vpop.f32.mrf.mxu0
  %1168 = vdwg.mxu0
  %v1170 = vsel %vm207, %v1097, 0
  %v1173 = vsel %vm207, %v1125, 0
  %1175 = vmatpush.bf16.xpose.msra.mxu0 0
  %1176 = vmatpush.bf16.xpose.msra.mxu0 0
  %1177 = vmatpush.bf16.xpose.msra.mxu0 0
  %1178 = vmatpush.bf16.xpose.msra.mxu0 0
  %1179 = vmatpush.bf16.xpose.msra.mxu0 0
  %1180 = vmatpush.bf16.xpose.msra.mxu0 0
  %1181 = vmatpush.bf16.xpose.msra.mxu0 0
  %1182 = vmatpush.bf16.xpose.msra.mxu0 %v1173
  %1183 = vmatmul.bf16.gmra.mxu0 %v1170
  %v1184 = vpop.f32.mrf.mxu0
  %v1185 = vadd.f32 0.0, %v1184
  %v1186 = vpop.f32.mrf.mxu0
  %1187 = vdwg.mxu0
  %v1189 = vsel %vm207, %v1098, 0
  %v1192 = vsel %vm207, %v1126, 0
  %1194 = vmatpush.bf16.xpose.msra.mxu0 0
  %1195 = vmatpush.bf16.xpose.msra.mxu0 0
  %1196 = vmatpush.bf16.xpose.msra.mxu0 0
  %1197 = vmatpush.bf16.xpose.msra.mxu0 0
  %1198 = vmatpush.bf16.xpose.msra.mxu0 0
  %1199 = vmatpush.bf16.xpose.msra.mxu0 0
  %1200 = vmatpush.bf16.xpose.msra.mxu0 0
  %1201 = vmatpush.bf16.xpose.msra.mxu0 %v1192
  %1202 = vmatmul.bf16.gmra.mxu0 %v1189
  %v1203 = vpop.f32.mrf.mxu0
  %v1204 = vadd.f32 0.0, %v1203
  %v1205 = vpop.f32.mrf.mxu0
  %1206 = vdwg.mxu0
  %v1208 = vsel %vm207, %v1099, 0
  %v1211 = vsel %vm207, %v1127, 0
  %1213 = vmatpush.bf16.xpose.msra.mxu0 0
  %1214 = vmatpush.bf16.xpose.msra.mxu0 0
  %1215 = vmatpush.bf16.xpose.msra.mxu0 0
  %1216 = vmatpush.bf16.xpose.msra.mxu0 0
  %1217 = vmatpush.bf16.xpose.msra.mxu0 0
  %1218 = vmatpush.bf16.xpose.msra.mxu0 0
  %1219 = vmatpush.bf16.xpose.msra.mxu0 0
  %1220 = vmatpush.bf16.xpose.msra.mxu0 %v1211
  %1221 = vmatmul.bf16.gmra.mxu0 %v1208
  %v1222 = vpop.f32.mrf.mxu0
  %v1223 = vadd.f32 0.0, %v1222
  %v1224 = vpop.f32.mrf.mxu0
  %1225 = vdwg.mxu0
  %v1227 = vsel %vm207, %v1100, 0
  %v1230 = vsel %vm207, %v1128, 0
  %1232 = vmatpush.bf16.xpose.msra.mxu0 0
  %1233 = vmatpush.bf16.xpose.msra.mxu0 0
  %1234 = vmatpush.bf16.xpose.msra.mxu0 0
  %1235 = vmatpush.bf16.xpose.msra.mxu0 0
  %1236 = vmatpush.bf16.xpose.msra.mxu0 0
  %1237 = vmatpush.bf16.xpose.msra.mxu0 0
  %1238 = vmatpush.bf16.xpose.msra.mxu0 0
  %1239 = vmatpush.bf16.xpose.msra.mxu0 %v1230
  %1240 = vmatmul.bf16.gmra.mxu0 %v1227
  %v1241 = vpop.f32.mrf.mxu0
  %v1242 = vadd.f32 0.0, %v1241
  %v1243 = vpop.f32.mrf.mxu0
  %1244 = vdwg.mxu0
  %v1246 = vsel %vm207, %v1101, 0
  %v1249 = vsel %vm207, %v1129, 0
  %1251 = vmatpush.bf16.xpose.msra.mxu0 0
  %1252 = vmatpush.bf16.xpose.msra.mxu0 0
  %1253 = vmatpush.bf16.xpose.msra.mxu0 0
  %1254 = vmatpush.bf16.xpose.msra.mxu0 0
  %1255 = vmatpush.bf16.xpose.msra.mxu0 0
  %1256 = vmatpush.bf16.xpose.msra.mxu0 0
  %1257 = vmatpush.bf16.xpose.msra.mxu0 0
  %1258 = vmatpush.bf16.xpose.msra.mxu0 %v1249
  %1259 = vmatmul.bf16.gmra.mxu0 %v1246
  %v1260 = vpop.f32.mrf.mxu0
  %v1261 = vadd.f32 0.0, %v1260
  %v1262 = vpop.f32.mrf.mxu0
  %1263 = vdwg.mxu0
  %v1265 = vsel %vm207, %v1102, 0
  %v1268 = vsel %vm207, %v1130, 0
  %1270 = vmatpush.bf16.xpose.msra.mxu0 0
  %1271 = vmatpush.bf16.xpose.msra.mxu0 0
  %1272 = vmatpush.bf16.xpose.msra.mxu0 0
  %1273 = vmatpush.bf16.xpose.msra.mxu0 0
  %1274 = vmatpush.bf16.xpose.msra.mxu0 0
  %1275 = vmatpush.bf16.xpose.msra.mxu0 0
  %1276 = vmatpush.bf16.xpose.msra.mxu0 0
  %1277 = vmatpush.bf16.xpose.msra.mxu0 %v1268
  %1278 = vmatmul.bf16.gmra.mxu0 %v1265
  %v1279 = vpop.f32.mrf.mxu0
  %v1280 = vadd.f32 0.0, %v1279
  %v1281 = vpop.f32.mrf.mxu0
  %1282 = vdwg.mxu0
  %v1283 = vmul.f32 %v1147, 0.35355338
  %v1284 = vmul.f32 %v1166, 0.35355338
  %v1285 = vmul.f32 %v1185, 0.35355338
  %v1286 = vmul.f32 %v1204, 0.35355338
  %v1287 = vmul.f32 %v1223, 0.35355338
  %v1288 = vmul.f32 %v1242, 0.35355338
  %v1289 = vmul.f32 %v1261, 0.35355338
  %v1290 = vmul.f32 %v1280, 0.35355338
  %v1291 = vperm.slane %v1068, 0
  %v1292 = vperm.slane %v1070, 0
  %v1295 = vadd.f32 %v1283, %v1291
  %v1296 = vadd.f32 %v1284, %v1291
  %v1297 = vadd.f32 %v1285, %v1291
  %v1298 = vadd.f32 %v1286, %v1291
  %v1299 = vadd.f32 %v1287, %v1292
  %v1300 = vadd.f32 %v1288, %v1292
  %v1301 = vadd.f32 %v1289, %v1292
  %v1302 = vadd.f32 %v1290, %v1292
  %vm1303 = vcmask 62464
  %v1304 = vsel %vm1303, %v1295, -inf
  %1305 = vmax.xlane.f32.xlu0 %v1304
  %v1306 = vpop.xlane.xlu0 %1305
  %v1307 = vsel %vm1303, %v1296, -inf
  %1308 = vmax.xlane.f32.xlu0 %v1307
  %v1309 = vpop.xlane.xlu0 %1308
  %v1310 = vsel %vm1303, %v1297, -inf
  %1311 = vmax.xlane.f32.xlu0 %v1310
  %v1312 = vpop.xlane.xlu0 %1311
  %v1313 = vsel %vm1303, %v1298, -inf
  %1314 = vmax.xlane.f32.xlu0 %v1313
  %v1315 = vpop.xlane.xlu0 %1314
  %v1316 = vsel %vm1303, %v1299, -inf
  %1317 = vmax.xlane.f32.xlu0 %v1316
  %v1318 = vpop.xlane.xlu0 %1317
  %v1319 = vsel %vm1303, %v1300, -inf
  %1320 = vmax.xlane.f32.xlu0 %v1319
  %v1321 = vpop.xlane.xlu0 %1320
  %v1322 = vsel %vm1303, %v1301, -inf
  %1323 = vmax.xlane.f32.xlu0 %v1322
  %v1324 = vpop.xlane.xlu0 %1323
  %v1325 = vsel %vm1303, %v1302, -inf
  %1326 = vmax.xlane.f32.xlu0 %v1325
  %v1327 = vpop.xlane.xlu0 %1326
  %v1328 = vsub.f32 %v1295, %v1306
  %v1329 = vsub.f32 %v1296, %v1309
  %v1330 = vsub.f32 %v1297, %v1312
  %v1331 = vsub.f32 %v1298, %v1315
  %v1332 = vsub.f32 %v1299, %v1318
  %v1333 = vsub.f32 %v1300, %v1321
  %v1334 = vsub.f32 %v1301, %v1324
  %v1335 = vsub.f32 %v1302, %v1327
  %v1336 = vmul.f32 %v1328, 1.442695
  %v1337 = vpow.pop %v1336
  %v1338 = vmul.f32 %v1329, 1.442695
  %v1339 = vpow.pop %v1338
  %v1340 = vmul.f32 %v1330, 1.442695
  %v1341 = vpow.pop %v1340
  %v1342 = vmul.f32 %v1331, 1.442695
  %v1343 = vpow.pop %v1342
  %v1344 = vmul.f32 %v1332, 1.442695
  %v1345 = vpow.pop %v1344
  %v1346 = vmul.f32 %v1333, 1.442695
  %v1347 = vpow.pop %v1346
  %v1348 = vmul.f32 %v1334, 1.442695
  %v1349 = vpow.pop %v1348
  %v1350 = vmul.f32 %v1335, 1.442695
  %v1351 = vpow.pop %v1350
  %v1352 = vsel %vm1303, %v1337, 0.0
  %1353 = vadd.xlane.f32.xlu0 %v1352
  %v1354 = vpop.xlane.xlu0 %1353
  %v1355 = vsel %vm1303, %v1339, 0.0
  %1356 = vadd.xlane.f32.xlu0 %v1355
  %v1357 = vpop.xlane.xlu0 %1356
  %v1358 = vsel %vm1303, %v1341, 0.0
  %1359 = vadd.xlane.f32.xlu0 %v1358
  %v1360 = vpop.xlane.xlu0 %1359
  %v1361 = vsel %vm1303, %v1343, 0.0
  %1362 = vadd.xlane.f32.xlu0 %v1361
  %v1363 = vpop.xlane.xlu0 %1362
  %v1364 = vsel %vm1303, %v1345, 0.0
  %1365 = vadd.xlane.f32.xlu0 %v1364
  %v1366 = vpop.xlane.xlu0 %1365
  %v1367 = vsel %vm1303, %v1347, 0.0
  %1368 = vadd.xlane.f32.xlu0 %v1367
  %v1369 = vpop.xlane.xlu0 %1368
  %v1370 = vsel %vm1303, %v1349, 0.0
  %1371 = vadd.xlane.f32.xlu0 %v1370
  %v1372 = vpop.xlane.xlu0 %1371
  %v1373 = vsel %vm1303, %v1351, 0.0
  %1374 = vadd.xlane.f32.xlu0 %v1373
  %v1375 = vpop.xlane.xlu0 %1374
  %v1376 = vrcp.pop %v1354
  %v1377 = vrcp.pop %v1357
  %v1378 = vrcp.pop %v1360
  %v1379 = vrcp.pop %v1363
  %v1380 = vrcp.pop %v1366
  %v1381 = vrcp.pop %v1369
  %v1382 = vrcp.pop %v1372
  %v1383 = vrcp.pop %v1375
  %v1384 = vmul.f32 %v1337, %v1376
  %v1385 = vmul.f32 %v1339, %v1377
  %v1386 = vmul.f32 %v1341, %v1378
  %v1387 = vmul.f32 %v1343, %v1379
  %v1388 = vmul.f32 %v1345, %v1380
  %v1389 = vmul.f32 %v1347, %v1381
  %v1390 = vmul.f32 %v1349, %v1382
  %v1391 = vmul.f32 %v1351, %v1383
  %v1392 = vpack.c.bf16 %v1384, %v1384
  %v1393 = vpack.c.bf16 %v1385, %v1385
  %v1394 = vpack.c.bf16 %v1386, %v1386
  %v1395 = vpack.c.bf16 %v1387, %v1387
  %v1396 = vpack.c.bf16 %v1388, %v1388
  %v1397 = vpack.c.bf16 %v1389, %v1389
  %v1398 = vpack.c.bf16 %v1390, %v1390
  %v1399 = vpack.c.bf16 %v1391, %v1391
  %v1401 = vunpack.c.l.b16 %v1123
  %v1402 = vpack.c.b16 %v1401, %v1401
  %1403 = vrot.lane.b32.xlu0 %v1402, 96
  %v1404 = vpop.permute.xlu0 %1403
  %v1406 = vsel %vm207, %v1392, 0
  %vm1408 = vcmask 1043456
  %v1410 = vsel %vm1408, %v1404, 0
  %1412 = vmatpush.bf16.msra.mxu0 0
  %1413 = vmatpush.bf16.msra.mxu0 0
  %1414 = vmatpush.bf16.msra.mxu0 0
  %1415 = vmatpush.bf16.msra.mxu0 0
  %1416 = vmatpush.bf16.msra.mxu0 0
  %1417 = vmatpush.bf16.msra.mxu0 0
  %1418 = vmatpush.bf16.msra.mxu0 0
  %1419 = vmatpush.bf16.msra.mxu0 %v1410
  %1420 = vmatmul.bf16.gmra.mxu0 %v1406
  %v1421 = vpop.f32.mrf.mxu0
  %v1422 = vadd.f32 0.0, %v1421
  %v1423 = vpop.f32.mrf.mxu0
  %1424 = vdwg.mxu0
  %v1426 = vunpack.c.l.b16 %v1124
  %v1427 = vpack.c.b16 %v1426, %v1426
  %1428 = vrot.lane.b32.xlu0 %v1427, 96
  %v1429 = vpop.permute.xlu0 %1428
  %v1431 = vsel %vm207, %v1393, 0
  %v1434 = vsel %vm1408, %v1429, 0
  %1436 = vmatpush.bf16.msra.mxu0 0
  %1437 = vmatpush.bf16.msra.mxu0 0
  %1438 = vmatpush.bf16.msra.mxu0 0
  %1439 = vmatpush.bf16.msra.mxu0 0
  %1440 = vmatpush.bf16.msra.mxu0 0
  %1441 = vmatpush.bf16.msra.mxu0 0
  %1442 = vmatpush.bf16.msra.mxu0 0
  %1443 = vmatpush.bf16.msra.mxu0 %v1434
  %1444 = vmatmul.bf16.gmra.mxu0 %v1431
  %v1445 = vpop.f32.mrf.mxu0
  %v1446 = vadd.f32 0.0, %v1445
  %v1447 = vpop.f32.mrf.mxu0
  %1448 = vdwg.mxu0
  %v1450 = vunpack.c.l.b16 %v1125
  %v1451 = vpack.c.b16 %v1450, %v1450
  %1452 = vrot.lane.b32.xlu0 %v1451, 96
  %v1453 = vpop.permute.xlu0 %1452
  %v1455 = vsel %vm207, %v1394, 0
  %v1458 = vsel %vm1408, %v1453, 0
  %1460 = vmatpush.bf16.msra.mxu0 0
  %1461 = vmatpush.bf16.msra.mxu0 0
  %1462 = vmatpush.bf16.msra.mxu0 0
  %1463 = vmatpush.bf16.msra.mxu0 0
  %1464 = vmatpush.bf16.msra.mxu0 0
  %1465 = vmatpush.bf16.msra.mxu0 0
  %1466 = vmatpush.bf16.msra.mxu0 0
  %1467 = vmatpush.bf16.msra.mxu0 %v1458
  %1468 = vmatmul.bf16.gmra.mxu0 %v1455
  %v1469 = vpop.f32.mrf.mxu0
  %v1470 = vadd.f32 0.0, %v1469
  %v1471 = vpop.f32.mrf.mxu0
  %1472 = vdwg.mxu0
  %v1474 = vunpack.c.l.b16 %v1126
  %v1475 = vpack.c.b16 %v1474, %v1474
  %1476 = vrot.lane.b32.xlu0 %v1475, 96
  %v1477 = vpop.permute.xlu0 %1476
  %v1479 = vsel %vm207, %v1395, 0
  %v1482 = vsel %vm1408, %v1477, 0
  %1484 = vmatpush.bf16.msra.mxu0 0
  %1485 = vmatpush.bf16.msra.mxu0 0
  %1486 = vmatpush.bf16.msra.mxu0 0
  %1487 = vmatpush.bf16.msra.mxu0 0
  %1488 = vmatpush.bf16.msra.mxu0 0
  %1489 = vmatpush.bf16.msra.mxu0 0
  %1490 = vmatpush.bf16.msra.mxu0 0
  %1491 = vmatpush.bf16.msra.mxu0 %v1482
  %1492 = vmatmul.bf16.gmra.mxu0 %v1479
  %v1493 = vpop.f32.mrf.mxu0
  %v1494 = vadd.f32 0.0, %v1493
  %v1495 = vpop.f32.mrf.mxu0
  %1496 = vdwg.mxu0
  %v1498 = vunpack.c.l.b16 %v1127
  %v1499 = vpack.c.b16 %v1498, %v1498
  %1500 = vrot.lane.b32.xlu0 %v1499, 96
  %v1501 = vpop.permute.xlu0 %1500
  %v1503 = vsel %vm207, %v1396, 0
  %v1506 = vsel %vm1408, %v1501, 0
  %1508 = vmatpush.bf16.msra.mxu0 0
  %1509 = vmatpush.bf16.msra.mxu0 0
  %1510 = vmatpush.bf16.msra.mxu0 0
  %1511 = vmatpush.bf16.msra.mxu0 0
  %1512 = vmatpush.bf16.msra.mxu0 0
  %1513 = vmatpush.bf16.msra.mxu0 0
  %1514 = vmatpush.bf16.msra.mxu0 0
  %1515 = vmatpush.bf16.msra.mxu0 %v1506
  %1516 = vmatmul.bf16.gmra.mxu0 %v1503
  %v1517 = vpop.f32.mrf.mxu0
  %v1518 = vadd.f32 0.0, %v1517
  %v1519 = vpop.f32.mrf.mxu0
  %1520 = vdwg.mxu0
  %v1522 = vunpack.c.l.b16 %v1128
  %v1523 = vpack.c.b16 %v1522, %v1522
  %1524 = vrot.lane.b32.xlu0 %v1523, 96
  %v1525 = vpop.permute.xlu0 %1524
  %v1527 = vsel %vm207, %v1397, 0
  %v1530 = vsel %vm1408, %v1525, 0
  %1532 = vmatpush.bf16.msra.mxu0 0
  %1533 = vmatpush.bf16.msra.mxu0 0
  %1534 = vmatpush.bf16.msra.mxu0 0
  %1535 = vmatpush.bf16.msra.mxu0 0
  %1536 = vmatpush.bf16.msra.mxu0 0
  %1537 = vmatpush.bf16.msra.mxu0 0
  %1538 = vmatpush.bf16.msra.mxu0 0
  %1539 = vmatpush.bf16.msra.mxu0 %v1530
  %1540 = vmatmul.bf16.gmra.mxu0 %v1527
  %v1541 = vpop.f32.mrf.mxu0
  %v1542 = vadd.f32 0.0, %v1541
  %v1543 = vpop.f32.mrf.mxu0
  %1544 = vdwg.mxu0
  %v1546 = vunpack.c.l.b16 %v1129
  %v1547 = vpack.c.b16 %v1546, %v1546
  %1548 = vrot.lane.b32.xlu0 %v1547, 96
  %v1549 = vpop.permute.xlu0 %1548
  %v1551 = vsel %vm207, %v1398, 0
  %v1554 = vsel %vm1408, %v1549, 0
  %1556 = vmatpush.bf16.msra.mxu0 0
  %1557 = vmatpush.bf16.msra.mxu0 0
  %1558 = vmatpush.bf16.msra.mxu0 0
  %1559 = vmatpush.bf16.msra.mxu0 0
  %1560 = vmatpush.bf16.msra.mxu0 0
  %1561 = vmatpush.bf16.msra.mxu0 0
  %1562 = vmatpush.bf16.msra.mxu0 0
  %1563 = vmatpush.bf16.msra.mxu0 %v1554
  %1564 = vmatmul.bf16.gmra.mxu0 %v1551
  %v1565 = vpop.f32.mrf.mxu0
  %v1566 = vadd.f32 0.0, %v1565
  %v1567 = vpop.f32.mrf.mxu0
  %1568 = vdwg.mxu0
  %v1570 = vunpack.c.l.b16 %v1130
  %v1571 = vpack.c.b16 %v1570, %v1570
  %1572 = vrot.lane.b32.xlu0 %v1571, 96
  %v1573 = vpop.permute.xlu0 %1572
  %v1575 = vsel %vm207, %v1399, 0
  %v1578 = vsel %vm1408, %v1573, 0
  %1580 = vmatpush.bf16.msra.mxu0 0
  %1581 = vmatpush.bf16.msra.mxu0 0
  %1582 = vmatpush.bf16.msra.mxu0 0
  %1583 = vmatpush.bf16.msra.mxu0 0
  %1584 = vmatpush.bf16.msra.mxu0 0
  %1585 = vmatpush.bf16.msra.mxu0 0
  %1586 = vmatpush.bf16.msra.mxu0 0
  %1587 = vmatpush.bf16.msra.mxu0 %v1578
  %1588 = vmatmul.bf16.gmra.mxu0 %v1575
  %v1589 = vpop.f32.mrf.mxu0
  %v1590 = vadd.f32 0.0, %v1589
  %v1591 = vpop.f32.mrf.mxu0
  %1592 = vdwg.mxu0
  %1594 = vrot.lane.b32.xlu0 %v1446, 8
  %v1595 = vpop.permute.xlu0 %1594
  %1598 = vrot.lane.b32.xlu0 %v1470, 16
  %v1599 = vpop.permute.xlu0 %1598
  %1602 = vrot.lane.b32.xlu0 %v1494, 24
  %v1603 = vpop.permute.xlu0 %1602
  %v1605 = vsel %vm207, %v1422, %v1595
  %v1606 = vsel %vm691, %v1605, %v1599
  %v1607 = vsel %vm693, %v1606, %v1603
  %1609 = vrot.lane.b32.xlu0 %v1542, 8
  %v1610 = vpop.permute.xlu0 %1609
  %1613 = vrot.lane.b32.xlu0 %v1566, 16
  %v1614 = vpop.permute.xlu0 %1613
  %1617 = vrot.lane.b32.xlu0 %v1590, 24
  %v1618 = vpop.permute.xlu0 %1617
  %v1620 = vsel %vm207, %v1518, %v1610
  %v1621 = vsel %vm691, %v1620, %v1614
  %v1622 = vsel %vm693, %v1621, %v1618
  %v1624 = vrot.slane %v1622, 2
  %v1626 = vsel %vm713, %v1607, %v1624
  %v1627 = vld [vmem:[%s16] sm:$0xf]
  %v1628 = vld [vmem:[%s16 + $0x4] sm:$0xf]
  %v1629 = vld [vmem:[%s16 + $0x8] sm:$0xf]
  %v1630 = vld [vmem:[%s16 + $0xc] sm:$0xf]
  %v1631 = vld [vmem:[%s17] sm:$0x1]
  %v1632 = vpack.c.bf16 %v1624, %v1626
  %v1634 = vperm.slane %v1631, 0
  %v1640 = vunpack.c.l.b16 %v1627
  %v1641 = vunpack.c.l.b16 %v1628
  %v1642 = vunpack.c.l.b16 %v1629
  %v1643 = vunpack.c.l.b16 %v1630
  %v1644 = vpack.c.b16 %v1641, %v1640
  %v1645 = vpack.c.b16 %v1643, %v1642
  %v1649 = vsel %vm139, %v1632, 0
  %1651 = vmatpush.bf16.msra.mxu0 0
  %1652 = vmatpush.bf16.msra.mxu0 0
  %1653 = vmatpush.bf16.msra.mxu0 0
  %1654 = vmatpush.bf16.msra.mxu0 0
  %1655 = vmatpush.bf16.msra.mxu0 0
  %1656 = vmatpush.bf16.msra.mxu0 0
  %1657 = vmatpush.bf16.msra.mxu0 %v1645
  %1658 = vmatpush.bf16.msra.mxu0 %v1644
  %1659 = vmatmul.bf16.gmra.mxu0 %v1649
  %v1660 = vpop.f32.mrf.mxu0
  %v1661 = vadd.f32 %v1634, %v1660
  %v1662 = vpop.f32.mrf.mxu0
  %v1663 = vadd.f32 %v1634, %v1662
  %1664 = vdwg.mxu0
  %v1667 = vrot.slane %v1661, 2
  %v1668 = vrot.slane %v1661, 4
  %v1669 = vrot.slane %v1661, 6
  %v1670 = vrot.slane %v1663, 2
  %v1675 = vadd.f32 %v965, %v1661
  %v1676 = vadd.f32 %v966, %v1667
  %v1677 = vadd.f32 %v967, %v1668
  %v1678 = vadd.f32 %v968, %v1669
  %v1679 = vadd.f32 %v969, %v1663
  %v1680 = vadd.f32 %v970, %v1670
  %v1681 = vld [vmem:[%s18] sm:$0x1]
  %v1682 = vld [vmem:[%s19] sm:$0x1]
  %1689 = vst [vmem:[#allocation1] ss:$4 sm:$0xff] %v1675
  %s1690 = scalar_lea.vmem [#allocation1], 1
  %1691 = vst [vmem:[%s1690] ss:$4 sm:$0xff] %v1676
  %s1692 = scalar_lea.vmem [#allocation1], 2
  %1693 = vst [vmem:[%s1692] ss:$4 sm:$0xff] %v1677
  %s1694 = scalar_lea.vmem [#allocation1], 3
  %1695 = vst [vmem:[%s1694] ss:$4 sm:$0xff] %v1678
  %s1696 = scalar_lea.vmem [#allocation1], 32
  %1697 = vst [vmem:[%s1696] ss:$4 sm:$0xff] %v1679
  %s1698 = scalar_lea.vmem [#allocation1], 33
  %1699 = vst [vmem:[%s1698] ss:$4 sm:$0xff] %v1680
  %v1700 = vld.sshfl [vmem:[#allocation1] sm:$0xff pattern:$0x73625140]
  %v1701 = vld.sshfl [vmem:[#allocation1 + $0x20] sm:$0xff pattern:$0x73625140]
  %v1704 = vsel %vm139, %v1700, 0.0
  %1705 = vadd.xlane.f32.xlu0 %v1704
  %v1706 = vpop.xlane.xlu0 %1705
  %v1707 = vsel %vm795, %v1701, 0.0
  %1708 = vadd.xlane.f32.xlu0 %v1707
  %v1709 = vpop.xlane.xlu0 %1708
  %v1710 = vmul.f32 %v1706, %v805
  %v1711 = vmul.f32 %v1709, %v805
  %v1715 = vunpack.c.l.s4 269488144
  %v1716 = vunpack.c.0.s8 %v1715
  %v1717 = vperm.slane %v1710, %v1716
  %v1719 = vunpack.c.l.s4 842150450
  %v1720 = vunpack.c.0.s8 %v1719
  %v1721 = vperm.slane %v1710, %v1720
  %v1723 = vunpack.c.l.s4 1414812756
  %v1724 = vunpack.c.0.s8 %v1723
  %v1725 = vperm.slane %v1710, %v1724
  %v1727 = vunpack.c.l.s4 1987475062
  %v1728 = vunpack.c.0.s8 %v1727
  %v1729 = vperm.slane %v1710, %v1728
  %v1731 = vunpack.c.l.s4 269488144
  %v1732 = vunpack.c.0.s8 %v1731
  %v1733 = vperm.slane %v1711, %v1732
  %v1735 = vunpack.c.l.s4 842150450
  %v1736 = vunpack.c.0.s8 %v1735
  %v1737 = vperm.slane %v1711, %v1736
  %v1744 = vsub.f32 %v1675, %v1717
  %v1745 = vsub.f32 %v1676, %v1721
  %v1746 = vsub.f32 %v1677, %v1725
  %v1747 = vsub.f32 %v1678, %v1729
  %v1748 = vsub.f32 %v1679, %v1733
  %v1749 = vsub.f32 %v1680, %v1737
  %v1750 = vmul.f32 %v1744, %v1744
  %v1751 = vmul.f32 %v1745, %v1745
  %v1752 = vmul.f32 %v1746, %v1746
  %v1753 = vmul.f32 %v1747, %v1747
  %v1754 = vmul.f32 %v1748, %v1748
  %v1755 = vmul.f32 %v1749, %v1749
  %1762 = vst [vmem:[#allocation1] ss:$4 sm:$0xff] %v1750
  %s1763 = scalar_lea.vmem [#allocation1], 1
  %1764 = vst [vmem:[%s1763] ss:$4 sm:$0xff] %v1751
  %s1765 = scalar_lea.vmem [#allocation1], 2
  %1766 = vst [vmem:[%s1765] ss:$4 sm:$0xff] %v1752
  %s1767 = scalar_lea.vmem [#allocation1], 3
  %1768 = vst [vmem:[%s1767] ss:$4 sm:$0xff] %v1753
  %s1769 = scalar_lea.vmem [#allocation1], 32
  %1770 = vst [vmem:[%s1769] ss:$4 sm:$0xff] %v1754
  %s1771 = scalar_lea.vmem [#allocation1], 33
  %1772 = vst [vmem:[%s1771] ss:$4 sm:$0xff] %v1755
  %v1773 = vld.sshfl [vmem:[#allocation1] sm:$0xff pattern:$0x73625140]
  %v1774 = vld.sshfl [vmem:[#allocation1 + $0x20] sm:$0xff pattern:$0x73625140]
  %v1777 = vsel %vm139, %v1773, 0.0
  %1778 = vadd.xlane.f32.xlu0 %v1777
  %v1779 = vpop.xlane.xlu0 %1778
  %v1780 = vsel %vm795, %v1774, 0.0
  %1781 = vadd.xlane.f32.xlu0 %v1780
  %v1782 = vpop.xlane.xlu0 %1781
  %v1783 = vmul.f32 %v1779, %v805
  %v1784 = vmul.f32 %v1782, %v805
  %v1785 = vadd.f32 %v1783, 1e-05
  %v1786 = vadd.f32 %v1784, 1e-05
  %v1787 = vrsqrt.pop %v1785
  %v1788 = vmul.f32 %v1787, %v1785
  %v1789 = vmul.f32 %v1788, %v1787
  %v1790 = vmul.f32 0.5, %v1789
  %v1791 = vsub.f32 1.5, %v1790
  %v1792 = vmul.f32 %v1787, %v1791
  %vm1793 = vweird.f32 %v1785
  %vm1794 = vweird.f32 %v1787
  %vm1795 = vmor %vm1793, %vm1794
  %v1796 = vsel %vm1795, %v1787, %v1792
  %v1797 = vrsqrt.pop %v1786
  %v1798 = vmul.f32 %v1797, %v1786
  %v1799 = vmul.f32 %v1798, %v1797
  %v1800 = vmul.f32 0.5, %v1799
  %v1801 = vsub.f32 1.5, %v1800
  %v1802 = vmul.f32 %v1797, %v1801
  %vm1803 = vweird.f32 %v1786
  %vm1804 = vweird.f32 %v1797
  %vm1805 = vmor %vm1803, %vm1804
  %v1806 = vsel %vm1805, %v1797, %v1802
  %v1810 = vunpack.c.l.s4 269488144
  %v1811 = vunpack.c.0.s8 %v1810
  %v1812 = vperm.slane %v1796, %v1811
  %v1814 = vunpack.c.l.s4 842150450
  %v1815 = vunpack.c.0.s8 %v1814
  %v1816 = vperm.slane %v1796, %v1815
  %v1818 = vunpack.c.l.s4 1414812756
  %v1819 = vunpack.c.0.s8 %v1818
  %v1820 = vperm.slane %v1796, %v1819
  %v1822 = vunpack.c.l.s4 1987475062
  %v1823 = vunpack.c.0.s8 %v1822
  %v1824 = vperm.slane %v1796, %v1823
  %v1826 = vunpack.c.l.s4 269488144
  %v1827 = vunpack.c.0.s8 %v1826
  %v1828 = vperm.slane %v1806, %v1827
  %v1830 = vunpack.c.l.s4 842150450
  %v1831 = vunpack.c.0.s8 %v1830
  %v1832 = vperm.slane %v1806, %v1831
  %v1839 = vmul.f32 %v1744, %v1812
  %v1840 = vmul.f32 %v1745, %v1816
  %v1841 = vmul.f32 %v1746, %v1820
  %v1842 = vmul.f32 %v1747, %v1824
  %v1843 = vmul.f32 %v1748, %v1828
  %v1844 = vmul.f32 %v1749, %v1832
  %v1846 = vperm.slane %v1681, 0
  %v1848 = vrot.slane %v1846, 2
  %v1849 = vrot.slane %v1846, 4
  %v1850 = vrot.slane %v1846, 6
  %v1854 = vmul.f32 %v1839, %v1846
  %v1855 = vmul.f32 %v1840, %v1848
  %v1856 = vmul.f32 %v1841, %v1849
  %v1857 = vmul.f32 %v1842, %v1850
  %v1858 = vmul.f32 %v1843, %v1846
  %v1859 = vmul.f32 %v1844, %v1848
  %v1861 = vperm.slane %v1682, 0
  %v1863 = vrot.slane %v1861, 2
  %v1864 = vrot.slane %v1861, 4
  %v1865 = vrot.slane %v1861, 6
  %v1869 = vadd.f32 %v1854, %v1861
  %v1870 = vadd.f32 %v1855, %v1863
  %v1871 = vadd.f32 %v1856, %v1864
  %v1872 = vadd.f32 %v1857, %v1865
  %v1873 = vadd.f32 %v1858, %v1861
  %v1874 = vadd.f32 %v1859, %v1863
  %v1875 = vld [vmem:[%s20] sm:$0xf]
  %v1876 = vld [vmem:[%s20 + $0x4] sm:$0xf]
  %v1877 = vld [vmem:[%s20 + $0x8] sm:$0xf]
  %v1878 = vld [vmem:[%s20 + $0xc] sm:$0xf]
  %v1879 = vld [vmem:[%s21] sm:$0x1]
  %1886 = vst [vmem:[#allocation1] ss:$4 sm:$0xff] %v1869
  %s1887 = scalar_lea.vmem [#allocation1], 1
  %1888 = vst [vmem:[%s1887] ss:$4 sm:$0xff] %v1870
  %s1889 = scalar_lea.vmem [#allocation1], 2
  %1890 = vst [vmem:[%s1889] ss:$4 sm:$0xff] %v1871
  %s1891 = scalar_lea.vmem [#allocation1], 3
  %1892 = vst [vmem:[%s1891] ss:$4 sm:$0xff] %v1872
  %s1893 = scalar_lea.vmem [#allocation1], 32
  %1894 = vst [vmem:[%s1893] ss:$4 sm:$0xff] %v1873
  %s1895 = scalar_lea.vmem [#allocation1], 33
  %1896 = vst [vmem:[%s1895] ss:$4 sm:$0xff] %v1874
  %v1897 = vld.sshfl [vmem:[#allocation1] sm:$0xff pattern:$0x73625140]
  %v1898 = vld.sshfl [vmem:[#allocation1 + $0x20] sm:$0xff pattern:$0x73625140]
  %v1901 = vpack.c.bf16 %v1898, %v1897
  %v1903 = vperm.slane %v1879, 0
  %v1909 = vunpack.c.l.b16 %v1875
  %v1910 = vunpack.c.l.b16 %v1876
  %v1911 = vunpack.c.l.b16 %v1877
  %v1912 = vunpack.c.l.b16 %v1878
  %v1913 = vpack.c.b16 %v1910, %v1909
  %v1914 = vpack.c.b16 %v1912, %v1911
  %v1918 = vsel %vm139, %v1901, 0
  %1920 = vmatpush.bf16.msra.mxu0 0
  %1921 = vmatpush.bf16.msra.mxu0 0
  %1922 = vmatpush.bf16.msra.mxu0 0
  %1923 = vmatpush.bf16.msra.mxu0 0
  %1924 = vmatpush.bf16.msra.mxu0 0
  %1925 = vmatpush.bf16.msra.mxu0 0
  %1926 = vmatpush.bf16.msra.mxu0 %v1914
  %1927 = vmatpush.bf16.msra.mxu0 %v1913
  %1928 = vmatmul.bf16.gmra.mxu0 %v1918
  %v1929 = vpop.f32.mrf.mxu0
  %v1930 = vadd.f32 %v1903, %v1929
  %v1931 = vpop.f32.mrf.mxu0
  %v1932 = vadd.f32 %v1903, %v1931
  %1933 = vdwg.mxu0
  %v1934 = vmax.f32 %v1930, 0.0
  %v1935 = vmax.f32 %v1932, 0.0
  %v1936 = vld [vmem:[%s22] sm:$0xf]
  %v1937 = vld [vmem:[%s22 + $0x4] sm:$0xf]
  %v1938 = vld [vmem:[%s22 + $0x8] sm:$0xf]
  %v1939 = vld [vmem:[%s22 + $0xc] sm:$0xf]
  %v1940 = vld [vmem:[%s22 + $0x10] sm:$0xf]
  %v1941 = vld [vmem:[%s22 + $0x14] sm:$0xf]
  %v1942 = vld [vmem:[%s22 + $0x18] sm:$0xf]
  %v1943 = vld [vmem:[%s22 + $0x1c] sm:$0xf]
  %v1944 = vld [vmem:[%s23] sm:$0x1]
  %v1945 = vpack.c.bf16 %v1935, %v1934
  %v1947 = vperm.slane %v1944, 0
  %v1957 = vunpack.c.l.b16 %v1936
  %v1958 = vunpack.c.l.b16 %v1937
  %v1959 = vunpack.c.l.b16 %v1938
  %v1960 = vunpack.c.l.b16 %v1939
  %v1961 = vunpack.c.l.b16 %v1940
  %v1962 = vunpack.c.l.b16 %v1941
  %v1963 = vunpack.c.l.b16 %v1942
  %v1964 = vunpack.c.l.b16 %v1943
  %v1965 = vpack.c.b16 %v1958, %v1957
  %v1966 = vpack.c.b16 %v1960, %v1959
  %v1967 = vpack.c.b16 %v1962, %v1961
  %v1968 = vpack.c.b16 %v1964, %v1963
  %vm1973 = vcmask 523264
  %v1975 = vsel %vm1973, %v1945, 0
  %1977 = vmatpush.bf16.msra.mxu0 0
  %1978 = vmatpush.bf16.msra.mxu0 0
  %1979 = vmatpush.bf16.msra.mxu0 0
  %1980 = vmatpush.bf16.msra.mxu0 0
  %1981 = vmatpush.bf16.msra.mxu0 %v1968
  %1982 = vmatpush.bf16.msra.mxu0 %v1967
  %1983 = vmatpush.bf16.msra.mxu0 %v1966
  %1984 = vmatpush.bf16.msra.mxu0 %v1965
  %1985 = vmatmul.bf16.gmra.mxu0 %v1975
  %v1986 = vpop.f32.mrf.mxu0
  %v1987 = vadd.f32 %v1947, %v1986
  %v1988 = vpop.f32.mrf.mxu0
  %v1989 = vadd.f32 %v1947, %v1988
  %1990 = vdwg.mxu0
  %v1993 = vrot.slane %v1987, 2
  %v1994 = vrot.slane %v1987, 4
  %v1995 = vrot.slane %v1987, 6
  %v1996 = vrot.slane %v1989, 2
  %v2001 = vadd.f32 %v1869, %v1987
  %v2002 = vadd.f32 %v1870, %v1993
  %v2003 = vadd.f32 %v1871, %v1994
  %v2004 = vadd.f32 %v1872, %v1995
  %v2005 = vadd.f32 %v1873, %v1989
  %v2006 = vadd.f32 %v1874, %v1996
  %v2007 = vld [vmem:[%s24] sm:$0x1]
  %v2008 = vld [vmem:[%s25] sm:$0x1]
  %2015 = vst [vmem:[#allocation1] ss:$4 sm:$0xff] %v2001
  %s2016 = scalar_lea.vmem [#allocation1], 1
  %2017 = vst [vmem:[%s2016] ss:$4 sm:$0xff] %v2002
  %s2018 = scalar_lea.vmem [#allocation1], 2
  %2019 = vst [vmem:[%s2018] ss:$4 sm:$0xff] %v2003
  %s2020 = scalar_lea.vmem [#allocation1], 3
  %2021 = vst [vmem:[%s2020] ss:$4 sm:$0xff] %v2004
  %s2022 = scalar_lea.vmem [#allocation1], 32
  %2023 = vst [vmem:[%s2022] ss:$4 sm:$0xff] %v2005
  %s2024 = scalar_lea.vmem [#allocation1], 33
  %2025 = vst [vmem:[%s2024] ss:$4 sm:$0xff] %v2006
  %v2026 = vld.sshfl [vmem:[#allocation1] sm:$0xff pattern:$0x73625140]
  %v2027 = vld.sshfl [vmem:[#allocation1 + $0x20] sm:$0xff pattern:$0x73625140]
  %v2030 = vsel %vm139, %v2026, 0.0
  %2031 = vadd.xlane.f32.xlu0 %v2030
  %v2032 = vpop.xlane.xlu0 %2031
  %v2033 = vsel %vm795, %v2027, 0.0
  %2034 = vadd.xlane.f32.xlu0 %v2033
  %v2035 = vpop.xlane.xlu0 %2034
  %v2036 = vmul.f32 %v2032, %v805
  %v2037 = vmul.f32 %v2035, %v805
  %v2041 = vunpack.c.l.s4 269488144
  %v2042 = vunpack.c.0.s8 %v2041
  %v2043 = vperm.slane %v2036, %v2042
  %v2045 = vunpack.c.l.s4 842150450
  %v2046 = vunpack.c.0.s8 %v2045
  %v2047 = vperm.slane %v2036, %v2046
  %v2049 = vunpack.c.l.s4 1414812756
  %v2050 = vunpack.c.0.s8 %v2049
  %v2051 = vperm.slane %v2036, %v2050
  %v2053 = vunpack.c.l.s4 1987475062
  %v2054 = vunpack.c.0.s8 %v2053
  %v2055 = vperm.slane %v2036, %v2054
  %v2057 = vunpack.c.l.s4 269488144
  %v2058 = vunpack.c.0.s8 %v2057
  %v2059 = vperm.slane %v2037, %v2058
  %v2061 = vunpack.c.l.s4 842150450
  %v2062 = vunpack.c.0.s8 %v2061
  %v2063 = vperm.slane %v2037, %v2062
  %v2070 = vsub.f32 %v2001, %v2043
  %v2071 = vsub.f32 %v2002, %v2047
  %v2072 = vsub.f32 %v2003, %v2051
  %v2073 = vsub.f32 %v2004, %v2055
  %v2074 = vsub.f32 %v2005, %v2059
  %v2075 = vsub.f32 %v2006, %v2063
  %v2076 = vmul.f32 %v2070, %v2070
  %v2077 = vmul.f32 %v2071, %v2071
  %v2078 = vmul.f32 %v2072, %v2072
  %v2079 = vmul.f32 %v2073, %v2073
  %v2080 = vmul.f32 %v2074, %v2074
  %v2081 = vmul.f32 %v2075, %v2075
  %2088 = vst [vmem:[#allocation1] ss:$4 sm:$0xff] %v2076
  %s2089 = scalar_lea.vmem [#allocation1], 1
  %2090 = vst [vmem:[%s2089] ss:$4 sm:$0xff] %v2077
  %s2091 = scalar_lea.vmem [#allocation1], 2
  %2092 = vst [vmem:[%s2091] ss:$4 sm:$0xff] %v2078
  %s2093 = scalar_lea.vmem [#allocation1], 3
  %2094 = vst [vmem:[%s2093] ss:$4 sm:$0xff] %v2079
  %s2095 = scalar_lea.vmem [#allocation1], 32
  %2096 = vst [vmem:[%s2095] ss:$4 sm:$0xff] %v2080
  %s2097 = scalar_lea.vmem [#allocation1], 33
  %2098 = vst [vmem:[%s2097] ss:$4 sm:$0xff] %v2081
  %v2099 = vld.sshfl [vmem:[#allocation1] sm:$0xff pattern:$0x73625140]
  %v2100 = vld.sshfl [vmem:[#allocation1 + $0x20] sm:$0xff pattern:$0x73625140]
  %v2103 = vsel %vm139, %v2099, 0.0
  %2104 = vadd.xlane.f32.xlu0 %v2103
  %v2105 = vpop.xlane.xlu0 %2104
  %v2106 = vsel %vm795, %v2100, 0.0
  %2107 = vadd.xlane.f32.xlu0 %v2106
  %v2108 = vpop.xlane.xlu0 %2107
  %v2109 = vmul.f32 %v2105, %v805
  %v2110 = vmul.f32 %v2108, %v805
  %v2111 = vadd.f32 %v2109, 1e-05
  %v2112 = vadd.f32 %v2110, 1e-05
  %v2113 = vrsqrt.pop %v2111
  %v2114 = vmul.f32 %v2113, %v2111
  %v2115 = vmul.f32 %v2114, %v2113
  %v2116 = vmul.f32 0.5, %v2115
  %v2117 = vsub.f32 1.5, %v2116
  %v2118 = vmul.f32 %v2113, %v2117
  %vm2119 = vweird.f32 %v2111
  %vm2120 = vweird.f32 %v2113
  %vm2121 = vmor %vm2119, %vm2120
  %v2122 = vsel %vm2121, %v2113, %v2118
  %v2123 = vrsqrt.pop %v2112
  %v2124 = vmul.f32 %v2123, %v2112
  %v2125 = vmul.f32 %v2124, %v2123
  %v2126 = vmul.f32 0.5, %v2125
  %v2127 = vsub.f32 1.5, %v2126
  %v2128 = vmul.f32 %v2123, %v2127
  %vm2129 = vweird.f32 %v2112
  %vm2130 = vweird.f32 %v2123
  %vm2131 = vmor %vm2129, %vm2130
  %v2132 = vsel %vm2131, %v2123, %v2128
  %v2136 = vunpack.c.l.s4 269488144
  %v2137 = vunpack.c.0.s8 %v2136
  %v2138 = vperm.slane %v2122, %v2137
  %v2140 = vunpack.c.l.s4 842150450
  %v2141 = vunpack.c.0.s8 %v2140
  %v2142 = vperm.slane %v2122, %v2141
  %v2144 = vunpack.c.l.s4 1414812756
  %v2145 = vunpack.c.0.s8 %v2144
  %v2146 = vperm.slane %v2122, %v2145
  %v2148 = vunpack.c.l.s4 1987475062
  %v2149 = vunpack.c.0.s8 %v2148
  %v2150 = vperm.slane %v2122, %v2149
  %v2152 = vunpack.c.l.s4 269488144
  %v2153 = vunpack.c.0.s8 %v2152
  %v2154 = vperm.slane %v2132, %v2153
  %v2156 = vunpack.c.l.s4 842150450
  %v2157 = vunpack.c.0.s8 %v2156
  %v2158 = vperm.slane %v2132, %v2157
  %v2165 = vmul.f32 %v2070, %v2138
  %v2166 = vmul.f32 %v2071, %v2142
  %v2167 = vmul.f32 %v2072, %v2146
  %v2168 = vmul.f32 %v2073, %v2150
  %v2169 = vmul.f32 %v2074, %v2154
  %v2170 = vmul.f32 %v2075, %v2158
  %v2172 = vperm.slane %v2007, 0
  %v2174 = vrot.slane %v2172, 2
  %v2175 = vrot.slane %v2172, 4
  %v2176 = vrot.slane %v2172, 6
  %v2180 = vmul.f32 %v2165, %v2172
  %v2181 = vmul.f32 %v2166, %v2174
  %v2182 = vmul.f32 %v2167, %v2175
  %v2183 = vmul.f32 %v2168, %v2176
  %v2184 = vmul.f32 %v2169, %v2172
  %v2185 = vmul.f32 %v2170, %v2174
  %v2187 = vperm.slane %v2008, 0
  %v2189 = vrot.slane %v2187, 2
  %v2190 = vrot.slane %v2187, 4
  %v2191 = vrot.slane %v2187, 6
  %v2195 = vadd.f32 %v2180, %v2187
  %v2196 = vadd.f32 %v2181, %v2189
  %v2197 = vadd.f32 %v2182, %v2190
  %v2198 = vadd.f32 %v2183, %v2191
  %v2199 = vadd.f32 %v2184, %v2187
  %v2200 = vadd.f32 %v2185, %v2189
  %2207 = vst [vmem:[#allocation1] ss:$4 sm:$0xff] %v2195
  %s2208 = scalar_lea.vmem [#allocation1], 1
  %2209 = vst [vmem:[%s2208] ss:$4 sm:$0xff] %v2196
  %s2210 = scalar_lea.vmem [#allocation1], 2
  %2211 = vst [vmem:[%s2210] ss:$4 sm:$0xff] %v2197
  %v2212 = vld.sshfl [vmem:[#allocation1] sm:$0xff pattern:$0x73625140]
  %s2213 = scalar_lea.vmem [#allocation1], 32
  %2214 = vst [vmem:[%s2213] ss:$4 sm:$0xff] %v2198
  %s2215 = scalar_lea.vmem [#allocation1], 33
  %2216 = vst [vmem:[%s2215] ss:$4 sm:$0xff] %v2199
  %s2217 = scalar_lea.vmem [#allocation1], 34
  %2218 = vst [vmem:[%s2217] ss:$4 sm:$0xff] %v2200
  %v2219 = vld.sshfl [vmem:[#allocation1 + $0x20] sm:$0xff pattern:$0x73625140]
  %vm2222 = vcmask 259072
  %2223 = vst.msk [vmem:[%s26] sm:$0x3f] %vm2222, %v2212
  %2224 = vst.msk [vmem:[%s26 + $0x8] sm:$0x3f] %vm2222, %v2219
  // Predicated region
  $region106: #{seq2seq_forward.7} parent=0 // pred_check
    _
  $region107: #{seq2seq_forward.7} parent=0 // pred_check_branch
    %2226 = sbr.rel (0) target = $region109
  $region108: #{seq2seq_forward.7} parent=0 // pred_region
    _
  $region109: #{seq2seq_forward.7} parent=0 // pred_fallthru
    _
  // Predicated region
  $region110: #{seq2seq_forward.7} parent=0 // pred_check
    _
  $region111: #{seq2seq_forward.7} parent=0 // pred_check_branch
    %2228 = sbr.rel (0) target = $region113
  $region112: #{seq2seq_forward.7} parent=0 // pred_region
    _
  $region113: #{seq2seq_forward.7} parent=0 // pred_fallthru
    _

</llo_original>
